<compile_context>
chip_gen: v7x
topology: tpu7x:2x2x1
jax: 0.10.0
libtpu: 0.0.40
codegen_flags: <defaults>
</compile_context>

<pallas_src>
import functools

import jax
import jax.numpy as jnp
from jax import lax
from jax.experimental import pallas as pl
from jax.experimental.pallas import tpu as pltpu


def ggnn_kernel(x_ref, adj_ref, wcomb_ref, whh_ref, bih_ref, bhh_ref,
                wg_ref, bg_ref, mask_ref, out_ref, *, d_real):
    """num_layers of GatedGraphConv + GlobalAttention pooling for G graphs.

    x_ref:     [G, Np, Dp]    node embeddings (f32, zero-padded)
    adj_ref:   [G, Np, Np]    dense adjacency, adj[g, dst, src] = #edges (f32)
    wcomb_ref: [L, Dp, Gp]    W[l] @ concat(Wih_r, Wih_z, Wih_n), packed (bf16)
    whh_ref:   [Dp, Gp]       concat(Whh_r, Whh_z, Whh_n), packed       (bf16)
    bih_ref:   [1, Gp]        fused GRU input biases                     (f32)
    bhh_ref:   [1, Gp]        fused GRU hidden biases                    (f32)
    wg_ref:    [1, Dp]        gate_nn linear weight (row layout)         (f32)
    bg_ref:    [1, 1]         gate_nn linear bias                        (f32)
    mask_ref:  [G, Np, 1]     1.0 for real nodes of real graphs          (f32)
    out_ref:   [G, Dp]        pooled per-graph embeddings                (f32)

    d_real: true embedding dim D (gates are packed at lanes [0, 3*D)).
    """
    G, Np, Dp = x_ref.shape
    L = wcomb_ref.shape[0]
    D = d_real
    M = G * Np

    # Hoisted out of the layer loop (loaded once).
    adj = adj_ref[...]          # f32, exact edge counts
    whh = whh_ref[...]          # bf16
    bih = bih_ref[...]
    bhh = bhh_ref[...]
    if D < Dp:
        zpad = jnp.zeros((M, Dp - D), jnp.float32)

    def layer(l, x):
        # Sum-aggregate raw node states over incoming edges per graph; the
        # per-layer message weight W[l] is already folded into wcomb.
        ax = jnp.einsum("gij,gjd->gid", adj, x.reshape(G, Np, Dp),
                        preferred_element_type=jnp.float32).reshape(M, Dp)
        xb = x.astype(jnp.bfloat16)                      # single bf16 cast
        gi = jnp.dot(ax.astype(jnp.bfloat16), wcomb_ref[l],
                     preferred_element_type=jnp.float32) + bih
        gh = jnp.dot(xb, whh, preferred_element_type=jnp.float32) + bhh
        # GRUCell(a, x), torch gate order (r, z, n); gates packed at 3*D lanes.
        rz = jax.nn.sigmoid(gi[:, :2 * D] + gh[:, :2 * D])
        r = rz[:, :D]
        z = rz[:, D:2 * D]
        n = jnp.tanh(gi[:, 2 * D:3 * D] + r * gh[:, 2 * D:3 * D])
        h = (1.0 - z) * n + z * x[:, :D]
        if D < Dp:
            h = jnp.concatenate([h, zpad], axis=-1)      # padded lanes stay 0
        return h

    x = lax.fori_loop(0, L, layer, x_ref[...].reshape(M, Dp), unroll=True)

    # GlobalAttention with gate_nn = Sequential(Linear(D,1), Sigmoid):
    #   gate  = sigmoid(x @ wg + bg)
    #   alpha = softmax(gate) over the real nodes of each graph
    #   hg[g] = sum_i alpha[g,i] * x[g,i]
    # Matvec as VPU multiply + lane reduce (no 1-wide MXU pass).
    gate = jax.nn.sigmoid(
        jnp.sum(x * wg_ref[...], axis=-1, keepdims=True) + bg_ref[...])  # [M,1]
    # gate is in (0, 1) so exp() needs no max-subtraction; padded nodes /
    # padded graphs are excluded from the softmax by the mask.
    e = jnp.exp(gate).reshape(G, Np, 1) * mask_ref[...]                  # [G,Np,1]
    denom = jnp.maximum(jnp.sum(e, axis=1, keepdims=True), 1e-6)         # [G,1,1]
    alpha = e * pl.reciprocal(denom, approx=True)                        # [G,Np,1]
    out_ref[...] = jnp.sum(alpha * x.reshape(G, Np, Dp), axis=1)         # [G,Dp]


def _round_up(v, m):
    return (v + m - 1) // m * m


def ggnn_forward(x_idx, edge_index, edge_attr, params, num_nodes):
    """Batched GGNN forward: embedding lookup, weight fusion/packing, dense
    per-graph adjacency -> one pallas_call with a 'parallel' grid over graph
    blocks.  Each graph is processed exactly as the PyTorch module would
    process it on its own (batch vector of zeros -> single pooled vector).

    x_idx:      [B, N, 1] int node tokens
    edge_index: [B, 2, E] int (src, dst) edges per graph
    edge_attr:  [B, E, 1] int edge tokens or None
    num_nodes:  real node count per graph (int, same for all graphs here)
    returns     [B, D] pooled graph embeddings
    """
    B, N, _ = x_idx.shape
    E = edge_index.shape[-1]
    D = params["embed"].shape[1]
    L = params["ggnn_w"].shape[0]

    Dp = _round_up(D, 128)              # lane-dense feature dim
    Gp = _round_up(3 * D, 128)          # packed 3-gate lane group
    Np = _round_up(max(num_nodes, N), 8)  # sublane-aligned node dim

    # Graphs per block: aim for ~128 rows (G*Np) feeding the MXU M dimension.
    if B <= 8:
        G = B                           # single block == full array dims
    else:
        G = 8                           # multiple-of-8 sublane rows per block
    B_pad = _round_up(B, G)
    num_blocks = B_pad // G
    M = G * Np

    # nn.Embedding(x).squeeze(1), zero-padded to [B_pad, Np, Dp].
    x_emb = params["embed"][x_idx[..., 0]].astype(jnp.float32)        # [B,N,D]
    x_p = jnp.zeros((B_pad, Np, Dp), jnp.float32).at[:B, :N, :D].set(x_emb)

    # edge_embed(edge_attr).squeeze(1) — computed for parity with the reference
    # forward, but (as in the reference) never passed to the GGNN layer.
    if edge_attr is not None:
        _edge_weight = params["edge_embed"][edge_attr[..., 0]]         # unused

    # Dense per-graph adjacency: adj[b, dst, src] += 1 (source_to_target,
    # 'add').  Kept f32 so integer edge multiplicities stay exact.
    # TODO(synk): for large/sparse graphs, tile adj over a (dst, src) grid with
    # BlockSpecs (src axis last, "arbitrary") or a scalar-prefetched
    # segment-sum, and set vmem_limit_bytes, instead of one VMEM-resident
    # [Np, Np] block per graph.
    src, dst = edge_index[:, 0, :], edge_index[:, 1, :]                # [B,E]
    b_ix = jnp.broadcast_to(jnp.arange(B)[:, None], (B, E))
    adj = jnp.zeros((B_pad, Np, Np), jnp.float32).at[b_ix, dst, src].add(1.0)

    node_ok = (jnp.arange(Np) < num_nodes)
    graph_ok = (jnp.arange(B_pad) < B)
    mask = (node_ok[None, :, None] & graph_ok[:, None, None]).astype(jnp.float32)

    # Pack the three GRU gates contiguously at 3*D lanes (one 128-lane group)
    # and fold the per-layer message weight into the input path:
    #   (adj @ x @ W[l]) @ Wih == (adj @ x) @ (W[l] @ Wih).
    wih_cat = jnp.concatenate([params["gru_wih"][g] for g in range(3)], axis=1)
    whh_cat = jnp.concatenate([params["gru_whh"][g] for g in range(3)], axis=1)
    bih_cat = jnp.concatenate([params["gru_bih"][g] for g in range(3)], axis=1)
    bhh_cat = jnp.concatenate([params["gru_bhh"][g] for g in range(3)], axis=1)
    wcomb_small = jnp.einsum("lij,jk->lik", params["ggnn_w"], wih_cat)  # [L,D,3D]

    wcomb = (jnp.zeros((L, Dp, Gp), jnp.float32)
             .at[:, :D, :3 * D].set(wcomb_small).astype(jnp.bfloat16))
    whh = (jnp.zeros((Dp, Gp), jnp.float32)
           .at[:D, :3 * D].set(whh_cat).astype(jnp.bfloat16))
    bih = jnp.zeros((1, Gp), jnp.float32).at[:, :3 * D].set(bih_cat)
    bhh = jnp.zeros((1, Gp), jnp.float32).at[:, :3 * D].set(bhh_cat)
    wg = jnp.zeros((1, Dp), jnp.float32).at[0, :D].set(params["gate_w"][:, 0])
    bg = params["gate_b"].astype(jnp.float32)                          # [1,1]

    flops = int(num_blocks * (L * (2 * G * Np * Np * Dp + 4 * M * Dp * Gp)
                              + 4 * M * Dp))
    transcendentals = int(num_blocks * (L * 3 * D * M + 2 * M))
    bytes_accessed = int(x_p.size * 4 + adj.size * 4 + wcomb.size * 2 +
                         whh.size * 2 +
                         (bih.size + bhh.size + wg.size + bg.size + mask.size) * 4 +
                         B_pad * Dp * 4)

    kernel = functools.partial(ggnn_kernel, d_real=D)

    in_specs = [
        pl.BlockSpec((G, Np, Dp), lambda b: (b, 0, 0)),   # x      (per block)
        pl.BlockSpec((G, Np, Np), lambda b: (b, 0, 0)),   # adj    (per block)
        pl.BlockSpec((L, Dp, Gp), lambda b: (0, 0, 0)),   # wcomb  (shared)
        pl.BlockSpec((Dp, Gp),    lambda b: (0, 0)),      # whh    (shared)
        pl.BlockSpec((1, Gp),     lambda b: (0, 0)),      # bih
        pl.BlockSpec((1, Gp),     lambda b: (0, 0)),      # bhh
        pl.BlockSpec((1, Dp),     lambda b: (0, 0)),      # wg
        pl.BlockSpec((1, 1),      lambda b: (0, 0)),      # bg
        pl.BlockSpec((G, Np, 1),  lambda b: (b, 0, 0)),   # mask   (per block)
    ]
    out_spec = pl.BlockSpec((G, Dp), lambda b: (b, 0))

    # TODO(synk): if L*Dp*Gp weight bytes grow to multiple MiB, add an
    # "arbitrary" layer grid axis with a (1, Dp, Gp) wcomb BlockSpec and a VMEM
    # scratch carry for x so layer weights stream/double-buffer.
    out = pl.pallas_call(
        kernel,
        out_shape=jax.ShapeDtypeStruct((B_pad, Dp), jnp.float32),
        grid=(num_blocks,),
        in_specs=in_specs,
        out_specs=out_spec,
        compiler_params=pltpu.CompilerParams(
            dimension_semantics=("parallel",)),
        cost_estimate=pl.CostEstimate(
            flops=flops, transcendentals=transcendentals,
            bytes_accessed=bytes_accessed),
    )(x_p, adj, wcomb, whh, bih, bhh, wg, bg, mask)
    return out[:B, :D]


def init_params(key, vocablen, embedding_dim, num_layers):
    D = embedding_dim
    ks = jax.random.split(key, 9)
    scale = 0.1
    return {
        "embed":      scale * jax.random.normal(ks[0], (vocablen, D), jnp.float32),
        "edge_embed": scale * jax.random.normal(ks[1], (20, D), jnp.float32),
        "ggnn_w":     scale * jax.random.normal(ks[2], (num_layers, D, D), jnp.float32),
        "gru_wih":    scale * jax.random.normal(ks[3], (3, D, D), jnp.float32),
        "gru_whh":    scale * jax.random.normal(ks[4], (3, D, D), jnp.float32),
        "gru_bih":    scale * jax.random.normal(ks[5], (3, 1, D), jnp.float32),
        "gru_bhh":    scale * jax.random.normal(ks[6], (3, 1, D), jnp.float32),
        "gate_w":     scale * jax.random.normal(ks[7], (D, 1), jnp.float32),
        "gate_b":     scale * jax.random.normal(ks[8], (1, 1), jnp.float32),
    }


if __name__ == "__main__":
    vocablen = 100
    embedding_dim = 32
    num_layers = 4
    num_graphs = 16          # batched graphs -> grid=(2,) of 8-graph blocks
    num_nodes = 16
    num_edges = 24

    key = jax.random.PRNGKey(0)
    kp, kx, ke, ka = jax.random.split(key, 4)

    params = init_params(kp, vocablen, embedding_dim, num_layers)

    # Per-graph data = (x, edge_index, edge_attr), mirroring the PyTorch
    # module's input, stacked along a leading graph axis.
    x_idx = jax.random.randint(kx, (num_graphs, num_nodes, 1), 0, vocablen,
                               jnp.int32)
    edge_index = jax.random.randint(ke, (num_graphs, 2, num_edges), 0,
                                    num_nodes, jnp.int32)
    edge_attr = jax.random.randint(ka, (num_graphs, num_edges, 1), 0, 20,
                                   jnp.int32)

    hg = ggnn_forward(x_idx, edge_index, edge_attr, params, num_nodes)
    hg = jax.block_until_ready(hg)
    assert hg.shape == (num_graphs, embedding_dim)
    print("KERNEL_OK")
</pallas_src>

<mosaic_0001>
module attributes {stable_mosaic.version = 11 : i64} {
  func.func @ggnn_kernel(%arg0: i32, %arg1: memref<8x16x128xf32, #tpu.memory_space<vmem>>, %arg2: memref<8x16x16xf32, #tpu.memory_space<vmem>>, %arg3: memref<4x128x128xbf16, #tpu.memory_space<vmem>>, %arg4: memref<128x128xbf16, #tpu.memory_space<vmem>>, %arg5: memref<1x128xf32, #tpu.memory_space<vmem>>, %arg6: memref<1x128xf32, #tpu.memory_space<vmem>>, %arg7: memref<1x128xf32, #tpu.memory_space<vmem>>, %arg8: memref<1x1xf32, #tpu.memory_space<vmem>>, %arg9: memref<8x16x1xf32, #tpu.memory_space<vmem>>, %arg10: memref<8x128xf32, #tpu.memory_space<vmem>>) attributes {dimension_semantics = [#tpu.dimension_semantics<parallel>], iteration_bounds = array<i64: 2>, scalar_prefetch = 0 : i64, scratch_operands = 0 : i64, tpu.core_type = #tpu.core_type<tc>, window_params = [{transform_indices = @transform_0, window_bounds = array<i64: 8, 16, 128>}, {transform_indices = @transform_1, window_bounds = array<i64: 8, 16, 16>}, {pipeline_mode = #tpu.pipeline_mode<synchronous>, transform_indices = @transform_2, window_bounds = array<i64: 4, 128, 128>}, {pipeline_mode = #tpu.pipeline_mode<synchronous>, transform_indices = @transform_3, window_bounds = array<i64: 128, 128>}, {pipeline_mode = #tpu.pipeline_mode<synchronous>, transform_indices = @transform_4, window_bounds = array<i64: 1, 128>}, {pipeline_mode = #tpu.pipeline_mode<synchronous>, transform_indices = @transform_5, window_bounds = array<i64: 1, 128>}, {pipeline_mode = #tpu.pipeline_mode<synchronous>, transform_indices = @transform_6, window_bounds = array<i64: 1, 128>}, {pipeline_mode = #tpu.pipeline_mode<synchronous>, transform_indices = @transform_7, window_bounds = array<i64: 1, 1>}, {transform_indices = @transform_8, window_bounds = array<i64: 8, 16, 1>}, {transform_indices = @transform_9, window_bounds = array<i64: 8, 128>}]} {
    %c0 = arith.constant 0 : index
    %c0_0 = arith.constant 0 : index
    %c0_1 = arith.constant 0 : index
    %0 = vector.load %arg2[%c0, %c0_0, %c0_1] : memref<8x16x16xf32, #tpu.memory_space<vmem>>, vector<8x16x16xf32>
    %c0_2 = arith.constant 0 : index
    %c0_3 = arith.constant 0 : index
    %1 = vector.load %arg4[%c0_2, %c0_3] : memref<128x128xbf16, #tpu.memory_space<vmem>>, vector<128x128xbf16>
    %c0_4 = arith.constant 0 : index
    %c0_5 = arith.constant 0 : index
    %2 = vector.load %arg5[%c0_4, %c0_5] : memref<1x128xf32, #tpu.memory_space<vmem>>, vector<1x128xf32>
    %c0_6 = arith.constant 0 : index
    %c0_7 = arith.constant 0 : index
    %3 = vector.load %arg6[%c0_6, %c0_7] : memref<1x128xf32, #tpu.memory_space<vmem>>, vector<1x128xf32>
    %cst = arith.constant 0.000000e+00 : f32
    %4 = vector.broadcast %cst : f32 to vector<128x96xf32>
    %c0_8 = arith.constant 0 : index
    %c0_9 = arith.constant 0 : index
    %c0_10 = arith.constant 0 : index
    %5 = vector.load %arg1[%c0_8, %c0_9, %c0_10] : memref<8x16x128xf32, #tpu.memory_space<vmem>>, vector<8x16x128xf32>
    %6 = vector.shape_cast %5 : vector<8x16x128xf32> to vector<128x128xf32>
    %c0_i32 = arith.constant 0 : i32
    %7 = vector.shape_cast %6 : vector<128x128xf32> to vector<8x16x128xf32>
    "tpu.trace_start"() <{level = 10 : i32, message = "gij,gjd->gid"}> : () -> ()
    %cst_11 = arith.constant dense<0.000000e+00> : vector<8x16x128xf32>
    %8 = tpu.matmul %0, %7, %cst_11 {dimension_numbers = #tpu.dot_dimension_numbers<[2], [1], [1], [2], [0, 0, 0, 1, 1, 2], [0], [0]>} : vector<8x16x16xf32>, vector<8x16x128xf32>, vector<8x16x128xf32> -> vector<8x16x128xf32>
    "tpu.trace_stop"() : () -> ()
    %9 = vector.shape_cast %8 : vector<8x16x128xf32> to vector<128x128xf32>
    %10 = arith.truncf %6 : vector<128x128xf32> to vector<128x128xbf16>
    %11 = arith.truncf %9 : vector<128x128xf32> to vector<128x128xbf16>
    %12 = arith.index_cast %c0_i32 : i32 to index
    %c0_12 = arith.constant 0 : index
    %c0_13 = arith.constant 0 : index
    %13 = vector.load %arg3[%12, %c0_12, %c0_13] : memref<4x128x128xbf16, #tpu.memory_space<vmem>>, vector<1x128x128xbf16>
    %14 = vector.shape_cast %13 : vector<1x128x128xbf16> to vector<128x128xbf16>
    %cst_14 = arith.constant dense<0.000000e+00> : vector<128x128xf32>
    %15 = tpu.matmul %11, %14, %cst_14 {dimension_numbers = #tpu.dot_dimension_numbers<[1], [0], [0], [1], [0, 0, 1, 1], [], []>} : vector<128x128xbf16>, vector<128x128xbf16>, vector<128x128xf32> -> vector<128x128xf32>
    %16 = vector.broadcast %2 : vector<1x128xf32> to vector<128x128xf32>
    %17 = arith.addf %15, %16 : vector<128x128xf32>
    %cst_15 = arith.constant dense<0.000000e+00> : vector<128x128xf32>
    %18 = tpu.matmul %10, %1, %cst_15 {dimension_numbers = #tpu.dot_dimension_numbers<[1], [0], [0], [1], [0, 0, 1, 1], [], []>} : vector<128x128xbf16>, vector<128x128xbf16>, vector<128x128xf32> -> vector<128x128xf32>
    %19 = vector.broadcast %3 : vector<1x128xf32> to vector<128x128xf32>
    %20 = arith.addf %18, %19 : vector<128x128xf32>
    %21 = vector.extract_strided_slice %17 {offsets = [0, 0], sizes = [128, 64], strides = [1, 1]} : vector<128x128xf32> to vector<128x64xf32>
    %22 = vector.extract_strided_slice %20 {offsets = [0, 0], sizes = [128, 64], strides = [1, 1]} : vector<128x128xf32> to vector<128x64xf32>
    %23 = arith.addf %21, %22 : vector<128x64xf32>
    %24 = arith.negf %23 : vector<128x64xf32>
    %25 = math.exp %24 : vector<128x64xf32>
    %cst_16 = arith.constant 1.000000e+00 : f32
    %26 = vector.broadcast %cst_16 : f32 to vector<128x64xf32>
    %27 = arith.addf %26, %25 : vector<128x64xf32>
    %28 = arith.divf %26, %27 : vector<128x64xf32>
    %29 = vector.extract_strided_slice %28 {offsets = [0, 0], sizes = [128, 32], strides = [1, 1]} : vector<128x64xf32> to vector<128x32xf32>
    %30 = vector.extract_strided_slice %28 {offsets = [0, 32], sizes = [128, 32], strides = [1, 1]} : vector<128x64xf32> to vector<128x32xf32>
    %31 = vector.extract_strided_slice %17 {offsets = [0, 64], sizes = [128, 32], strides = [1, 1]} : vector<128x128xf32> to vector<128x32xf32>
    %32 = vector.extract_strided_slice %20 {offsets = [0, 64], sizes = [128, 32], strides = [1, 1]} : vector<128x128xf32> to vector<128x32xf32>
    %33 = arith.mulf %29, %32 : vector<128x32xf32>
    %34 = arith.addf %31, %33 : vector<128x32xf32>
    %35 = math.tanh %34 : vector<128x32xf32>
    %cst_17 = arith.constant 1.000000e+00 : f32
    %36 = vector.broadcast %cst_17 : f32 to vector<128x32xf32>
    %37 = arith.subf %36, %30 : vector<128x32xf32>
    %38 = arith.mulf %37, %35 : vector<128x32xf32>
    %39 = vector.extract_strided_slice %6 {offsets = [0, 0], sizes = [128, 32], strides = [1, 1]} : vector<128x128xf32> to vector<128x32xf32>
    %40 = arith.mulf %30, %39 : vector<128x32xf32>
    %41 = arith.addf %38, %40 : vector<128x32xf32>
    %42 = tpu.concatenate %41, %4 in 1 : vector<128x32xf32>, vector<128x96xf32> -> vector<128x128xf32>
    %c1_i32 = arith.constant 1 : i32
    %43 = vector.shape_cast %42 : vector<128x128xf32> to vector<8x16x128xf32>
    "tpu.trace_start"() <{level = 10 : i32, message = "gij,gjd->gid"}> : () -> ()
    %cst_18 = arith.constant dense<0.000000e+00> : vector<8x16x128xf32>
    %44 = tpu.matmul %0, %43, %cst_18 {dimension_numbers = #tpu.dot_dimension_numbers<[2], [1], [1], [2], [0, 0, 0, 1, 1, 2], [0], [0]>} : vector<8x16x16xf32>, vector<8x16x128xf32>, vector<8x16x128xf32> -> vector<8x16x128xf32>
    "tpu.trace_stop"() : () -> ()
    %45 = vector.shape_cast %44 : vector<8x16x128xf32> to vector<128x128xf32>
    %46 = arith.truncf %42 : vector<128x128xf32> to vector<128x128xbf16>
    %47 = arith.truncf %45 : vector<128x128xf32> to vector<128x128xbf16>
    %48 = arith.index_cast %c1_i32 : i32 to index
    %c0_19 = arith.constant 0 : index
    %c0_20 = arith.constant 0 : index
    %49 = vector.load %arg3[%48, %c0_19, %c0_20] : memref<4x128x128xbf16, #tpu.memory_space<vmem>>, vector<1x128x128xbf16>
    %50 = vector.shape_cast %49 : vector<1x128x128xbf16> to vector<128x128xbf16>
    %cst_21 = arith.constant dense<0.000000e+00> : vector<128x128xf32>
    %51 = tpu.matmul %47, %50, %cst_21 {dimension_numbers = #tpu.dot_dimension_numbers<[1], [0], [0], [1], [0, 0, 1, 1], [], []>} : vector<128x128xbf16>, vector<128x128xbf16>, vector<128x128xf32> -> vector<128x128xf32>
    %52 = vector.broadcast %2 : vector<1x128xf32> to vector<128x128xf32>
    %53 = arith.addf %51, %52 : vector<128x128xf32>
    %cst_22 = arith.constant dense<0.000000e+00> : vector<128x128xf32>
    %54 = tpu.matmul %46, %1, %cst_22 {dimension_numbers = #tpu.dot_dimension_numbers<[1], [0], [0], [1], [0, 0, 1, 1], [], []>} : vector<128x128xbf16>, vector<128x128xbf16>, vector<128x128xf32> -> vector<128x128xf32>
    %55 = vector.broadcast %3 : vector<1x128xf32> to vector<128x128xf32>
    %56 = arith.addf %54, %55 : vector<128x128xf32>
    %57 = vector.extract_strided_slice %53 {offsets = [0, 0], sizes = [128, 64], strides = [1, 1]} : vector<128x128xf32> to vector<128x64xf32>
    %58 = vector.extract_strided_slice %56 {offsets = [0, 0], sizes = [128, 64], strides = [1, 1]} : vector<128x128xf32> to vector<128x64xf32>
    %59 = arith.addf %57, %58 : vector<128x64xf32>
    %60 = arith.negf %59 : vector<128x64xf32>
    %61 = math.exp %60 : vector<128x64xf32>
    %cst_23 = arith.constant 1.000000e+00 : f32
    %62 = vector.broadcast %cst_23 : f32 to vector<128x64xf32>
    %63 = arith.addf %62, %61 : vector<128x64xf32>
    %64 = arith.divf %62, %63 : vector<128x64xf32>
    %65 = vector.extract_strided_slice %64 {offsets = [0, 0], sizes = [128, 32], strides = [1, 1]} : vector<128x64xf32> to vector<128x32xf32>
    %66 = vector.extract_strided_slice %64 {offsets = [0, 32], sizes = [128, 32], strides = [1, 1]} : vector<128x64xf32> to vector<128x32xf32>
    %67 = vector.extract_strided_slice %53 {offsets = [0, 64], sizes = [128, 32], strides = [1, 1]} : vector<128x128xf32> to vector<128x32xf32>
    %68 = vector.extract_strided_slice %56 {offsets = [0, 64], sizes = [128, 32], strides = [1, 1]} : vector<128x128xf32> to vector<128x32xf32>
    %69 = arith.mulf %65, %68 : vector<128x32xf32>
    %70 = arith.addf %67, %69 : vector<128x32xf32>
    %71 = math.tanh %70 : vector<128x32xf32>
    %cst_24 = arith.constant 1.000000e+00 : f32
    %72 = vector.broadcast %cst_24 : f32 to vector<128x32xf32>
    %73 = arith.subf %72, %66 : vector<128x32xf32>
    %74 = arith.mulf %73, %71 : vector<128x32xf32>
    %75 = vector.extract_strided_slice %42 {offsets = [0, 0], sizes = [128, 32], strides = [1, 1]} : vector<128x128xf32> to vector<128x32xf32>
    %76 = arith.mulf %66, %75 : vector<128x32xf32>
    %77 = arith.addf %74, %76 : vector<128x32xf32>
    %78 = tpu.concatenate %77, %4 in 1 : vector<128x32xf32>, vector<128x96xf32> -> vector<128x128xf32>
    %c2_i32 = arith.constant 2 : i32
    %79 = vector.shape_cast %78 : vector<128x128xf32> to vector<8x16x128xf32>
    "tpu.trace_start"() <{level = 10 : i32, message = "gij,gjd->gid"}> : () -> ()
    %cst_25 = arith.constant dense<0.000000e+00> : vector<8x16x128xf32>
    %80 = tpu.matmul %0, %79, %cst_25 {dimension_numbers = #tpu.dot_dimension_numbers<[2], [1], [1], [2], [0, 0, 0, 1, 1, 2], [0], [0]>} : vector<8x16x16xf32>, vector<8x16x128xf32>, vector<8x16x128xf32> -> vector<8x16x128xf32>
    "tpu.trace_stop"() : () -> ()
    %81 = vector.shape_cast %80 : vector<8x16x128xf32> to vector<128x128xf32>
    %82 = arith.truncf %78 : vector<128x128xf32> to vector<128x128xbf16>
    %83 = arith.truncf %81 : vector<128x128xf32> to vector<128x128xbf16>
    %84 = arith.index_cast %c2_i32 : i32 to index
    %c0_26 = arith.constant 0 : index
    %c0_27 = arith.constant 0 : index
    %85 = vector.load %arg3[%84, %c0_26, %c0_27] : memref<4x128x128xbf16, #tpu.memory_space<vmem>>, vector<1x128x128xbf16>
    %86 = vector.shape_cast %85 : vector<1x128x128xbf16> to vector<128x128xbf16>
    %cst_28 = arith.constant dense<0.000000e+00> : vector<128x128xf32>
    %87 = tpu.matmul %83, %86, %cst_28 {dimension_numbers = #tpu.dot_dimension_numbers<[1], [0], [0], [1], [0, 0, 1, 1], [], []>} : vector<128x128xbf16>, vector<128x128xbf16>, vector<128x128xf32> -> vector<128x128xf32>
    %88 = vector.broadcast %2 : vector<1x128xf32> to vector<128x128xf32>
    %89 = arith.addf %87, %88 : vector<128x128xf32>
    %cst_29 = arith.constant dense<0.000000e+00> : vector<128x128xf32>
    %90 = tpu.matmul %82, %1, %cst_29 {dimension_numbers = #tpu.dot_dimension_numbers<[1], [0], [0], [1], [0, 0, 1, 1], [], []>} : vector<128x128xbf16>, vector<128x128xbf16>, vector<128x128xf32> -> vector<128x128xf32>
    %91 = vector.broadcast %3 : vector<1x128xf32> to vector<128x128xf32>
    %92 = arith.addf %90, %91 : vector<128x128xf32>
    %93 = vector.extract_strided_slice %89 {offsets = [0, 0], sizes = [128, 64], strides = [1, 1]} : vector<128x128xf32> to vector<128x64xf32>
    %94 = vector.extract_strided_slice %92 {offsets = [0, 0], sizes = [128, 64], strides = [1, 1]} : vector<128x128xf32> to vector<128x64xf32>
    %95 = arith.addf %93, %94 : vector<128x64xf32>
    %96 = arith.negf %95 : vector<128x64xf32>
    %97 = math.exp %96 : vector<128x64xf32>
    %cst_30 = arith.constant 1.000000e+00 : f32
    %98 = vector.broadcast %cst_30 : f32 to vector<128x64xf32>
    %99 = arith.addf %98, %97 : vector<128x64xf32>
    %100 = arith.divf %98, %99 : vector<128x64xf32>
    %101 = vector.extract_strided_slice %100 {offsets = [0, 0], sizes = [128, 32], strides = [1, 1]} : vector<128x64xf32> to vector<128x32xf32>
    %102 = vector.extract_strided_slice %100 {offsets = [0, 32], sizes = [128, 32], strides = [1, 1]} : vector<128x64xf32> to vector<128x32xf32>
    %103 = vector.extract_strided_slice %89 {offsets = [0, 64], sizes = [128, 32], strides = [1, 1]} : vector<128x128xf32> to vector<128x32xf32>
    %104 = vector.extract_strided_slice %92 {offsets = [0, 64], sizes = [128, 32], strides = [1, 1]} : vector<128x128xf32> to vector<128x32xf32>
    %105 = arith.mulf %101, %104 : vector<128x32xf32>
    %106 = arith.addf %103, %105 : vector<128x32xf32>
    %107 = math.tanh %106 : vector<128x32xf32>
    %cst_31 = arith.constant 1.000000e+00 : f32
    %108 = vector.broadcast %cst_31 : f32 to vector<128x32xf32>
    %109 = arith.subf %108, %102 : vector<128x32xf32>
    %110 = arith.mulf %109, %107 : vector<128x32xf32>
    %111 = vector.extract_strided_slice %78 {offsets = [0, 0], sizes = [128, 32], strides = [1, 1]} : vector<128x128xf32> to vector<128x32xf32>
    %112 = arith.mulf %102, %111 : vector<128x32xf32>
    %113 = arith.addf %110, %112 : vector<128x32xf32>
    %114 = tpu.concatenate %113, %4 in 1 : vector<128x32xf32>, vector<128x96xf32> -> vector<128x128xf32>
    %c3_i32 = arith.constant 3 : i32
    %115 = vector.shape_cast %114 : vector<128x128xf32> to vector<8x16x128xf32>
    "tpu.trace_start"() <{level = 10 : i32, message = "gij,gjd->gid"}> : () -> ()
    %cst_32 = arith.constant dense<0.000000e+00> : vector<8x16x128xf32>
    %116 = tpu.matmul %0, %115, %cst_32 {dimension_numbers = #tpu.dot_dimension_numbers<[2], [1], [1], [2], [0, 0, 0, 1, 1, 2], [0], [0]>} : vector<8x16x16xf32>, vector<8x16x128xf32>, vector<8x16x128xf32> -> vector<8x16x128xf32>
    "tpu.trace_stop"() : () -> ()
    %117 = vector.shape_cast %116 : vector<8x16x128xf32> to vector<128x128xf32>
    %118 = arith.truncf %114 : vector<128x128xf32> to vector<128x128xbf16>
    %119 = arith.truncf %117 : vector<128x128xf32> to vector<128x128xbf16>
    %120 = arith.index_cast %c3_i32 : i32 to index
    %c0_33 = arith.constant 0 : index
    %c0_34 = arith.constant 0 : index
    %121 = vector.load %arg3[%120, %c0_33, %c0_34] : memref<4x128x128xbf16, #tpu.memory_space<vmem>>, vector<1x128x128xbf16>
    %122 = vector.shape_cast %121 : vector<1x128x128xbf16> to vector<128x128xbf16>
    %cst_35 = arith.constant dense<0.000000e+00> : vector<128x128xf32>
    %123 = tpu.matmul %119, %122, %cst_35 {dimension_numbers = #tpu.dot_dimension_numbers<[1], [0], [0], [1], [0, 0, 1, 1], [], []>} : vector<128x128xbf16>, vector<128x128xbf16>, vector<128x128xf32> -> vector<128x128xf32>
    %124 = vector.broadcast %2 : vector<1x128xf32> to vector<128x128xf32>
    %125 = arith.addf %123, %124 : vector<128x128xf32>
    %cst_36 = arith.constant dense<0.000000e+00> : vector<128x128xf32>
    %126 = tpu.matmul %118, %1, %cst_36 {dimension_numbers = #tpu.dot_dimension_numbers<[1], [0], [0], [1], [0, 0, 1, 1], [], []>} : vector<128x128xbf16>, vector<128x128xbf16>, vector<128x128xf32> -> vector<128x128xf32>
    %127 = vector.broadcast %3 : vector<1x128xf32> to vector<128x128xf32>
    %128 = arith.addf %126, %127 : vector<128x128xf32>
    %129 = vector.extract_strided_slice %125 {offsets = [0, 0], sizes = [128, 64], strides = [1, 1]} : vector<128x128xf32> to vector<128x64xf32>
    %130 = vector.extract_strided_slice %128 {offsets = [0, 0], sizes = [128, 64], strides = [1, 1]} : vector<128x128xf32> to vector<128x64xf32>
    %131 = arith.addf %129, %130 : vector<128x64xf32>
    %132 = arith.negf %131 : vector<128x64xf32>
    %133 = math.exp %132 : vector<128x64xf32>
    %cst_37 = arith.constant 1.000000e+00 : f32
    %134 = vector.broadcast %cst_37 : f32 to vector<128x64xf32>
    %135 = arith.addf %134, %133 : vector<128x64xf32>
    %136 = arith.divf %134, %135 : vector<128x64xf32>
    %137 = vector.extract_strided_slice %136 {offsets = [0, 0], sizes = [128, 32], strides = [1, 1]} : vector<128x64xf32> to vector<128x32xf32>
    %138 = vector.extract_strided_slice %136 {offsets = [0, 32], sizes = [128, 32], strides = [1, 1]} : vector<128x64xf32> to vector<128x32xf32>
    %139 = vector.extract_strided_slice %125 {offsets = [0, 64], sizes = [128, 32], strides = [1, 1]} : vector<128x128xf32> to vector<128x32xf32>
    %140 = vector.extract_strided_slice %128 {offsets = [0, 64], sizes = [128, 32], strides = [1, 1]} : vector<128x128xf32> to vector<128x32xf32>
    %141 = arith.mulf %137, %140 : vector<128x32xf32>
    %142 = arith.addf %139, %141 : vector<128x32xf32>
    %143 = math.tanh %142 : vector<128x32xf32>
    %cst_38 = arith.constant 1.000000e+00 : f32
    %144 = vector.broadcast %cst_38 : f32 to vector<128x32xf32>
    %145 = arith.subf %144, %138 : vector<128x32xf32>
    %146 = arith.mulf %145, %143 : vector<128x32xf32>
    %147 = vector.extract_strided_slice %114 {offsets = [0, 0], sizes = [128, 32], strides = [1, 1]} : vector<128x128xf32> to vector<128x32xf32>
    %148 = arith.mulf %138, %147 : vector<128x32xf32>
    %149 = arith.addf %146, %148 : vector<128x32xf32>
    %150 = tpu.concatenate %149, %4 in 1 : vector<128x32xf32>, vector<128x96xf32> -> vector<128x128xf32>
    %c4_i32 = arith.constant 4 : i32
    %c0_39 = arith.constant 0 : index
    %c0_40 = arith.constant 0 : index
    %151 = vector.load %arg7[%c0_39, %c0_40] : memref<1x128xf32, #tpu.memory_space<vmem>>, vector<1x128xf32>
    %152 = vector.broadcast %151 : vector<1x128xf32> to vector<128x128xf32>
    %153 = arith.mulf %150, %152 : vector<128x128xf32>
    %cst_41 = arith.constant dense<0.000000e+00> : vector<128xf32>
    %154 = vector.multi_reduction <add>, %153, %cst_41 [1] : vector<128x128xf32> to vector<128xf32>
    %155 = vector.shape_cast %154 : vector<128xf32> to vector<128x1xf32>
    %c0_42 = arith.constant 0 : index
    %c0_43 = arith.constant 0 : index
    %156 = vector.load %arg8[%c0_42, %c0_43] : memref<1x1xf32, #tpu.memory_space<vmem>>, vector<1x1xf32>
    %157 = vector.broadcast %156 : vector<1x1xf32> to vector<128x1xf32>
    %158 = arith.addf %155, %157 : vector<128x1xf32>
    %159 = arith.negf %158 : vector<128x1xf32>
    %160 = math.exp %159 : vector<128x1xf32>
    %cst_44 = arith.constant 1.000000e+00 : f32
    %161 = vector.broadcast %cst_44 : f32 to vector<128x1xf32>
    %162 = arith.addf %161, %160 : vector<128x1xf32>
    %163 = arith.divf %161, %162 : vector<128x1xf32>
    %164 = math.exp %163 : vector<128x1xf32>
    %165 = vector.shape_cast %164 : vector<128x1xf32> to vector<8x16x1xf32>
    %c0_45 = arith.constant 0 : index
    %c0_46 = arith.constant 0 : index
    %c0_47 = arith.constant 0 : index
    %166 = vector.load %arg9[%c0_45, %c0_46, %c0_47] : memref<8x16x1xf32, #tpu.memory_space<vmem>>, vector<8x16x1xf32>
    %167 = arith.mulf %165, %166 : vector<8x16x1xf32>
    %cst_48 = arith.constant dense<0.000000e+00> : vector<8x1xf32>
    %168 = vector.multi_reduction <add>, %167, %cst_48 [1] : vector<8x16x1xf32> to vector<8x1xf32>
    %169 = vector.shape_cast %168 : vector<8x1xf32> to vector<8x1x1xf32>
    %cst_49 = arith.constant 9.99999997E-7 : f32
    %170 = vector.broadcast %cst_49 : f32 to vector<8x1x1xf32>
    %171 = arith.maximumf %169, %170 : vector<8x1x1xf32>
    %172 = tpu.reciprocal %171 {approx = true} : vector<8x1x1xf32> -> vector<8x1x1xf32>
    %173 = vector.broadcast %172 : vector<8x1x1xf32> to vector<8x16x1xf32>
    %174 = arith.mulf %167, %173 : vector<8x16x1xf32>
    %175 = vector.shape_cast %150 : vector<128x128xf32> to vector<8x16x128xf32>
    %176 = vector.broadcast %174 : vector<8x16x1xf32> to vector<8x16x128xf32>
    %177 = arith.mulf %176, %175 : vector<8x16x128xf32>
    %cst_50 = arith.constant dense<0.000000e+00> : vector<8x128xf32>
    %178 = vector.multi_reduction <add>, %177, %cst_50 [1] : vector<8x16x128xf32> to vector<8x128xf32>
    %c0_51 = arith.constant 0 : index
    %c0_52 = arith.constant 0 : index
    %179 = vector.load %arg10[%c0_51, %c0_52] : memref<8x128xf32, #tpu.memory_space<vmem>>, vector<8x128xf32>
    tpu.vector_store %arg10[%c0_51, %c0_52], %178 {strides = array<i32>} : memref<8x128xf32, #tpu.memory_space<vmem>>, vector<8x128xf32>,
    return
  }
  func.func @transform_0(%arg0: i32) -> (i32, i32, i32) {
    %c0_i32 = arith.constant 0 : i32
    %c0_i32_0 = arith.constant 0 : i32
    %c0_i32_1 = arith.constant 0 : i32
    return %arg0, %c0_i32, %c0_i32_0 : i32, i32, i32
  }
  func.func @transform_1(%arg0: i32) -> (i32, i32, i32) {
    %c0_i32 = arith.constant 0 : i32
    %c0_i32_0 = arith.constant 0 : i32
    %c0_i32_1 = arith.constant 0 : i32
    return %arg0, %c0_i32, %c0_i32_0 : i32, i32, i32
  }
  func.func @transform_2(%arg0: i32) -> (i32, i32, i32) {
    %c0_i32 = arith.constant 0 : i32
    %c0_i32_0 = arith.constant 0 : i32
    %c0_i32_1 = arith.constant 0 : i32
    %c0_i32_2 = arith.constant 0 : i32
    return %c0_i32, %c0_i32_0, %c0_i32_1 : i32, i32, i32
  }
  func.func @transform_3(%arg0: i32) -> (i32, i32) {
    %c0_i32 = arith.constant 0 : i32
    %c0_i32_0 = arith.constant 0 : i32
    %c0_i32_1 = arith.constant 0 : i32
    return %c0_i32, %c0_i32_0 : i32, i32
  }
  func.func @transform_4(%arg0: i32) -> (i32, i32) {
    %c0_i32 = arith.constant 0 : i32
    %c0_i32_0 = arith.constant 0 : i32
    %c0_i32_1 = arith.constant 0 : i32
    return %c0_i32, %c0_i32_0 : i32, i32
  }
  func.func @transform_5(%arg0: i32) -> (i32, i32) {
    %c0_i32 = arith.constant 0 : i32
    %c0_i32_0 = arith.constant 0 : i32
    %c0_i32_1 = arith.constant 0 : i32
    return %c0_i32, %c0_i32_0 : i32, i32
  }
  func.func @transform_6(%arg0: i32) -> (i32, i32) {
    %c0_i32 = arith.constant 0 : i32
    %c0_i32_0 = arith.constant 0 : i32
    %c0_i32_1 = arith.constant 0 : i32
    return %c0_i32, %c0_i32_0 : i32, i32
  }
  func.func @transform_7(%arg0: i32) -> (i32, i32) {
    %c0_i32 = arith.constant 0 : i32
    %c0_i32_0 = arith.constant 0 : i32
    %c0_i32_1 = arith.constant 0 : i32
    return %c0_i32, %c0_i32_0 : i32, i32
  }
  func.func @transform_8(%arg0: i32) -> (i32, i32, i32) {
    %c0_i32 = arith.constant 0 : i32
    %c0_i32_0 = arith.constant 0 : i32
    %c0_i32_1 = arith.constant 0 : i32
    return %arg0, %c0_i32, %c0_i32_0 : i32, i32, i32
  }
  func.func @transform_9(%arg0: i32) -> (i32, i32) {
    %c0_i32 = arith.constant 0 : i32
    %c0_i32_0 = arith.constant 0 : i32
    return %arg0, %c0_i32 : i32, i32
  }
}

</mosaic_0001>

<llo_original>
// kernel: tpu_custom_call.1
$region0: #{tpu_custom_call.1}
  #allocation0 [shape = 'u32[]', space=smem, size = 0x4, offset = 0x4, fixed_abs, tag = 'smem constant byte address 0x4 - core index']
  #allocation1 [shape = 'u32[144,128]{1,0:T(1,128)}', space=vmem, size = 0x12000, scoped, tag = 'internal scratch']
  #allocation2 [shape = 'f32[1,1]{1,0:T(1,128)S(1)}', space=vmem, size = 0x200, scoped, tag = 'scoped memory for tpu_custom_call.1']
  %s0 = inlined_call_operand.vmem [shape: f32[16,16,128], index: 0, kind: input, shape index: {}]
  %s1 = inlined_call_operand.hbm [shape: f32[16,16,16], index: 1, kind: input, shape index: {}]
  %s2 = inlined_call_operand.hbm [shape: bf16[4,128,128], index: 2, kind: input, shape index: {}]
  %s3 = inlined_call_operand.hbm [shape: bf16[128,128], index: 3, kind: input, shape index: {}]
  %s4 = inlined_call_operand.vmem [shape: f32[1,128], index: 4, kind: input, shape index: {}]
  %s5 = inlined_call_operand.vmem [shape: f32[1,128], index: 5, kind: input, shape index: {}]
  %s6 = inlined_call_operand.vmem [shape: f32[1,128], index: 6, kind: input, shape index: {}]
  %s7 = inlined_call_operand.<no memory space> [shape: f32[1,1], index: 7, kind: input, shape index: {}]
  %s8 = inlined_call_operand.vmem [shape: f32[16,16,1], index: 8, kind: input, shape index: {}]
  %s9 = inlined_call_operand.hbm [shape: f32[16,128], index: 9, kind: output, shape index: {}]
  %s10 = sld [smem:[#allocation0]]
  $region81: #{tpu_custom_call.1} parent=0
    _
  %s12 = ssub.s32 1, %s10
  %s13 = scalar_select 0, %s12, %s10
  %v14 = vstv %s7
  %15 = vst [vmem:[#allocation2] sm:$0x1] %v14
  $region1: #{tpu_custom_call.1} parent=0
    #allocation3 [shape = 'u8[131072]{0}', space=vmem, size = 0x20000, scoped, tag = 'input window, operand 1']
    #allocation4 [shape = 's32[2]{0}', space=sflag, size = 0x8, scoped, tag = 'scoped memory for tpu_custom_call.1']
    #allocation5 [shape = 's32[2]{0}', space=sflag, size = 0x8, scoped, tag = 'scoped memory for tpu_custom_call.1']
    #allocation6 [shape = 'u8[131072]{0}', space=vmem, size = 0x20000, scoped, tag = 'input window, operand 2, single buffered']
    #allocation7 [shape = 's32[1]{0}', space=sflag, size = 0x4, scoped, tag = 'scoped memory for tpu_custom_call.1']
    #allocation8 [shape = 'u8[32768]{0}', space=vmem, size = 0x8000, scoped, tag = 'input window, operand 3, single buffered']
    #allocation9 [shape = 'u8[8192]{0}', space=vmem, size = 0x2000, scoped, tag = 'output window, operand 0']
    %16 = vsyncpa [#allocation4], 0
    %s17 = scalar_lea.sflag [#allocation4], 1
    %18 = vsyncpa %s17, 0
    %19 = vsyncpa [#allocation7], 0
    %20 = vsyncpa [#allocation5], 0
    %s21 = scalar_lea.sflag [#allocation5], 1
    %22 = vsyncpa %s21, 0
    loop: start=0, step=1, limit=4
    $region2: #{tpu_custom_call.1} parent=1 // loop_pre_header
      _
    $region3: #{tpu_custom_call.1} parent=1 // loop_header
      %s24 = sphi 0, %s28
      %p25 = scmp.ge.s32.totalorder %s24, 4
      %s34 = sphi 0, %s36
      %s37 = sphi 0, %s34
      %s38 = sphi 0, %s37
      %s54 = sphi 0, %s38
      %s60 = sphi 0, %s62
      %s63 = sphi 0, %s60
      %s64 = sphi 0, %s63
      %s80 = sphi 0, %s64
      %s84 = sphi 0, %s84
      %s86 = sphi 0, %s84
      %s87 = sphi 0, %s86
      %s101 = sphi 0, %s87
      %s105 = sphi 0, %s105
      %s107 = sphi 0, %s105
      %s108 = sphi 0, %s107
      %s122 = sphi 0, %s108
      %s126 = sphi 0, %s126
      %s128 = sphi 0, %s126
      %s129 = sphi 0, %s128
      %s143 = sphi 0, %s129
      %s147 = sphi 0, %s147
      %s149 = sphi 0, %s147
      %s150 = sphi 0, %s149
      %s164 = sphi 0, %s150
      %s168 = sphi 0, %s168
      %s170 = sphi 0, %s168
      %s171 = sphi 0, %s170
      %s185 = sphi 0, %s171
      %s189 = sphi 0, %s189
      %s191 = sphi 0, %s189
      %s192 = sphi 0, %s191
      %s206 = sphi 0, %s192
      %s212 = sphi 0, %s214
      %s215 = sphi 0, %s212
      %s216 = sphi 0, %s215
      %s232 = sphi 0, %s216
      %s238 = sphi 0, %s240
      %s241 = sphi 0, %s238
      %s242 = sphi 0, %s241
      %s258 = sphi 0, %s242
    $region4: #{tpu_custom_call.1} parent=1 // loop_header_branch
      %27 = sbr.rel (%p25) target = $region8
    $region5: #{tpu_custom_call.1} parent=1 // loop_body
      %s29 = ssub.s32 %s24, 1
      %s30 = ssub.s32 %s24, 2
      %s31 = sadd.s32 %s24, 1
      %s32 = ssub.s32 %s24, %s31
      %p33 = scmp.eq.s32.totalorder %s32, 0
      %s35 = sadd.s32 %s34, 1
      %s36 = scalar_select %p33, %s34, %s35
      %p39 = pneg %p33
      %p40 = scmp.eq.s32.totalorder %s24, 1
      %p41 = por %p39, %p40
      %p42 = scmp.ne.s32.totalorder %s34, %s37
      %p43 = scmp.eq.s32.totalorder %s24, 0
      %p44 = por %p42, %p43
      %p45 = scmp.ne.s32.totalorder %s34, %s37
      %p46 = scmp.eq.s32.totalorder %s29, 1
      %p47 = por %p45, %p46
      %p48 = scmp.ne.s32.totalorder %s37, %s38
      %p49 = scmp.eq.s32.totalorder %s29, 0
      %p50 = por %p48, %p49
      %p51 = scmp.ne.s32.totalorder %s37, %s38
      %p52 = scmp.eq.s32.totalorder %s30, 1
      %p53 = por %p51, %p52
      %p55 = scmp.ne.s32.totalorder %s38, %s54
      %p56 = scmp.eq.s32.totalorder %s30, 0
      %p57 = por %p55, %p56
      %s58 = ssub.s32 %s24, %s31
      %p59 = scmp.eq.s32.totalorder %s58, 0
      %s61 = sadd.s32 %s60, 1
      %s62 = scalar_select %p59, %s60, %s61
      %p65 = pneg %p59
      %p66 = scmp.eq.s32.totalorder %s24, 1
      %p67 = por %p65, %p66
      %p68 = scmp.ne.s32.totalorder %s60, %s63
      %p69 = scmp.eq.s32.totalorder %s24, 0
      %p70 = por %p68, %p69
      %p71 = scmp.ne.s32.totalorder %s60, %s63
      %p72 = scmp.eq.s32.totalorder %s29, 1
      %p73 = por %p71, %p72
      %p74 = scmp.ne.s32.totalorder %s63, %s64
      %p75 = scmp.eq.s32.totalorder %s29, 0
      %p76 = por %p74, %p75
      %p77 = scmp.ne.s32.totalorder %s63, %s64
      %p78 = scmp.eq.s32.totalorder %s30, 1
      %p79 = por %p77, %p78
      %p81 = scmp.ne.s32.totalorder %s64, %s80
      %p82 = scmp.eq.s32.totalorder %s30, 0
      %p83 = por %p81, %p82
      %s85 = sadd.s32 %s84, 1
      %p88 = scmp.eq.s32.totalorder %s24, 1
      %p89 = scmp.ne.s32.totalorder %s84, %s86
      %p90 = scmp.eq.s32.totalorder %s24, 0
      %p91 = por %p89, %p90
      %p92 = scmp.ne.s32.totalorder %s84, %s86
      %p93 = scmp.eq.s32.totalorder %s29, 1
      %p94 = por %p92, %p93
      %p95 = scmp.ne.s32.totalorder %s86, %s87
      %p96 = scmp.eq.s32.totalorder %s29, 0
      %p97 = por %p95, %p96
      %p98 = scmp.ne.s32.totalorder %s86, %s87
      %p99 = scmp.eq.s32.totalorder %s30, 1
      %p100 = por %p98, %p99
      %p102 = scmp.ne.s32.totalorder %s87, %s101
      %p103 = scmp.eq.s32.totalorder %s30, 0
      %p104 = por %p102, %p103
      %s106 = sadd.s32 %s105, 1
      %p109 = scmp.eq.s32.totalorder %s24, 1
      %p110 = scmp.ne.s32.totalorder %s105, %s107
      %p111 = scmp.eq.s32.totalorder %s24, 0
      %p112 = por %p110, %p111
      %p113 = scmp.ne.s32.totalorder %s105, %s107
      %p114 = scmp.eq.s32.totalorder %s29, 1
      %p115 = por %p113, %p114
      %p116 = scmp.ne.s32.totalorder %s107, %s108
      %p117 = scmp.eq.s32.totalorder %s29, 0
      %p118 = por %p116, %p117
      %p119 = scmp.ne.s32.totalorder %s107, %s108
      %p120 = scmp.eq.s32.totalorder %s30, 1
      %p121 = por %p119, %p120
      %p123 = scmp.ne.s32.totalorder %s108, %s122
      %p124 = scmp.eq.s32.totalorder %s30, 0
      %p125 = por %p123, %p124
      %s127 = sadd.s32 %s126, 1
      %p130 = scmp.eq.s32.totalorder %s24, 1
      %p131 = scmp.ne.s32.totalorder %s126, %s128
      %p132 = scmp.eq.s32.totalorder %s24, 0
      %p133 = por %p131, %p132
      %p134 = scmp.ne.s32.totalorder %s126, %s128
      %p135 = scmp.eq.s32.totalorder %s29, 1
      %p136 = por %p134, %p135
      %p137 = scmp.ne.s32.totalorder %s128, %s129
      %p138 = scmp.eq.s32.totalorder %s29, 0
      %p139 = por %p137, %p138
      %p140 = scmp.ne.s32.totalorder %s128, %s129
      %p141 = scmp.eq.s32.totalorder %s30, 1
      %p142 = por %p140, %p141
      %p144 = scmp.ne.s32.totalorder %s129, %s143
      %p145 = scmp.eq.s32.totalorder %s30, 0
      %p146 = por %p144, %p145
      %s148 = sadd.s32 %s147, 1
      %p151 = scmp.eq.s32.totalorder %s24, 1
      %p152 = scmp.ne.s32.totalorder %s147, %s149
      %p153 = scmp.eq.s32.totalorder %s24, 0
      %p154 = por %p152, %p153
      %p155 = scmp.ne.s32.totalorder %s147, %s149
      %p156 = scmp.eq.s32.totalorder %s29, 1
      %p157 = por %p155, %p156
      %p158 = scmp.ne.s32.totalorder %s149, %s150
      %p159 = scmp.eq.s32.totalorder %s29, 0
      %p160 = por %p158, %p159
      %p161 = scmp.ne.s32.totalorder %s149, %s150
      %p162 = scmp.eq.s32.totalorder %s30, 1
      %p163 = por %p161, %p162
      %p165 = scmp.ne.s32.totalorder %s150, %s164
      %p166 = scmp.eq.s32.totalorder %s30, 0
      %p167 = por %p165, %p166
      %s169 = sadd.s32 %s168, 1
      %p172 = scmp.eq.s32.totalorder %s24, 1
      %p173 = scmp.ne.s32.totalorder %s168, %s170
      %p174 = scmp.eq.s32.totalorder %s24, 0
      %p175 = por %p173, %p174
      %p176 = scmp.ne.s32.totalorder %s168, %s170
      %p177 = scmp.eq.s32.totalorder %s29, 1
      %p178 = por %p176, %p177
      %p179 = scmp.ne.s32.totalorder %s170, %s171
      %p180 = scmp.eq.s32.totalorder %s29, 0
      %p181 = por %p179, %p180
      %p182 = scmp.ne.s32.totalorder %s170, %s171
      %p183 = scmp.eq.s32.totalorder %s30, 1
      %p184 = por %p182, %p183
      %p186 = scmp.ne.s32.totalorder %s171, %s185
      %p187 = scmp.eq.s32.totalorder %s30, 0
      %p188 = por %p186, %p187
      %s190 = sadd.s32 %s189, 1
      %p193 = scmp.eq.s32.totalorder %s24, 1
      %p194 = scmp.ne.s32.totalorder %s189, %s191
      %p195 = scmp.eq.s32.totalorder %s24, 0
      %p196 = por %p194, %p195
      %p197 = scmp.ne.s32.totalorder %s189, %s191
      %p198 = scmp.eq.s32.totalorder %s29, 1
      %p199 = por %p197, %p198
      %p200 = scmp.ne.s32.totalorder %s191, %s192
      %p201 = scmp.eq.s32.totalorder %s29, 0
      %p202 = por %p200, %p201
      %p203 = scmp.ne.s32.totalorder %s191, %s192
      %p204 = scmp.eq.s32.totalorder %s30, 1
      %p205 = por %p203, %p204
      %p207 = scmp.ne.s32.totalorder %s192, %s206
      %p208 = scmp.eq.s32.totalorder %s30, 0
      %p209 = por %p207, %p208
      %s210 = ssub.s32 %s24, %s31
      %p211 = scmp.eq.s32.totalorder %s210, 0
      %s213 = sadd.s32 %s212, 1
      %s214 = scalar_select %p211, %s212, %s213
      %p217 = pneg %p211
      %p218 = scmp.eq.s32.totalorder %s24, 1
      %p219 = por %p217, %p218
      %p220 = scmp.ne.s32.totalorder %s212, %s215
      %p221 = scmp.eq.s32.totalorder %s24, 0
      %p222 = por %p220, %p221
      %p223 = scmp.ne.s32.totalorder %s212, %s215
      %p224 = scmp.eq.s32.totalorder %s29, 1
      %p225 = por %p223, %p224
      %p226 = scmp.ne.s32.totalorder %s215, %s216
      %p227 = scmp.eq.s32.totalorder %s29, 0
      %p228 = por %p226, %p227
      %p229 = scmp.ne.s32.totalorder %s215, %s216
      %p230 = scmp.eq.s32.totalorder %s30, 1
      %p231 = por %p229, %p230
      %p233 = scmp.ne.s32.totalorder %s216, %s232
      %p234 = scmp.eq.s32.totalorder %s30, 0
      %p235 = por %p233, %p234
      %s236 = ssub.s32 %s24, %s31
      %p237 = scmp.eq.s32.totalorder %s236, 0
      %s239 = sadd.s32 %s238, 1
      %s240 = scalar_select %p237, %s238, %s239
      %p243 = pneg %p237
      %p244 = scmp.eq.s32.totalorder %s24, 1
      %p245 = por %p243, %p244
      %p246 = scmp.ne.s32.totalorder %s238, %s241
      %p247 = scmp.eq.s32.totalorder %s24, 0
      %p248 = por %p246, %p247
      %p249 = scmp.ne.s32.totalorder %s238, %s241
      %p250 = scmp.eq.s32.totalorder %s29, 1
      %p251 = por %p249, %p250
      %p252 = scmp.ne.s32.totalorder %s241, %s242
      %p253 = scmp.eq.s32.totalorder %s29, 0
      %p254 = por %p252, %p253
      %p255 = scmp.ne.s32.totalorder %s241, %s242
      %p256 = scmp.eq.s32.totalorder %s30, 1
      %p257 = por %p255, %p256
      %p259 = scmp.ne.s32.totalorder %s242, %s258
      %p260 = scmp.eq.s32.totalorder %s30, 0
      %p261 = por %p259, %p260
      %p262 = scmp.le.s32.totalorder 1, %s24
      %p263 = scmp.lt.s32.totalorder %s24, 3
      %p264 = pnand %p262, %p263
      %p265 = pneg %p264
      // Predicated region
      $region9: #{tpu_custom_call.1} parent=5 // pred_check
        _
      $region10: #{tpu_custom_call.1} parent=5 // pred_check_branch
        %267 = sbr.rel (%p264) target = $region12
      $region11: #{tpu_custom_call.1} parent=5 // pred_region
        %s268 = ssub.s32 %s24, 1
        // Predicated region
        $region13: #{tpu_custom_call.1} parent=11 // pred_check
          %p269 = pneg %p97
        $region14: #{tpu_custom_call.1} parent=11 // pred_check_branch
          %271 = sbr.rel (%p269) target = $region16
        $region15: #{tpu_custom_call.1} parent=11 // pred_region
          %s273 = ssub.s32 4096, 4096
          %274 = vsyncadd [#allocation7], %s273
          %s275 = sshll.u32 [#allocation6], 4
          %s276 = int_to_ptr.vmem [resolvable:$true] %s275
          %281 = dma.hbm_to_vmem [thread:$0]  %s2, 4096, %s276, [#allocation7], 64, 64, 4
        $region16: #{tpu_custom_call.1} parent=11 // pred_fallthru
          _
        // Predicated region
        $region17: #{tpu_custom_call.1} parent=11 // pred_check
          %p282 = pneg %p118
        $region18: #{tpu_custom_call.1} parent=11 // pred_check_branch
          %284 = sbr.rel (%p282) target = $region20
        $region19: #{tpu_custom_call.1} parent=11 // pred_region
          %s286 = ssub.s32 1024, 1024
          %287 = vsyncadd [#allocation7], %s286
          %s288 = sshll.u32 [#allocation8], 4
          %s289 = int_to_ptr.vmem [resolvable:$true] %s288
          %294 = dma.hbm_to_vmem [thread:$0]  %s3, 1024, %s289, [#allocation7], 64, 64, 4
        $region20: #{tpu_custom_call.1} parent=11 // pred_fallthru
          _
        // Predicated region
        $region21: #{tpu_custom_call.1} parent=11 // pred_check
          %p295 = pneg %p139
        $region22: #{tpu_custom_call.1} parent=11 // pred_check_branch
          %297 = sbr.rel (%p295) target = $region24
        $region23: #{tpu_custom_call.1} parent=11 // pred_region
          _
        $region24: #{tpu_custom_call.1} parent=11 // pred_fallthru
          _
        // Predicated region
        $region25: #{tpu_custom_call.1} parent=11 // pred_check
          %p298 = pneg %p160
        $region26: #{tpu_custom_call.1} parent=11 // pred_check_branch
          %300 = sbr.rel (%p298) target = $region28
        $region27: #{tpu_custom_call.1} parent=11 // pred_region
          _
        $region28: #{tpu_custom_call.1} parent=11 // pred_fallthru
          _
        // Predicated region
        $region29: #{tpu_custom_call.1} parent=11 // pred_check
          %p301 = pneg %p181
        $region30: #{tpu_custom_call.1} parent=11 // pred_check_branch
          %303 = sbr.rel (%p301) target = $region32
        $region31: #{tpu_custom_call.1} parent=11 // pred_region
          _
        $region32: #{tpu_custom_call.1} parent=11 // pred_fallthru
          _
        // Predicated region
        $region33: #{tpu_custom_call.1} parent=11 // pred_check
          %p304 = pneg %p202
        $region34: #{tpu_custom_call.1} parent=11 // pred_check_branch
          %306 = sbr.rel (%p304) target = $region36
        $region35: #{tpu_custom_call.1} parent=11 // pred_region
          _
        $region36: #{tpu_custom_call.1} parent=11 // pred_fallthru
          _
      $region12: #{tpu_custom_call.1} parent=5 // pred_fallthru
        _
      %p307 = scmp.lt.s32.totalorder %s24, 2
      // Predicated region
      $region37: #{tpu_custom_call.1} parent=5 // pred_check
        %p308 = pneg %p307
      $region38: #{tpu_custom_call.1} parent=5 // pred_check_branch
        %310 = sbr.rel (%p308) target = $region40
      $region39: #{tpu_custom_call.1} parent=5 // pred_region
        // Predicated region
        $region41: #{tpu_custom_call.1} parent=39 // pred_check
          %p311 = pneg %p44
        $region42: #{tpu_custom_call.1} parent=39 // pred_check_branch
          %313 = sbr.rel (%p311) target = $region44
        $region43: #{tpu_custom_call.1} parent=39 // pred_region
          %s314 = smul.u32 8, %s24
          %p315 = scmp.lt.s32.totalorder %s314, 15
          %s316 = scalar_select %p315, %s314, 15
          %s317 = smul.addr %s316, 2
          %s318 = smul.addr %s317, 8
          %s319 = scalar_lea.vmem %s0, %s318
          %s320 = smul.u32 8, %s24
        $region44: #{tpu_custom_call.1} parent=39 // pred_fallthru
          _
        // Predicated region
        $region45: #{tpu_custom_call.1} parent=39 // pred_check
          %p321 = pneg %p70
        $region46: #{tpu_custom_call.1} parent=39 // pred_check_branch
          %323 = sbr.rel (%p321) target = $region48
        $region47: #{tpu_custom_call.1} parent=39 // pred_region
          %s324 = sand.u32 %s60, 1
          %s325 = scalar_lea.sflag [#allocation4], %s324
          %s326 = sand.u32 %s60, 1
          %s327 = smul.addr %s326, 128
          %s328 = scalar_lea.vmem [#allocation3], %s327
          %s329 = smul.u32 8, %s24
          %s331 = ssub.s32 2048, 2048
          %332 = vsyncadd %s325, %s331
          %s333 = smul.addr %s329, 2
          %s334 = smul.addr %s333, 128
          %s335 = scalar_lea.hbm %s1, %s334
          %s336 = sshll.u32 %s328, 4
          %s337 = int_to_ptr.vmem [resolvable:$true] %s336
          %342 = dma.hbm_to_vmem [thread:$0]  %s335, 2048, %s337, %s325, 128, 128, 8
        $region48: #{tpu_custom_call.1} parent=39 // pred_fallthru
          _
        // Predicated region
        $region49: #{tpu_custom_call.1} parent=39 // pred_check
          %p343 = pneg %p222
        $region50: #{tpu_custom_call.1} parent=39 // pred_check_branch
          %345 = sbr.rel (%p343) target = $region52
        $region51: #{tpu_custom_call.1} parent=39 // pred_region
          %s346 = smul.u32 8, %s24
          %p347 = scmp.lt.s32.totalorder %s346, 15
          %s348 = scalar_select %p347, %s346, 15
          %s349 = smul.addr %s348, 2
          %s350 = smul.addr %s349, 8
          %s351 = scalar_lea.vmem %s8, %s350
          %s352 = smul.u32 8, %s24
        $region52: #{tpu_custom_call.1} parent=39 // pred_fallthru
          _
      $region40: #{tpu_custom_call.1} parent=5 // pred_fallthru
        _
      %p353 = scmp.le.s32.totalorder 1, %s24
      %p354 = scmp.lt.s32.totalorder %s24, 3
      %p355 = pnand %p353, %p354
      %p356 = pneg %p355
      // Predicated region
      $region53: #{tpu_custom_call.1} parent=5 // pred_check
        _
      $region54: #{tpu_custom_call.1} parent=5 // pred_check_branch
        %358 = sbr.rel (%p355) target = $region56
      $region55: #{tpu_custom_call.1} parent=5 // pred_region
        %s359 = ssub.s32 %s24, 1
        %s360 = sand.u32 %s63, 1
        %s361 = scalar_lea.sflag [#allocation4], %s360
        %s362 = sand.u32 %s63, 1
        %s363 = smul.addr %s362, 128
        %s364 = scalar_lea.vmem [#allocation3], %s363
        // Predicated region
        $region57: #{tpu_custom_call.1} parent=55 // pred_check
          %p365 = pneg %p76
        $region58: #{tpu_custom_call.1} parent=55 // pred_check_branch
          %367 = sbr.rel (%p365) target = $region60
        $region59: #{tpu_custom_call.1} parent=55 // pred_region
          %368 = dma.done %s361, 2048
        $region60: #{tpu_custom_call.1} parent=55 // pred_fallthru
          _
        // Predicated region
        $region61: #{tpu_custom_call.1} parent=55 // pred_check
          %p369 = pneg %p97
        $region62: #{tpu_custom_call.1} parent=55 // pred_check_branch
          %371 = sbr.rel (%p369) target = $region64
        $region63: #{tpu_custom_call.1} parent=55 // pred_region
          %372 = dma.done [#allocation7], 4096
        $region64: #{tpu_custom_call.1} parent=55 // pred_fallthru
          _
        // Predicated region
        $region65: #{tpu_custom_call.1} parent=55 // pred_check
          %p373 = pneg %p118
        $region66: #{tpu_custom_call.1} parent=55 // pred_check_branch
          %375 = sbr.rel (%p373) target = $region68
        $region67: #{tpu_custom_call.1} parent=55 // pred_region
          %376 = dma.done [#allocation7], 1024
        $region68: #{tpu_custom_call.1} parent=55 // pred_fallthru
          _
        %s377 = smul.u32 8, %s29
        %p378 = scmp.lt.s32.totalorder %s377, 15
        %s379 = scalar_select %p378, %s377, 15
        %s380 = smul.addr %s379, 2
        %s381 = smul.addr %s380, 8
        %s382 = scalar_lea.vmem %s0, %s381
        %p383 = pneg %p50
        %p384 = pneg %p47
        %s385 = sand.u32 %s63, 1
        %s386 = scalar_lea.sflag [#allocation4], %s385
        %s387 = sand.u32 %s63, 1
        %s388 = smul.addr %s387, 128
        %s389 = scalar_lea.vmem [#allocation3], %s388
        %p390 = pneg %p76
        %p391 = pneg %p73
        %p392 = pneg %p97
        %p393 = pneg %p94
        %p394 = pneg %p118
        %p395 = pneg %p115
        %p396 = pneg %p139
        %p397 = pneg %p136
        %p398 = pneg %p160
        %p399 = pneg %p157
        %p400 = pneg %p181
        %p401 = pneg %p178
        %p402 = pneg %p202
        %p403 = pneg %p199
        %s404 = smul.u32 8, %s29
        %p405 = scmp.lt.s32.totalorder %s404, 15
        %s406 = scalar_select %p405, %s404, 15
        %s407 = smul.addr %s406, 2
        %s408 = smul.addr %s407, 8
        %s409 = scalar_lea.vmem %s8, %s408
        %p410 = pneg %p228
        %p411 = pneg %p225
        %p412 = pneg %p254
        %p413 = pneg %p251
        %s414 = sand.u32 %s241, 1
        %s415 = scalar_lea.sflag [#allocation5], %s414
        %s416 = sand.u32 %s241, 1
        %s417 = smul.addr %s416, 8
        %s418 = scalar_lea.vmem [#allocation9], %s417
        %s419 = smul.u32 8, %s29
        %p420 = scmp.lt.s32.totalorder %s419, 15
        %s421 = scalar_select %p420, %s419, 15
        %s422 = smul.addr %s421, 2
        %s423 = smul.addr %s422, 8
        %s424 = scalar_lea.vmem %s0, %s423
        %s425 = smul.u32 8, %s29
        %s426 = smul.u32 8, %s29
        %s427 = smul.u32 8, %s29
        %p428 = scmp.lt.s32.totalorder %s427, 15
        %s429 = scalar_select %p428, %s427, 15
        %s430 = smul.addr %s429, 2
        %s431 = smul.addr %s430, 8
        %s432 = scalar_lea.vmem %s8, %s431
        %s433 = smul.u32 8, %s29
        %v435 = vld [vmem:[%s364] sm:$0xff]
        %v436 = vld [vmem:[%s364 + $0x8] sm:$0xff]
        %v437 = vld [vmem:[%s364 + $0x10] sm:$0xff]
        %v438 = vld [vmem:[%s364 + $0x18] sm:$0xff]
        %v439 = vld [vmem:[%s364 + $0x20] sm:$0xff]
        %v440 = vld [vmem:[%s364 + $0x28] sm:$0xff]
        %v441 = vld [vmem:[%s364 + $0x30] sm:$0xff]
        %v442 = vld [vmem:[%s364 + $0x38] sm:$0xff]
        %v443 = vld [vmem:[%s364 + $0x40] sm:$0xff]
        %v444 = vld [vmem:[%s364 + $0x48] sm:$0xff]
        %v445 = vld [vmem:[%s364 + $0x50] sm:$0xff]
        %v446 = vld [vmem:[%s364 + $0x58] sm:$0xff]
        %v447 = vld [vmem:[%s364 + $0x60] sm:$0xff]
        %v448 = vld [vmem:[%s364 + $0x68] sm:$0xff]
        %v449 = vld [vmem:[%s364 + $0x70] sm:$0xff]
        %v450 = vld [vmem:[%s364 + $0x78] sm:$0xff]
        %v451 = vld [vmem:[#allocation8] sm:$0xf]
        %v452 = vld [vmem:[#allocation8 + $0x4] sm:$0xf]
        %v453 = vld [vmem:[#allocation8 + $0x8] sm:$0xf]
        %v454 = vld [vmem:[#allocation8 + $0xc] sm:$0xf]
        %v455 = vld [vmem:[#allocation8 + $0x10] sm:$0xf]
        %v456 = vld [vmem:[#allocation8 + $0x14] sm:$0xf]
        %v457 = vld [vmem:[#allocation8 + $0x18] sm:$0xf]
        %v458 = vld [vmem:[#allocation8 + $0x1c] sm:$0xf]
        %v459 = vld [vmem:[#allocation8 + $0x20] sm:$0xf]
        %v460 = vld [vmem:[#allocation8 + $0x24] sm:$0xf]
        %v461 = vld [vmem:[#allocation8 + $0x28] sm:$0xf]
        %v462 = vld [vmem:[#allocation8 + $0x2c] sm:$0xf]
        %v463 = vld [vmem:[#allocation8 + $0x30] sm:$0xf]
        %v464 = vld [vmem:[#allocation8 + $0x34] sm:$0xf]
        %v465 = vld [vmem:[#allocation8 + $0x38] sm:$0xf]
        %v466 = vld [vmem:[#allocation8 + $0x3c] sm:$0xf]
        %v467 = vld [vmem:[%s4] sm:$0x1]
        %v468 = vld [vmem:[%s5] sm:$0x1]
        %v469 = vld [vmem:[%s424] sm:$0xff]
        %v470 = vld [vmem:[%s424 + $0x8] sm:$0xff]
        %v471 = vld [vmem:[%s424 + $0x10] sm:$0xff]
        %v472 = vld [vmem:[%s424 + $0x18] sm:$0xff]
        %v473 = vld [vmem:[%s424 + $0x20] sm:$0xff]
        %v474 = vld [vmem:[%s424 + $0x28] sm:$0xff]
        %v475 = vld [vmem:[%s424 + $0x30] sm:$0xff]
        %v476 = vld [vmem:[%s424 + $0x38] sm:$0xff]
        %v477 = vld [vmem:[%s424 + $0x40] sm:$0xff]
        %v478 = vld [vmem:[%s424 + $0x48] sm:$0xff]
        %v479 = vld [vmem:[%s424 + $0x50] sm:$0xff]
        %v480 = vld [vmem:[%s424 + $0x58] sm:$0xff]
        %v481 = vld [vmem:[%s424 + $0x60] sm:$0xff]
        %v482 = vld [vmem:[%s424 + $0x68] sm:$0xff]
        %v483 = vld [vmem:[%s424 + $0x70] sm:$0xff]
        %v484 = vld [vmem:[%s424 + $0x78] sm:$0xff]
        %vm485 = vcmask 130048
        %v487 = vsel %vm485, %v435, 0
        %v490 = vsel %vm485, %v436, 0
        %492 = vmatprep.subr.mxu0 0.0
        %493 = vmatpush1.msra.mxu0 %v469
        %494 = vmatprep.subr.mxu0 0.0
        %495 = vmatpush1.msra.mxu0 %v470
        %496 = vmatprep.subr.mxu0 0.0
        %497 = vmatpush1.msra.mxu0 0.0
        %498 = vmatprep.subr.mxu0 0.0
        %499 = vmatpush1.msra.mxu0 0.0
        %500 = vmatprep.subr.mxu0 0.0
        %501 = vmatpush1.msra.mxu0 0.0
        %502 = vmatprep.subr.mxu0 0.0
        %503 = vmatpush1.msra.mxu0 0.0
        %504 = vmatprep.subr.mxu0 0.0
        %505 = vmatpush1.msra.mxu0 0.0
        %506 = vmatprep.subr.mxu0 0.0
        %507 = vmatpush1.msra.mxu0 0.0
        %508 = vmatprep.subr.mxu0 0.0
        %509 = vmatpush1.msra.mxu0 0.0
        %510 = vmatprep.subr.mxu0 0.0
        %511 = vmatpush1.msra.mxu0 0.0
        %512 = vmatprep.subr.mxu0 0.0
        %513 = vmatpush1.msra.mxu0 0.0
        %514 = vmatprep.subr.mxu0 0.0
        %515 = vmatpush1.msra.mxu0 0.0
        %516 = vmatprep.subr.mxu0 0.0
        %517 = vmatpush1.msra.mxu0 0.0
        %518 = vmatprep.subr.mxu0 0.0
        %519 = vmatpush1.msra.mxu0 0.0
        %520 = vmatprep.subr.mxu0 0.0
        %521 = vmatpush1.msra.mxu0 0.0
        %522 = vmatprep.subr.mxu0 0.0
        %523 = vmatpush1.msra.mxu0 0.0
        %524 = vmatprep.subr.mxu0 0.0
        %525 = vmatpush1.msra.mxu0 0.0
        %526 = vmatprep.subr.mxu0 0.0
        %527 = vmatpush1.msra.mxu0 0.0
        %528 = vmatprep.subr.mxu0 0.0
        %529 = vmatpush1.msra.mxu0 0.0
        %530 = vmatprep.subr.mxu0 0.0
        %531 = vmatpush1.msra.mxu0 0.0
        %532 = vmatprep.subr.mxu0 0.0
        %533 = vmatpush1.msra.mxu0 0.0
        %534 = vmatprep.subr.mxu0 0.0
        %535 = vmatpush1.msra.mxu0 0.0
        %536 = vmatprep.subr.mxu0 0.0
        %537 = vmatpush1.msra.mxu0 0.0
        %538 = vmatprep.subr.mxu0 0.0
        %539 = vmatpush1.msra.mxu0 0.0
        %540 = vmatprep.subr.mxu0 0.0
        %541 = vmatpush1.msra.mxu0 0.0
        %542 = vmatprep.subr.mxu0 0.0
        %543 = vmatpush1.msra.mxu0 0.0
        %544 = vmatprep.subr.mxu0 0.0
        %545 = vmatpush1.msra.mxu0 0.0
        %546 = vmatprep.subr.mxu0 0.0
        %547 = vmatpush1.msra.mxu0 0.0
        %548 = vmatprep.subr.mxu0 0.0
        %549 = vmatpush1.msra.mxu0 0.0
        %550 = vmatprep.subr.mxu0 0.0
        %551 = vmatpush1.msra.mxu0 0.0
        %552 = vmatprep.subr.mxu0 0.0
        %553 = vmatpush1.msra.mxu0 0.0
        %554 = vmatprep.subr.mxu0 0.0
        %555 = vmatpush1.msra.mxu0 0.0
        %556 = vmatprep.mubr.f32.mxu0 0.0
        %557 = vmatmul.mubr.f32.gmra.mrb[0].mxu0 %v487
        %v558 = vpop.f32.mrb[0].mxu0
        %v559 = vadd.f32 0.0, %v558
        %v560 = vpop.f32.mrb[0].mxu0
        %561 = vmatprep.mubr.f32.mxu0 0.0
        %562 = vmatmul.mubr.f32.gmra.mrb[0].mxu0 %v490
        %v563 = vpop.f32.mrb[0].mxu0
        %v564 = vadd.f32 0.0, %v563
        %v565 = vpop.f32.mrb[0].mxu0
        %566 = vdwg.mxu0
        %v568 = vsel %vm485, %v437, 0
        %v571 = vsel %vm485, %v438, 0
        %573 = vmatprep.subr.mxu0 0.0
        %574 = vmatpush1.msra.mxu0 %v471
        %575 = vmatprep.subr.mxu0 0.0
        %576 = vmatpush1.msra.mxu0 %v472
        %577 = vmatprep.subr.mxu0 0.0
        %578 = vmatpush1.msra.mxu0 0.0
        %579 = vmatprep.subr.mxu0 0.0
        %580 = vmatpush1.msra.mxu0 0.0
        %581 = vmatprep.subr.mxu0 0.0
        %582 = vmatpush1.msra.mxu0 0.0
        %583 = vmatprep.subr.mxu0 0.0
        %584 = vmatpush1.msra.mxu0 0.0
        %585 = vmatprep.subr.mxu0 0.0
        %586 = vmatpush1.msra.mxu0 0.0
        %587 = vmatprep.subr.mxu0 0.0
        %588 = vmatpush1.msra.mxu0 0.0
        %589 = vmatprep.subr.mxu0 0.0
        %590 = vmatpush1.msra.mxu0 0.0
        %591 = vmatprep.subr.mxu0 0.0
        %592 = vmatpush1.msra.mxu0 0.0
        %593 = vmatprep.subr.mxu0 0.0
        %594 = vmatpush1.msra.mxu0 0.0
        %595 = vmatprep.subr.mxu0 0.0
        %596 = vmatpush1.msra.mxu0 0.0
        %597 = vmatprep.subr.mxu0 0.0
        %598 = vmatpush1.msra.mxu0 0.0
        %599 = vmatprep.subr.mxu0 0.0
        %600 = vmatpush1.msra.mxu0 0.0
        %601 = vmatprep.subr.mxu0 0.0
        %602 = vmatpush1.msra.mxu0 0.0
        %603 = vmatprep.subr.mxu0 0.0
        %604 = vmatpush1.msra.mxu0 0.0
        %605 = vmatprep.subr.mxu0 0.0
        %606 = vmatpush1.msra.mxu0 0.0
        %607 = vmatprep.subr.mxu0 0.0
        %608 = vmatpush1.msra.mxu0 0.0
        %609 = vmatprep.subr.mxu0 0.0
        %610 = vmatpush1.msra.mxu0 0.0
        %611 = vmatprep.subr.mxu0 0.0
        %612 = vmatpush1.msra.mxu0 0.0
        %613 = vmatprep.subr.mxu0 0.0
        %614 = vmatpush1.msra.mxu0 0.0
        %615 = vmatprep.subr.mxu0 0.0
        %616 = vmatpush1.msra.mxu0 0.0
        %617 = vmatprep.subr.mxu0 0.0
        %618 = vmatpush1.msra.mxu0 0.0
        %619 = vmatprep.subr.mxu0 0.0
        %620 = vmatpush1.msra.mxu0 0.0
        %621 = vmatprep.subr.mxu0 0.0
        %622 = vmatpush1.msra.mxu0 0.0
        %623 = vmatprep.subr.mxu0 0.0
        %624 = vmatpush1.msra.mxu0 0.0
        %625 = vmatprep.subr.mxu0 0.0
        %626 = vmatpush1.msra.mxu0 0.0
        %627 = vmatprep.subr.mxu0 0.0
        %628 = vmatpush1.msra.mxu0 0.0
        %629 = vmatprep.subr.mxu0 0.0
        %630 = vmatpush1.msra.mxu0 0.0
        %631 = vmatprep.subr.mxu0 0.0
        %632 = vmatpush1.msra.mxu0 0.0
        %633 = vmatprep.subr.mxu0 0.0
        %634 = vmatpush1.msra.mxu0 0.0
        %635 = vmatprep.subr.mxu0 0.0
        %636 = vmatpush1.msra.mxu0 0.0
        %637 = vmatprep.mubr.f32.mxu0 0.0
        %638 = vmatmul.mubr.f32.gmra.mrb[0].mxu0 %v568
        %v639 = vpop.f32.mrb[0].mxu0
        %v640 = vadd.f32 0.0, %v639
        %v641 = vpop.f32.mrb[0].mxu0
        %642 = vmatprep.mubr.f32.mxu0 0.0
        %643 = vmatmul.mubr.f32.gmra.mrb[0].mxu0 %v571
        %v644 = vpop.f32.mrb[0].mxu0
        %v645 = vadd.f32 0.0, %v644
        %v646 = vpop.f32.mrb[0].mxu0
        %647 = vdwg.mxu0
        %v649 = vsel %vm485, %v439, 0
        %v652 = vsel %vm485, %v440, 0
        %654 = vmatprep.subr.mxu0 0.0
        %655 = vmatpush1.msra.mxu0 %v473
        %656 = vmatprep.subr.mxu0 0.0
        %657 = vmatpush1.msra.mxu0 %v474
        %658 = vmatprep.subr.mxu0 0.0
        %659 = vmatpush1.msra.mxu0 0.0
        %660 = vmatprep.subr.mxu0 0.0
        %661 = vmatpush1.msra.mxu0 0.0
        %662 = vmatprep.subr.mxu0 0.0
        %663 = vmatpush1.msra.mxu0 0.0
        %664 = vmatprep.subr.mxu0 0.0
        %665 = vmatpush1.msra.mxu0 0.0
        %666 = vmatprep.subr.mxu0 0.0
        %667 = vmatpush1.msra.mxu0 0.0
        %668 = vmatprep.subr.mxu0 0.0
        %669 = vmatpush1.msra.mxu0 0.0
        %670 = vmatprep.subr.mxu0 0.0
        %671 = vmatpush1.msra.mxu0 0.0
        %672 = vmatprep.subr.mxu0 0.0
        %673 = vmatpush1.msra.mxu0 0.0
        %674 = vmatprep.subr.mxu0 0.0
        %675 = vmatpush1.msra.mxu0 0.0
        %676 = vmatprep.subr.mxu0 0.0
        %677 = vmatpush1.msra.mxu0 0.0
        %678 = vmatprep.subr.mxu0 0.0
        %679 = vmatpush1.msra.mxu0 0.0
        %680 = vmatprep.subr.mxu0 0.0
        %681 = vmatpush1.msra.mxu0 0.0
        %682 = vmatprep.subr.mxu0 0.0
        %683 = vmatpush1.msra.mxu0 0.0
        %684 = vmatprep.subr.mxu0 0.0
        %685 = vmatpush1.msra.mxu0 0.0
        %686 = vmatprep.subr.mxu0 0.0
        %687 = vmatpush1.msra.mxu0 0.0
        %688 = vmatprep.subr.mxu0 0.0
        %689 = vmatpush1.msra.mxu0 0.0
        %690 = vmatprep.subr.mxu0 0.0
        %691 = vmatpush1.msra.mxu0 0.0
        %692 = vmatprep.subr.mxu0 0.0
        %693 = vmatpush1.msra.mxu0 0.0
        %694 = vmatprep.subr.mxu0 0.0
        %695 = vmatpush1.msra.mxu0 0.0
        %696 = vmatprep.subr.mxu0 0.0
        %697 = vmatpush1.msra.mxu0 0.0
        %698 = vmatprep.subr.mxu0 0.0
        %699 = vmatpush1.msra.mxu0 0.0
        %700 = vmatprep.subr.mxu0 0.0
        %701 = vmatpush1.msra.mxu0 0.0
        %702 = vmatprep.subr.mxu0 0.0
        %703 = vmatpush1.msra.mxu0 0.0
        %704 = vmatprep.subr.mxu0 0.0
        %705 = vmatpush1.msra.mxu0 0.0
        %706 = vmatprep.subr.mxu0 0.0
        %707 = vmatpush1.msra.mxu0 0.0
        %708 = vmatprep.subr.mxu0 0.0
        %709 = vmatpush1.msra.mxu0 0.0
        %710 = vmatprep.subr.mxu0 0.0
        %711 = vmatpush1.msra.mxu0 0.0
        %712 = vmatprep.subr.mxu0 0.0
        %713 = vmatpush1.msra.mxu0 0.0
        %714 = vmatprep.subr.mxu0 0.0
        %715 = vmatpush1.msra.mxu0 0.0
        %716 = vmatprep.subr.mxu0 0.0
        %717 = vmatpush1.msra.mxu0 0.0
        %718 = vmatprep.mubr.f32.mxu0 0.0
        %719 = vmatmul.mubr.f32.gmra.mrb[0].mxu0 %v649
        %v720 = vpop.f32.mrb[0].mxu0
        %v721 = vadd.f32 0.0, %v720
        %v722 = vpop.f32.mrb[0].mxu0
        %723 = vmatprep.mubr.f32.mxu0 0.0
        %724 = vmatmul.mubr.f32.gmra.mrb[0].mxu0 %v652
        %v725 = vpop.f32.mrb[0].mxu0
        %v726 = vadd.f32 0.0, %v725
        %v727 = vpop.f32.mrb[0].mxu0
        %728 = vdwg.mxu0
        %v730 = vsel %vm485, %v441, 0
        %v733 = vsel %vm485, %v442, 0
        %735 = vmatprep.subr.mxu0 0.0
        %736 = vmatpush1.msra.mxu0 %v475
        %737 = vmatprep.subr.mxu0 0.0
        %738 = vmatpush1.msra.mxu0 %v476
        %739 = vmatprep.subr.mxu0 0.0
        %740 = vmatpush1.msra.mxu0 0.0
        %741 = vmatprep.subr.mxu0 0.0
        %742 = vmatpush1.msra.mxu0 0.0
        %743 = vmatprep.subr.mxu0 0.0
        %744 = vmatpush1.msra.mxu0 0.0
        %745 = vmatprep.subr.mxu0 0.0
        %746 = vmatpush1.msra.mxu0 0.0
        %747 = vmatprep.subr.mxu0 0.0
        %748 = vmatpush1.msra.mxu0 0.0
        %749 = vmatprep.subr.mxu0 0.0
        %750 = vmatpush1.msra.mxu0 0.0
        %751 = vmatprep.subr.mxu0 0.0
        %752 = vmatpush1.msra.mxu0 0.0
        %753 = vmatprep.subr.mxu0 0.0
        %754 = vmatpush1.msra.mxu0 0.0
        %755 = vmatprep.subr.mxu0 0.0
        %756 = vmatpush1.msra.mxu0 0.0
        %757 = vmatprep.subr.mxu0 0.0
        %758 = vmatpush1.msra.mxu0 0.0
        %759 = vmatprep.subr.mxu0 0.0
        %760 = vmatpush1.msra.mxu0 0.0
        %761 = vmatprep.subr.mxu0 0.0
        %762 = vmatpush1.msra.mxu0 0.0
        %763 = vmatprep.subr.mxu0 0.0
        %764 = vmatpush1.msra.mxu0 0.0
        %765 = vmatprep.subr.mxu0 0.0
        %766 = vmatpush1.msra.mxu0 0.0
        %767 = vmatprep.subr.mxu0 0.0
        %768 = vmatpush1.msra.mxu0 0.0
        %769 = vmatprep.subr.mxu0 0.0
        %770 = vmatpush1.msra.mxu0 0.0
        %771 = vmatprep.subr.mxu0 0.0
        %772 = vmatpush1.msra.mxu0 0.0
        %773 = vmatprep.subr.mxu0 0.0
        %774 = vmatpush1.msra.mxu0 0.0
        %775 = vmatprep.subr.mxu0 0.0
        %776 = vmatpush1.msra.mxu0 0.0
        %777 = vmatprep.subr.mxu0 0.0
        %778 = vmatpush1.msra.mxu0 0.0
        %779 = vmatprep.subr.mxu0 0.0
        %780 = vmatpush1.msra.mxu0 0.0
        %781 = vmatprep.subr.mxu0 0.0
        %782 = vmatpush1.msra.mxu0 0.0
        %783 = vmatprep.subr.mxu0 0.0
        %784 = vmatpush1.msra.mxu0 0.0
        %785 = vmatprep.subr.mxu0 0.0
        %786 = vmatpush1.msra.mxu0 0.0
        %787 = vmatprep.subr.mxu0 0.0
        %788 = vmatpush1.msra.mxu0 0.0
        %789 = vmatprep.subr.mxu0 0.0
        %790 = vmatpush1.msra.mxu0 0.0
        %791 = vmatprep.subr.mxu0 0.0
        %792 = vmatpush1.msra.mxu0 0.0
        %793 = vmatprep.subr.mxu0 0.0
        %794 = vmatpush1.msra.mxu0 0.0
        %795 = vmatprep.subr.mxu0 0.0
        %796 = vmatpush1.msra.mxu0 0.0
        %797 = vmatprep.subr.mxu0 0.0
        %798 = vmatpush1.msra.mxu0 0.0
        %799 = vmatprep.mubr.f32.mxu0 0.0
        %800 = vmatmul.mubr.f32.gmra.mrb[0].mxu0 %v730
        %v801 = vpop.f32.mrb[0].mxu0
        %v802 = vadd.f32 0.0, %v801
        %v803 = vpop.f32.mrb[0].mxu0
        %804 = vmatprep.mubr.f32.mxu0 0.0
        %805 = vmatmul.mubr.f32.gmra.mrb[0].mxu0 %v733
        %v806 = vpop.f32.mrb[0].mxu0
        %v807 = vadd.f32 0.0, %v806
        %v808 = vpop.f32.mrb[0].mxu0
        %809 = vdwg.mxu0
        %v811 = vsel %vm485, %v443, 0
        %v814 = vsel %vm485, %v444, 0
        %816 = vmatprep.subr.mxu0 0.0
        %817 = vmatpush1.msra.mxu0 %v477
        %818 = vmatprep.subr.mxu0 0.0
        %819 = vmatpush1.msra.mxu0 %v478
        %820 = vmatprep.subr.mxu0 0.0
        %821 = vmatpush1.msra.mxu0 0.0
        %822 = vmatprep.subr.mxu0 0.0
        %823 = vmatpush1.msra.mxu0 0.0
        %824 = vmatprep.subr.mxu0 0.0
        %825 = vmatpush1.msra.mxu0 0.0
        %826 = vmatprep.subr.mxu0 0.0
        %827 = vmatpush1.msra.mxu0 0.0
        %828 = vmatprep.subr.mxu0 0.0
        %829 = vmatpush1.msra.mxu0 0.0
        %830 = vmatprep.subr.mxu0 0.0
        %831 = vmatpush1.msra.mxu0 0.0
        %832 = vmatprep.subr.mxu0 0.0
        %833 = vmatpush1.msra.mxu0 0.0
        %834 = vmatprep.subr.mxu0 0.0
        %835 = vmatpush1.msra.mxu0 0.0
        %836 = vmatprep.subr.mxu0 0.0
        %837 = vmatpush1.msra.mxu0 0.0
        %838 = vmatprep.subr.mxu0 0.0
        %839 = vmatpush1.msra.mxu0 0.0
        %840 = vmatprep.subr.mxu0 0.0
        %841 = vmatpush1.msra.mxu0 0.0
        %842 = vmatprep.subr.mxu0 0.0
        %843 = vmatpush1.msra.mxu0 0.0
        %844 = vmatprep.subr.mxu0 0.0
        %845 = vmatpush1.msra.mxu0 0.0
        %846 = vmatprep.subr.mxu0 0.0
        %847 = vmatpush1.msra.mxu0 0.0
        %848 = vmatprep.subr.mxu0 0.0
        %849 = vmatpush1.msra.mxu0 0.0
        %850 = vmatprep.subr.mxu0 0.0
        %851 = vmatpush1.msra.mxu0 0.0
        %852 = vmatprep.subr.mxu0 0.0
        %853 = vmatpush1.msra.mxu0 0.0
        %854 = vmatprep.subr.mxu0 0.0
        %855 = vmatpush1.msra.mxu0 0.0
        %856 = vmatprep.subr.mxu0 0.0
        %857 = vmatpush1.msra.mxu0 0.0
        %858 = vmatprep.subr.mxu0 0.0
        %859 = vmatpush1.msra.mxu0 0.0
        %860 = vmatprep.subr.mxu0 0.0
        %861 = vmatpush1.msra.mxu0 0.0
        %862 = vmatprep.subr.mxu0 0.0
        %863 = vmatpush1.msra.mxu0 0.0
        %864 = vmatprep.subr.mxu0 0.0
        %865 = vmatpush1.msra.mxu0 0.0
        %866 = vmatprep.subr.mxu0 0.0
        %867 = vmatpush1.msra.mxu0 0.0
        %868 = vmatprep.subr.mxu0 0.0
        %869 = vmatpush1.msra.mxu0 0.0
        %870 = vmatprep.subr.mxu0 0.0
        %871 = vmatpush1.msra.mxu0 0.0
        %872 = vmatprep.subr.mxu0 0.0
        %873 = vmatpush1.msra.mxu0 0.0
        %874 = vmatprep.subr.mxu0 0.0
        %875 = vmatpush1.msra.mxu0 0.0
        %876 = vmatprep.subr.mxu0 0.0
        %877 = vmatpush1.msra.mxu0 0.0
        %878 = vmatprep.subr.mxu0 0.0
        %879 = vmatpush1.msra.mxu0 0.0
        %880 = vmatprep.mubr.f32.mxu0 0.0
        %881 = vmatmul.mubr.f32.gmra.mrb[0].mxu0 %v811
        %v882 = vpop.f32.mrb[0].mxu0
        %v883 = vadd.f32 0.0, %v882
        %v884 = vpop.f32.mrb[0].mxu0
        %885 = vmatprep.mubr.f32.mxu0 0.0
        %886 = vmatmul.mubr.f32.gmra.mrb[0].mxu0 %v814
        %v887 = vpop.f32.mrb[0].mxu0
        %v888 = vadd.f32 0.0, %v887
        %v889 = vpop.f32.mrb[0].mxu0
        %890 = vdwg.mxu0
        %v892 = vsel %vm485, %v445, 0
        %v895 = vsel %vm485, %v446, 0
        %897 = vmatprep.subr.mxu0 0.0
        %898 = vmatpush1.msra.mxu0 %v479
        %899 = vmatprep.subr.mxu0 0.0
        %900 = vmatpush1.msra.mxu0 %v480
        %901 = vmatprep.subr.mxu0 0.0
        %902 = vmatpush1.msra.mxu0 0.0
        %903 = vmatprep.subr.mxu0 0.0
        %904 = vmatpush1.msra.mxu0 0.0
        %905 = vmatprep.subr.mxu0 0.0
        %906 = vmatpush1.msra.mxu0 0.0
        %907 = vmatprep.subr.mxu0 0.0
        %908 = vmatpush1.msra.mxu0 0.0
        %909 = vmatprep.subr.mxu0 0.0
        %910 = vmatpush1.msra.mxu0 0.0
        %911 = vmatprep.subr.mxu0 0.0
        %912 = vmatpush1.msra.mxu0 0.0
        %913 = vmatprep.subr.mxu0 0.0
        %914 = vmatpush1.msra.mxu0 0.0
        %915 = vmatprep.subr.mxu0 0.0
        %916 = vmatpush1.msra.mxu0 0.0
        %917 = vmatprep.subr.mxu0 0.0
        %918 = vmatpush1.msra.mxu0 0.0
        %919 = vmatprep.subr.mxu0 0.0
        %920 = vmatpush1.msra.mxu0 0.0
        %921 = vmatprep.subr.mxu0 0.0
        %922 = vmatpush1.msra.mxu0 0.0
        %923 = vmatprep.subr.mxu0 0.0
        %924 = vmatpush1.msra.mxu0 0.0
        %925 = vmatprep.subr.mxu0 0.0
        %926 = vmatpush1.msra.mxu0 0.0
        %927 = vmatprep.subr.mxu0 0.0
        %928 = vmatpush1.msra.mxu0 0.0
        %929 = vmatprep.subr.mxu0 0.0
        %930 = vmatpush1.msra.mxu0 0.0
        %931 = vmatprep.subr.mxu0 0.0
        %932 = vmatpush1.msra.mxu0 0.0
        %933 = vmatprep.subr.mxu0 0.0
        %934 = vmatpush1.msra.mxu0 0.0
        %935 = vmatprep.subr.mxu0 0.0
        %936 = vmatpush1.msra.mxu0 0.0
        %937 = vmatprep.subr.mxu0 0.0
        %938 = vmatpush1.msra.mxu0 0.0
        %939 = vmatprep.subr.mxu0 0.0
        %940 = vmatpush1.msra.mxu0 0.0
        %941 = vmatprep.subr.mxu0 0.0
        %942 = vmatpush1.msra.mxu0 0.0
        %943 = vmatprep.subr.mxu0 0.0
        %944 = vmatpush1.msra.mxu0 0.0
        %945 = vmatprep.subr.mxu0 0.0
        %946 = vmatpush1.msra.mxu0 0.0
        %947 = vmatprep.subr.mxu0 0.0
        %948 = vmatpush1.msra.mxu0 0.0
        %949 = vmatprep.subr.mxu0 0.0
        %950 = vmatpush1.msra.mxu0 0.0
        %951 = vmatprep.subr.mxu0 0.0
        %952 = vmatpush1.msra.mxu0 0.0
        %953 = vmatprep.subr.mxu0 0.0
        %954 = vmatpush1.msra.mxu0 0.0
        %955 = vmatprep.subr.mxu0 0.0
        %956 = vmatpush1.msra.mxu0 0.0
        %957 = vmatprep.subr.mxu0 0.0
        %958 = vmatpush1.msra.mxu0 0.0
        %959 = vmatprep.subr.mxu0 0.0
        %960 = vmatpush1.msra.mxu0 0.0
        %961 = vmatprep.mubr.f32.mxu0 0.0
        %962 = vmatmul.mubr.f32.gmra.mrb[0].mxu0 %v892
        %v963 = vpop.f32.mrb[0].mxu0
        %v964 = vadd.f32 0.0, %v963
        %v965 = vpop.f32.mrb[0].mxu0
        %966 = vmatprep.mubr.f32.mxu0 0.0
        %967 = vmatmul.mubr.f32.gmra.mrb[0].mxu0 %v895
        %v968 = vpop.f32.mrb[0].mxu0
        %v969 = vadd.f32 0.0, %v968
        %v970 = vpop.f32.mrb[0].mxu0
        %971 = vdwg.mxu0
        %v973 = vsel %vm485, %v447, 0
        %v976 = vsel %vm485, %v448, 0
        %978 = vmatprep.subr.mxu0 0.0
        %979 = vmatpush1.msra.mxu0 %v481
        %980 = vmatprep.subr.mxu0 0.0
        %981 = vmatpush1.msra.mxu0 %v482
        %982 = vmatprep.subr.mxu0 0.0
        %983 = vmatpush1.msra.mxu0 0.0
        %984 = vmatprep.subr.mxu0 0.0
        %985 = vmatpush1.msra.mxu0 0.0
        %986 = vmatprep.subr.mxu0 0.0
        %987 = vmatpush1.msra.mxu0 0.0
        %988 = vmatprep.subr.mxu0 0.0
        %989 = vmatpush1.msra.mxu0 0.0
        %990 = vmatprep.subr.mxu0 0.0
        %991 = vmatpush1.msra.mxu0 0.0
        %992 = vmatprep.subr.mxu0 0.0
        %993 = vmatpush1.msra.mxu0 0.0
        %994 = vmatprep.subr.mxu0 0.0
        %995 = vmatpush1.msra.mxu0 0.0
        %996 = vmatprep.subr.mxu0 0.0
        %997 = vmatpush1.msra.mxu0 0.0
        %998 = vmatprep.subr.mxu0 0.0
        %999 = vmatpush1.msra.mxu0 0.0
        %1000 = vmatprep.subr.mxu0 0.0
        %1001 = vmatpush1.msra.mxu0 0.0
        %1002 = vmatprep.subr.mxu0 0.0
        %1003 = vmatpush1.msra.mxu0 0.0
        %1004 = vmatprep.subr.mxu0 0.0
        %1005 = vmatpush1.msra.mxu0 0.0
        %1006 = vmatprep.subr.mxu0 0.0
        %1007 = vmatpush1.msra.mxu0 0.0
        %1008 = vmatprep.subr.mxu0 0.0
        %1009 = vmatpush1.msra.mxu0 0.0
        %1010 = vmatprep.subr.mxu0 0.0
        %1011 = vmatpush1.msra.mxu0 0.0
        %1012 = vmatprep.subr.mxu0 0.0
        %1013 = vmatpush1.msra.mxu0 0.0
        %1014 = vmatprep.subr.mxu0 0.0
        %1015 = vmatpush1.msra.mxu0 0.0
        %1016 = vmatprep.subr.mxu0 0.0
        %1017 = vmatpush1.msra.mxu0 0.0
        %1018 = vmatprep.subr.mxu0 0.0
        %1019 = vmatpush1.msra.mxu0 0.0
        %1020 = vmatprep.subr.mxu0 0.0
        %1021 = vmatpush1.msra.mxu0 0.0
        %1022 = vmatprep.subr.mxu0 0.0
        %1023 = vmatpush1.msra.mxu0 0.0
        %1024 = vmatprep.subr.mxu0 0.0
        %1025 = vmatpush1.msra.mxu0 0.0
        %1026 = vmatprep.subr.mxu0 0.0
        %1027 = vmatpush1.msra.mxu0 0.0
        %1028 = vmatprep.subr.mxu0 0.0
        %1029 = vmatpush1.msra.mxu0 0.0
        %1030 = vmatprep.subr.mxu0 0.0
        %1031 = vmatpush1.msra.mxu0 0.0
        %1032 = vmatprep.subr.mxu0 0.0
        %1033 = vmatpush1.msra.mxu0 0.0
        %1034 = vmatprep.subr.mxu0 0.0
        %1035 = vmatpush1.msra.mxu0 0.0
        %1036 = vmatprep.subr.mxu0 0.0
        %1037 = vmatpush1.msra.mxu0 0.0
        %1038 = vmatprep.subr.mxu0 0.0
        %1039 = vmatpush1.msra.mxu0 0.0
        %1040 = vmatprep.subr.mxu0 0.0
        %1041 = vmatpush1.msra.mxu0 0.0
        %1042 = vmatprep.mubr.f32.mxu0 0.0
        %1043 = vmatmul.mubr.f32.gmra.mrb[0].mxu0 %v973
        %v1044 = vpop.f32.mrb[0].mxu0
        %v1045 = vadd.f32 0.0, %v1044
        %v1046 = vpop.f32.mrb[0].mxu0
        %1047 = vmatprep.mubr.f32.mxu0 0.0
        %1048 = vmatmul.mubr.f32.gmra.mrb[0].mxu0 %v976
        %v1049 = vpop.f32.mrb[0].mxu0
        %v1050 = vadd.f32 0.0, %v1049
        %v1051 = vpop.f32.mrb[0].mxu0
        %1052 = vdwg.mxu0
        %v1054 = vsel %vm485, %v449, 0
        %v1057 = vsel %vm485, %v450, 0
        %1059 = vmatprep.subr.mxu0 0.0
        %1060 = vmatpush1.msra.mxu0 %v483
        %1061 = vmatprep.subr.mxu0 0.0
        %1062 = vmatpush1.msra.mxu0 %v484
        %1063 = vmatprep.subr.mxu0 0.0
        %1064 = vmatpush1.msra.mxu0 0.0
        %1065 = vmatprep.subr.mxu0 0.0
        %1066 = vmatpush1.msra.mxu0 0.0
        %1067 = vmatprep.subr.mxu0 0.0
        %1068 = vmatpush1.msra.mxu0 0.0
        %1069 = vmatprep.subr.mxu0 0.0
        %1070 = vmatpush1.msra.mxu0 0.0
        %1071 = vmatprep.subr.mxu0 0.0
        %1072 = vmatpush1.msra.mxu0 0.0
        %1073 = vmatprep.subr.mxu0 0.0
        %1074 = vmatpush1.msra.mxu0 0.0
        %1075 = vmatprep.subr.mxu0 0.0
        %1076 = vmatpush1.msra.mxu0 0.0
        %1077 = vmatprep.subr.mxu0 0.0
        %1078 = vmatpush1.msra.mxu0 0.0
        %1079 = vmatprep.subr.mxu0 0.0
        %1080 = vmatpush1.msra.mxu0 0.0
        %1081 = vmatprep.subr.mxu0 0.0
        %1082 = vmatpush1.msra.mxu0 0.0
        %1083 = vmatprep.subr.mxu0 0.0
        %1084 = vmatpush1.msra.mxu0 0.0
        %1085 = vmatprep.subr.mxu0 0.0
        %1086 = vmatpush1.msra.mxu0 0.0
        %1087 = vmatprep.subr.mxu0 0.0
        %1088 = vmatpush1.msra.mxu0 0.0
        %1089 = vmatprep.subr.mxu0 0.0
        %1090 = vmatpush1.msra.mxu0 0.0
        %1091 = vmatprep.subr.mxu0 0.0
        %1092 = vmatpush1.msra.mxu0 0.0
        %1093 = vmatprep.subr.mxu0 0.0
        %1094 = vmatpush1.msra.mxu0 0.0
        %1095 = vmatprep.subr.mxu0 0.0
        %1096 = vmatpush1.msra.mxu0 0.0
        %1097 = vmatprep.subr.mxu0 0.0
        %1098 = vmatpush1.msra.mxu0 0.0
        %1099 = vmatprep.subr.mxu0 0.0
        %1100 = vmatpush1.msra.mxu0 0.0
        %1101 = vmatprep.subr.mxu0 0.0
        %1102 = vmatpush1.msra.mxu0 0.0
        %1103 = vmatprep.subr.mxu0 0.0
        %1104 = vmatpush1.msra.mxu0 0.0
        %1105 = vmatprep.subr.mxu0 0.0
        %1106 = vmatpush1.msra.mxu0 0.0
        %1107 = vmatprep.subr.mxu0 0.0
        %1108 = vmatpush1.msra.mxu0 0.0
        %1109 = vmatprep.subr.mxu0 0.0
        %1110 = vmatpush1.msra.mxu0 0.0
        %1111 = vmatprep.subr.mxu0 0.0
        %1112 = vmatpush1.msra.mxu0 0.0
        %1113 = vmatprep.subr.mxu0 0.0
        %1114 = vmatpush1.msra.mxu0 0.0
        %1115 = vmatprep.subr.mxu0 0.0
        %1116 = vmatpush1.msra.mxu0 0.0
        %1117 = vmatprep.subr.mxu0 0.0
        %1118 = vmatpush1.msra.mxu0 0.0
        %1119 = vmatprep.subr.mxu0 0.0
        %1120 = vmatpush1.msra.mxu0 0.0
        %1121 = vmatprep.subr.mxu0 0.0
        %1122 = vmatpush1.msra.mxu0 0.0
        %1123 = vmatprep.mubr.f32.mxu0 0.0
        %1124 = vmatmul.mubr.f32.gmra.mrb[0].mxu0 %v1054
        %v1125 = vpop.f32.mrb[0].mxu0
        %v1126 = vadd.f32 0.0, %v1125
        %v1127 = vpop.f32.mrb[0].mxu0
        %1128 = vmatprep.mubr.f32.mxu0 0.0
        %1129 = vmatmul.mubr.f32.gmra.mrb[0].mxu0 %v1057
        %v1130 = vpop.f32.mrb[0].mxu0
        %v1131 = vadd.f32 0.0, %v1130
        %v1132 = vpop.f32.mrb[0].mxu0
        %1133 = vdwg.mxu0
        %v1134 = vpack.c.bf16 %v470, %v469
        %v1135 = vpack.c.bf16 %v472, %v471
        %v1136 = vpack.c.bf16 %v474, %v473
        %v1137 = vpack.c.bf16 %v476, %v475
        %v1138 = vpack.c.bf16 %v478, %v477
        %v1139 = vpack.c.bf16 %v480, %v479
        %v1140 = vpack.c.bf16 %v482, %v481
        %v1141 = vpack.c.bf16 %v484, %v483
        %v1142 = vpack.c.bf16 %v564, %v559
        %v1143 = vpack.c.bf16 %v645, %v640
        %v1144 = vpack.c.bf16 %v726, %v721
        %v1145 = vpack.c.bf16 %v807, %v802
        %v1146 = vpack.c.bf16 %v888, %v883
        %v1147 = vpack.c.bf16 %v969, %v964
        %v1148 = vpack.c.bf16 %v1050, %v1045
        %v1149 = vpack.c.bf16 %v1131, %v1126
        %v1150 = vld [vmem:[#allocation6] sm:$0xf]
        %v1151 = vld [vmem:[#allocation6 + $0x4] sm:$0xf]
        %v1152 = vld [vmem:[#allocation6 + $0x8] sm:$0xf]
        %v1153 = vld [vmem:[#allocation6 + $0xc] sm:$0xf]
        %v1154 = vld [vmem:[#allocation6 + $0x10] sm:$0xf]
        %v1155 = vld [vmem:[#allocation6 + $0x14] sm:$0xf]
        %v1156 = vld [vmem:[#allocation6 + $0x18] sm:$0xf]
        %v1157 = vld [vmem:[#allocation6 + $0x1c] sm:$0xf]
        %v1158 = vld [vmem:[#allocation6 + $0x20] sm:$0xf]
        %v1159 = vld [vmem:[#allocation6 + $0x24] sm:$0xf]
        %v1160 = vld [vmem:[#allocation6 + $0x28] sm:$0xf]
        %v1161 = vld [vmem:[#allocation6 + $0x2c] sm:$0xf]
        %v1162 = vld [vmem:[#allocation6 + $0x30] sm:$0xf]
        %v1163 = vld [vmem:[#allocation6 + $0x34] sm:$0xf]
        %v1164 = vld [vmem:[#allocation6 + $0x38] sm:$0xf]
        %v1165 = vld [vmem:[#allocation6 + $0x3c] sm:$0xf]
        %v1167 = vlaneseq
        %v1168 = vshrl.u32 %v1167, 7
        %v1169 = vsub.s32 0, %v1168
        %v1170 = vrot.slane %v467, %v1169
        %v1188 = vunpack.c.l.b16 %v1150
        %v1189 = vunpack.c.l.b16 %v1151
        %v1190 = vunpack.c.l.b16 %v1152
        %v1191 = vunpack.c.l.b16 %v1153
        %v1192 = vunpack.c.l.b16 %v1154
        %v1193 = vunpack.c.l.b16 %v1155
        %v1194 = vunpack.c.l.b16 %v1156
        %v1195 = vunpack.c.l.b16 %v1157
        %v1196 = vunpack.c.l.b16 %v1158
        %v1197 = vunpack.c.l.b16 %v1159
        %v1198 = vunpack.c.l.b16 %v1160
        %v1199 = vunpack.c.l.b16 %v1161
        %v1200 = vunpack.c.l.b16 %v1162
        %v1201 = vunpack.c.l.b16 %v1163
        %v1202 = vunpack.c.l.b16 %v1164
        %v1203 = vunpack.c.l.b16 %v1165
        %v1204 = vpack.c.b16 %v1189, %v1188
        %v1205 = vpack.c.b16 %v1191, %v1190
        %v1206 = vpack.c.b16 %v1193, %v1192
        %v1207 = vpack.c.b16 %v1195, %v1194
        %v1208 = vpack.c.b16 %v1197, %v1196
        %v1209 = vpack.c.b16 %v1199, %v1198
        %v1210 = vpack.c.b16 %v1201, %v1200
        %v1211 = vpack.c.b16 %v1203, %v1202
        %1220 = vmatprep.subr.bf16.mxu0 0
        %1221 = vmatpush1.bf16.msra.mxu0 %v1204
        %1222 = vmatprep.subr.bf16.mxu0 0
        %1223 = vmatpush1.bf16.msra.mxu0 %v1205
        %1224 = vmatprep.subr.bf16.mxu0 0
        %1225 = vmatpush1.bf16.msra.mxu0 %v1206
        %1226 = vmatprep.subr.bf16.mxu0 0
        %1227 = vmatpush1.bf16.msra.mxu0 %v1207
        %1228 = vmatprep.subr.bf16.mxu0 0
        %1229 = vmatpush1.bf16.msra.mxu0 %v1208
        %1230 = vmatprep.subr.bf16.mxu0 0
        %1231 = vmatpush1.bf16.msra.mxu0 %v1209
        %1232 = vmatprep.subr.bf16.mxu0 0
        %1233 = vmatpush1.bf16.msra.mxu0 %v1210
        %1234 = vmatprep.subr.bf16.mxu0 0
        %1235 = vmatpush1.bf16.msra.mxu0 %v1211
        %1236 = vmatprep.subr.bf16.mxu0 0
        %1237 = vmatpush1.bf16.msra.mxu0 0
        %1238 = vmatprep.subr.bf16.mxu0 0
        %1239 = vmatpush1.bf16.msra.mxu0 0
        %1240 = vmatprep.subr.bf16.mxu0 0
        %1241 = vmatpush1.bf16.msra.mxu0 0
        %1242 = vmatprep.subr.bf16.mxu0 0
        %1243 = vmatpush1.bf16.msra.mxu0 0
        %1244 = vmatprep.subr.bf16.mxu0 0
        %1245 = vmatpush1.bf16.msra.mxu0 0
        %1246 = vmatprep.subr.bf16.mxu0 0
        %1247 = vmatpush1.bf16.msra.mxu0 0
        %1248 = vmatprep.subr.bf16.mxu0 0
        %1249 = vmatpush1.bf16.msra.mxu0 0
        %1250 = vmatprep.subr.bf16.mxu0 0
        %1251 = vmatpush1.bf16.msra.mxu0 0
        %1252 = vmatprep.mubr.bf16.mxu0 0
        %1253 = vmatmul.mubr.bf16.gmra.mrb[0].mxu0 %v1142
        %v1254 = vpop.f32.mrb[0].mxu0
        %v1255 = vadd.f32 %v1170, %v1254
        %v1256 = vpop.f32.mrb[0].mxu0
        %v1257 = vpop.f32.mrb[0].mxu0
        %v1258 = vadd.f32 %v1170, %v1257
        %v1259 = vpop.f32.mrb[0].mxu0
        %1260 = vmatprep.mubr.bf16.mxu0 0
        %1261 = vmatmul.mubr.bf16.gmra.mrb[0].mxu0 %v1143
        %v1262 = vpop.f32.mrb[0].mxu0
        %v1263 = vadd.f32 %v1170, %v1262
        %v1264 = vpop.f32.mrb[0].mxu0
        %v1265 = vpop.f32.mrb[0].mxu0
        %v1266 = vadd.f32 %v1170, %v1265
        %v1267 = vpop.f32.mrb[0].mxu0
        %1268 = vmatprep.mubr.bf16.mxu0 0
        %1269 = vmatmul.mubr.bf16.gmra.mrb[0].mxu0 %v1144
        %v1270 = vpop.f32.mrb[0].mxu0
        %v1271 = vadd.f32 %v1170, %v1270
        %v1272 = vpop.f32.mrb[0].mxu0
        %v1273 = vpop.f32.mrb[0].mxu0
        %v1274 = vadd.f32 %v1170, %v1273
        %v1275 = vpop.f32.mrb[0].mxu0
        %1276 = vmatprep.mubr.bf16.mxu0 0
        %1277 = vmatmul.mubr.bf16.gmra.mrb[0].mxu0 %v1145
        %v1278 = vpop.f32.mrb[0].mxu0
        %v1279 = vadd.f32 %v1170, %v1278
        %v1280 = vpop.f32.mrb[0].mxu0
        %v1281 = vpop.f32.mrb[0].mxu0
        %v1282 = vadd.f32 %v1170, %v1281
        %v1283 = vpop.f32.mrb[0].mxu0
        %1284 = vmatprep.mubr.bf16.mxu0 0
        %1285 = vmatmul.mubr.bf16.gmra.mrb[0].mxu0 %v1146
        %v1286 = vpop.f32.mrb[0].mxu0
        %v1287 = vadd.f32 %v1170, %v1286
        %v1288 = vpop.f32.mrb[0].mxu0
        %v1289 = vpop.f32.mrb[0].mxu0
        %v1290 = vadd.f32 %v1170, %v1289
        %v1291 = vpop.f32.mrb[0].mxu0
        %1292 = vmatprep.mubr.bf16.mxu0 0
        %1293 = vmatmul.mubr.bf16.gmra.mrb[0].mxu0 %v1147
        %v1294 = vpop.f32.mrb[0].mxu0
        %v1295 = vadd.f32 %v1170, %v1294
        %v1296 = vpop.f32.mrb[0].mxu0
        %v1297 = vpop.f32.mrb[0].mxu0
        %v1298 = vadd.f32 %v1170, %v1297
        %v1299 = vpop.f32.mrb[0].mxu0
        %1300 = vmatprep.mubr.bf16.mxu0 0
        %1301 = vmatmul.mubr.bf16.gmra.mrb[0].mxu0 %v1148
        %v1302 = vpop.f32.mrb[0].mxu0
        %v1303 = vadd.f32 %v1170, %v1302
        %v1304 = vpop.f32.mrb[0].mxu0
        %v1305 = vpop.f32.mrb[0].mxu0
        %v1306 = vadd.f32 %v1170, %v1305
        %v1307 = vpop.f32.mrb[0].mxu0
        %1308 = vmatprep.mubr.bf16.mxu0 0
        %1309 = vmatmul.mubr.bf16.gmra.mrb[0].mxu0 %v1149
        %v1310 = vpop.f32.mrb[0].mxu0
        %v1311 = vadd.f32 %v1170, %v1310
        %v1312 = vpop.f32.mrb[0].mxu0
        %v1313 = vpop.f32.mrb[0].mxu0
        %v1314 = vadd.f32 %v1170, %v1313
        %v1315 = vpop.f32.mrb[0].mxu0
        %1316 = vdwg.mxu0
        %v1318 = vlaneseq
        %v1319 = vshrl.u32 %v1318, 7
        %v1320 = vsub.s32 0, %v1319
        %v1321 = vrot.slane %v468, %v1320
        %v1339 = vunpack.c.l.b16 %v451
        %v1340 = vunpack.c.l.b16 %v452
        %v1341 = vunpack.c.l.b16 %v453
        %v1342 = vunpack.c.l.b16 %v454
        %v1343 = vunpack.c.l.b16 %v455
        %v1344 = vunpack.c.l.b16 %v456
        %v1345 = vunpack.c.l.b16 %v457
        %v1346 = vunpack.c.l.b16 %v458
        %v1347 = vunpack.c.l.b16 %v459
        %v1348 = vunpack.c.l.b16 %v460
        %v1349 = vunpack.c.l.b16 %v461
        %v1350 = vunpack.c.l.b16 %v462
        %v1351 = vunpack.c.l.b16 %v463
        %v1352 = vunpack.c.l.b16 %v464
        %v1353 = vunpack.c.l.b16 %v465
        %v1354 = vunpack.c.l.b16 %v466
        %v1355 = vpack.c.b16 %v1340, %v1339
        %v1356 = vpack.c.b16 %v1342, %v1341
        %v1357 = vpack.c.b16 %v1344, %v1343
        %v1358 = vpack.c.b16 %v1346, %v1345
        %v1359 = vpack.c.b16 %v1348, %v1347
        %v1360 = vpack.c.b16 %v1350, %v1349
        %v1361 = vpack.c.b16 %v1352, %v1351
        %v1362 = vpack.c.b16 %v1354, %v1353
        %1371 = vmatprep.subr.bf16.mxu0 0
        %1372 = vmatpush1.bf16.msra.mxu0 %v1355
        %1373 = vmatprep.subr.bf16.mxu0 0
        %1374 = vmatpush1.bf16.msra.mxu0 %v1356
        %1375 = vmatprep.subr.bf16.mxu0 0
        %1376 = vmatpush1.bf16.msra.mxu0 %v1357
        %1377 = vmatprep.subr.bf16.mxu0 0
        %1378 = vmatpush1.bf16.msra.mxu0 %v1358
        %1379 = vmatprep.subr.bf16.mxu0 0
        %1380 = vmatpush1.bf16.msra.mxu0 %v1359
        %1381 = vmatprep.subr.bf16.mxu0 0
        %1382 = vmatpush1.bf16.msra.mxu0 %v1360
        %1383 = vmatprep.subr.bf16.mxu0 0
        %1384 = vmatpush1.bf16.msra.mxu0 %v1361
        %1385 = vmatprep.subr.bf16.mxu0 0
        %1386 = vmatpush1.bf16.msra.mxu0 %v1362
        %1387 = vmatprep.subr.bf16.mxu0 0
        %1388 = vmatpush1.bf16.msra.mxu0 0
        %1389 = vmatprep.subr.bf16.mxu0 0
        %1390 = vmatpush1.bf16.msra.mxu0 0
        %1391 = vmatprep.subr.bf16.mxu0 0
        %1392 = vmatpush1.bf16.msra.mxu0 0
        %1393 = vmatprep.subr.bf16.mxu0 0
        %1394 = vmatpush1.bf16.msra.mxu0 0
        %1395 = vmatprep.subr.bf16.mxu0 0
        %1396 = vmatpush1.bf16.msra.mxu0 0
        %1397 = vmatprep.subr.bf16.mxu0 0
        %1398 = vmatpush1.bf16.msra.mxu0 0
        %1399 = vmatprep.subr.bf16.mxu0 0
        %1400 = vmatpush1.bf16.msra.mxu0 0
        %1401 = vmatprep.subr.bf16.mxu0 0
        %1402 = vmatpush1.bf16.msra.mxu0 0
        %1403 = vmatprep.mubr.bf16.mxu0 0
        %1404 = vmatmul.mubr.bf16.gmra.mrb[0].mxu0 %v1134
        %v1405 = vpop.f32.mrb[0].mxu0
        %v1406 = vadd.f32 %v1321, %v1405
        %v1407 = vpop.f32.mrb[0].mxu0
        %v1408 = vpop.f32.mrb[0].mxu0
        %v1409 = vadd.f32 %v1321, %v1408
        %v1410 = vpop.f32.mrb[0].mxu0
        %1411 = vmatprep.mubr.bf16.mxu0 0
        %1412 = vmatmul.mubr.bf16.gmra.mrb[0].mxu0 %v1135
        %v1413 = vpop.f32.mrb[0].mxu0
        %v1414 = vadd.f32 %v1321, %v1413
        %v1415 = vpop.f32.mrb[0].mxu0
        %v1416 = vpop.f32.mrb[0].mxu0
        %v1417 = vadd.f32 %v1321, %v1416
        %v1418 = vpop.f32.mrb[0].mxu0
        %1419 = vmatprep.mubr.bf16.mxu0 0
        %1420 = vmatmul.mubr.bf16.gmra.mrb[0].mxu0 %v1136
        %v1421 = vpop.f32.mrb[0].mxu0
        %v1422 = vadd.f32 %v1321, %v1421
        %v1423 = vpop.f32.mrb[0].mxu0
        %v1424 = vpop.f32.mrb[0].mxu0
        %v1425 = vadd.f32 %v1321, %v1424
        %v1426 = vpop.f32.mrb[0].mxu0
        %1427 = vmatprep.mubr.bf16.mxu0 0
        %1428 = vmatmul.mubr.bf16.gmra.mrb[0].mxu0 %v1137
        %v1429 = vpop.f32.mrb[0].mxu0
        %v1430 = vadd.f32 %v1321, %v1429
        %v1431 = vpop.f32.mrb[0].mxu0
        %v1432 = vpop.f32.mrb[0].mxu0
        %v1433 = vadd.f32 %v1321, %v1432
        %v1434 = vpop.f32.mrb[0].mxu0
        %1435 = vmatprep.mubr.bf16.mxu0 0
        %1436 = vmatmul.mubr.bf16.gmra.mrb[0].mxu0 %v1138
        %v1437 = vpop.f32.mrb[0].mxu0
        %v1438 = vadd.f32 %v1321, %v1437
        %v1439 = vpop.f32.mrb[0].mxu0
        %v1440 = vpop.f32.mrb[0].mxu0
        %v1441 = vadd.f32 %v1321, %v1440
        %v1442 = vpop.f32.mrb[0].mxu0
        %1443 = vmatprep.mubr.bf16.mxu0 0
        %1444 = vmatmul.mubr.bf16.gmra.mrb[0].mxu0 %v1139
        %v1445 = vpop.f32.mrb[0].mxu0
        %v1446 = vadd.f32 %v1321, %v1445
        %v1447 = vpop.f32.mrb[0].mxu0
        %v1448 = vpop.f32.mrb[0].mxu0
        %v1449 = vadd.f32 %v1321, %v1448
        %v1450 = vpop.f32.mrb[0].mxu0
        %1451 = vmatprep.mubr.bf16.mxu0 0
        %1452 = vmatmul.mubr.bf16.gmra.mrb[0].mxu0 %v1140
        %v1453 = vpop.f32.mrb[0].mxu0
        %v1454 = vadd.f32 %v1321, %v1453
        %v1455 = vpop.f32.mrb[0].mxu0
        %v1456 = vpop.f32.mrb[0].mxu0
        %v1457 = vadd.f32 %v1321, %v1456
        %v1458 = vpop.f32.mrb[0].mxu0
        %1459 = vmatprep.mubr.bf16.mxu0 0
        %1460 = vmatmul.mubr.bf16.gmra.mrb[0].mxu0 %v1141
        %v1461 = vpop.f32.mrb[0].mxu0
        %v1462 = vadd.f32 %v1321, %v1461
        %v1463 = vpop.f32.mrb[0].mxu0
        %v1464 = vpop.f32.mrb[0].mxu0
        %v1465 = vadd.f32 %v1321, %v1464
        %v1466 = vpop.f32.mrb[0].mxu0
        %1467 = vdwg.mxu0
        %v1468 = vadd.f32 %v1255, %v1406
        %v1469 = vadd.f32 %v1258, %v1409
        %v1470 = vadd.f32 %v1263, %v1414
        %v1471 = vadd.f32 %v1266, %v1417
        %v1472 = vadd.f32 %v1271, %v1422
        %v1473 = vadd.f32 %v1274, %v1425
        %v1474 = vadd.f32 %v1279, %v1430
        %v1475 = vadd.f32 %v1282, %v1433
        %v1476 = vadd.f32 %v1287, %v1438
        %v1477 = vadd.f32 %v1290, %v1441
        %v1478 = vadd.f32 %v1295, %v1446
        %v1479 = vadd.f32 %v1298, %v1449
        %v1480 = vadd.f32 %v1303, %v1454
        %v1481 = vadd.f32 %v1306, %v1457
        %v1482 = vadd.f32 %v1311, %v1462
        %v1483 = vadd.f32 %v1314, %v1465
        %v1484 = vxor.u32 %v1468, 2147483648
        %v1485 = vxor.u32 %v1469, 2147483648
        %v1486 = vxor.u32 %v1470, 2147483648
        %v1487 = vxor.u32 %v1471, 2147483648
        %v1488 = vxor.u32 %v1472, 2147483648
        %v1489 = vxor.u32 %v1473, 2147483648
        %v1490 = vxor.u32 %v1474, 2147483648
        %v1491 = vxor.u32 %v1475, 2147483648
        %v1492 = vxor.u32 %v1476, 2147483648
        %v1493 = vxor.u32 %v1477, 2147483648
        %v1494 = vxor.u32 %v1478, 2147483648
        %v1495 = vxor.u32 %v1479, 2147483648
        %v1496 = vxor.u32 %v1480, 2147483648
        %v1497 = vxor.u32 %v1481, 2147483648
        %v1498 = vxor.u32 %v1482, 2147483648
        %v1499 = vxor.u32 %v1483, 2147483648
        %v1500 = vmul.f32 %v1484, 1.442695
        %v1501 = vpow.pop %v1500
        %v1502 = vmul.f32 %v1485, 1.442695
        %v1503 = vpow.pop %v1502
        %v1504 = vmul.f32 %v1486, 1.442695
        %v1505 = vpow.pop %v1504
        %v1506 = vmul.f32 %v1487, 1.442695
        %v1507 = vpow.pop %v1506
        %v1508 = vmul.f32 %v1488, 1.442695
        %v1509 = vpow.pop %v1508
        %v1510 = vmul.f32 %v1489, 1.442695
        %v1511 = vpow.pop %v1510
        %v1512 = vmul.f32 %v1490, 1.442695
        %v1513 = vpow.pop %v1512
        %v1514 = vmul.f32 %v1491, 1.442695
        %v1515 = vpow.pop %v1514
        %v1516 = vmul.f32 %v1492, 1.442695
        %v1517 = vpow.pop %v1516
        %v1518 = vmul.f32 %v1493, 1.442695
        %v1519 = vpow.pop %v1518
        %v1520 = vmul.f32 %v1494, 1.442695
        %v1521 = vpow.pop %v1520
        %v1522 = vmul.f32 %v1495, 1.442695
        %v1523 = vpow.pop %v1522
        %v1524 = vmul.f32 %v1496, 1.442695
        %v1525 = vpow.pop %v1524
        %v1526 = vmul.f32 %v1497, 1.442695
        %v1527 = vpow.pop %v1526
        %v1528 = vmul.f32 %v1498, 1.442695
        %v1529 = vpow.pop %v1528
        %v1530 = vmul.f32 %v1499, 1.442695
        %v1531 = vpow.pop %v1530
        %v1532 = vadd.f32 %v1501, 1.0
        %v1533 = vadd.f32 %v1503, 1.0
        %v1534 = vadd.f32 %v1505, 1.0
        %v1535 = vadd.f32 %v1507, 1.0
        %v1536 = vadd.f32 %v1509, 1.0
        %v1537 = vadd.f32 %v1511, 1.0
        %v1538 = vadd.f32 %v1513, 1.0
        %v1539 = vadd.f32 %v1515, 1.0
        %v1540 = vadd.f32 %v1517, 1.0
        %v1541 = vadd.f32 %v1519, 1.0
        %v1542 = vadd.f32 %v1521, 1.0
        %v1543 = vadd.f32 %v1523, 1.0
        %v1544 = vadd.f32 %v1525, 1.0
        %v1545 = vadd.f32 %v1527, 1.0
        %v1546 = vadd.f32 %v1529, 1.0
        %v1547 = vadd.f32 %v1531, 1.0
        %v1548 = vrcp.pop %v1532
        %v1549 = vmul.f32 1.0, %v1548
        %v1550 = vrcp.pop %v1533
        %v1551 = vmul.f32 1.0, %v1550
        %v1552 = vrcp.pop %v1534
        %v1553 = vmul.f32 1.0, %v1552
        %v1554 = vrcp.pop %v1535
        %v1555 = vmul.f32 1.0, %v1554
        %v1556 = vrcp.pop %v1536
        %v1557 = vmul.f32 1.0, %v1556
        %v1558 = vrcp.pop %v1537
        %v1559 = vmul.f32 1.0, %v1558
        %v1560 = vrcp.pop %v1538
        %v1561 = vmul.f32 1.0, %v1560
        %v1562 = vrcp.pop %v1539
        %v1563 = vmul.f32 1.0, %v1562
        %v1564 = vrcp.pop %v1540
        %v1565 = vmul.f32 1.0, %v1564
        %v1566 = vrcp.pop %v1541
        %v1567 = vmul.f32 1.0, %v1566
        %v1568 = vrcp.pop %v1542
        %v1569 = vmul.f32 1.0, %v1568
        %v1570 = vrcp.pop %v1543
        %v1571 = vmul.f32 1.0, %v1570
        %v1572 = vrcp.pop %v1544
        %v1573 = vmul.f32 1.0, %v1572
        %v1574 = vrcp.pop %v1545
        %v1575 = vmul.f32 1.0, %v1574
        %v1576 = vrcp.pop %v1546
        %v1577 = vmul.f32 1.0, %v1576
        %v1578 = vrcp.pop %v1547
        %v1579 = vmul.f32 1.0, %v1578
        %1596 = vrot.lane.b32.xlu0 %v1406, 64
        %v1597 = vpop.permute.xlu0 %1596
        %1598 = vrot.lane.b32.xlu0 %v1409, 64
        %v1599 = vpop.permute.xlu0 %1598
        %1600 = vrot.lane.b32.xlu0 %v1414, 64
        %v1601 = vpop.permute.xlu0 %1600
        %1602 = vrot.lane.b32.xlu0 %v1417, 64
        %v1603 = vpop.permute.xlu0 %1602
        %1604 = vrot.lane.b32.xlu0 %v1422, 64
        %v1605 = vpop.permute.xlu0 %1604
        %1606 = vrot.lane.b32.xlu0 %v1425, 64
        %v1607 = vpop.permute.xlu0 %1606
        %1608 = vrot.lane.b32.xlu0 %v1430, 64
        %v1609 = vpop.permute.xlu0 %1608
        %1610 = vrot.lane.b32.xlu0 %v1433, 64
        %v1611 = vpop.permute.xlu0 %1610
        %1612 = vrot.lane.b32.xlu0 %v1438, 64
        %v1613 = vpop.permute.xlu0 %1612
        %1614 = vrot.lane.b32.xlu0 %v1441, 64
        %v1615 = vpop.permute.xlu0 %1614
        %1616 = vrot.lane.b32.xlu0 %v1446, 64
        %v1617 = vpop.permute.xlu0 %1616
        %1618 = vrot.lane.b32.xlu0 %v1449, 64
        %v1619 = vpop.permute.xlu0 %1618
        %1620 = vrot.lane.b32.xlu0 %v1454, 64
        %v1621 = vpop.permute.xlu0 %1620
        %1622 = vrot.lane.b32.xlu0 %v1457, 64
        %v1623 = vpop.permute.xlu0 %1622
        %1624 = vrot.lane.b32.xlu0 %v1462, 64
        %v1625 = vpop.permute.xlu0 %1624
        %1626 = vrot.lane.b32.xlu0 %v1465, 64
        %v1627 = vpop.permute.xlu0 %1626
        %v1644 = vmul.f32 %v1549, %v1597
        %v1645 = vmul.f32 %v1551, %v1599
        %v1646 = vmul.f32 %v1553, %v1601
        %v1647 = vmul.f32 %v1555, %v1603
        %v1648 = vmul.f32 %v1557, %v1605
        %v1649 = vmul.f32 %v1559, %v1607
        %v1650 = vmul.f32 %v1561, %v1609
        %v1651 = vmul.f32 %v1563, %v1611
        %v1652 = vmul.f32 %v1565, %v1613
        %v1653 = vmul.f32 %v1567, %v1615
        %v1654 = vmul.f32 %v1569, %v1617
        %v1655 = vmul.f32 %v1571, %v1619
        %v1656 = vmul.f32 %v1573, %v1621
        %v1657 = vmul.f32 %v1575, %v1623
        %v1658 = vmul.f32 %v1577, %v1625
        %v1659 = vmul.f32 %v1579, %v1627
        %1676 = vrot.lane.b32.xlu0 %v1644, 64
        %v1677 = vpop.permute.xlu0 %1676
        %1678 = vrot.lane.b32.xlu0 %v1645, 64
        %v1679 = vpop.permute.xlu0 %1678
        %1680 = vrot.lane.b32.xlu0 %v1646, 64
        %v1681 = vpop.permute.xlu0 %1680
        %1682 = vrot.lane.b32.xlu0 %v1647, 64
        %v1683 = vpop.permute.xlu0 %1682
        %1684 = vrot.lane.b32.xlu0 %v1648, 64
        %v1685 = vpop.permute.xlu0 %1684
        %1686 = vrot.lane.b32.xlu0 %v1649, 64
        %v1687 = vpop.permute.xlu0 %1686
        %1688 = vrot.lane.b32.xlu0 %v1650, 64
        %v1689 = vpop.permute.xlu0 %1688
        %1690 = vrot.lane.b32.xlu0 %v1651, 64
        %v1691 = vpop.permute.xlu0 %1690
        %1692 = vrot.lane.b32.xlu0 %v1652, 64
        %v1693 = vpop.permute.xlu0 %1692
        %1694 = vrot.lane.b32.xlu0 %v1653, 64
        %v1695 = vpop.permute.xlu0 %1694
        %1696 = vrot.lane.b32.xlu0 %v1654, 64
        %v1697 = vpop.permute.xlu0 %1696
        %1698 = vrot.lane.b32.xlu0 %v1655, 64
        %v1699 = vpop.permute.xlu0 %1698
        %1700 = vrot.lane.b32.xlu0 %v1656, 64
        %v1701 = vpop.permute.xlu0 %1700
        %1702 = vrot.lane.b32.xlu0 %v1657, 64
        %v1703 = vpop.permute.xlu0 %1702
        %1704 = vrot.lane.b32.xlu0 %v1658, 64
        %v1705 = vpop.permute.xlu0 %1704
        %1706 = vrot.lane.b32.xlu0 %v1659, 64
        %v1707 = vpop.permute.xlu0 %1706
        %v1724 = vadd.f32 %v1255, %v1677
        %v1725 = vadd.f32 %v1258, %v1679
        %v1726 = vadd.f32 %v1263, %v1681
        %v1727 = vadd.f32 %v1266, %v1683
        %v1728 = vadd.f32 %v1271, %v1685
        %v1729 = vadd.f32 %v1274, %v1687
        %v1730 = vadd.f32 %v1279, %v1689
        %v1731 = vadd.f32 %v1282, %v1691
        %v1732 = vadd.f32 %v1287, %v1693
        %v1733 = vadd.f32 %v1290, %v1695
        %v1734 = vadd.f32 %v1295, %v1697
        %v1735 = vadd.f32 %v1298, %v1699
        %v1736 = vadd.f32 %v1303, %v1701
        %v1737 = vadd.f32 %v1306, %v1703
        %v1738 = vadd.f32 %v1311, %v1705
        %v1739 = vadd.f32 %v1314, %v1707
        %v1740 = vtanh.pop %v1724
        %v1741 = vtanh.pop %v1725
        %v1742 = vtanh.pop %v1726
        %v1743 = vtanh.pop %v1727
        %v1744 = vtanh.pop %v1728
        %v1745 = vtanh.pop %v1729
        %v1746 = vtanh.pop %v1730
        %v1747 = vtanh.pop %v1731
        %v1748 = vtanh.pop %v1732
        %v1749 = vtanh.pop %v1733
        %v1750 = vtanh.pop %v1734
        %v1751 = vtanh.pop %v1735
        %v1752 = vtanh.pop %v1736
        %v1753 = vtanh.pop %v1737
        %v1754 = vtanh.pop %v1738
        %v1755 = vtanh.pop %v1739
        %v1756 = vsub.f32 1.0, %v1549
        %v1757 = vsub.f32 1.0, %v1551
        %v1758 = vsub.f32 1.0, %v1553
        %v1759 = vsub.f32 1.0, %v1555
        %v1760 = vsub.f32 1.0, %v1557
        %v1761 = vsub.f32 1.0, %v1559
        %v1762 = vsub.f32 1.0, %v1561
        %v1763 = vsub.f32 1.0, %v1563
        %v1764 = vsub.f32 1.0, %v1565
        %v1765 = vsub.f32 1.0, %v1567
        %v1766 = vsub.f32 1.0, %v1569
        %v1767 = vsub.f32 1.0, %v1571
        %v1768 = vsub.f32 1.0, %v1573
        %v1769 = vsub.f32 1.0, %v1575
        %v1770 = vsub.f32 1.0, %v1577
        %v1771 = vsub.f32 1.0, %v1579
        %1788 = vrot.lane.b32.xlu0 %v1740, 96
        %v1789 = vpop.permute.xlu0 %1788
        %1790 = vrot.lane.b32.xlu0 %v1741, 96
        %v1791 = vpop.permute.xlu0 %1790
        %1792 = vrot.lane.b32.xlu0 %v1742, 96
        %v1793 = vpop.permute.xlu0 %1792
        %1794 = vrot.lane.b32.xlu0 %v1743, 96
        %v1795 = vpop.permute.xlu0 %1794
        %1796 = vrot.lane.b32.xlu0 %v1744, 96
        %v1797 = vpop.permute.xlu0 %1796
        %1798 = vrot.lane.b32.xlu0 %v1745, 96
        %v1799 = vpop.permute.xlu0 %1798
        %1800 = vrot.lane.b32.xlu0 %v1746, 96
        %v1801 = vpop.permute.xlu0 %1800
        %1802 = vrot.lane.b32.xlu0 %v1747, 96
        %v1803 = vpop.permute.xlu0 %1802
        %1804 = vrot.lane.b32.xlu0 %v1748, 96
        %v1805 = vpop.permute.xlu0 %1804
        %1806 = vrot.lane.b32.xlu0 %v1749, 96
        %v1807 = vpop.permute.xlu0 %1806
        %1808 = vrot.lane.b32.xlu0 %v1750, 96
        %v1809 = vpop.permute.xlu0 %1808
        %1810 = vrot.lane.b32.xlu0 %v1751, 96
        %v1811 = vpop.permute.xlu0 %1810
        %1812 = vrot.lane.b32.xlu0 %v1752, 96
        %v1813 = vpop.permute.xlu0 %1812
        %1814 = vrot.lane.b32.xlu0 %v1753, 96
        %v1815 = vpop.permute.xlu0 %1814
        %1816 = vrot.lane.b32.xlu0 %v1754, 96
        %v1817 = vpop.permute.xlu0 %1816
        %1818 = vrot.lane.b32.xlu0 %v1755, 96
        %v1819 = vpop.permute.xlu0 %1818
        %v1836 = vmul.f32 %v1756, %v1789
        %v1837 = vmul.f32 %v1757, %v1791
        %v1838 = vmul.f32 %v1758, %v1793
        %v1839 = vmul.f32 %v1759, %v1795
        %v1840 = vmul.f32 %v1760, %v1797
        %v1841 = vmul.f32 %v1761, %v1799
        %v1842 = vmul.f32 %v1762, %v1801
        %v1843 = vmul.f32 %v1763, %v1803
        %v1844 = vmul.f32 %v1764, %v1805
        %v1845 = vmul.f32 %v1765, %v1807
        %v1846 = vmul.f32 %v1766, %v1809
        %v1847 = vmul.f32 %v1767, %v1811
        %v1848 = vmul.f32 %v1768, %v1813
        %v1849 = vmul.f32 %v1769, %v1815
        %v1850 = vmul.f32 %v1770, %v1817
        %v1851 = vmul.f32 %v1771, %v1819
        %1868 = vrot.lane.b32.xlu0 %v469, 32
        %v1869 = vpop.permute.xlu0 %1868
        %1870 = vrot.lane.b32.xlu0 %v470, 32
        %v1871 = vpop.permute.xlu0 %1870
        %1872 = vrot.lane.b32.xlu0 %v471, 32
        %v1873 = vpop.permute.xlu0 %1872
        %1874 = vrot.lane.b32.xlu0 %v472, 32
        %v1875 = vpop.permute.xlu0 %1874
        %1876 = vrot.lane.b32.xlu0 %v473, 32
        %v1877 = vpop.permute.xlu0 %1876
        %1878 = vrot.lane.b32.xlu0 %v474, 32
        %v1879 = vpop.permute.xlu0 %1878
        %1880 = vrot.lane.b32.xlu0 %v475, 32
        %v1881 = vpop.permute.xlu0 %1880
        %1882 = vrot.lane.b32.xlu0 %v476, 32
        %v1883 = vpop.permute.xlu0 %1882
        %1884 = vrot.lane.b32.xlu0 %v477, 32
        %v1885 = vpop.permute.xlu0 %1884
        %1886 = vrot.lane.b32.xlu0 %v478, 32
        %v1887 = vpop.permute.xlu0 %1886
        %1888 = vrot.lane.b32.xlu0 %v479, 32
        %v1889 = vpop.permute.xlu0 %1888
        %1890 = vrot.lane.b32.xlu0 %v480, 32
        %v1891 = vpop.permute.xlu0 %1890
        %1892 = vrot.lane.b32.xlu0 %v481, 32
        %v1893 = vpop.permute.xlu0 %1892
        %1894 = vrot.lane.b32.xlu0 %v482, 32
        %v1895 = vpop.permute.xlu0 %1894
        %1896 = vrot.lane.b32.xlu0 %v483, 32
        %v1897 = vpop.permute.xlu0 %1896
        %1898 = vrot.lane.b32.xlu0 %v484, 32
        %v1899 = vpop.permute.xlu0 %1898
        %v1916 = vmul.f32 %v1549, %v1869
        %v1917 = vmul.f32 %v1551, %v1871
        %v1918 = vmul.f32 %v1553, %v1873
        %v1919 = vmul.f32 %v1555, %v1875
        %v1920 = vmul.f32 %v1557, %v1877
        %v1921 = vmul.f32 %v1559, %v1879
        %v1922 = vmul.f32 %v1561, %v1881
        %v1923 = vmul.f32 %v1563, %v1883
        %v1924 = vmul.f32 %v1565, %v1885
        %v1925 = vmul.f32 %v1567, %v1887
        %v1926 = vmul.f32 %v1569, %v1889
        %v1927 = vmul.f32 %v1571, %v1891
        %v1928 = vmul.f32 %v1573, %v1893
        %v1929 = vmul.f32 %v1575, %v1895
        %v1930 = vmul.f32 %v1577, %v1897
        %v1931 = vmul.f32 %v1579, %v1899
        %v1932 = vadd.f32 %v1836, %v1916
        %v1933 = vadd.f32 %v1837, %v1917
        %v1934 = vadd.f32 %v1838, %v1918
        %v1935 = vadd.f32 %v1839, %v1919
        %v1936 = vadd.f32 %v1840, %v1920
        %v1937 = vadd.f32 %v1841, %v1921
        %v1938 = vadd.f32 %v1842, %v1922
        %v1939 = vadd.f32 %v1843, %v1923
        %v1940 = vadd.f32 %v1844, %v1924
        %v1941 = vadd.f32 %v1845, %v1925
        %v1942 = vadd.f32 %v1846, %v1926
        %v1943 = vadd.f32 %v1847, %v1927
        %v1944 = vadd.f32 %v1848, %v1928
        %v1945 = vadd.f32 %v1849, %v1929
        %v1946 = vadd.f32 %v1850, %v1930
        %v1947 = vadd.f32 %v1851, %v1931
        %1964 = vrot.lane.b32.xlu0 %v1932, 96
        %v1965 = vpop.permute.xlu0 %1964
        %1966 = vrot.lane.b32.xlu0 %v1933, 96
        %v1967 = vpop.permute.xlu0 %1966
        %1968 = vrot.lane.b32.xlu0 %v1934, 96
        %v1969 = vpop.permute.xlu0 %1968
        %1970 = vrot.lane.b32.xlu0 %v1935, 96
        %v1971 = vpop.permute.xlu0 %1970
        %1972 = vrot.lane.b32.xlu0 %v1936, 96
        %v1973 = vpop.permute.xlu0 %1972
        %1974 = vrot.lane.b32.xlu0 %v1937, 96
        %v1975 = vpop.permute.xlu0 %1974
        %1976 = vrot.lane.b32.xlu0 %v1938, 96
        %v1977 = vpop.permute.xlu0 %1976
        %1978 = vrot.lane.b32.xlu0 %v1939, 96
        %v1979 = vpop.permute.xlu0 %1978
        %1980 = vrot.lane.b32.xlu0 %v1940, 96
        %v1981 = vpop.permute.xlu0 %1980
        %1982 = vrot.lane.b32.xlu0 %v1941, 96
        %v1983 = vpop.permute.xlu0 %1982
        %1984 = vrot.lane.b32.xlu0 %v1942, 96
        %v1985 = vpop.permute.xlu0 %1984
        %1986 = vrot.lane.b32.xlu0 %v1943, 96
        %v1987 = vpop.permute.xlu0 %1986
        %1988 = vrot.lane.b32.xlu0 %v1944, 96
        %v1989 = vpop.permute.xlu0 %1988
        %1990 = vrot.lane.b32.xlu0 %v1945, 96
        %v1991 = vpop.permute.xlu0 %1990
        %1992 = vrot.lane.b32.xlu0 %v1946, 96
        %v1993 = vpop.permute.xlu0 %1992
        %1994 = vrot.lane.b32.xlu0 %v1947, 96
        %v1995 = vpop.permute.xlu0 %1994
        %vm2012 = vcmask 261120
        %v2013 = vsel %vm2012, %v1965, 0.0
        %v2014 = vsel %vm2012, %v1967, 0.0
        %v2015 = vsel %vm2012, %v1969, 0.0
        %v2016 = vsel %vm2012, %v1971, 0.0
        %v2017 = vsel %vm2012, %v1973, 0.0
        %v2018 = vsel %vm2012, %v1975, 0.0
        %v2019 = vsel %vm2012, %v1977, 0.0
        %v2020 = vsel %vm2012, %v1979, 0.0
        %v2021 = vsel %vm2012, %v1981, 0.0
        %v2022 = vsel %vm2012, %v1983, 0.0
        %v2023 = vsel %vm2012, %v1985, 0.0
        %v2024 = vsel %vm2012, %v1987, 0.0
        %v2025 = vsel %vm2012, %v1989, 0.0
        %v2026 = vsel %vm2012, %v1991, 0.0
        %v2027 = vsel %vm2012, %v1993, 0.0
        %v2028 = vsel %vm2012, %v1995, 0.0
        %2029 = vmatprep.subr.mxu0 0.0
        %2030 = vmatpush1.msra.mxu0 %v2013
        %2031 = vmatprep.subr.mxu0 0.0
        %2032 = vmatpush1.msra.mxu0 %v2014
        %2033 = vmatprep.subr.mxu0 0.0
        %2034 = vmatpush1.msra.mxu0 0.0
        %2035 = vmatprep.subr.mxu0 0.0
        %2036 = vmatpush1.msra.mxu0 0.0
        %2037 = vmatprep.subr.mxu0 0.0
        %2038 = vmatpush1.msra.mxu0 0.0
        %2039 = vmatprep.subr.mxu0 0.0
        %2040 = vmatpush1.msra.mxu0 0.0
        %2041 = vmatprep.subr.mxu0 0.0
        %2042 = vmatpush1.msra.mxu0 0.0
        %2043 = vmatprep.subr.mxu0 0.0
        %2044 = vmatpush1.msra.mxu0 0.0
        %2045 = vmatprep.subr.mxu0 0.0
        %2046 = vmatpush1.msra.mxu0 0.0
        %2047 = vmatprep.subr.mxu0 0.0
        %2048 = vmatpush1.msra.mxu0 0.0
        %2049 = vmatprep.subr.mxu0 0.0
        %2050 = vmatpush1.msra.mxu0 0.0
        %2051 = vmatprep.subr.mxu0 0.0
        %2052 = vmatpush1.msra.mxu0 0.0
        %2053 = vmatprep.subr.mxu0 0.0
        %2054 = vmatpush1.msra.mxu0 0.0
        %2055 = vmatprep.subr.mxu0 0.0
        %2056 = vmatpush1.msra.mxu0 0.0
        %2057 = vmatprep.subr.mxu0 0.0
        %2058 = vmatpush1.msra.mxu0 0.0
        %2059 = vmatprep.subr.mxu0 0.0
        %2060 = vmatpush1.msra.mxu0 0.0
        %2061 = vmatprep.subr.mxu0 0.0
        %2062 = vmatpush1.msra.mxu0 0.0
        %2063 = vmatprep.subr.mxu0 0.0
        %2064 = vmatpush1.msra.mxu0 0.0
        %2065 = vmatprep.subr.mxu0 0.0
        %2066 = vmatpush1.msra.mxu0 0.0
        %2067 = vmatprep.subr.mxu0 0.0
        %2068 = vmatpush1.msra.mxu0 0.0
        %2069 = vmatprep.subr.mxu0 0.0
        %2070 = vmatpush1.msra.mxu0 0.0
        %2071 = vmatprep.subr.mxu0 0.0
        %2072 = vmatpush1.msra.mxu0 0.0
        %2073 = vmatprep.subr.mxu0 0.0
        %2074 = vmatpush1.msra.mxu0 0.0
        %2075 = vmatprep.subr.mxu0 0.0
        %2076 = vmatpush1.msra.mxu0 0.0
        %2077 = vmatprep.subr.mxu0 0.0
        %2078 = vmatpush1.msra.mxu0 0.0
        %2079 = vmatprep.subr.mxu0 0.0
        %2080 = vmatpush1.msra.mxu0 0.0
        %2081 = vmatprep.subr.mxu0 0.0
        %2082 = vmatpush1.msra.mxu0 0.0
        %2083 = vmatprep.subr.mxu0 0.0
        %2084 = vmatpush1.msra.mxu0 0.0
        %2085 = vmatprep.subr.mxu0 0.0
        %2086 = vmatpush1.msra.mxu0 0.0
        %2087 = vmatprep.subr.mxu0 0.0
        %2088 = vmatpush1.msra.mxu0 0.0
        %2089 = vmatprep.subr.mxu0 0.0
        %2090 = vmatpush1.msra.mxu0 0.0
        %2091 = vmatprep.subr.mxu0 0.0
        %2092 = vmatpush1.msra.mxu0 0.0
        %2093 = vmatprep.mubr.f32.mxu0 0.0
        %2094 = vmatmul.mubr.f32.gmra.mrb[0].mxu0 %v487
        %v2095 = vpop.f32.mrb[0].mxu0
        %v2096 = vadd.f32 0.0, %v2095
        %v2097 = vpop.f32.mrb[0].mxu0
        %2098 = vmatprep.mubr.f32.mxu0 0.0
        %2099 = vmatmul.mubr.f32.gmra.mrb[0].mxu0 %v490
        %v2100 = vpop.f32.mrb[0].mxu0
        %v2101 = vadd.f32 0.0, %v2100
        %v2102 = vpop.f32.mrb[0].mxu0
        %2103 = vdwg.mxu0
        %2104 = vmatprep.subr.mxu0 0.0
        %2105 = vmatpush1.msra.mxu0 %v2015
        %2106 = vmatprep.subr.mxu0 0.0
        %2107 = vmatpush1.msra.mxu0 %v2016
        %2108 = vmatprep.subr.mxu0 0.0
        %2109 = vmatpush1.msra.mxu0 0.0
        %2110 = vmatprep.subr.mxu0 0.0
        %2111 = vmatpush1.msra.mxu0 0.0
        %2112 = vmatprep.subr.mxu0 0.0
        %2113 = vmatpush1.msra.mxu0 0.0
        %2114 = vmatprep.subr.mxu0 0.0
        %2115 = vmatpush1.msra.mxu0 0.0
        %2116 = vmatprep.subr.mxu0 0.0
        %2117 = vmatpush1.msra.mxu0 0.0
        %2118 = vmatprep.subr.mxu0 0.0
        %2119 = vmatpush1.msra.mxu0 0.0
        %2120 = vmatprep.subr.mxu0 0.0
        %2121 = vmatpush1.msra.mxu0 0.0
        %2122 = vmatprep.subr.mxu0 0.0
        %2123 = vmatpush1.msra.mxu0 0.0
        %2124 = vmatprep.subr.mxu0 0.0
        %2125 = vmatpush1.msra.mxu0 0.0
        %2126 = vmatprep.subr.mxu0 0.0
        %2127 = vmatpush1.msra.mxu0 0.0
        %2128 = vmatprep.subr.mxu0 0.0
        %2129 = vmatpush1.msra.mxu0 0.0
        %2130 = vmatprep.subr.mxu0 0.0
        %2131 = vmatpush1.msra.mxu0 0.0
        %2132 = vmatprep.subr.mxu0 0.0
        %2133 = vmatpush1.msra.mxu0 0.0
        %2134 = vmatprep.subr.mxu0 0.0
        %2135 = vmatpush1.msra.mxu0 0.0
        %2136 = vmatprep.subr.mxu0 0.0
        %2137 = vmatpush1.msra.mxu0 0.0
        %2138 = vmatprep.subr.mxu0 0.0
        %2139 = vmatpush1.msra.mxu0 0.0
        %2140 = vmatprep.subr.mxu0 0.0
        %2141 = vmatpush1.msra.mxu0 0.0
        %2142 = vmatprep.subr.mxu0 0.0
        %2143 = vmatpush1.msra.mxu0 0.0
        %2144 = vmatprep.subr.mxu0 0.0
        %2145 = vmatpush1.msra.mxu0 0.0
        %2146 = vmatprep.subr.mxu0 0.0
        %2147 = vmatpush1.msra.mxu0 0.0
        %2148 = vmatprep.subr.mxu0 0.0
        %2149 = vmatpush1.msra.mxu0 0.0
        %2150 = vmatprep.subr.mxu0 0.0
        %2151 = vmatpush1.msra.mxu0 0.0
        %2152 = vmatprep.subr.mxu0 0.0
        %2153 = vmatpush1.msra.mxu0 0.0
        %2154 = vmatprep.subr.mxu0 0.0
        %2155 = vmatpush1.msra.mxu0 0.0
        %2156 = vmatprep.subr.mxu0 0.0
        %2157 = vmatpush1.msra.mxu0 0.0
        %2158 = vmatprep.subr.mxu0 0.0
        %2159 = vmatpush1.msra.mxu0 0.0
        %2160 = vmatprep.subr.mxu0 0.0
        %2161 = vmatpush1.msra.mxu0 0.0
        %2162 = vmatprep.subr.mxu0 0.0
        %2163 = vmatpush1.msra.mxu0 0.0
        %2164 = vmatprep.subr.mxu0 0.0
        %2165 = vmatpush1.msra.mxu0 0.0
        %2166 = vmatprep.subr.mxu0 0.0
        %2167 = vmatpush1.msra.mxu0 0.0
        %2168 = vmatprep.mubr.f32.mxu0 0.0
        %2169 = vmatmul.mubr.f32.gmra.mrb[0].mxu0 %v568
        %v2170 = vpop.f32.mrb[0].mxu0
        %v2171 = vadd.f32 0.0, %v2170
        %v2172 = vpop.f32.mrb[0].mxu0
        %2173 = vmatprep.mubr.f32.mxu0 0.0
        %2174 = vmatmul.mubr.f32.gmra.mrb[0].mxu0 %v571
        %v2175 = vpop.f32.mrb[0].mxu0
        %v2176 = vadd.f32 0.0, %v2175
        %v2177 = vpop.f32.mrb[0].mxu0
        %2178 = vdwg.mxu0
        %2179 = vmatprep.subr.mxu0 0.0
        %2180 = vmatpush1.msra.mxu0 %v2017
        %2181 = vmatprep.subr.mxu0 0.0
        %2182 = vmatpush1.msra.mxu0 %v2018
        %2183 = vmatprep.subr.mxu0 0.0
        %2184 = vmatpush1.msra.mxu0 0.0
        %2185 = vmatprep.subr.mxu0 0.0
        %2186 = vmatpush1.msra.mxu0 0.0
        %2187 = vmatprep.subr.mxu0 0.0
        %2188 = vmatpush1.msra.mxu0 0.0
        %2189 = vmatprep.subr.mxu0 0.0
        %2190 = vmatpush1.msra.mxu0 0.0
        %2191 = vmatprep.subr.mxu0 0.0
        %2192 = vmatpush1.msra.mxu0 0.0
        %2193 = vmatprep.subr.mxu0 0.0
        %2194 = vmatpush1.msra.mxu0 0.0
        %2195 = vmatprep.subr.mxu0 0.0
        %2196 = vmatpush1.msra.mxu0 0.0
        %2197 = vmatprep.subr.mxu0 0.0
        %2198 = vmatpush1.msra.mxu0 0.0
        %2199 = vmatprep.subr.mxu0 0.0
        %2200 = vmatpush1.msra.mxu0 0.0
        %2201 = vmatprep.subr.mxu0 0.0
        %2202 = vmatpush1.msra.mxu0 0.0
        %2203 = vmatprep.subr.mxu0 0.0
        %2204 = vmatpush1.msra.mxu0 0.0
        %2205 = vmatprep.subr.mxu0 0.0
        %2206 = vmatpush1.msra.mxu0 0.0
        %2207 = vmatprep.subr.mxu0 0.0
        %2208 = vmatpush1.msra.mxu0 0.0
        %2209 = vmatprep.subr.mxu0 0.0
        %2210 = vmatpush1.msra.mxu0 0.0
        %2211 = vmatprep.subr.mxu0 0.0
        %2212 = vmatpush1.msra.mxu0 0.0
        %2213 = vmatprep.subr.mxu0 0.0
        %2214 = vmatpush1.msra.mxu0 0.0
        %2215 = vmatprep.subr.mxu0 0.0
        %2216 = vmatpush1.msra.mxu0 0.0
        %2217 = vmatprep.subr.mxu0 0.0
        %2218 = vmatpush1.msra.mxu0 0.0
        %2219 = vmatprep.subr.mxu0 0.0
        %2220 = vmatpush1.msra.mxu0 0.0
        %2221 = vmatprep.subr.mxu0 0.0
        %2222 = vmatpush1.msra.mxu0 0.0
        %2223 = vmatprep.subr.mxu0 0.0
        %2224 = vmatpush1.msra.mxu0 0.0
        %2225 = vmatprep.subr.mxu0 0.0
        %2226 = vmatpush1.msra.mxu0 0.0
        %2227 = vmatprep.subr.mxu0 0.0
        %2228 = vmatpush1.msra.mxu0 0.0
        %2229 = vmatprep.subr.mxu0 0.0
        %2230 = vmatpush1.msra.mxu0 0.0
        %2231 = vmatprep.subr.mxu0 0.0
        %2232 = vmatpush1.msra.mxu0 0.0
        %2233 = vmatprep.subr.mxu0 0.0
        %2234 = vmatpush1.msra.mxu0 0.0
        %2235 = vmatprep.subr.mxu0 0.0
        %2236 = vmatpush1.msra.mxu0 0.0
        %2237 = vmatprep.subr.mxu0 0.0
        %2238 = vmatpush1.msra.mxu0 0.0
        %2239 = vmatprep.subr.mxu0 0.0
        %2240 = vmatpush1.msra.mxu0 0.0
        %2241 = vmatprep.subr.mxu0 0.0
        %2242 = vmatpush1.msra.mxu0 0.0
        %2243 = vmatprep.mubr.f32.mxu0 0.0
        %2244 = vmatmul.mubr.f32.gmra.mrb[0].mxu0 %v649
        %v2245 = vpop.f32.mrb[0].mxu0
        %v2246 = vadd.f32 0.0, %v2245
        %v2247 = vpop.f32.mrb[0].mxu0
        %2248 = vmatprep.mubr.f32.mxu0 0.0
        %2249 = vmatmul.mubr.f32.gmra.mrb[0].mxu0 %v652
        %v2250 = vpop.f32.mrb[0].mxu0
        %v2251 = vadd.f32 0.0, %v2250
        %v2252 = vpop.f32.mrb[0].mxu0
        %2253 = vdwg.mxu0
        %2254 = vmatprep.subr.mxu0 0.0
        %2255 = vmatpush1.msra.mxu0 %v2019
        %2256 = vmatprep.subr.mxu0 0.0
        %2257 = vmatpush1.msra.mxu0 %v2020
        %2258 = vmatprep.subr.mxu0 0.0
        %2259 = vmatpush1.msra.mxu0 0.0
        %2260 = vmatprep.subr.mxu0 0.0
        %2261 = vmatpush1.msra.mxu0 0.0
        %2262 = vmatprep.subr.mxu0 0.0
        %2263 = vmatpush1.msra.mxu0 0.0
        %2264 = vmatprep.subr.mxu0 0.0
        %2265 = vmatpush1.msra.mxu0 0.0
        %2266 = vmatprep.subr.mxu0 0.0
        %2267 = vmatpush1.msra.mxu0 0.0
        %2268 = vmatprep.subr.mxu0 0.0
        %2269 = vmatpush1.msra.mxu0 0.0
        %2270 = vmatprep.subr.mxu0 0.0
        %2271 = vmatpush1.msra.mxu0 0.0
        %2272 = vmatprep.subr.mxu0 0.0
        %2273 = vmatpush1.msra.mxu0 0.0
        %2274 = vmatprep.subr.mxu0 0.0
        %2275 = vmatpush1.msra.mxu0 0.0
        %2276 = vmatprep.subr.mxu0 0.0
        %2277 = vmatpush1.msra.mxu0 0.0
        %2278 = vmatprep.subr.mxu0 0.0
        %2279 = vmatpush1.msra.mxu0 0.0
        %2280 = vmatprep.subr.mxu0 0.0
        %2281 = vmatpush1.msra.mxu0 0.0
        %2282 = vmatprep.subr.mxu0 0.0
        %2283 = vmatpush1.msra.mxu0 0.0
        %2284 = vmatprep.subr.mxu0 0.0
        %2285 = vmatpush1.msra.mxu0 0.0
        %2286 = vmatprep.subr.mxu0 0.0
        %2287 = vmatpush1.msra.mxu0 0.0
        %2288 = vmatprep.subr.mxu0 0.0
        %2289 = vmatpush1.msra.mxu0 0.0
        %2290 = vmatprep.subr.mxu0 0.0
        %2291 = vmatpush1.msra.mxu0 0.0
        %2292 = vmatprep.subr.mxu0 0.0
        %2293 = vmatpush1.msra.mxu0 0.0
        %2294 = vmatprep.subr.mxu0 0.0
        %2295 = vmatpush1.msra.mxu0 0.0
        %2296 = vmatprep.subr.mxu0 0.0
        %2297 = vmatpush1.msra.mxu0 0.0
        %2298 = vmatprep.subr.mxu0 0.0
        %2299 = vmatpush1.msra.mxu0 0.0
        %2300 = vmatprep.subr.mxu0 0.0
        %2301 = vmatpush1.msra.mxu0 0.0
        %2302 = vmatprep.subr.mxu0 0.0
        %2303 = vmatpush1.msra.mxu0 0.0
        %2304 = vmatprep.subr.mxu0 0.0
        %2305 = vmatpush1.msra.mxu0 0.0
        %2306 = vmatprep.subr.mxu0 0.0
        %2307 = vmatpush1.msra.mxu0 0.0
        %2308 = vmatprep.subr.mxu0 0.0
        %2309 = vmatpush1.msra.mxu0 0.0
        %2310 = vmatprep.subr.mxu0 0.0
        %2311 = vmatpush1.msra.mxu0 0.0
        %2312 = vmatprep.subr.mxu0 0.0
        %2313 = vmatpush1.msra.mxu0 0.0
        %2314 = vmatprep.subr.mxu0 0.0
        %2315 = vmatpush1.msra.mxu0 0.0
        %2316 = vmatprep.subr.mxu0 0.0
        %2317 = vmatpush1.msra.mxu0 0.0
        %2318 = vmatprep.mubr.f32.mxu0 0.0
        %2319 = vmatmul.mubr.f32.gmra.mrb[0].mxu0 %v730
        %v2320 = vpop.f32.mrb[0].mxu0
        %v2321 = vadd.f32 0.0, %v2320
        %v2322 = vpop.f32.mrb[0].mxu0
        %2323 = vmatprep.mubr.f32.mxu0 0.0
        %2324 = vmatmul.mubr.f32.gmra.mrb[0].mxu0 %v733
        %v2325 = vpop.f32.mrb[0].mxu0
        %v2326 = vadd.f32 0.0, %v2325
        %v2327 = vpop.f32.mrb[0].mxu0
        %2328 = vdwg.mxu0
        %2329 = vmatprep.subr.mxu0 0.0
        %2330 = vmatpush1.msra.mxu0 %v2021
        %2331 = vmatprep.subr.mxu0 0.0
        %2332 = vmatpush1.msra.mxu0 %v2022
        %2333 = vmatprep.subr.mxu0 0.0
        %2334 = vmatpush1.msra.mxu0 0.0
        %2335 = vmatprep.subr.mxu0 0.0
        %2336 = vmatpush1.msra.mxu0 0.0
        %2337 = vmatprep.subr.mxu0 0.0
        %2338 = vmatpush1.msra.mxu0 0.0
        %2339 = vmatprep.subr.mxu0 0.0
        %2340 = vmatpush1.msra.mxu0 0.0
        %2341 = vmatprep.subr.mxu0 0.0
        %2342 = vmatpush1.msra.mxu0 0.0
        %2343 = vmatprep.subr.mxu0 0.0
        %2344 = vmatpush1.msra.mxu0 0.0
        %2345 = vmatprep.subr.mxu0 0.0
        %2346 = vmatpush1.msra.mxu0 0.0
        %2347 = vmatprep.subr.mxu0 0.0
        %2348 = vmatpush1.msra.mxu0 0.0
        %2349 = vmatprep.subr.mxu0 0.0
        %2350 = vmatpush1.msra.mxu0 0.0
        %2351 = vmatprep.subr.mxu0 0.0
        %2352 = vmatpush1.msra.mxu0 0.0
        %2353 = vmatprep.subr.mxu0 0.0
        %2354 = vmatpush1.msra.mxu0 0.0
        %2355 = vmatprep.subr.mxu0 0.0
        %2356 = vmatpush1.msra.mxu0 0.0
        %2357 = vmatprep.subr.mxu0 0.0
        %2358 = vmatpush1.msra.mxu0 0.0
        %2359 = vmatprep.subr.mxu0 0.0
        %2360 = vmatpush1.msra.mxu0 0.0
        %2361 = vmatprep.subr.mxu0 0.0
        %2362 = vmatpush1.msra.mxu0 0.0
        %2363 = vmatprep.subr.mxu0 0.0
        %2364 = vmatpush1.msra.mxu0 0.0
        %2365 = vmatprep.subr.mxu0 0.0
        %2366 = vmatpush1.msra.mxu0 0.0
        %2367 = vmatprep.subr.mxu0 0.0
        %2368 = vmatpush1.msra.mxu0 0.0
        %2369 = vmatprep.subr.mxu0 0.0
        %2370 = vmatpush1.msra.mxu0 0.0
        %2371 = vmatprep.subr.mxu0 0.0
        %2372 = vmatpush1.msra.mxu0 0.0
        %2373 = vmatprep.subr.mxu0 0.0
        %2374 = vmatpush1.msra.mxu0 0.0
        %2375 = vmatprep.subr.mxu0 0.0
        %2376 = vmatpush1.msra.mxu0 0.0
        %2377 = vmatprep.subr.mxu0 0.0
        %2378 = vmatpush1.msra.mxu0 0.0
        %2379 = vmatprep.subr.mxu0 0.0
        %2380 = vmatpush1.msra.mxu0 0.0
        %2381 = vmatprep.subr.mxu0 0.0
        %2382 = vmatpush1.msra.mxu0 0.0
        %2383 = vmatprep.subr.mxu0 0.0
        %2384 = vmatpush1.msra.mxu0 0.0
        %2385 = vmatprep.subr.mxu0 0.0
        %2386 = vmatpush1.msra.mxu0 0.0
        %2387 = vmatprep.subr.mxu0 0.0
        %2388 = vmatpush1.msra.mxu0 0.0
        %2389 = vmatprep.subr.mxu0 0.0
        %2390 = vmatpush1.msra.mxu0 0.0
        %2391 = vmatprep.subr.mxu0 0.0
        %2392 = vmatpush1.msra.mxu0 0.0
        %2393 = vmatprep.mubr.f32.mxu0 0.0
        %2394 = vmatmul.mubr.f32.gmra.mrb[0].mxu0 %v811
        %v2395 = vpop.f32.mrb[0].mxu0
        %v2396 = vadd.f32 0.0, %v2395
        %v2397 = vpop.f32.mrb[0].mxu0
        %2398 = vmatprep.mubr.f32.mxu0 0.0
        %2399 = vmatmul.mubr.f32.gmra.mrb[0].mxu0 %v814
        %v2400 = vpop.f32.mrb[0].mxu0
        %v2401 = vadd.f32 0.0, %v2400
        %v2402 = vpop.f32.mrb[0].mxu0
        %2403 = vdwg.mxu0
        %2404 = vmatprep.subr.mxu0 0.0
        %2405 = vmatpush1.msra.mxu0 %v2023
        %2406 = vmatprep.subr.mxu0 0.0
        %2407 = vmatpush1.msra.mxu0 %v2024
        %2408 = vmatprep.subr.mxu0 0.0
        %2409 = vmatpush1.msra.mxu0 0.0
        %2410 = vmatprep.subr.mxu0 0.0
        %2411 = vmatpush1.msra.mxu0 0.0
        %2412 = vmatprep.subr.mxu0 0.0
        %2413 = vmatpush1.msra.mxu0 0.0
        %2414 = vmatprep.subr.mxu0 0.0
        %2415 = vmatpush1.msra.mxu0 0.0
        %2416 = vmatprep.subr.mxu0 0.0
        %2417 = vmatpush1.msra.mxu0 0.0
        %2418 = vmatprep.subr.mxu0 0.0
        %2419 = vmatpush1.msra.mxu0 0.0
        %2420 = vmatprep.subr.mxu0 0.0
        %2421 = vmatpush1.msra.mxu0 0.0
        %2422 = vmatprep.subr.mxu0 0.0
        %2423 = vmatpush1.msra.mxu0 0.0
        %2424 = vmatprep.subr.mxu0 0.0
        %2425 = vmatpush1.msra.mxu0 0.0
        %2426 = vmatprep.subr.mxu0 0.0
        %2427 = vmatpush1.msra.mxu0 0.0
        %2428 = vmatprep.subr.mxu0 0.0
        %2429 = vmatpush1.msra.mxu0 0.0
        %2430 = vmatprep.subr.mxu0 0.0
        %2431 = vmatpush1.msra.mxu0 0.0
        %2432 = vmatprep.subr.mxu0 0.0
        %2433 = vmatpush1.msra.mxu0 0.0
        %2434 = vmatprep.subr.mxu0 0.0
        %2435 = vmatpush1.msra.mxu0 0.0
        %2436 = vmatprep.subr.mxu0 0.0
        %2437 = vmatpush1.msra.mxu0 0.0
        %2438 = vmatprep.subr.mxu0 0.0
        %2439 = vmatpush1.msra.mxu0 0.0
        %2440 = vmatprep.subr.mxu0 0.0
        %2441 = vmatpush1.msra.mxu0 0.0
        %2442 = vmatprep.subr.mxu0 0.0
        %2443 = vmatpush1.msra.mxu0 0.0
        %2444 = vmatprep.subr.mxu0 0.0
        %2445 = vmatpush1.msra.mxu0 0.0
        %2446 = vmatprep.subr.mxu0 0.0
        %2447 = vmatpush1.msra.mxu0 0.0
        %2448 = vmatprep.subr.mxu0 0.0
        %2449 = vmatpush1.msra.mxu0 0.0
        %2450 = vmatprep.subr.mxu0 0.0
        %2451 = vmatpush1.msra.mxu0 0.0
        %2452 = vmatprep.subr.mxu0 0.0
        %2453 = vmatpush1.msra.mxu0 0.0
        %2454 = vmatprep.subr.mxu0 0.0
        %2455 = vmatpush1.msra.mxu0 0.0
        %2456 = vmatprep.subr.mxu0 0.0
        %2457 = vmatpush1.msra.mxu0 0.0
        %2458 = vmatprep.subr.mxu0 0.0
        %2459 = vmatpush1.msra.mxu0 0.0
        %2460 = vmatprep.subr.mxu0 0.0
        %2461 = vmatpush1.msra.mxu0 0.0
        %2462 = vmatprep.subr.mxu0 0.0
        %2463 = vmatpush1.msra.mxu0 0.0
        %2464 = vmatprep.subr.mxu0 0.0
        %2465 = vmatpush1.msra.mxu0 0.0
        %2466 = vmatprep.subr.mxu0 0.0
        %2467 = vmatpush1.msra.mxu0 0.0
        %2468 = vmatprep.mubr.f32.mxu0 0.0
        %2469 = vmatmul.mubr.f32.gmra.mrb[0].mxu0 %v892
        %v2470 = vpop.f32.mrb[0].mxu0
        %v2471 = vadd.f32 0.0, %v2470
        %v2472 = vpop.f32.mrb[0].mxu0
        %2473 = vmatprep.mubr.f32.mxu0 0.0
        %2474 = vmatmul.mubr.f32.gmra.mrb[0].mxu0 %v895
        %v2475 = vpop.f32.mrb[0].mxu0
        %v2476 = vadd.f32 0.0, %v2475
        %v2477 = vpop.f32.mrb[0].mxu0
        %2478 = vdwg.mxu0
        %2479 = vmatprep.subr.mxu0 0.0
        %2480 = vmatpush1.msra.mxu0 %v2025
        %2481 = vmatprep.subr.mxu0 0.0
        %2482 = vmatpush1.msra.mxu0 %v2026
        %2483 = vmatprep.subr.mxu0 0.0
        %2484 = vmatpush1.msra.mxu0 0.0
        %2485 = vmatprep.subr.mxu0 0.0
        %2486 = vmatpush1.msra.mxu0 0.0
        %2487 = vmatprep.subr.mxu0 0.0
        %2488 = vmatpush1.msra.mxu0 0.0
        %2489 = vmatprep.subr.mxu0 0.0
        %2490 = vmatpush1.msra.mxu0 0.0
        %2491 = vmatprep.subr.mxu0 0.0
        %2492 = vmatpush1.msra.mxu0 0.0
        %2493 = vmatprep.subr.mxu0 0.0
        %2494 = vmatpush1.msra.mxu0 0.0
        %2495 = vmatprep.subr.mxu0 0.0
        %2496 = vmatpush1.msra.mxu0 0.0
        %2497 = vmatprep.subr.mxu0 0.0
        %2498 = vmatpush1.msra.mxu0 0.0
        %2499 = vmatprep.subr.mxu0 0.0
        %2500 = vmatpush1.msra.mxu0 0.0
        %2501 = vmatprep.subr.mxu0 0.0
        %2502 = vmatpush1.msra.mxu0 0.0
        %2503 = vmatprep.subr.mxu0 0.0
        %2504 = vmatpush1.msra.mxu0 0.0
        %2505 = vmatprep.subr.mxu0 0.0
        %2506 = vmatpush1.msra.mxu0 0.0
        %2507 = vmatprep.subr.mxu0 0.0
        %2508 = vmatpush1.msra.mxu0 0.0
        %2509 = vmatprep.subr.mxu0 0.0
        %2510 = vmatpush1.msra.mxu0 0.0
        %2511 = vmatprep.subr.mxu0 0.0
        %2512 = vmatpush1.msra.mxu0 0.0
        %2513 = vmatprep.subr.mxu0 0.0
        %2514 = vmatpush1.msra.mxu0 0.0
        %2515 = vmatprep.subr.mxu0 0.0
        %2516 = vmatpush1.msra.mxu0 0.0
        %2517 = vmatprep.subr.mxu0 0.0
        %2518 = vmatpush1.msra.mxu0 0.0
        %2519 = vmatprep.subr.mxu0 0.0
        %2520 = vmatpush1.msra.mxu0 0.0
        %2521 = vmatprep.subr.mxu0 0.0
        %2522 = vmatpush1.msra.mxu0 0.0
        %2523 = vmatprep.subr.mxu0 0.0
        %2524 = vmatpush1.msra.mxu0 0.0
        %2525 = vmatprep.subr.mxu0 0.0
        %2526 = vmatpush1.msra.mxu0 0.0
        %2527 = vmatprep.subr.mxu0 0.0
        %2528 = vmatpush1.msra.mxu0 0.0
        %2529 = vmatprep.subr.mxu0 0.0
        %2530 = vmatpush1.msra.mxu0 0.0
        %2531 = vmatprep.subr.mxu0 0.0
        %2532 = vmatpush1.msra.mxu0 0.0
        %2533 = vmatprep.subr.mxu0 0.0
        %2534 = vmatpush1.msra.mxu0 0.0
        %2535 = vmatprep.subr.mxu0 0.0
        %2536 = vmatpush1.msra.mxu0 0.0
        %2537 = vmatprep.subr.mxu0 0.0
        %2538 = vmatpush1.msra.mxu0 0.0
        %2539 = vmatprep.subr.mxu0 0.0
        %2540 = vmatpush1.msra.mxu0 0.0
        %2541 = vmatprep.subr.mxu0 0.0
        %2542 = vmatpush1.msra.mxu0 0.0
        %2543 = vmatprep.mubr.f32.mxu0 0.0
        %2544 = vmatmul.mubr.f32.gmra.mrb[0].mxu0 %v973
        %v2545 = vpop.f32.mrb[0].mxu0
        %v2546 = vadd.f32 0.0, %v2545
        %v2547 = vpop.f32.mrb[0].mxu0
        %2548 = vmatprep.mubr.f32.mxu0 0.0
        %2549 = vmatmul.mubr.f32.gmra.mrb[0].mxu0 %v976
        %v2550 = vpop.f32.mrb[0].mxu0
        %v2551 = vadd.f32 0.0, %v2550
        %v2552 = vpop.f32.mrb[0].mxu0
        %2553 = vdwg.mxu0
        %2554 = vmatprep.subr.mxu0 0.0
        %2555 = vmatpush1.msra.mxu0 %v2027
        %2556 = vmatprep.subr.mxu0 0.0
        %2557 = vmatpush1.msra.mxu0 %v2028
        %2558 = vmatprep.subr.mxu0 0.0
        %2559 = vmatpush1.msra.mxu0 0.0
        %2560 = vmatprep.subr.mxu0 0.0
        %2561 = vmatpush1.msra.mxu0 0.0
        %2562 = vmatprep.subr.mxu0 0.0
        %2563 = vmatpush1.msra.mxu0 0.0
        %2564 = vmatprep.subr.mxu0 0.0
        %2565 = vmatpush1.msra.mxu0 0.0
        %2566 = vmatprep.subr.mxu0 0.0
        %2567 = vmatpush1.msra.mxu0 0.0
        %2568 = vmatprep.subr.mxu0 0.0
        %2569 = vmatpush1.msra.mxu0 0.0
        %2570 = vmatprep.subr.mxu0 0.0
        %2571 = vmatpush1.msra.mxu0 0.0
        %2572 = vmatprep.subr.mxu0 0.0
        %2573 = vmatpush1.msra.mxu0 0.0
        %2574 = vmatprep.subr.mxu0 0.0
        %2575 = vmatpush1.msra.mxu0 0.0
        %2576 = vmatprep.subr.mxu0 0.0
        %2577 = vmatpush1.msra.mxu0 0.0
        %2578 = vmatprep.subr.mxu0 0.0
        %2579 = vmatpush1.msra.mxu0 0.0
        %2580 = vmatprep.subr.mxu0 0.0
        %2581 = vmatpush1.msra.mxu0 0.0
        %2582 = vmatprep.subr.mxu0 0.0
        %2583 = vmatpush1.msra.mxu0 0.0
        %2584 = vmatprep.subr.mxu0 0.0
        %2585 = vmatpush1.msra.mxu0 0.0
        %2586 = vmatprep.subr.mxu0 0.0
        %2587 = vmatpush1.msra.mxu0 0.0
        %2588 = vmatprep.subr.mxu0 0.0
        %2589 = vmatpush1.msra.mxu0 0.0
        %2590 = vmatprep.subr.mxu0 0.0
        %2591 = vmatpush1.msra.mxu0 0.0
        %2592 = vmatprep.subr.mxu0 0.0
        %2593 = vmatpush1.msra.mxu0 0.0
        %2594 = vmatprep.subr.mxu0 0.0
        %2595 = vmatpush1.msra.mxu0 0.0
        %2596 = vmatprep.subr.mxu0 0.0
        %2597 = vmatpush1.msra.mxu0 0.0
        %2598 = vmatprep.subr.mxu0 0.0
        %2599 = vmatpush1.msra.mxu0 0.0
        %2600 = vmatprep.subr.mxu0 0.0
        %2601 = vmatpush1.msra.mxu0 0.0
        %2602 = vmatprep.subr.mxu0 0.0
        %2603 = vmatpush1.msra.mxu0 0.0
        %2604 = vmatprep.subr.mxu0 0.0
        %2605 = vmatpush1.msra.mxu0 0.0
        %2606 = vmatprep.subr.mxu0 0.0
        %2607 = vmatpush1.msra.mxu0 0.0
        %2608 = vmatprep.subr.mxu0 0.0
        %2609 = vmatpush1.msra.mxu0 0.0
        %2610 = vmatprep.subr.mxu0 0.0
        %2611 = vmatpush1.msra.mxu0 0.0
        %2612 = vmatprep.subr.mxu0 0.0
        %2613 = vmatpush1.msra.mxu0 0.0
        %2614 = vmatprep.subr.mxu0 0.0
        %2615 = vmatpush1.msra.mxu0 0.0
        %2616 = vmatprep.subr.mxu0 0.0
        %2617 = vmatpush1.msra.mxu0 0.0
        %2618 = vmatprep.mubr.f32.mxu0 0.0
        %2619 = vmatmul.mubr.f32.gmra.mrb[0].mxu0 %v1054
        %v2620 = vpop.f32.mrb[0].mxu0
        %v2621 = vadd.f32 0.0, %v2620
        %v2622 = vpop.f32.mrb[0].mxu0
        %2623 = vmatprep.mubr.f32.mxu0 0.0
        %2624 = vmatmul.mubr.f32.gmra.mrb[0].mxu0 %v1057
        %v2625 = vpop.f32.mrb[0].mxu0
        %v2626 = vadd.f32 0.0, %v2625
        %v2627 = vpop.f32.mrb[0].mxu0
        %2628 = vdwg.mxu0
        %v2629 = vpack.c.bf16 %v2014, %v2013
        %v2630 = vpack.c.bf16 %v2016, %v2015
        %v2631 = vpack.c.bf16 %v2018, %v2017
        %v2632 = vpack.c.bf16 %v2020, %v2019
        %v2633 = vpack.c.bf16 %v2022, %v2021
        %v2634 = vpack.c.bf16 %v2024, %v2023
        %v2635 = vpack.c.bf16 %v2026, %v2025
        %v2636 = vpack.c.bf16 %v2028, %v2027
        %v2637 = vpack.c.bf16 %v2101, %v2096
        %v2638 = vpack.c.bf16 %v2176, %v2171
        %v2639 = vpack.c.bf16 %v2251, %v2246
        %v2640 = vpack.c.bf16 %v2326, %v2321
        %v2641 = vpack.c.bf16 %v2401, %v2396
        %v2642 = vpack.c.bf16 %v2476, %v2471
        %v2643 = vpack.c.bf16 %v2551, %v2546
        %v2644 = vpack.c.bf16 %v2626, %v2621
        %s2645 = scalar_lea.vmem [#allocation6], 64
        %v2646 = vld [vmem:[%s2645] sm:$0xf]
        %v2647 = vld [vmem:[%s2645 + $0x4] sm:$0xf]
        %v2648 = vld [vmem:[%s2645 + $0x8] sm:$0xf]
        %v2649 = vld [vmem:[%s2645 + $0xc] sm:$0xf]
        %v2650 = vld [vmem:[%s2645 + $0x10] sm:$0xf]
        %v2651 = vld [vmem:[%s2645 + $0x14] sm:$0xf]
        %v2652 = vld [vmem:[%s2645 + $0x18] sm:$0xf]
        %v2653 = vld [vmem:[%s2645 + $0x1c] sm:$0xf]
        %v2654 = vld [vmem:[%s2645 + $0x20] sm:$0xf]
        %v2655 = vld [vmem:[%s2645 + $0x24] sm:$0xf]
        %v2656 = vld [vmem:[%s2645 + $0x28] sm:$0xf]
        %v2657 = vld [vmem:[%s2645 + $0x2c] sm:$0xf]
        %v2658 = vld [vmem:[%s2645 + $0x30] sm:$0xf]
        %v2659 = vld [vmem:[%s2645 + $0x34] sm:$0xf]
        %v2660 = vld [vmem:[%s2645 + $0x38] sm:$0xf]
        %v2661 = vld [vmem:[%s2645 + $0x3c] sm:$0xf]
        %v2678 = vunpack.c.l.b16 %v2646
        %v2679 = vunpack.c.l.b16 %v2647
        %v2680 = vunpack.c.l.b16 %v2648
        %v2681 = vunpack.c.l.b16 %v2649
        %v2682 = vunpack.c.l.b16 %v2650
        %v2683 = vunpack.c.l.b16 %v2651
        %v2684 = vunpack.c.l.b16 %v2652
        %v2685 = vunpack.c.l.b16 %v2653
        %v2686 = vunpack.c.l.b16 %v2654
        %v2687 = vunpack.c.l.b16 %v2655
        %v2688 = vunpack.c.l.b16 %v2656
        %v2689 = vunpack.c.l.b16 %v2657
        %v2690 = vunpack.c.l.b16 %v2658
        %v2691 = vunpack.c.l.b16 %v2659
        %v2692 = vunpack.c.l.b16 %v2660
        %v2693 = vunpack.c.l.b16 %v2661
        %v2694 = vpack.c.b16 %v2679, %v2678
        %v2695 = vpack.c.b16 %v2681, %v2680
        %v2696 = vpack.c.b16 %v2683, %v2682
        %v2697 = vpack.c.b16 %v2685, %v2684
        %v2698 = vpack.c.b16 %v2687, %v2686
        %v2699 = vpack.c.b16 %v2689, %v2688
        %v2700 = vpack.c.b16 %v2691, %v2690
        %v2701 = vpack.c.b16 %v2693, %v2692
        %2710 = vmatprep.subr.bf16.mxu0 0
        %2711 = vmatpush1.bf16.msra.mxu0 %v2694
        %2712 = vmatprep.subr.bf16.mxu0 0
        %2713 = vmatpush1.bf16.msra.mxu0 %v2695
        %2714 = vmatprep.subr.bf16.mxu0 0
        %2715 = vmatpush1.bf16.msra.mxu0 %v2696
        %2716 = vmatprep.subr.bf16.mxu0 0
        %2717 = vmatpush1.bf16.msra.mxu0 %v2697
        %2718 = vmatprep.subr.bf16.mxu0 0
        %2719 = vmatpush1.bf16.msra.mxu0 %v2698
        %2720 = vmatprep.subr.bf16.mxu0 0
        %2721 = vmatpush1.bf16.msra.mxu0 %v2699
        %2722 = vmatprep.subr.bf16.mxu0 0
        %2723 = vmatpush1.bf16.msra.mxu0 %v2700
        %2724 = vmatprep.subr.bf16.mxu0 0
        %2725 = vmatpush1.bf16.msra.mxu0 %v2701
        %2726 = vmatprep.subr.bf16.mxu0 0
        %2727 = vmatpush1.bf16.msra.mxu0 0
        %2728 = vmatprep.subr.bf16.mxu0 0
        %2729 = vmatpush1.bf16.msra.mxu0 0
        %2730 = vmatprep.subr.bf16.mxu0 0
        %2731 = vmatpush1.bf16.msra.mxu0 0
        %2732 = vmatprep.subr.bf16.mxu0 0
        %2733 = vmatpush1.bf16.msra.mxu0 0
        %2734 = vmatprep.subr.bf16.mxu0 0
        %2735 = vmatpush1.bf16.msra.mxu0 0
        %2736 = vmatprep.subr.bf16.mxu0 0
        %2737 = vmatpush1.bf16.msra.mxu0 0
        %2738 = vmatprep.subr.bf16.mxu0 0
        %2739 = vmatpush1.bf16.msra.mxu0 0
        %2740 = vmatprep.subr.bf16.mxu0 0
        %2741 = vmatpush1.bf16.msra.mxu0 0
        %2742 = vmatprep.mubr.bf16.mxu0 0
        %2743 = vmatmul.mubr.bf16.gmra.mrb[0].mxu0 %v2637
        %v2744 = vpop.f32.mrb[0].mxu0
        %v2745 = vadd.f32 %v1170, %v2744
        %v2746 = vpop.f32.mrb[0].mxu0
        %v2747 = vpop.f32.mrb[0].mxu0
        %v2748 = vadd.f32 %v1170, %v2747
        %v2749 = vpop.f32.mrb[0].mxu0
        %2750 = vmatprep.mubr.bf16.mxu0 0
        %2751 = vmatmul.mubr.bf16.gmra.mrb[0].mxu0 %v2638
        %v2752 = vpop.f32.mrb[0].mxu0
        %v2753 = vadd.f32 %v1170, %v2752
        %v2754 = vpop.f32.mrb[0].mxu0
        %v2755 = vpop.f32.mrb[0].mxu0
        %v2756 = vadd.f32 %v1170, %v2755
        %v2757 = vpop.f32.mrb[0].mxu0
        %2758 = vmatprep.mubr.bf16.mxu0 0
        %2759 = vmatmul.mubr.bf16.gmra.mrb[0].mxu0 %v2639
        %v2760 = vpop.f32.mrb[0].mxu0
        %v2761 = vadd.f32 %v1170, %v2760
        %v2762 = vpop.f32.mrb[0].mxu0
        %v2763 = vpop.f32.mrb[0].mxu0
        %v2764 = vadd.f32 %v1170, %v2763
        %v2765 = vpop.f32.mrb[0].mxu0
        %2766 = vmatprep.mubr.bf16.mxu0 0
        %2767 = vmatmul.mubr.bf16.gmra.mrb[0].mxu0 %v2640
        %v2768 = vpop.f32.mrb[0].mxu0
        %v2769 = vadd.f32 %v1170, %v2768
        %v2770 = vpop.f32.mrb[0].mxu0
        %v2771 = vpop.f32.mrb[0].mxu0
        %v2772 = vadd.f32 %v1170, %v2771
        %v2773 = vpop.f32.mrb[0].mxu0
        %2774 = vmatprep.mubr.bf16.mxu0 0
        %2775 = vmatmul.mubr.bf16.gmra.mrb[0].mxu0 %v2641
        %v2776 = vpop.f32.mrb[0].mxu0
        %v2777 = vadd.f32 %v1170, %v2776
        %v2778 = vpop.f32.mrb[0].mxu0
        %v2779 = vpop.f32.mrb[0].mxu0
        %v2780 = vadd.f32 %v1170, %v2779
        %v2781 = vpop.f32.mrb[0].mxu0
        %2782 = vmatprep.mubr.bf16.mxu0 0
        %2783 = vmatmul.mubr.bf16.gmra.mrb[0].mxu0 %v2642
        %v2784 = vpop.f32.mrb[0].mxu0
        %v2785 = vadd.f32 %v1170, %v2784
        %v2786 = vpop.f32.mrb[0].mxu0
        %v2787 = vpop.f32.mrb[0].mxu0
        %v2788 = vadd.f32 %v1170, %v2787
        %v2789 = vpop.f32.mrb[0].mxu0
        %2790 = vmatprep.mubr.bf16.mxu0 0
        %2791 = vmatmul.mubr.bf16.gmra.mrb[0].mxu0 %v2643
        %v2792 = vpop.f32.mrb[0].mxu0
        %v2793 = vadd.f32 %v1170, %v2792
        %v2794 = vpop.f32.mrb[0].mxu0
        %v2795 = vpop.f32.mrb[0].mxu0
        %v2796 = vadd.f32 %v1170, %v2795
        %v2797 = vpop.f32.mrb[0].mxu0
        %2798 = vmatprep.mubr.bf16.mxu0 0
        %2799 = vmatmul.mubr.bf16.gmra.mrb[0].mxu0 %v2644
        %v2800 = vpop.f32.mrb[0].mxu0
        %v2801 = vadd.f32 %v1170, %v2800
        %v2802 = vpop.f32.mrb[0].mxu0
        %v2803 = vpop.f32.mrb[0].mxu0
        %v2804 = vadd.f32 %v1170, %v2803
        %v2805 = vpop.f32.mrb[0].mxu0
        %2806 = vdwg.mxu0
        %2807 = vmatprep.subr.bf16.mxu0 0
        %2808 = vmatpush1.bf16.msra.mxu0 %v1355
        %2809 = vmatprep.subr.bf16.mxu0 0
        %2810 = vmatpush1.bf16.msra.mxu0 %v1356
        %2811 = vmatprep.subr.bf16.mxu0 0
        %2812 = vmatpush1.bf16.msra.mxu0 %v1357
        %2813 = vmatprep.subr.bf16.mxu0 0
        %2814 = vmatpush1.bf16.msra.mxu0 %v1358
        %2815 = vmatprep.subr.bf16.mxu0 0
        %2816 = vmatpush1.bf16.msra.mxu0 %v1359
        %2817 = vmatprep.subr.bf16.mxu0 0
        %2818 = vmatpush1.bf16.msra.mxu0 %v1360
        %2819 = vmatprep.subr.bf16.mxu0 0
        %2820 = vmatpush1.bf16.msra.mxu0 %v1361
        %2821 = vmatprep.subr.bf16.mxu0 0
        %2822 = vmatpush1.bf16.msra.mxu0 %v1362
        %2823 = vmatprep.subr.bf16.mxu0 0
        %2824 = vmatpush1.bf16.msra.mxu0 0
        %2825 = vmatprep.subr.bf16.mxu0 0
        %2826 = vmatpush1.bf16.msra.mxu0 0
        %2827 = vmatprep.subr.bf16.mxu0 0
        %2828 = vmatpush1.bf16.msra.mxu0 0
        %2829 = vmatprep.subr.bf16.mxu0 0
        %2830 = vmatpush1.bf16.msra.mxu0 0
        %2831 = vmatprep.subr.bf16.mxu0 0
        %2832 = vmatpush1.bf16.msra.mxu0 0
        %2833 = vmatprep.subr.bf16.mxu0 0
        %2834 = vmatpush1.bf16.msra.mxu0 0
        %2835 = vmatprep.subr.bf16.mxu0 0
        %2836 = vmatpush1.bf16.msra.mxu0 0
        %2837 = vmatprep.subr.bf16.mxu0 0
        %2838 = vmatpush1.bf16.msra.mxu0 0
        %2839 = vmatprep.mubr.bf16.mxu0 0
        %2840 = vmatmul.mubr.bf16.gmra.mrb[0].mxu0 %v2629
        %v2841 = vpop.f32.mrb[0].mxu0
        %v2842 = vadd.f32 %v1321, %v2841
        %v2843 = vpop.f32.mrb[0].mxu0
        %v2844 = vpop.f32.mrb[0].mxu0
        %v2845 = vadd.f32 %v1321, %v2844
        %v2846 = vpop.f32.mrb[0].mxu0
        %2847 = vmatprep.mubr.bf16.mxu0 0
        %2848 = vmatmul.mubr.bf16.gmra.mrb[0].mxu0 %v2630
        %v2849 = vpop.f32.mrb[0].mxu0
        %v2850 = vadd.f32 %v1321, %v2849
        %v2851 = vpop.f32.mrb[0].mxu0
        %v2852 = vpop.f32.mrb[0].mxu0
        %v2853 = vadd.f32 %v1321, %v2852
        %v2854 = vpop.f32.mrb[0].mxu0
        %2855 = vmatprep.mubr.bf16.mxu0 0
        %2856 = vmatmul.mubr.bf16.gmra.mrb[0].mxu0 %v2631
        %v2857 = vpop.f32.mrb[0].mxu0
        %v2858 = vadd.f32 %v1321, %v2857
        %v2859 = vpop.f32.mrb[0].mxu0
        %v2860 = vpop.f32.mrb[0].mxu0
        %v2861 = vadd.f32 %v1321, %v2860
        %v2862 = vpop.f32.mrb[0].mxu0
        %2863 = vmatprep.mubr.bf16.mxu0 0
        %2864 = vmatmul.mubr.bf16.gmra.mrb[0].mxu0 %v2632
        %v2865 = vpop.f32.mrb[0].mxu0
        %v2866 = vadd.f32 %v1321, %v2865
        %v2867 = vpop.f32.mrb[0].mxu0
        %v2868 = vpop.f32.mrb[0].mxu0
        %v2869 = vadd.f32 %v1321, %v2868
        %v2870 = vpop.f32.mrb[0].mxu0
        %2871 = vmatprep.mubr.bf16.mxu0 0
        %2872 = vmatmul.mubr.bf16.gmra.mrb[0].mxu0 %v2633
        %v2873 = vpop.f32.mrb[0].mxu0
        %v2874 = vadd.f32 %v1321, %v2873
        %v2875 = vpop.f32.mrb[0].mxu0
        %v2876 = vpop.f32.mrb[0].mxu0
        %v2877 = vadd.f32 %v1321, %v2876
        %v2878 = vpop.f32.mrb[0].mxu0
        %2879 = vmatprep.mubr.bf16.mxu0 0
        %2880 = vmatmul.mubr.bf16.gmra.mrb[0].mxu0 %v2634
        %v2881 = vpop.f32.mrb[0].mxu0
        %v2882 = vadd.f32 %v1321, %v2881
        %v2883 = vpop.f32.mrb[0].mxu0
        %v2884 = vpop.f32.mrb[0].mxu0
        %v2885 = vadd.f32 %v1321, %v2884
        %v2886 = vpop.f32.mrb[0].mxu0
        %2887 = vmatprep.mubr.bf16.mxu0 0
        %2888 = vmatmul.mubr.bf16.gmra.mrb[0].mxu0 %v2635
        %v2889 = vpop.f32.mrb[0].mxu0
        %v2890 = vadd.f32 %v1321, %v2889
        %v2891 = vpop.f32.mrb[0].mxu0
        %v2892 = vpop.f32.mrb[0].mxu0
        %v2893 = vadd.f32 %v1321, %v2892
        %v2894 = vpop.f32.mrb[0].mxu0
        %2895 = vmatprep.mubr.bf16.mxu0 0
        %2896 = vmatmul.mubr.bf16.gmra.mrb[0].mxu0 %v2636
        %v2897 = vpop.f32.mrb[0].mxu0
        %v2898 = vadd.f32 %v1321, %v2897
        %v2899 = vpop.f32.mrb[0].mxu0
        %v2900 = vpop.f32.mrb[0].mxu0
        %v2901 = vadd.f32 %v1321, %v2900
        %v2902 = vpop.f32.mrb[0].mxu0
        %2903 = vdwg.mxu0
        %v2904 = vadd.f32 %v2745, %v2842
        %v2905 = vadd.f32 %v2748, %v2845
        %v2906 = vadd.f32 %v2753, %v2850
        %v2907 = vadd.f32 %v2756, %v2853
        %v2908 = vadd.f32 %v2761, %v2858
        %v2909 = vadd.f32 %v2764, %v2861
        %v2910 = vadd.f32 %v2769, %v2866
        %v2911 = vadd.f32 %v2772, %v2869
        %v2912 = vadd.f32 %v2777, %v2874
        %v2913 = vadd.f32 %v2780, %v2877
        %v2914 = vadd.f32 %v2785, %v2882
        %v2915 = vadd.f32 %v2788, %v2885
        %v2916 = vadd.f32 %v2793, %v2890
        %v2917 = vadd.f32 %v2796, %v2893
        %v2918 = vadd.f32 %v2801, %v2898
        %v2919 = vadd.f32 %v2804, %v2901
        %v2920 = vxor.u32 %v2904, 2147483648
        %v2921 = vxor.u32 %v2905, 2147483648
        %v2922 = vxor.u32 %v2906, 2147483648
        %v2923 = vxor.u32 %v2907, 2147483648
        %v2924 = vxor.u32 %v2908, 2147483648
        %v2925 = vxor.u32 %v2909, 2147483648
        %v2926 = vxor.u32 %v2910, 2147483648
        %v2927 = vxor.u32 %v2911, 2147483648
        %v2928 = vxor.u32 %v2912, 2147483648
        %v2929 = vxor.u32 %v2913, 2147483648
        %v2930 = vxor.u32 %v2914, 2147483648
        %v2931 = vxor.u32 %v2915, 2147483648
        %v2932 = vxor.u32 %v2916, 2147483648
        %v2933 = vxor.u32 %v2917, 2147483648
        %v2934 = vxor.u32 %v2918, 2147483648
        %v2935 = vxor.u32 %v2919, 2147483648
        %v2936 = vmul.f32 %v2920, 1.442695
        %v2937 = vpow.pop %v2936
        %v2938 = vmul.f32 %v2921, 1.442695
        %v2939 = vpow.pop %v2938
        %v2940 = vmul.f32 %v2922, 1.442695
        %v2941 = vpow.pop %v2940
        %v2942 = vmul.f32 %v2923, 1.442695
        %v2943 = vpow.pop %v2942
        %v2944 = vmul.f32 %v2924, 1.442695
        %v2945 = vpow.pop %v2944
        %v2946 = vmul.f32 %v2925, 1.442695
        %v2947 = vpow.pop %v2946
        %v2948 = vmul.f32 %v2926, 1.442695
        %v2949 = vpow.pop %v2948
        %v2950 = vmul.f32 %v2927, 1.442695
        %v2951 = vpow.pop %v2950
        %v2952 = vmul.f32 %v2928, 1.442695
        %v2953 = vpow.pop %v2952
        %v2954 = vmul.f32 %v2929, 1.442695
        %v2955 = vpow.pop %v2954
        %v2956 = vmul.f32 %v2930, 1.442695
        %v2957 = vpow.pop %v2956
        %v2958 = vmul.f32 %v2931, 1.442695
        %v2959 = vpow.pop %v2958
        %v2960 = vmul.f32 %v2932, 1.442695
        %v2961 = vpow.pop %v2960
        %v2962 = vmul.f32 %v2933, 1.442695
        %v2963 = vpow.pop %v2962
        %v2964 = vmul.f32 %v2934, 1.442695
        %v2965 = vpow.pop %v2964
        %v2966 = vmul.f32 %v2935, 1.442695
        %v2967 = vpow.pop %v2966
        %v2968 = vadd.f32 %v2937, 1.0
        %v2969 = vadd.f32 %v2939, 1.0
        %v2970 = vadd.f32 %v2941, 1.0
        %v2971 = vadd.f32 %v2943, 1.0
        %v2972 = vadd.f32 %v2945, 1.0
        %v2973 = vadd.f32 %v2947, 1.0
        %v2974 = vadd.f32 %v2949, 1.0
        %v2975 = vadd.f32 %v2951, 1.0
        %v2976 = vadd.f32 %v2953, 1.0
        %v2977 = vadd.f32 %v2955, 1.0
        %v2978 = vadd.f32 %v2957, 1.0
        %v2979 = vadd.f32 %v2959, 1.0
        %v2980 = vadd.f32 %v2961, 1.0
        %v2981 = vadd.f32 %v2963, 1.0
        %v2982 = vadd.f32 %v2965, 1.0
        %v2983 = vadd.f32 %v2967, 1.0
        %v2984 = vrcp.pop %v2968
        %v2985 = vmul.f32 1.0, %v2984
        %v2986 = vrcp.pop %v2969
        %v2987 = vmul.f32 1.0, %v2986
        %v2988 = vrcp.pop %v2970
        %v2989 = vmul.f32 1.0, %v2988
        %v2990 = vrcp.pop %v2971
        %v2991 = vmul.f32 1.0, %v2990
        %v2992 = vrcp.pop %v2972
        %v2993 = vmul.f32 1.0, %v2992
        %v2994 = vrcp.pop %v2973
        %v2995 = vmul.f32 1.0, %v2994
        %v2996 = vrcp.pop %v2974
        %v2997 = vmul.f32 1.0, %v2996
        %v2998 = vrcp.pop %v2975
        %v2999 = vmul.f32 1.0, %v2998
        %v3000 = vrcp.pop %v2976
        %v3001 = vmul.f32 1.0, %v3000
        %v3002 = vrcp.pop %v2977
        %v3003 = vmul.f32 1.0, %v3002
        %v3004 = vrcp.pop %v2978
        %v3005 = vmul.f32 1.0, %v3004
        %v3006 = vrcp.pop %v2979
        %v3007 = vmul.f32 1.0, %v3006
        %v3008 = vrcp.pop %v2980
        %v3009 = vmul.f32 1.0, %v3008
        %v3010 = vrcp.pop %v2981
        %v3011 = vmul.f32 1.0, %v3010
        %v3012 = vrcp.pop %v2982
        %v3013 = vmul.f32 1.0, %v3012
        %v3014 = vrcp.pop %v2983
        %v3015 = vmul.f32 1.0, %v3014
        %3032 = vrot.lane.b32.xlu0 %v2842, 64
        %v3033 = vpop.permute.xlu0 %3032
        %3034 = vrot.lane.b32.xlu0 %v2845, 64
        %v3035 = vpop.permute.xlu0 %3034
        %3036 = vrot.lane.b32.xlu0 %v2850, 64
        %v3037 = vpop.permute.xlu0 %3036
        %3038 = vrot.lane.b32.xlu0 %v2853, 64
        %v3039 = vpop.permute.xlu0 %3038
        %3040 = vrot.lane.b32.xlu0 %v2858, 64
        %v3041 = vpop.permute.xlu0 %3040
        %3042 = vrot.lane.b32.xlu0 %v2861, 64
        %v3043 = vpop.permute.xlu0 %3042
        %3044 = vrot.lane.b32.xlu0 %v2866, 64
        %v3045 = vpop.permute.xlu0 %3044
        %3046 = vrot.lane.b32.xlu0 %v2869, 64
        %v3047 = vpop.permute.xlu0 %3046
        %3048 = vrot.lane.b32.xlu0 %v2874, 64
        %v3049 = vpop.permute.xlu0 %3048
        %3050 = vrot.lane.b32.xlu0 %v2877, 64
        %v3051 = vpop.permute.xlu0 %3050
        %3052 = vrot.lane.b32.xlu0 %v2882, 64
        %v3053 = vpop.permute.xlu0 %3052
        %3054 = vrot.lane.b32.xlu0 %v2885, 64
        %v3055 = vpop.permute.xlu0 %3054
        %3056 = vrot.lane.b32.xlu0 %v2890, 64
        %v3057 = vpop.permute.xlu0 %3056
        %3058 = vrot.lane.b32.xlu0 %v2893, 64
        %v3059 = vpop.permute.xlu0 %3058
        %3060 = vrot.lane.b32.xlu0 %v2898, 64
        %v3061 = vpop.permute.xlu0 %3060
        %3062 = vrot.lane.b32.xlu0 %v2901, 64
        %v3063 = vpop.permute.xlu0 %3062
        %v3080 = vmul.f32 %v2985, %v3033
        %v3081 = vmul.f32 %v2987, %v3035
        %v3082 = vmul.f32 %v2989, %v3037
        %v3083 = vmul.f32 %v2991, %v3039
        %v3084 = vmul.f32 %v2993, %v3041
        %v3085 = vmul.f32 %v2995, %v3043
        %v3086 = vmul.f32 %v2997, %v3045
        %v3087 = vmul.f32 %v2999, %v3047
        %v3088 = vmul.f32 %v3001, %v3049
        %v3089 = vmul.f32 %v3003, %v3051
        %v3090 = vmul.f32 %v3005, %v3053
        %v3091 = vmul.f32 %v3007, %v3055
        %v3092 = vmul.f32 %v3009, %v3057
        %v3093 = vmul.f32 %v3011, %v3059
        %v3094 = vmul.f32 %v3013, %v3061
        %v3095 = vmul.f32 %v3015, %v3063
        %3112 = vrot.lane.b32.xlu0 %v3080, 64
        %v3113 = vpop.permute.xlu0 %3112
        %3114 = vrot.lane.b32.xlu0 %v3081, 64
        %v3115 = vpop.permute.xlu0 %3114
        %3116 = vrot.lane.b32.xlu0 %v3082, 64
        %v3117 = vpop.permute.xlu0 %3116
        %3118 = vrot.lane.b32.xlu0 %v3083, 64
        %v3119 = vpop.permute.xlu0 %3118
        %3120 = vrot.lane.b32.xlu0 %v3084, 64
        %v3121 = vpop.permute.xlu0 %3120
        %3122 = vrot.lane.b32.xlu0 %v3085, 64
        %v3123 = vpop.permute.xlu0 %3122
        %3124 = vrot.lane.b32.xlu0 %v3086, 64
        %v3125 = vpop.permute.xlu0 %3124
        %3126 = vrot.lane.b32.xlu0 %v3087, 64
        %v3127 = vpop.permute.xlu0 %3126
        %3128 = vrot.lane.b32.xlu0 %v3088, 64
        %v3129 = vpop.permute.xlu0 %3128
        %3130 = vrot.lane.b32.xlu0 %v3089, 64
        %v3131 = vpop.permute.xlu0 %3130
        %3132 = vrot.lane.b32.xlu0 %v3090, 64
        %v3133 = vpop.permute.xlu0 %3132
        %3134 = vrot.lane.b32.xlu0 %v3091, 64
        %v3135 = vpop.permute.xlu0 %3134
        %3136 = vrot.lane.b32.xlu0 %v3092, 64
        %v3137 = vpop.permute.xlu0 %3136
        %3138 = vrot.lane.b32.xlu0 %v3093, 64
        %v3139 = vpop.permute.xlu0 %3138
        %3140 = vrot.lane.b32.xlu0 %v3094, 64
        %v3141 = vpop.permute.xlu0 %3140
        %3142 = vrot.lane.b32.xlu0 %v3095, 64
        %v3143 = vpop.permute.xlu0 %3142
        %v3160 = vadd.f32 %v2745, %v3113
        %v3161 = vadd.f32 %v2748, %v3115
        %v3162 = vadd.f32 %v2753, %v3117
        %v3163 = vadd.f32 %v2756, %v3119
        %v3164 = vadd.f32 %v2761, %v3121
        %v3165 = vadd.f32 %v2764, %v3123
        %v3166 = vadd.f32 %v2769, %v3125
        %v3167 = vadd.f32 %v2772, %v3127
        %v3168 = vadd.f32 %v2777, %v3129
        %v3169 = vadd.f32 %v2780, %v3131
        %v3170 = vadd.f32 %v2785, %v3133
        %v3171 = vadd.f32 %v2788, %v3135
        %v3172 = vadd.f32 %v2793, %v3137
        %v3173 = vadd.f32 %v2796, %v3139
        %v3174 = vadd.f32 %v2801, %v3141
        %v3175 = vadd.f32 %v2804, %v3143
        %v3176 = vtanh.pop %v3160
        %v3177 = vtanh.pop %v3161
        %v3178 = vtanh.pop %v3162
        %v3179 = vtanh.pop %v3163
        %v3180 = vtanh.pop %v3164
        %v3181 = vtanh.pop %v3165
        %v3182 = vtanh.pop %v3166
        %v3183 = vtanh.pop %v3167
        %v3184 = vtanh.pop %v3168
        %v3185 = vtanh.pop %v3169
        %v3186 = vtanh.pop %v3170
        %v3187 = vtanh.pop %v3171
        %v3188 = vtanh.pop %v3172
        %v3189 = vtanh.pop %v3173
        %v3190 = vtanh.pop %v3174
        %v3191 = vtanh.pop %v3175
        %v3192 = vsub.f32 1.0, %v2985
        %v3193 = vsub.f32 1.0, %v2987
        %v3194 = vsub.f32 1.0, %v2989
        %v3195 = vsub.f32 1.0, %v2991
        %v3196 = vsub.f32 1.0, %v2993
        %v3197 = vsub.f32 1.0, %v2995
        %v3198 = vsub.f32 1.0, %v2997
        %v3199 = vsub.f32 1.0, %v2999
        %v3200 = vsub.f32 1.0, %v3001
        %v3201 = vsub.f32 1.0, %v3003
        %v3202 = vsub.f32 1.0, %v3005
        %v3203 = vsub.f32 1.0, %v3007
        %v3204 = vsub.f32 1.0, %v3009
        %v3205 = vsub.f32 1.0, %v3011
        %v3206 = vsub.f32 1.0, %v3013
        %v3207 = vsub.f32 1.0, %v3015
        %3224 = vrot.lane.b32.xlu0 %v3176, 96
        %v3225 = vpop.permute.xlu0 %3224
        %3226 = vrot.lane.b32.xlu0 %v3177, 96
        %v3227 = vpop.permute.xlu0 %3226
        %3228 = vrot.lane.b32.xlu0 %v3178, 96
        %v3229 = vpop.permute.xlu0 %3228
        %3230 = vrot.lane.b32.xlu0 %v3179, 96
        %v3231 = vpop.permute.xlu0 %3230
        %3232 = vrot.lane.b32.xlu0 %v3180, 96
        %v3233 = vpop.permute.xlu0 %3232
        %3234 = vrot.lane.b32.xlu0 %v3181, 96
        %v3235 = vpop.permute.xlu0 %3234
        %3236 = vrot.lane.b32.xlu0 %v3182, 96
        %v3237 = vpop.permute.xlu0 %3236
        %3238 = vrot.lane.b32.xlu0 %v3183, 96
        %v3239 = vpop.permute.xlu0 %3238
        %3240 = vrot.lane.b32.xlu0 %v3184, 96
        %v3241 = vpop.permute.xlu0 %3240
        %3242 = vrot.lane.b32.xlu0 %v3185, 96
        %v3243 = vpop.permute.xlu0 %3242
        %3244 = vrot.lane.b32.xlu0 %v3186, 96
        %v3245 = vpop.permute.xlu0 %3244
        %3246 = vrot.lane.b32.xlu0 %v3187, 96
        %v3247 = vpop.permute.xlu0 %3246
        %3248 = vrot.lane.b32.xlu0 %v3188, 96
        %v3249 = vpop.permute.xlu0 %3248
        %3250 = vrot.lane.b32.xlu0 %v3189, 96
        %v3251 = vpop.permute.xlu0 %3250
        %3252 = vrot.lane.b32.xlu0 %v3190, 96
        %v3253 = vpop.permute.xlu0 %3252
        %3254 = vrot.lane.b32.xlu0 %v3191, 96
        %v3255 = vpop.permute.xlu0 %3254
        %v3272 = vmul.f32 %v3192, %v3225
        %v3273 = vmul.f32 %v3193, %v3227
        %v3274 = vmul.f32 %v3194, %v3229
        %v3275 = vmul.f32 %v3195, %v3231
        %v3276 = vmul.f32 %v3196, %v3233
        %v3277 = vmul.f32 %v3197, %v3235
        %v3278 = vmul.f32 %v3198, %v3237
        %v3279 = vmul.f32 %v3199, %v3239
        %v3280 = vmul.f32 %v3200, %v3241
        %v3281 = vmul.f32 %v3201, %v3243
        %v3282 = vmul.f32 %v3202, %v3245
        %v3283 = vmul.f32 %v3203, %v3247
        %v3284 = vmul.f32 %v3204, %v3249
        %v3285 = vmul.f32 %v3205, %v3251
        %v3286 = vmul.f32 %v3206, %v3253
        %v3287 = vmul.f32 %v3207, %v3255
        %3304 = vrot.lane.b32.xlu0 %v2013, 32
        %v3305 = vpop.permute.xlu0 %3304
        %3306 = vrot.lane.b32.xlu0 %v2014, 32
        %v3307 = vpop.permute.xlu0 %3306
        %3308 = vrot.lane.b32.xlu0 %v2015, 32
        %v3309 = vpop.permute.xlu0 %3308
        %3310 = vrot.lane.b32.xlu0 %v2016, 32
        %v3311 = vpop.permute.xlu0 %3310
        %3312 = vrot.lane.b32.xlu0 %v2017, 32
        %v3313 = vpop.permute.xlu0 %3312
        %3314 = vrot.lane.b32.xlu0 %v2018, 32
        %v3315 = vpop.permute.xlu0 %3314
        %3316 = vrot.lane.b32.xlu0 %v2019, 32
        %v3317 = vpop.permute.xlu0 %3316
        %3318 = vrot.lane.b32.xlu0 %v2020, 32
        %v3319 = vpop.permute.xlu0 %3318
        %3320 = vrot.lane.b32.xlu0 %v2021, 32
        %v3321 = vpop.permute.xlu0 %3320
        %3322 = vrot.lane.b32.xlu0 %v2022, 32
        %v3323 = vpop.permute.xlu0 %3322
        %3324 = vrot.lane.b32.xlu0 %v2023, 32
        %v3325 = vpop.permute.xlu0 %3324
        %3326 = vrot.lane.b32.xlu0 %v2024, 32
        %v3327 = vpop.permute.xlu0 %3326
        %3328 = vrot.lane.b32.xlu0 %v2025, 32
        %v3329 = vpop.permute.xlu0 %3328
        %3330 = vrot.lane.b32.xlu0 %v2026, 32
        %v3331 = vpop.permute.xlu0 %3330
        %3332 = vrot.lane.b32.xlu0 %v2027, 32
        %v3333 = vpop.permute.xlu0 %3332
        %3334 = vrot.lane.b32.xlu0 %v2028, 32
        %v3335 = vpop.permute.xlu0 %3334
        %v3352 = vmul.f32 %v2985, %v3305
        %v3353 = vmul.f32 %v2987, %v3307
        %v3354 = vmul.f32 %v2989, %v3309
        %v3355 = vmul.f32 %v2991, %v3311
        %v3356 = vmul.f32 %v2993, %v3313
        %v3357 = vmul.f32 %v2995, %v3315
        %v3358 = vmul.f32 %v2997, %v3317
        %v3359 = vmul.f32 %v2999, %v3319
        %v3360 = vmul.f32 %v3001, %v3321
        %v3361 = vmul.f32 %v3003, %v3323
        %v3362 = vmul.f32 %v3005, %v3325
        %v3363 = vmul.f32 %v3007, %v3327
        %v3364 = vmul.f32 %v3009, %v3329
        %v3365 = vmul.f32 %v3011, %v3331
        %v3366 = vmul.f32 %v3013, %v3333
        %v3367 = vmul.f32 %v3015, %v3335
        %v3368 = vadd.f32 %v3272, %v3352
        %v3369 = vadd.f32 %v3273, %v3353
        %v3370 = vadd.f32 %v3274, %v3354
        %v3371 = vadd.f32 %v3275, %v3355
        %v3372 = vadd.f32 %v3276, %v3356
        %v3373 = vadd.f32 %v3277, %v3357
        %v3374 = vadd.f32 %v3278, %v3358
        %v3375 = vadd.f32 %v3279, %v3359
        %v3376 = vadd.f32 %v3280, %v3360
        %v3377 = vadd.f32 %v3281, %v3361
        %v3378 = vadd.f32 %v3282, %v3362
        %v3379 = vadd.f32 %v3283, %v3363
        %v3380 = vadd.f32 %v3284, %v3364
        %v3381 = vadd.f32 %v3285, %v3365
        %v3382 = vadd.f32 %v3286, %v3366
        %v3383 = vadd.f32 %v3287, %v3367
        %3400 = vrot.lane.b32.xlu0 %v3368, 96
        %v3401 = vpop.permute.xlu0 %3400
        %3402 = vrot.lane.b32.xlu0 %v3369, 96
        %v3403 = vpop.permute.xlu0 %3402
        %3404 = vrot.lane.b32.xlu0 %v3370, 96
        %v3405 = vpop.permute.xlu0 %3404
        %3406 = vrot.lane.b32.xlu0 %v3371, 96
        %v3407 = vpop.permute.xlu0 %3406
        %3408 = vrot.lane.b32.xlu0 %v3372, 96
        %v3409 = vpop.permute.xlu0 %3408
        %3410 = vrot.lane.b32.xlu0 %v3373, 96
        %v3411 = vpop.permute.xlu0 %3410
        %3412 = vrot.lane.b32.xlu0 %v3374, 96
        %v3413 = vpop.permute.xlu0 %3412
        %3414 = vrot.lane.b32.xlu0 %v3375, 96
        %v3415 = vpop.permute.xlu0 %3414
        %3416 = vrot.lane.b32.xlu0 %v3376, 96
        %v3417 = vpop.permute.xlu0 %3416
        %3418 = vrot.lane.b32.xlu0 %v3377, 96
        %v3419 = vpop.permute.xlu0 %3418
        %3420 = vrot.lane.b32.xlu0 %v3378, 96
        %v3421 = vpop.permute.xlu0 %3420
        %3422 = vrot.lane.b32.xlu0 %v3379, 96
        %v3423 = vpop.permute.xlu0 %3422
        %3424 = vrot.lane.b32.xlu0 %v3380, 96
        %v3425 = vpop.permute.xlu0 %3424
        %3426 = vrot.lane.b32.xlu0 %v3381, 96
        %v3427 = vpop.permute.xlu0 %3426
        %3428 = vrot.lane.b32.xlu0 %v3382, 96
        %v3429 = vpop.permute.xlu0 %3428
        %3430 = vrot.lane.b32.xlu0 %v3383, 96
        %v3431 = vpop.permute.xlu0 %3430
        %v3448 = vsel %vm2012, %v3401, 0.0
        %v3449 = vsel %vm2012, %v3403, 0.0
        %v3450 = vsel %vm2012, %v3405, 0.0
        %v3451 = vsel %vm2012, %v3407, 0.0
        %v3452 = vsel %vm2012, %v3409, 0.0
        %v3453 = vsel %vm2012, %v3411, 0.0
        %v3454 = vsel %vm2012, %v3413, 0.0
        %v3455 = vsel %vm2012, %v3415, 0.0
        %v3456 = vsel %vm2012, %v3417, 0.0
        %v3457 = vsel %vm2012, %v3419, 0.0
        %v3458 = vsel %vm2012, %v3421, 0.0
        %v3459 = vsel %vm2012, %v3423, 0.0
        %v3460 = vsel %vm2012, %v3425, 0.0
        %v3461 = vsel %vm2012, %v3427, 0.0
        %v3462 = vsel %vm2012, %v3429, 0.0
        %v3463 = vsel %vm2012, %v3431, 0.0
        %3464 = vmatprep.subr.mxu0 0.0
        %3465 = vmatpush1.msra.mxu0 %v3448
        %3466 = vmatprep.subr.mxu0 0.0
        %3467 = vmatpush1.msra.mxu0 %v3449
        %3468 = vmatprep.subr.mxu0 0.0
        %3469 = vmatpush1.msra.mxu0 0.0
        %3470 = vmatprep.subr.mxu0 0.0
        %3471 = vmatpush1.msra.mxu0 0.0
        %3472 = vmatprep.subr.mxu0 0.0
        %3473 = vmatpush1.msra.mxu0 0.0
        %3474 = vmatprep.subr.mxu0 0.0
        %3475 = vmatpush1.msra.mxu0 0.0
        %3476 = vmatprep.subr.mxu0 0.0
        %3477 = vmatpush1.msra.mxu0 0.0
        %3478 = vmatprep.subr.mxu0 0.0
        %3479 = vmatpush1.msra.mxu0 0.0
        %3480 = vmatprep.subr.mxu0 0.0
        %3481 = vmatpush1.msra.mxu0 0.0
        %3482 = vmatprep.subr.mxu0 0.0
        %3483 = vmatpush1.msra.mxu0 0.0
        %3484 = vmatprep.subr.mxu0 0.0
        %3485 = vmatpush1.msra.mxu0 0.0
        %3486 = vmatprep.subr.mxu0 0.0
        %3487 = vmatpush1.msra.mxu0 0.0
        %3488 = vmatprep.subr.mxu0 0.0
        %3489 = vmatpush1.msra.mxu0 0.0
        %3490 = vmatprep.subr.mxu0 0.0
        %3491 = vmatpush1.msra.mxu0 0.0
        %3492 = vmatprep.subr.mxu0 0.0
        %3493 = vmatpush1.msra.mxu0 0.0
        %3494 = vmatprep.subr.mxu0 0.0
        %3495 = vmatpush1.msra.mxu0 0.0
        %3496 = vmatprep.subr.mxu0 0.0
        %3497 = vmatpush1.msra.mxu0 0.0
        %3498 = vmatprep.subr.mxu0 0.0
        %3499 = vmatpush1.msra.mxu0 0.0
        %3500 = vmatprep.subr.mxu0 0.0
        %3501 = vmatpush1.msra.mxu0 0.0
        %3502 = vmatprep.subr.mxu0 0.0
        %3503 = vmatpush1.msra.mxu0 0.0
        %3504 = vmatprep.subr.mxu0 0.0
        %3505 = vmatpush1.msra.mxu0 0.0
        %3506 = vmatprep.subr.mxu0 0.0
        %3507 = vmatpush1.msra.mxu0 0.0
        %3508 = vmatprep.subr.mxu0 0.0
        %3509 = vmatpush1.msra.mxu0 0.0
        %3510 = vmatprep.subr.mxu0 0.0
        %3511 = vmatpush1.msra.mxu0 0.0
        %3512 = vmatprep.subr.mxu0 0.0
        %3513 = vmatpush1.msra.mxu0 0.0
        %3514 = vmatprep.subr.mxu0 0.0
        %3515 = vmatpush1.msra.mxu0 0.0
        %3516 = vmatprep.subr.mxu0 0.0
        %3517 = vmatpush1.msra.mxu0 0.0
        %3518 = vmatprep.subr.mxu0 0.0
        %3519 = vmatpush1.msra.mxu0 0.0
        %3520 = vmatprep.subr.mxu0 0.0
        %3521 = vmatpush1.msra.mxu0 0.0
        %3522 = vmatprep.subr.mxu0 0.0
        %3523 = vmatpush1.msra.mxu0 0.0
        %3524 = vmatprep.subr.mxu0 0.0
        %3525 = vmatpush1.msra.mxu0 0.0
        %3526 = vmatprep.subr.mxu0 0.0
        %3527 = vmatpush1.msra.mxu0 0.0
        %3528 = vmatprep.mubr.f32.mxu0 0.0
        %3529 = vmatmul.mubr.f32.gmra.mrb[0].mxu0 %v487
        %v3530 = vpop.f32.mrb[0].mxu0
        %v3531 = vadd.f32 0.0, %v3530
        %v3532 = vpop.f32.mrb[0].mxu0
        %3533 = vmatprep.mubr.f32.mxu0 0.0
        %3534 = vmatmul.mubr.f32.gmra.mrb[0].mxu0 %v490
        %v3535 = vpop.f32.mrb[0].mxu0
        %v3536 = vadd.f32 0.0, %v3535
        %v3537 = vpop.f32.mrb[0].mxu0
        %3538 = vdwg.mxu0
        %3539 = vmatprep.subr.mxu0 0.0
        %3540 = vmatpush1.msra.mxu0 %v3450
        %3541 = vmatprep.subr.mxu0 0.0
        %3542 = vmatpush1.msra.mxu0 %v3451
        %3543 = vmatprep.subr.mxu0 0.0
        %3544 = vmatpush1.msra.mxu0 0.0
        %3545 = vmatprep.subr.mxu0 0.0
        %3546 = vmatpush1.msra.mxu0 0.0
        %3547 = vmatprep.subr.mxu0 0.0
        %3548 = vmatpush1.msra.mxu0 0.0
        %3549 = vmatprep.subr.mxu0 0.0
        %3550 = vmatpush1.msra.mxu0 0.0
        %3551 = vmatprep.subr.mxu0 0.0
        %3552 = vmatpush1.msra.mxu0 0.0
        %3553 = vmatprep.subr.mxu0 0.0
        %3554 = vmatpush1.msra.mxu0 0.0
        %3555 = vmatprep.subr.mxu0 0.0
        %3556 = vmatpush1.msra.mxu0 0.0
        %3557 = vmatprep.subr.mxu0 0.0
        %3558 = vmatpush1.msra.mxu0 0.0
        %3559 = vmatprep.subr.mxu0 0.0
        %3560 = vmatpush1.msra.mxu0 0.0
        %3561 = vmatprep.subr.mxu0 0.0
        %3562 = vmatpush1.msra.mxu0 0.0
        %3563 = vmatprep.subr.mxu0 0.0
        %3564 = vmatpush1.msra.mxu0 0.0
        %3565 = vmatprep.subr.mxu0 0.0
        %3566 = vmatpush1.msra.mxu0 0.0
        %3567 = vmatprep.subr.mxu0 0.0
        %3568 = vmatpush1.msra.mxu0 0.0
        %3569 = vmatprep.subr.mxu0 0.0
        %3570 = vmatpush1.msra.mxu0 0.0
        %3571 = vmatprep.subr.mxu0 0.0
        %3572 = vmatpush1.msra.mxu0 0.0
        %3573 = vmatprep.subr.mxu0 0.0
        %3574 = vmatpush1.msra.mxu0 0.0
        %3575 = vmatprep.subr.mxu0 0.0
        %3576 = vmatpush1.msra.mxu0 0.0
        %3577 = vmatprep.subr.mxu0 0.0
        %3578 = vmatpush1.msra.mxu0 0.0
        %3579 = vmatprep.subr.mxu0 0.0
        %3580 = vmatpush1.msra.mxu0 0.0
        %3581 = vmatprep.subr.mxu0 0.0
        %3582 = vmatpush1.msra.mxu0 0.0
        %3583 = vmatprep.subr.mxu0 0.0
        %3584 = vmatpush1.msra.mxu0 0.0
        %3585 = vmatprep.subr.mxu0 0.0
        %3586 = vmatpush1.msra.mxu0 0.0
        %3587 = vmatprep.subr.mxu0 0.0
        %3588 = vmatpush1.msra.mxu0 0.0
        %3589 = vmatprep.subr.mxu0 0.0
        %3590 = vmatpush1.msra.mxu0 0.0
        %3591 = vmatprep.subr.mxu0 0.0
        %3592 = vmatpush1.msra.mxu0 0.0
        %3593 = vmatprep.subr.mxu0 0.0
        %3594 = vmatpush1.msra.mxu0 0.0
        %3595 = vmatprep.subr.mxu0 0.0
        %3596 = vmatpush1.msra.mxu0 0.0
        %3597 = vmatprep.subr.mxu0 0.0
        %3598 = vmatpush1.msra.mxu0 0.0
        %3599 = vmatprep.subr.mxu0 0.0
        %3600 = vmatpush1.msra.mxu0 0.0
        %3601 = vmatprep.subr.mxu0 0.0
        %3602 = vmatpush1.msra.mxu0 0.0
        %3603 = vmatprep.mubr.f32.mxu0 0.0
        %3604 = vmatmul.mubr.f32.gmra.mrb[0].mxu0 %v568
        %v3605 = vpop.f32.mrb[0].mxu0
        %v3606 = vadd.f32 0.0, %v3605
        %v3607 = vpop.f32.mrb[0].mxu0
        %3608 = vmatprep.mubr.f32.mxu0 0.0
        %3609 = vmatmul.mubr.f32.gmra.mrb[0].mxu0 %v571
        %v3610 = vpop.f32.mrb[0].mxu0
        %v3611 = vadd.f32 0.0, %v3610
        %v3612 = vpop.f32.mrb[0].mxu0
        %3613 = vdwg.mxu0
        %3614 = vmatprep.subr.mxu0 0.0
        %3615 = vmatpush1.msra.mxu0 %v3452
        %3616 = vmatprep.subr.mxu0 0.0
        %3617 = vmatpush1.msra.mxu0 %v3453
        %3618 = vmatprep.subr.mxu0 0.0
        %3619 = vmatpush1.msra.mxu0 0.0
        %3620 = vmatprep.subr.mxu0 0.0
        %3621 = vmatpush1.msra.mxu0 0.0
        %3622 = vmatprep.subr.mxu0 0.0
        %3623 = vmatpush1.msra.mxu0 0.0
        %3624 = vmatprep.subr.mxu0 0.0
        %3625 = vmatpush1.msra.mxu0 0.0
        %3626 = vmatprep.subr.mxu0 0.0
        %3627 = vmatpush1.msra.mxu0 0.0
        %3628 = vmatprep.subr.mxu0 0.0
        %3629 = vmatpush1.msra.mxu0 0.0
        %3630 = vmatprep.subr.mxu0 0.0
        %3631 = vmatpush1.msra.mxu0 0.0
        %3632 = vmatprep.subr.mxu0 0.0
        %3633 = vmatpush1.msra.mxu0 0.0
        %3634 = vmatprep.subr.mxu0 0.0
        %3635 = vmatpush1.msra.mxu0 0.0
        %3636 = vmatprep.subr.mxu0 0.0
        %3637 = vmatpush1.msra.mxu0 0.0
        %3638 = vmatprep.subr.mxu0 0.0
        %3639 = vmatpush1.msra.mxu0 0.0
        %3640 = vmatprep.subr.mxu0 0.0
        %3641 = vmatpush1.msra.mxu0 0.0
        %3642 = vmatprep.subr.mxu0 0.0
        %3643 = vmatpush1.msra.mxu0 0.0
        %3644 = vmatprep.subr.mxu0 0.0
        %3645 = vmatpush1.msra.mxu0 0.0
        %3646 = vmatprep.subr.mxu0 0.0
        %3647 = vmatpush1.msra.mxu0 0.0
        %3648 = vmatprep.subr.mxu0 0.0
        %3649 = vmatpush1.msra.mxu0 0.0
        %3650 = vmatprep.subr.mxu0 0.0
        %3651 = vmatpush1.msra.mxu0 0.0
        %3652 = vmatprep.subr.mxu0 0.0
        %3653 = vmatpush1.msra.mxu0 0.0
        %3654 = vmatprep.subr.mxu0 0.0
        %3655 = vmatpush1.msra.mxu0 0.0
        %3656 = vmatprep.subr.mxu0 0.0
        %3657 = vmatpush1.msra.mxu0 0.0
        %3658 = vmatprep.subr.mxu0 0.0
        %3659 = vmatpush1.msra.mxu0 0.0
        %3660 = vmatprep.subr.mxu0 0.0
        %3661 = vmatpush1.msra.mxu0 0.0
        %3662 = vmatprep.subr.mxu0 0.0
        %3663 = vmatpush1.msra.mxu0 0.0
        %3664 = vmatprep.subr.mxu0 0.0
        %3665 = vmatpush1.msra.mxu0 0.0
        %3666 = vmatprep.subr.mxu0 0.0
        %3667 = vmatpush1.msra.mxu0 0.0
        %3668 = vmatprep.subr.mxu0 0.0
        %3669 = vmatpush1.msra.mxu0 0.0
        %3670 = vmatprep.subr.mxu0 0.0
        %3671 = vmatpush1.msra.mxu0 0.0
        %3672 = vmatprep.subr.mxu0 0.0
        %3673 = vmatpush1.msra.mxu0 0.0
        %3674 = vmatprep.subr.mxu0 0.0
        %3675 = vmatpush1.msra.mxu0 0.0
        %3676 = vmatprep.subr.mxu0 0.0
        %3677 = vmatpush1.msra.mxu0 0.0
        %3678 = vmatprep.mubr.f32.mxu0 0.0
        %3679 = vmatmul.mubr.f32.gmra.mrb[0].mxu0 %v649
        %v3680 = vpop.f32.mrb[0].mxu0
        %v3681 = vadd.f32 0.0, %v3680
        %v3682 = vpop.f32.mrb[0].mxu0
        %3683 = vmatprep.mubr.f32.mxu0 0.0
        %3684 = vmatmul.mubr.f32.gmra.mrb[0].mxu0 %v652
        %v3685 = vpop.f32.mrb[0].mxu0
        %v3686 = vadd.f32 0.0, %v3685
        %v3687 = vpop.f32.mrb[0].mxu0
        %3688 = vdwg.mxu0
        %3689 = vmatprep.subr.mxu0 0.0
        %3690 = vmatpush1.msra.mxu0 %v3454
        %3691 = vmatprep.subr.mxu0 0.0
        %3692 = vmatpush1.msra.mxu0 %v3455
        %3693 = vmatprep.subr.mxu0 0.0
        %3694 = vmatpush1.msra.mxu0 0.0
        %3695 = vmatprep.subr.mxu0 0.0
        %3696 = vmatpush1.msra.mxu0 0.0
        %3697 = vmatprep.subr.mxu0 0.0
        %3698 = vmatpush1.msra.mxu0 0.0
        %3699 = vmatprep.subr.mxu0 0.0
        %3700 = vmatpush1.msra.mxu0 0.0
        %3701 = vmatprep.subr.mxu0 0.0
        %3702 = vmatpush1.msra.mxu0 0.0
        %3703 = vmatprep.subr.mxu0 0.0
        %3704 = vmatpush1.msra.mxu0 0.0
        %3705 = vmatprep.subr.mxu0 0.0
        %3706 = vmatpush1.msra.mxu0 0.0
        %3707 = vmatprep.subr.mxu0 0.0
        %3708 = vmatpush1.msra.mxu0 0.0
        %3709 = vmatprep.subr.mxu0 0.0
        %3710 = vmatpush1.msra.mxu0 0.0
        %3711 = vmatprep.subr.mxu0 0.0
        %3712 = vmatpush1.msra.mxu0 0.0
        %3713 = vmatprep.subr.mxu0 0.0
        %3714 = vmatpush1.msra.mxu0 0.0
        %3715 = vmatprep.subr.mxu0 0.0
        %3716 = vmatpush1.msra.mxu0 0.0
        %3717 = vmatprep.subr.mxu0 0.0
        %3718 = vmatpush1.msra.mxu0 0.0
        %3719 = vmatprep.subr.mxu0 0.0
        %3720 = vmatpush1.msra.mxu0 0.0
        %3721 = vmatprep.subr.mxu0 0.0
        %3722 = vmatpush1.msra.mxu0 0.0
        %3723 = vmatprep.subr.mxu0 0.0
        %3724 = vmatpush1.msra.mxu0 0.0
        %3725 = vmatprep.subr.mxu0 0.0
        %3726 = vmatpush1.msra.mxu0 0.0
        %3727 = vmatprep.subr.mxu0 0.0
        %3728 = vmatpush1.msra.mxu0 0.0
        %3729 = vmatprep.subr.mxu0 0.0
        %3730 = vmatpush1.msra.mxu0 0.0
        %3731 = vmatprep.subr.mxu0 0.0
        %3732 = vmatpush1.msra.mxu0 0.0
        %3733 = vmatprep.subr.mxu0 0.0
        %3734 = vmatpush1.msra.mxu0 0.0
        %3735 = vmatprep.subr.mxu0 0.0
        %3736 = vmatpush1.msra.mxu0 0.0
        %3737 = vmatprep.subr.mxu0 0.0
        %3738 = vmatpush1.msra.mxu0 0.0
        %3739 = vmatprep.subr.mxu0 0.0
        %3740 = vmatpush1.msra.mxu0 0.0
        %3741 = vmatprep.subr.mxu0 0.0
        %3742 = vmatpush1.msra.mxu0 0.0
        %3743 = vmatprep.subr.mxu0 0.0
        %3744 = vmatpush1.msra.mxu0 0.0
        %3745 = vmatprep.subr.mxu0 0.0
        %3746 = vmatpush1.msra.mxu0 0.0
        %3747 = vmatprep.subr.mxu0 0.0
        %3748 = vmatpush1.msra.mxu0 0.0
        %3749 = vmatprep.subr.mxu0 0.0
        %3750 = vmatpush1.msra.mxu0 0.0
        %3751 = vmatprep.subr.mxu0 0.0
        %3752 = vmatpush1.msra.mxu0 0.0
        %3753 = vmatprep.mubr.f32.mxu0 0.0
        %3754 = vmatmul.mubr.f32.gmra.mrb[0].mxu0 %v730
        %v3755 = vpop.f32.mrb[0].mxu0
        %v3756 = vadd.f32 0.0, %v3755
        %v3757 = vpop.f32.mrb[0].mxu0
        %3758 = vmatprep.mubr.f32.mxu0 0.0
        %3759 = vmatmul.mubr.f32.gmra.mrb[0].mxu0 %v733
        %v3760 = vpop.f32.mrb[0].mxu0
        %v3761 = vadd.f32 0.0, %v3760
        %v3762 = vpop.f32.mrb[0].mxu0
        %3763 = vdwg.mxu0
        %3764 = vmatprep.subr.mxu0 0.0
        %3765 = vmatpush1.msra.mxu0 %v3456
        %3766 = vmatprep.subr.mxu0 0.0
        %3767 = vmatpush1.msra.mxu0 %v3457
        %3768 = vmatprep.subr.mxu0 0.0
        %3769 = vmatpush1.msra.mxu0 0.0
        %3770 = vmatprep.subr.mxu0 0.0
        %3771 = vmatpush1.msra.mxu0 0.0
        %3772 = vmatprep.subr.mxu0 0.0
        %3773 = vmatpush1.msra.mxu0 0.0
        %3774 = vmatprep.subr.mxu0 0.0
        %3775 = vmatpush1.msra.mxu0 0.0
        %3776 = vmatprep.subr.mxu0 0.0
        %3777 = vmatpush1.msra.mxu0 0.0
        %3778 = vmatprep.subr.mxu0 0.0
        %3779 = vmatpush1.msra.mxu0 0.0
        %3780 = vmatprep.subr.mxu0 0.0
        %3781 = vmatpush1.msra.mxu0 0.0
        %3782 = vmatprep.subr.mxu0 0.0
        %3783 = vmatpush1.msra.mxu0 0.0
        %3784 = vmatprep.subr.mxu0 0.0
        %3785 = vmatpush1.msra.mxu0 0.0
        %3786 = vmatprep.subr.mxu0 0.0
        %3787 = vmatpush1.msra.mxu0 0.0
        %3788 = vmatprep.subr.mxu0 0.0
        %3789 = vmatpush1.msra.mxu0 0.0
        %3790 = vmatprep.subr.mxu0 0.0
        %3791 = vmatpush1.msra.mxu0 0.0
        %3792 = vmatprep.subr.mxu0 0.0
        %3793 = vmatpush1.msra.mxu0 0.0
        %3794 = vmatprep.subr.mxu0 0.0
        %3795 = vmatpush1.msra.mxu0 0.0
        %3796 = vmatprep.subr.mxu0 0.0
        %3797 = vmatpush1.msra.mxu0 0.0
        %3798 = vmatprep.subr.mxu0 0.0
        %3799 = vmatpush1.msra.mxu0 0.0
        %3800 = vmatprep.subr.mxu0 0.0
        %3801 = vmatpush1.msra.mxu0 0.0
        %3802 = vmatprep.subr.mxu0 0.0
        %3803 = vmatpush1.msra.mxu0 0.0
        %3804 = vmatprep.subr.mxu0 0.0
        %3805 = vmatpush1.msra.mxu0 0.0
        %3806 = vmatprep.subr.mxu0 0.0
        %3807 = vmatpush1.msra.mxu0 0.0
        %3808 = vmatprep.subr.mxu0 0.0
        %3809 = vmatpush1.msra.mxu0 0.0
        %3810 = vmatprep.subr.mxu0 0.0
        %3811 = vmatpush1.msra.mxu0 0.0
        %3812 = vmatprep.subr.mxu0 0.0
        %3813 = vmatpush1.msra.mxu0 0.0
        %3814 = vmatprep.subr.mxu0 0.0
        %3815 = vmatpush1.msra.mxu0 0.0
        %3816 = vmatprep.subr.mxu0 0.0
        %3817 = vmatpush1.msra.mxu0 0.0
        %3818 = vmatprep.subr.mxu0 0.0
        %3819 = vmatpush1.msra.mxu0 0.0
        %3820 = vmatprep.subr.mxu0 0.0
        %3821 = vmatpush1.msra.mxu0 0.0
        %3822 = vmatprep.subr.mxu0 0.0
        %3823 = vmatpush1.msra.mxu0 0.0
        %3824 = vmatprep.subr.mxu0 0.0
        %3825 = vmatpush1.msra.mxu0 0.0
        %3826 = vmatprep.subr.mxu0 0.0
        %3827 = vmatpush1.msra.mxu0 0.0
        %3828 = vmatprep.mubr.f32.mxu0 0.0
        %3829 = vmatmul.mubr.f32.gmra.mrb[0].mxu0 %v811
        %v3830 = vpop.f32.mrb[0].mxu0
        %v3831 = vadd.f32 0.0, %v3830
        %v3832 = vpop.f32.mrb[0].mxu0
        %3833 = vmatprep.mubr.f32.mxu0 0.0
        %3834 = vmatmul.mubr.f32.gmra.mrb[0].mxu0 %v814
        %v3835 = vpop.f32.mrb[0].mxu0
        %v3836 = vadd.f32 0.0, %v3835
        %v3837 = vpop.f32.mrb[0].mxu0
        %3838 = vdwg.mxu0
        %3839 = vmatprep.subr.mxu0 0.0
        %3840 = vmatpush1.msra.mxu0 %v3458
        %3841 = vmatprep.subr.mxu0 0.0
        %3842 = vmatpush1.msra.mxu0 %v3459
        %3843 = vmatprep.subr.mxu0 0.0
        %3844 = vmatpush1.msra.mxu0 0.0
        %3845 = vmatprep.subr.mxu0 0.0
        %3846 = vmatpush1.msra.mxu0 0.0
        %3847 = vmatprep.subr.mxu0 0.0
        %3848 = vmatpush1.msra.mxu0 0.0
        %3849 = vmatprep.subr.mxu0 0.0
        %3850 = vmatpush1.msra.mxu0 0.0
        %3851 = vmatprep.subr.mxu0 0.0
        %3852 = vmatpush1.msra.mxu0 0.0
        %3853 = vmatprep.subr.mxu0 0.0
        %3854 = vmatpush1.msra.mxu0 0.0
        %3855 = vmatprep.subr.mxu0 0.0
        %3856 = vmatpush1.msra.mxu0 0.0
        %3857 = vmatprep.subr.mxu0 0.0
        %3858 = vmatpush1.msra.mxu0 0.0
        %3859 = vmatprep.subr.mxu0 0.0
        %3860 = vmatpush1.msra.mxu0 0.0
        %3861 = vmatprep.subr.mxu0 0.0
        %3862 = vmatpush1.msra.mxu0 0.0
        %3863 = vmatprep.subr.mxu0 0.0
        %3864 = vmatpush1.msra.mxu0 0.0
        %3865 = vmatprep.subr.mxu0 0.0
        %3866 = vmatpush1.msra.mxu0 0.0
        %3867 = vmatprep.subr.mxu0 0.0
        %3868 = vmatpush1.msra.mxu0 0.0
        %3869 = vmatprep.subr.mxu0 0.0
        %3870 = vmatpush1.msra.mxu0 0.0
        %3871 = vmatprep.subr.mxu0 0.0
        %3872 = vmatpush1.msra.mxu0 0.0
        %3873 = vmatprep.subr.mxu0 0.0
        %3874 = vmatpush1.msra.mxu0 0.0
        %3875 = vmatprep.subr.mxu0 0.0
        %3876 = vmatpush1.msra.mxu0 0.0
        %3877 = vmatprep.subr.mxu0 0.0
        %3878 = vmatpush1.msra.mxu0 0.0
        %3879 = vmatprep.subr.mxu0 0.0
        %3880 = vmatpush1.msra.mxu0 0.0
        %3881 = vmatprep.subr.mxu0 0.0
        %3882 = vmatpush1.msra.mxu0 0.0
        %3883 = vmatprep.subr.mxu0 0.0
        %3884 = vmatpush1.msra.mxu0 0.0
        %3885 = vmatprep.subr.mxu0 0.0
        %3886 = vmatpush1.msra.mxu0 0.0
        %3887 = vmatprep.subr.mxu0 0.0
        %3888 = vmatpush1.msra.mxu0 0.0
        %3889 = vmatprep.subr.mxu0 0.0
        %3890 = vmatpush1.msra.mxu0 0.0
        %3891 = vmatprep.subr.mxu0 0.0
        %3892 = vmatpush1.msra.mxu0 0.0
        %3893 = vmatprep.subr.mxu0 0.0
        %3894 = vmatpush1.msra.mxu0 0.0
        %3895 = vmatprep.subr.mxu0 0.0
        %3896 = vmatpush1.msra.mxu0 0.0
        %3897 = vmatprep.subr.mxu0 0.0
        %3898 = vmatpush1.msra.mxu0 0.0
        %3899 = vmatprep.subr.mxu0 0.0
        %3900 = vmatpush1.msra.mxu0 0.0
        %3901 = vmatprep.subr.mxu0 0.0
        %3902 = vmatpush1.msra.mxu0 0.0
        %3903 = vmatprep.mubr.f32.mxu0 0.0
        %3904 = vmatmul.mubr.f32.gmra.mrb[0].mxu0 %v892
        %v3905 = vpop.f32.mrb[0].mxu0
        %v3906 = vadd.f32 0.0, %v3905
        %v3907 = vpop.f32.mrb[0].mxu0
        %3908 = vmatprep.mubr.f32.mxu0 0.0
        %3909 = vmatmul.mubr.f32.gmra.mrb[0].mxu0 %v895
        %v3910 = vpop.f32.mrb[0].mxu0
        %v3911 = vadd.f32 0.0, %v3910
        %v3912 = vpop.f32.mrb[0].mxu0
        %3913 = vdwg.mxu0
        %3914 = vmatprep.subr.mxu0 0.0
        %3915 = vmatpush1.msra.mxu0 %v3460
        %3916 = vmatprep.subr.mxu0 0.0
        %3917 = vmatpush1.msra.mxu0 %v3461
        %3918 = vmatprep.subr.mxu0 0.0
        %3919 = vmatpush1.msra.mxu0 0.0
        %3920 = vmatprep.subr.mxu0 0.0
        %3921 = vmatpush1.msra.mxu0 0.0
        %3922 = vmatprep.subr.mxu0 0.0
        %3923 = vmatpush1.msra.mxu0 0.0
        %3924 = vmatprep.subr.mxu0 0.0
        %3925 = vmatpush1.msra.mxu0 0.0
        %3926 = vmatprep.subr.mxu0 0.0
        %3927 = vmatpush1.msra.mxu0 0.0
        %3928 = vmatprep.subr.mxu0 0.0
        %3929 = vmatpush1.msra.mxu0 0.0
        %3930 = vmatprep.subr.mxu0 0.0
        %3931 = vmatpush1.msra.mxu0 0.0
        %3932 = vmatprep.subr.mxu0 0.0
        %3933 = vmatpush1.msra.mxu0 0.0
        %3934 = vmatprep.subr.mxu0 0.0
        %3935 = vmatpush1.msra.mxu0 0.0
        %3936 = vmatprep.subr.mxu0 0.0
        %3937 = vmatpush1.msra.mxu0 0.0
        %3938 = vmatprep.subr.mxu0 0.0
        %3939 = vmatpush1.msra.mxu0 0.0
        %3940 = vmatprep.subr.mxu0 0.0
        %3941 = vmatpush1.msra.mxu0 0.0
        %3942 = vmatprep.subr.mxu0 0.0
        %3943 = vmatpush1.msra.mxu0 0.0
        %3944 = vmatprep.subr.mxu0 0.0
        %3945 = vmatpush1.msra.mxu0 0.0
        %3946 = vmatprep.subr.mxu0 0.0
        %3947 = vmatpush1.msra.mxu0 0.0
        %3948 = vmatprep.subr.mxu0 0.0
        %3949 = vmatpush1.msra.mxu0 0.0
        %3950 = vmatprep.subr.mxu0 0.0
        %3951 = vmatpush1.msra.mxu0 0.0
        %3952 = vmatprep.subr.mxu0 0.0
        %3953 = vmatpush1.msra.mxu0 0.0
        %3954 = vmatprep.subr.mxu0 0.0
        %3955 = vmatpush1.msra.mxu0 0.0
        %3956 = vmatprep.subr.mxu0 0.0
        %3957 = vmatpush1.msra.mxu0 0.0
        %3958 = vmatprep.subr.mxu0 0.0
        %3959 = vmatpush1.msra.mxu0 0.0
        %3960 = vmatprep.subr.mxu0 0.0
        %3961 = vmatpush1.msra.mxu0 0.0
        %3962 = vmatprep.subr.mxu0 0.0
        %3963 = vmatpush1.msra.mxu0 0.0
        %3964 = vmatprep.subr.mxu0 0.0
        %3965 = vmatpush1.msra.mxu0 0.0
        %3966 = vmatprep.subr.mxu0 0.0
        %3967 = vmatpush1.msra.mxu0 0.0
        %3968 = vmatprep.subr.mxu0 0.0
        %3969 = vmatpush1.msra.mxu0 0.0
        %3970 = vmatprep.subr.mxu0 0.0
        %3971 = vmatpush1.msra.mxu0 0.0
        %3972 = vmatprep.subr.mxu0 0.0
        %3973 = vmatpush1.msra.mxu0 0.0
        %3974 = vmatprep.subr.mxu0 0.0
        %3975 = vmatpush1.msra.mxu0 0.0
        %3976 = vmatprep.subr.mxu0 0.0
        %3977 = vmatpush1.msra.mxu0 0.0
        %3978 = vmatprep.mubr.f32.mxu0 0.0
        %3979 = vmatmul.mubr.f32.gmra.mrb[0].mxu0 %v973
        %v3980 = vpop.f32.mrb[0].mxu0
        %v3981 = vadd.f32 0.0, %v3980
        %v3982 = vpop.f32.mrb[0].mxu0
        %3983 = vmatprep.mubr.f32.mxu0 0.0
        %3984 = vmatmul.mubr.f32.gmra.mrb[0].mxu0 %v976
        %v3985 = vpop.f32.mrb[0].mxu0
        %v3986 = vadd.f32 0.0, %v3985
        %v3987 = vpop.f32.mrb[0].mxu0
        %3988 = vdwg.mxu0
        %3989 = vmatprep.subr.mxu0 0.0
        %3990 = vmatpush1.msra.mxu0 %v3462
        %3991 = vmatprep.subr.mxu0 0.0
        %3992 = vmatpush1.msra.mxu0 %v3463
        %3993 = vmatprep.subr.mxu0 0.0
        %3994 = vmatpush1.msra.mxu0 0.0
        %3995 = vmatprep.subr.mxu0 0.0
        %3996 = vmatpush1.msra.mxu0 0.0
        %3997 = vmatprep.subr.mxu0 0.0
        %3998 = vmatpush1.msra.mxu0 0.0
        %3999 = vmatprep.subr.mxu0 0.0
        %4000 = vmatpush1.msra.mxu0 0.0
        %4001 = vmatprep.subr.mxu0 0.0
        %4002 = vmatpush1.msra.mxu0 0.0
        %4003 = vmatprep.subr.mxu0 0.0
        %4004 = vmatpush1.msra.mxu0 0.0
        %4005 = vmatprep.subr.mxu0 0.0
        %4006 = vmatpush1.msra.mxu0 0.0
        %4007 = vmatprep.subr.mxu0 0.0
        %4008 = vmatpush1.msra.mxu0 0.0
        %4009 = vmatprep.subr.mxu0 0.0
        %4010 = vmatpush1.msra.mxu0 0.0
        %4011 = vmatprep.subr.mxu0 0.0
        %4012 = vmatpush1.msra.mxu0 0.0
        %4013 = vmatprep.subr.mxu0 0.0
        %4014 = vmatpush1.msra.mxu0 0.0
        %4015 = vmatprep.subr.mxu0 0.0
        %4016 = vmatpush1.msra.mxu0 0.0
        %4017 = vmatprep.subr.mxu0 0.0
        %4018 = vmatpush1.msra.mxu0 0.0
        %4019 = vmatprep.subr.mxu0 0.0
        %4020 = vmatpush1.msra.mxu0 0.0
        %4021 = vmatprep.subr.mxu0 0.0
        %4022 = vmatpush1.msra.mxu0 0.0
        %4023 = vmatprep.subr.mxu0 0.0
        %4024 = vmatpush1.msra.mxu0 0.0
        %4025 = vmatprep.subr.mxu0 0.0
        %4026 = vmatpush1.msra.mxu0 0.0
        %4027 = vmatprep.subr.mxu0 0.0
        %4028 = vmatpush1.msra.mxu0 0.0
        %4029 = vmatprep.subr.mxu0 0.0
        %4030 = vmatpush1.msra.mxu0 0.0
        %4031 = vmatprep.subr.mxu0 0.0
        %4032 = vmatpush1.msra.mxu0 0.0
        %4033 = vmatprep.subr.mxu0 0.0
        %4034 = vmatpush1.msra.mxu0 0.0
        %4035 = vmatprep.subr.mxu0 0.0
        %4036 = vmatpush1.msra.mxu0 0.0
        %4037 = vmatprep.subr.mxu0 0.0
        %4038 = vmatpush1.msra.mxu0 0.0
        %4039 = vmatprep.subr.mxu0 0.0
        %4040 = vmatpush1.msra.mxu0 0.0
        %4041 = vmatprep.subr.mxu0 0.0
        %4042 = vmatpush1.msra.mxu0 0.0
        %4043 = vmatprep.subr.mxu0 0.0
        %4044 = vmatpush1.msra.mxu0 0.0
        %4045 = vmatprep.subr.mxu0 0.0
        %4046 = vmatpush1.msra.mxu0 0.0
        %4047 = vmatprep.subr.mxu0 0.0
        %4048 = vmatpush1.msra.mxu0 0.0
        %4049 = vmatprep.subr.mxu0 0.0
        %4050 = vmatpush1.msra.mxu0 0.0
        %4051 = vmatprep.subr.mxu0 0.0
        %4052 = vmatpush1.msra.mxu0 0.0
        %4053 = vmatprep.mubr.f32.mxu0 0.0
        %4054 = vmatmul.mubr.f32.gmra.mrb[0].mxu0 %v1054
        %v4055 = vpop.f32.mrb[0].mxu0
        %v4056 = vadd.f32 0.0, %v4055
        %v4057 = vpop.f32.mrb[0].mxu0
        %4058 = vmatprep.mubr.f32.mxu0 0.0
        %4059 = vmatmul.mubr.f32.gmra.mrb[0].mxu0 %v1057
        %v4060 = vpop.f32.mrb[0].mxu0
        %v4061 = vadd.f32 0.0, %v4060
        %v4062 = vpop.f32.mrb[0].mxu0
        %4063 = vdwg.mxu0
        %v4064 = vpack.c.bf16 %v3449, %v3448
        %v4065 = vpack.c.bf16 %v3451, %v3450
        %v4066 = vpack.c.bf16 %v3453, %v3452
        %v4067 = vpack.c.bf16 %v3455, %v3454
        %v4068 = vpack.c.bf16 %v3457, %v3456
        %v4069 = vpack.c.bf16 %v3459, %v3458
        %v4070 = vpack.c.bf16 %v3461, %v3460
        %v4071 = vpack.c.bf16 %v3463, %v3462
        %v4072 = vpack.c.bf16 %v3536, %v3531
        %v4073 = vpack.c.bf16 %v3611, %v3606
        %v4074 = vpack.c.bf16 %v3686, %v3681
        %v4075 = vpack.c.bf16 %v3761, %v3756
        %v4076 = vpack.c.bf16 %v3836, %v3831
        %v4077 = vpack.c.bf16 %v3911, %v3906
        %v4078 = vpack.c.bf16 %v3986, %v3981
        %v4079 = vpack.c.bf16 %v4061, %v4056
        %s4080 = scalar_lea.vmem [#allocation6], 128
        %v4081 = vld [vmem:[%s4080] sm:$0xf]
        %v4082 = vld [vmem:[%s4080 + $0x4] sm:$0xf]
        %v4083 = vld [vmem:[%s4080 + $0x8] sm:$0xf]
        %v4084 = vld [vmem:[%s4080 + $0xc] sm:$0xf]
        %v4085 = vld [vmem:[%s4080 + $0x10] sm:$0xf]
        %v4086 = vld [vmem:[%s4080 + $0x14] sm:$0xf]
        %v4087 = vld [vmem:[%s4080 + $0x18] sm:$0xf]
        %v4088 = vld [vmem:[%s4080 + $0x1c] sm:$0xf]
        %v4089 = vld [vmem:[%s4080 + $0x20] sm:$0xf]
        %v4090 = vld [vmem:[%s4080 + $0x24] sm:$0xf]
        %v4091 = vld [vmem:[%s4080 + $0x28] sm:$0xf]
        %v4092 = vld [vmem:[%s4080 + $0x2c] sm:$0xf]
        %v4093 = vld [vmem:[%s4080 + $0x30] sm:$0xf]
        %v4094 = vld [vmem:[%s4080 + $0x34] sm:$0xf]
        %v4095 = vld [vmem:[%s4080 + $0x38] sm:$0xf]
        %v4096 = vld [vmem:[%s4080 + $0x3c] sm:$0xf]
        %v4113 = vunpack.c.l.b16 %v4081
        %v4114 = vunpack.c.l.b16 %v4082
        %v4115 = vunpack.c.l.b16 %v4083
        %v4116 = vunpack.c.l.b16 %v4084
        %v4117 = vunpack.c.l.b16 %v4085
        %v4118 = vunpack.c.l.b16 %v4086
        %v4119 = vunpack.c.l.b16 %v4087
        %v4120 = vunpack.c.l.b16 %v4088
        %v4121 = vunpack.c.l.b16 %v4089
        %v4122 = vunpack.c.l.b16 %v4090
        %v4123 = vunpack.c.l.b16 %v4091
        %v4124 = vunpack.c.l.b16 %v4092
        %v4125 = vunpack.c.l.b16 %v4093
        %v4126 = vunpack.c.l.b16 %v4094
        %v4127 = vunpack.c.l.b16 %v4095
        %v4128 = vunpack.c.l.b16 %v4096
        %v4129 = vpack.c.b16 %v4114, %v4113
        %v4130 = vpack.c.b16 %v4116, %v4115
        %v4131 = vpack.c.b16 %v4118, %v4117
        %v4132 = vpack.c.b16 %v4120, %v4119
        %v4133 = vpack.c.b16 %v4122, %v4121
        %v4134 = vpack.c.b16 %v4124, %v4123
        %v4135 = vpack.c.b16 %v4126, %v4125
        %v4136 = vpack.c.b16 %v4128, %v4127
        %4145 = vmatprep.subr.bf16.mxu0 0
        %4146 = vmatpush1.bf16.msra.mxu0 %v4129
        %4147 = vmatprep.subr.bf16.mxu0 0
        %4148 = vmatpush1.bf16.msra.mxu0 %v4130
        %4149 = vmatprep.subr.bf16.mxu0 0
        %4150 = vmatpush1.bf16.msra.mxu0 %v4131
        %4151 = vmatprep.subr.bf16.mxu0 0
        %4152 = vmatpush1.bf16.msra.mxu0 %v4132
        %4153 = vmatprep.subr.bf16.mxu0 0
        %4154 = vmatpush1.bf16.msra.mxu0 %v4133
        %4155 = vmatprep.subr.bf16.mxu0 0
        %4156 = vmatpush1.bf16.msra.mxu0 %v4134
        %4157 = vmatprep.subr.bf16.mxu0 0
        %4158 = vmatpush1.bf16.msra.mxu0 %v4135
        %4159 = vmatprep.subr.bf16.mxu0 0
        %4160 = vmatpush1.bf16.msra.mxu0 %v4136
        %4161 = vmatprep.subr.bf16.mxu0 0
        %4162 = vmatpush1.bf16.msra.mxu0 0
        %4163 = vmatprep.subr.bf16.mxu0 0
        %4164 = vmatpush1.bf16.msra.mxu0 0
        %4165 = vmatprep.subr.bf16.mxu0 0
        %4166 = vmatpush1.bf16.msra.mxu0 0
        %4167 = vmatprep.subr.bf16.mxu0 0
        %4168 = vmatpush1.bf16.msra.mxu0 0
        %4169 = vmatprep.subr.bf16.mxu0 0
        %4170 = vmatpush1.bf16.msra.mxu0 0
        %4171 = vmatprep.subr.bf16.mxu0 0
        %4172 = vmatpush1.bf16.msra.mxu0 0
        %4173 = vmatprep.subr.bf16.mxu0 0
        %4174 = vmatpush1.bf16.msra.mxu0 0
        %4175 = vmatprep.subr.bf16.mxu0 0
        %4176 = vmatpush1.bf16.msra.mxu0 0
        %4177 = vmatprep.mubr.bf16.mxu0 0
        %4178 = vmatmul.mubr.bf16.gmra.mrb[0].mxu0 %v4072
        %v4179 = vpop.f32.mrb[0].mxu0
        %v4180 = vadd.f32 %v1170, %v4179
        %v4181 = vpop.f32.mrb[0].mxu0
        %v4182 = vpop.f32.mrb[0].mxu0
        %v4183 = vadd.f32 %v1170, %v4182
        %v4184 = vpop.f32.mrb[0].mxu0
        %4185 = vmatprep.mubr.bf16.mxu0 0
        %4186 = vmatmul.mubr.bf16.gmra.mrb[0].mxu0 %v4073
        %v4187 = vpop.f32.mrb[0].mxu0
        %v4188 = vadd.f32 %v1170, %v4187
        %v4189 = vpop.f32.mrb[0].mxu0
        %v4190 = vpop.f32.mrb[0].mxu0
        %v4191 = vadd.f32 %v1170, %v4190
        %v4192 = vpop.f32.mrb[0].mxu0
        %4193 = vmatprep.mubr.bf16.mxu0 0
        %4194 = vmatmul.mubr.bf16.gmra.mrb[0].mxu0 %v4074
        %v4195 = vpop.f32.mrb[0].mxu0
        %v4196 = vadd.f32 %v1170, %v4195
        %v4197 = vpop.f32.mrb[0].mxu0
        %v4198 = vpop.f32.mrb[0].mxu0
        %v4199 = vadd.f32 %v1170, %v4198
        %v4200 = vpop.f32.mrb[0].mxu0
        %4201 = vmatprep.mubr.bf16.mxu0 0
        %4202 = vmatmul.mubr.bf16.gmra.mrb[0].mxu0 %v4075
        %v4203 = vpop.f32.mrb[0].mxu0
        %v4204 = vadd.f32 %v1170, %v4203
        %v4205 = vpop.f32.mrb[0].mxu0
        %v4206 = vpop.f32.mrb[0].mxu0
        %v4207 = vadd.f32 %v1170, %v4206
        %v4208 = vpop.f32.mrb[0].mxu0
        %4209 = vmatprep.mubr.bf16.mxu0 0
        %4210 = vmatmul.mubr.bf16.gmra.mrb[0].mxu0 %v4076
        %v4211 = vpop.f32.mrb[0].mxu0
        %v4212 = vadd.f32 %v1170, %v4211
        %v4213 = vpop.f32.mrb[0].mxu0
        %v4214 = vpop.f32.mrb[0].mxu0
        %v4215 = vadd.f32 %v1170, %v4214
        %v4216 = vpop.f32.mrb[0].mxu0
        %4217 = vmatprep.mubr.bf16.mxu0 0
        %4218 = vmatmul.mubr.bf16.gmra.mrb[0].mxu0 %v4077
        %v4219 = vpop.f32.mrb[0].mxu0
        %v4220 = vadd.f32 %v1170, %v4219
        %v4221 = vpop.f32.mrb[0].mxu0
        %v4222 = vpop.f32.mrb[0].mxu0
        %v4223 = vadd.f32 %v1170, %v4222
        %v4224 = vpop.f32.mrb[0].mxu0
        %4225 = vmatprep.mubr.bf16.mxu0 0
        %4226 = vmatmul.mubr.bf16.gmra.mrb[0].mxu0 %v4078
        %v4227 = vpop.f32.mrb[0].mxu0
        %v4228 = vadd.f32 %v1170, %v4227
        %v4229 = vpop.f32.mrb[0].mxu0
        %v4230 = vpop.f32.mrb[0].mxu0
        %v4231 = vadd.f32 %v1170, %v4230
        %v4232 = vpop.f32.mrb[0].mxu0
        %4233 = vmatprep.mubr.bf16.mxu0 0
        %4234 = vmatmul.mubr.bf16.gmra.mrb[0].mxu0 %v4079
        %v4235 = vpop.f32.mrb[0].mxu0
        %v4236 = vadd.f32 %v1170, %v4235
        %v4237 = vpop.f32.mrb[0].mxu0
        %v4238 = vpop.f32.mrb[0].mxu0
        %v4239 = vadd.f32 %v1170, %v4238
        %v4240 = vpop.f32.mrb[0].mxu0
        %4241 = vdwg.mxu0
        %4242 = vmatprep.subr.bf16.mxu0 0
        %4243 = vmatpush1.bf16.msra.mxu0 %v1355
        %4244 = vmatprep.subr.bf16.mxu0 0
        %4245 = vmatpush1.bf16.msra.mxu0 %v1356
        %4246 = vmatprep.subr.bf16.mxu0 0
        %4247 = vmatpush1.bf16.msra.mxu0 %v1357
        %4248 = vmatprep.subr.bf16.mxu0 0
        %4249 = vmatpush1.bf16.msra.mxu0 %v1358
        %4250 = vmatprep.subr.bf16.mxu0 0
        %4251 = vmatpush1.bf16.msra.mxu0 %v1359
        %4252 = vmatprep.subr.bf16.mxu0 0
        %4253 = vmatpush1.bf16.msra.mxu0 %v1360
        %4254 = vmatprep.subr.bf16.mxu0 0
        %4255 = vmatpush1.bf16.msra.mxu0 %v1361
        %4256 = vmatprep.subr.bf16.mxu0 0
        %4257 = vmatpush1.bf16.msra.mxu0 %v1362
        %4258 = vmatprep.subr.bf16.mxu0 0
        %4259 = vmatpush1.bf16.msra.mxu0 0
        %4260 = vmatprep.subr.bf16.mxu0 0
        %4261 = vmatpush1.bf16.msra.mxu0 0
        %4262 = vmatprep.subr.bf16.mxu0 0
        %4263 = vmatpush1.bf16.msra.mxu0 0
        %4264 = vmatprep.subr.bf16.mxu0 0
        %4265 = vmatpush1.bf16.msra.mxu0 0
        %4266 = vmatprep.subr.bf16.mxu0 0
        %4267 = vmatpush1.bf16.msra.mxu0 0
        %4268 = vmatprep.subr.bf16.mxu0 0
        %4269 = vmatpush1.bf16.msra.mxu0 0
        %4270 = vmatprep.subr.bf16.mxu0 0
        %4271 = vmatpush1.bf16.msra.mxu0 0
        %4272 = vmatprep.subr.bf16.mxu0 0
        %4273 = vmatpush1.bf16.msra.mxu0 0
        %4274 = vmatprep.mubr.bf16.mxu0 0
        %4275 = vmatmul.mubr.bf16.gmra.mrb[0].mxu0 %v4064
        %v4276 = vpop.f32.mrb[0].mxu0
        %v4277 = vadd.f32 %v1321, %v4276
        %v4278 = vpop.f32.mrb[0].mxu0
        %v4279 = vpop.f32.mrb[0].mxu0
        %v4280 = vadd.f32 %v1321, %v4279
        %v4281 = vpop.f32.mrb[0].mxu0
        %4282 = vmatprep.mubr.bf16.mxu0 0
        %4283 = vmatmul.mubr.bf16.gmra.mrb[0].mxu0 %v4065
        %v4284 = vpop.f32.mrb[0].mxu0
        %v4285 = vadd.f32 %v1321, %v4284
        %v4286 = vpop.f32.mrb[0].mxu0
        %v4287 = vpop.f32.mrb[0].mxu0
        %v4288 = vadd.f32 %v1321, %v4287
        %v4289 = vpop.f32.mrb[0].mxu0
        %4290 = vmatprep.mubr.bf16.mxu0 0
        %4291 = vmatmul.mubr.bf16.gmra.mrb[0].mxu0 %v4066
        %v4292 = vpop.f32.mrb[0].mxu0
        %v4293 = vadd.f32 %v1321, %v4292
        %v4294 = vpop.f32.mrb[0].mxu0
        %v4295 = vpop.f32.mrb[0].mxu0
        %v4296 = vadd.f32 %v1321, %v4295
        %v4297 = vpop.f32.mrb[0].mxu0
        %4298 = vmatprep.mubr.bf16.mxu0 0
        %4299 = vmatmul.mubr.bf16.gmra.mrb[0].mxu0 %v4067
        %v4300 = vpop.f32.mrb[0].mxu0
        %v4301 = vadd.f32 %v1321, %v4300
        %v4302 = vpop.f32.mrb[0].mxu0
        %v4303 = vpop.f32.mrb[0].mxu0
        %v4304 = vadd.f32 %v1321, %v4303
        %v4305 = vpop.f32.mrb[0].mxu0
        %4306 = vmatprep.mubr.bf16.mxu0 0
        %4307 = vmatmul.mubr.bf16.gmra.mrb[0].mxu0 %v4068
        %v4308 = vpop.f32.mrb[0].mxu0
        %v4309 = vadd.f32 %v1321, %v4308
        %v4310 = vpop.f32.mrb[0].mxu0
        %v4311 = vpop.f32.mrb[0].mxu0
        %v4312 = vadd.f32 %v1321, %v4311
        %v4313 = vpop.f32.mrb[0].mxu0
        %4314 = vmatprep.mubr.bf16.mxu0 0
        %4315 = vmatmul.mubr.bf16.gmra.mrb[0].mxu0 %v4069
        %v4316 = vpop.f32.mrb[0].mxu0
        %v4317 = vadd.f32 %v1321, %v4316
        %v4318 = vpop.f32.mrb[0].mxu0
        %v4319 = vpop.f32.mrb[0].mxu0
        %v4320 = vadd.f32 %v1321, %v4319
        %v4321 = vpop.f32.mrb[0].mxu0
        %4322 = vmatprep.mubr.bf16.mxu0 0
        %4323 = vmatmul.mubr.bf16.gmra.mrb[0].mxu0 %v4070
        %v4324 = vpop.f32.mrb[0].mxu0
        %v4325 = vadd.f32 %v1321, %v4324
        %v4326 = vpop.f32.mrb[0].mxu0
        %v4327 = vpop.f32.mrb[0].mxu0
        %v4328 = vadd.f32 %v1321, %v4327
        %v4329 = vpop.f32.mrb[0].mxu0
        %4330 = vmatprep.mubr.bf16.mxu0 0
        %4331 = vmatmul.mubr.bf16.gmra.mrb[0].mxu0 %v4071
        %v4332 = vpop.f32.mrb[0].mxu0
        %v4333 = vadd.f32 %v1321, %v4332
        %v4334 = vpop.f32.mrb[0].mxu0
        %v4335 = vpop.f32.mrb[0].mxu0
        %v4336 = vadd.f32 %v1321, %v4335
        %v4337 = vpop.f32.mrb[0].mxu0
        %4338 = vdwg.mxu0
        %v4339 = vadd.f32 %v4180, %v4277
        %v4340 = vadd.f32 %v4183, %v4280
        %v4341 = vadd.f32 %v4188, %v4285
        %v4342 = vadd.f32 %v4191, %v4288
        %v4343 = vadd.f32 %v4196, %v4293
        %v4344 = vadd.f32 %v4199, %v4296
        %v4345 = vadd.f32 %v4204, %v4301
        %v4346 = vadd.f32 %v4207, %v4304
        %v4347 = vadd.f32 %v4212, %v4309
        %v4348 = vadd.f32 %v4215, %v4312
        %v4349 = vadd.f32 %v4220, %v4317
        %v4350 = vadd.f32 %v4223, %v4320
        %v4351 = vadd.f32 %v4228, %v4325
        %v4352 = vadd.f32 %v4231, %v4328
        %v4353 = vadd.f32 %v4236, %v4333
        %v4354 = vadd.f32 %v4239, %v4336
        %v4355 = vxor.u32 %v4339, 2147483648
        %v4356 = vxor.u32 %v4340, 2147483648
        %v4357 = vxor.u32 %v4341, 2147483648
        %v4358 = vxor.u32 %v4342, 2147483648
        %v4359 = vxor.u32 %v4343, 2147483648
        %v4360 = vxor.u32 %v4344, 2147483648
        %v4361 = vxor.u32 %v4345, 2147483648
        %v4362 = vxor.u32 %v4346, 2147483648
        %v4363 = vxor.u32 %v4347, 2147483648
        %v4364 = vxor.u32 %v4348, 2147483648
        %v4365 = vxor.u32 %v4349, 2147483648
        %v4366 = vxor.u32 %v4350, 2147483648
        %v4367 = vxor.u32 %v4351, 2147483648
        %v4368 = vxor.u32 %v4352, 2147483648
        %v4369 = vxor.u32 %v4353, 2147483648
        %v4370 = vxor.u32 %v4354, 2147483648
        %v4371 = vmul.f32 %v4355, 1.442695
        %v4372 = vpow.pop %v4371
        %v4373 = vmul.f32 %v4356, 1.442695
        %v4374 = vpow.pop %v4373
        %v4375 = vmul.f32 %v4357, 1.442695
        %v4376 = vpow.pop %v4375
        %v4377 = vmul.f32 %v4358, 1.442695
        %v4378 = vpow.pop %v4377
        %v4379 = vmul.f32 %v4359, 1.442695
        %v4380 = vpow.pop %v4379
        %v4381 = vmul.f32 %v4360, 1.442695
        %v4382 = vpow.pop %v4381
        %v4383 = vmul.f32 %v4361, 1.442695
        %v4384 = vpow.pop %v4383
        %v4385 = vmul.f32 %v4362, 1.442695
        %v4386 = vpow.pop %v4385
        %v4387 = vmul.f32 %v4363, 1.442695
        %v4388 = vpow.pop %v4387
        %v4389 = vmul.f32 %v4364, 1.442695
        %v4390 = vpow.pop %v4389
        %v4391 = vmul.f32 %v4365, 1.442695
        %v4392 = vpow.pop %v4391
        %v4393 = vmul.f32 %v4366, 1.442695
        %v4394 = vpow.pop %v4393
        %v4395 = vmul.f32 %v4367, 1.442695
        %v4396 = vpow.pop %v4395
        %v4397 = vmul.f32 %v4368, 1.442695
        %v4398 = vpow.pop %v4397
        %v4399 = vmul.f32 %v4369, 1.442695
        %v4400 = vpow.pop %v4399
        %v4401 = vmul.f32 %v4370, 1.442695
        %v4402 = vpow.pop %v4401
        %v4403 = vadd.f32 %v4372, 1.0
        %v4404 = vadd.f32 %v4374, 1.0
        %v4405 = vadd.f32 %v4376, 1.0
        %v4406 = vadd.f32 %v4378, 1.0
        %v4407 = vadd.f32 %v4380, 1.0
        %v4408 = vadd.f32 %v4382, 1.0
        %v4409 = vadd.f32 %v4384, 1.0
        %v4410 = vadd.f32 %v4386, 1.0
        %v4411 = vadd.f32 %v4388, 1.0
        %v4412 = vadd.f32 %v4390, 1.0
        %v4413 = vadd.f32 %v4392, 1.0
        %v4414 = vadd.f32 %v4394, 1.0
        %v4415 = vadd.f32 %v4396, 1.0
        %v4416 = vadd.f32 %v4398, 1.0
        %v4417 = vadd.f32 %v4400, 1.0
        %v4418 = vadd.f32 %v4402, 1.0
        %v4419 = vrcp.pop %v4403
        %v4420 = vmul.f32 1.0, %v4419
        %v4421 = vrcp.pop %v4404
        %v4422 = vmul.f32 1.0, %v4421
        %v4423 = vrcp.pop %v4405
        %v4424 = vmul.f32 1.0, %v4423
        %v4425 = vrcp.pop %v4406
        %v4426 = vmul.f32 1.0, %v4425
        %v4427 = vrcp.pop %v4407
        %v4428 = vmul.f32 1.0, %v4427
        %v4429 = vrcp.pop %v4408
        %v4430 = vmul.f32 1.0, %v4429
        %v4431 = vrcp.pop %v4409
        %v4432 = vmul.f32 1.0, %v4431
        %v4433 = vrcp.pop %v4410
        %v4434 = vmul.f32 1.0, %v4433
        %v4435 = vrcp.pop %v4411
        %v4436 = vmul.f32 1.0, %v4435
        %v4437 = vrcp.pop %v4412
        %v4438 = vmul.f32 1.0, %v4437
        %v4439 = vrcp.pop %v4413
        %v4440 = vmul.f32 1.0, %v4439
        %v4441 = vrcp.pop %v4414
        %v4442 = vmul.f32 1.0, %v4441
        %v4443 = vrcp.pop %v4415
        %v4444 = vmul.f32 1.0, %v4443
        %v4445 = vrcp.pop %v4416
        %v4446 = vmul.f32 1.0, %v4445
        %v4447 = vrcp.pop %v4417
        %v4448 = vmul.f32 1.0, %v4447
        %v4449 = vrcp.pop %v4418
        %v4450 = vmul.f32 1.0, %v4449
        %4467 = vrot.lane.b32.xlu0 %v4277, 64
        %v4468 = vpop.permute.xlu0 %4467
        %4469 = vrot.lane.b32.xlu0 %v4280, 64
        %v4470 = vpop.permute.xlu0 %4469
        %4471 = vrot.lane.b32.xlu0 %v4285, 64
        %v4472 = vpop.permute.xlu0 %4471
        %4473 = vrot.lane.b32.xlu0 %v4288, 64
        %v4474 = vpop.permute.xlu0 %4473
        %4475 = vrot.lane.b32.xlu0 %v4293, 64
        %v4476 = vpop.permute.xlu0 %4475
        %4477 = vrot.lane.b32.xlu0 %v4296, 64
        %v4478 = vpop.permute.xlu0 %4477
        %4479 = vrot.lane.b32.xlu0 %v4301, 64
        %v4480 = vpop.permute.xlu0 %4479
        %4481 = vrot.lane.b32.xlu0 %v4304, 64
        %v4482 = vpop.permute.xlu0 %4481
        %4483 = vrot.lane.b32.xlu0 %v4309, 64
        %v4484 = vpop.permute.xlu0 %4483
        %4485 = vrot.lane.b32.xlu0 %v4312, 64
        %v4486 = vpop.permute.xlu0 %4485
        %4487 = vrot.lane.b32.xlu0 %v4317, 64
        %v4488 = vpop.permute.xlu0 %4487
        %4489 = vrot.lane.b32.xlu0 %v4320, 64
        %v4490 = vpop.permute.xlu0 %4489
        %4491 = vrot.lane.b32.xlu0 %v4325, 64
        %v4492 = vpop.permute.xlu0 %4491
        %4493 = vrot.lane.b32.xlu0 %v4328, 64
        %v4494 = vpop.permute.xlu0 %4493
        %4495 = vrot.lane.b32.xlu0 %v4333, 64
        %v4496 = vpop.permute.xlu0 %4495
        %4497 = vrot.lane.b32.xlu0 %v4336, 64
        %v4498 = vpop.permute.xlu0 %4497
        %v4515 = vmul.f32 %v4420, %v4468
        %v4516 = vmul.f32 %v4422, %v4470
        %v4517 = vmul.f32 %v4424, %v4472
        %v4518 = vmul.f32 %v4426, %v4474
        %v4519 = vmul.f32 %v4428, %v4476
        %v4520 = vmul.f32 %v4430, %v4478
        %v4521 = vmul.f32 %v4432, %v4480
        %v4522 = vmul.f32 %v4434, %v4482
        %v4523 = vmul.f32 %v4436, %v4484
        %v4524 = vmul.f32 %v4438, %v4486
        %v4525 = vmul.f32 %v4440, %v4488
        %v4526 = vmul.f32 %v4442, %v4490
        %v4527 = vmul.f32 %v4444, %v4492
        %v4528 = vmul.f32 %v4446, %v4494
        %v4529 = vmul.f32 %v4448, %v4496
        %v4530 = vmul.f32 %v4450, %v4498
        %4547 = vrot.lane.b32.xlu0 %v4515, 64
        %v4548 = vpop.permute.xlu0 %4547
        %4549 = vrot.lane.b32.xlu0 %v4516, 64
        %v4550 = vpop.permute.xlu0 %4549
        %4551 = vrot.lane.b32.xlu0 %v4517, 64
        %v4552 = vpop.permute.xlu0 %4551
        %4553 = vrot.lane.b32.xlu0 %v4518, 64
        %v4554 = vpop.permute.xlu0 %4553
        %4555 = vrot.lane.b32.xlu0 %v4519, 64
        %v4556 = vpop.permute.xlu0 %4555
        %4557 = vrot.lane.b32.xlu0 %v4520, 64
        %v4558 = vpop.permute.xlu0 %4557
        %4559 = vrot.lane.b32.xlu0 %v4521, 64
        %v4560 = vpop.permute.xlu0 %4559
        %4561 = vrot.lane.b32.xlu0 %v4522, 64
        %v4562 = vpop.permute.xlu0 %4561
        %4563 = vrot.lane.b32.xlu0 %v4523, 64
        %v4564 = vpop.permute.xlu0 %4563
        %4565 = vrot.lane.b32.xlu0 %v4524, 64
        %v4566 = vpop.permute.xlu0 %4565
        %4567 = vrot.lane.b32.xlu0 %v4525, 64
        %v4568 = vpop.permute.xlu0 %4567
        %4569 = vrot.lane.b32.xlu0 %v4526, 64
        %v4570 = vpop.permute.xlu0 %4569
        %4571 = vrot.lane.b32.xlu0 %v4527, 64
        %v4572 = vpop.permute.xlu0 %4571
        %4573 = vrot.lane.b32.xlu0 %v4528, 64
        %v4574 = vpop.permute.xlu0 %4573
        %4575 = vrot.lane.b32.xlu0 %v4529, 64
        %v4576 = vpop.permute.xlu0 %4575
        %4577 = vrot.lane.b32.xlu0 %v4530, 64
        %v4578 = vpop.permute.xlu0 %4577
        %v4595 = vadd.f32 %v4180, %v4548
        %v4596 = vadd.f32 %v4183, %v4550
        %v4597 = vadd.f32 %v4188, %v4552
        %v4598 = vadd.f32 %v4191, %v4554
        %v4599 = vadd.f32 %v4196, %v4556
        %v4600 = vadd.f32 %v4199, %v4558
        %v4601 = vadd.f32 %v4204, %v4560
        %v4602 = vadd.f32 %v4207, %v4562
        %v4603 = vadd.f32 %v4212, %v4564
        %v4604 = vadd.f32 %v4215, %v4566
        %v4605 = vadd.f32 %v4220, %v4568
        %v4606 = vadd.f32 %v4223, %v4570
        %v4607 = vadd.f32 %v4228, %v4572
        %v4608 = vadd.f32 %v4231, %v4574
        %v4609 = vadd.f32 %v4236, %v4576
        %v4610 = vadd.f32 %v4239, %v4578
        %v4611 = vtanh.pop %v4595
        %v4612 = vtanh.pop %v4596
        %v4613 = vtanh.pop %v4597
        %v4614 = vtanh.pop %v4598
        %v4615 = vtanh.pop %v4599
        %v4616 = vtanh.pop %v4600
        %v4617 = vtanh.pop %v4601
        %v4618 = vtanh.pop %v4602
        %v4619 = vtanh.pop %v4603
        %v4620 = vtanh.pop %v4604
        %v4621 = vtanh.pop %v4605
        %v4622 = vtanh.pop %v4606
        %v4623 = vtanh.pop %v4607
        %v4624 = vtanh.pop %v4608
        %v4625 = vtanh.pop %v4609
        %v4626 = vtanh.pop %v4610
        %v4627 = vsub.f32 1.0, %v4420
        %v4628 = vsub.f32 1.0, %v4422
        %v4629 = vsub.f32 1.0, %v4424
        %v4630 = vsub.f32 1.0, %v4426
        %v4631 = vsub.f32 1.0, %v4428
        %v4632 = vsub.f32 1.0, %v4430
        %v4633 = vsub.f32 1.0, %v4432
        %v4634 = vsub.f32 1.0, %v4434
        %v4635 = vsub.f32 1.0, %v4436
        %v4636 = vsub.f32 1.0, %v4438
        %v4637 = vsub.f32 1.0, %v4440
        %v4638 = vsub.f32 1.0, %v4442
        %v4639 = vsub.f32 1.0, %v4444
        %v4640 = vsub.f32 1.0, %v4446
        %v4641 = vsub.f32 1.0, %v4448
        %v4642 = vsub.f32 1.0, %v4450
        %4659 = vrot.lane.b32.xlu0 %v4611, 96
        %v4660 = vpop.permute.xlu0 %4659
        %4661 = vrot.lane.b32.xlu0 %v4612, 96
        %v4662 = vpop.permute.xlu0 %4661
        %4663 = vrot.lane.b32.xlu0 %v4613, 96
        %v4664 = vpop.permute.xlu0 %4663
        %4665 = vrot.lane.b32.xlu0 %v4614, 96
        %v4666 = vpop.permute.xlu0 %4665
        %4667 = vrot.lane.b32.xlu0 %v4615, 96
        %v4668 = vpop.permute.xlu0 %4667
        %4669 = vrot.lane.b32.xlu0 %v4616, 96
        %v4670 = vpop.permute.xlu0 %4669
        %4671 = vrot.lane.b32.xlu0 %v4617, 96
        %v4672 = vpop.permute.xlu0 %4671
        %4673 = vrot.lane.b32.xlu0 %v4618, 96
        %v4674 = vpop.permute.xlu0 %4673
        %4675 = vrot.lane.b32.xlu0 %v4619, 96
        %v4676 = vpop.permute.xlu0 %4675
        %4677 = vrot.lane.b32.xlu0 %v4620, 96
        %v4678 = vpop.permute.xlu0 %4677
        %4679 = vrot.lane.b32.xlu0 %v4621, 96
        %v4680 = vpop.permute.xlu0 %4679
        %4681 = vrot.lane.b32.xlu0 %v4622, 96
        %v4682 = vpop.permute.xlu0 %4681
        %4683 = vrot.lane.b32.xlu0 %v4623, 96
        %v4684 = vpop.permute.xlu0 %4683
        %4685 = vrot.lane.b32.xlu0 %v4624, 96
        %v4686 = vpop.permute.xlu0 %4685
        %4687 = vrot.lane.b32.xlu0 %v4625, 96
        %v4688 = vpop.permute.xlu0 %4687
        %4689 = vrot.lane.b32.xlu0 %v4626, 96
        %v4690 = vpop.permute.xlu0 %4689
        %v4707 = vmul.f32 %v4627, %v4660
        %v4708 = vmul.f32 %v4628, %v4662
        %v4709 = vmul.f32 %v4629, %v4664
        %v4710 = vmul.f32 %v4630, %v4666
        %v4711 = vmul.f32 %v4631, %v4668
        %v4712 = vmul.f32 %v4632, %v4670
        %v4713 = vmul.f32 %v4633, %v4672
        %v4714 = vmul.f32 %v4634, %v4674
        %v4715 = vmul.f32 %v4635, %v4676
        %v4716 = vmul.f32 %v4636, %v4678
        %v4717 = vmul.f32 %v4637, %v4680
        %v4718 = vmul.f32 %v4638, %v4682
        %v4719 = vmul.f32 %v4639, %v4684
        %v4720 = vmul.f32 %v4640, %v4686
        %v4721 = vmul.f32 %v4641, %v4688
        %v4722 = vmul.f32 %v4642, %v4690
        %4739 = vrot.lane.b32.xlu0 %v3448, 32
        %v4740 = vpop.permute.xlu0 %4739
        %4741 = vrot.lane.b32.xlu0 %v3449, 32
        %v4742 = vpop.permute.xlu0 %4741
        %4743 = vrot.lane.b32.xlu0 %v3450, 32
        %v4744 = vpop.permute.xlu0 %4743
        %4745 = vrot.lane.b32.xlu0 %v3451, 32
        %v4746 = vpop.permute.xlu0 %4745
        %4747 = vrot.lane.b32.xlu0 %v3452, 32
        %v4748 = vpop.permute.xlu0 %4747
        %4749 = vrot.lane.b32.xlu0 %v3453, 32
        %v4750 = vpop.permute.xlu0 %4749
        %4751 = vrot.lane.b32.xlu0 %v3454, 32
        %v4752 = vpop.permute.xlu0 %4751
        %4753 = vrot.lane.b32.xlu0 %v3455, 32
        %v4754 = vpop.permute.xlu0 %4753
        %4755 = vrot.lane.b32.xlu0 %v3456, 32
        %v4756 = vpop.permute.xlu0 %4755
        %4757 = vrot.lane.b32.xlu0 %v3457, 32
        %v4758 = vpop.permute.xlu0 %4757
        %4759 = vrot.lane.b32.xlu0 %v3458, 32
        %v4760 = vpop.permute.xlu0 %4759
        %4761 = vrot.lane.b32.xlu0 %v3459, 32
        %v4762 = vpop.permute.xlu0 %4761
        %4763 = vrot.lane.b32.xlu0 %v3460, 32
        %v4764 = vpop.permute.xlu0 %4763
        %4765 = vrot.lane.b32.xlu0 %v3461, 32
        %v4766 = vpop.permute.xlu0 %4765
        %4767 = vrot.lane.b32.xlu0 %v3462, 32
        %v4768 = vpop.permute.xlu0 %4767
        %4769 = vrot.lane.b32.xlu0 %v3463, 32
        %v4770 = vpop.permute.xlu0 %4769
        %v4787 = vmul.f32 %v4420, %v4740
        %v4788 = vmul.f32 %v4422, %v4742
        %v4789 = vmul.f32 %v4424, %v4744
        %v4790 = vmul.f32 %v4426, %v4746
        %v4791 = vmul.f32 %v4428, %v4748
        %v4792 = vmul.f32 %v4430, %v4750
        %v4793 = vmul.f32 %v4432, %v4752
        %v4794 = vmul.f32 %v4434, %v4754
        %v4795 = vmul.f32 %v4436, %v4756
        %v4796 = vmul.f32 %v4438, %v4758
        %v4797 = vmul.f32 %v4440, %v4760
        %v4798 = vmul.f32 %v4442, %v4762
        %v4799 = vmul.f32 %v4444, %v4764
        %v4800 = vmul.f32 %v4446, %v4766
        %v4801 = vmul.f32 %v4448, %v4768
        %v4802 = vmul.f32 %v4450, %v4770
        %v4803 = vadd.f32 %v4707, %v4787
        %v4804 = vadd.f32 %v4708, %v4788
        %v4805 = vadd.f32 %v4709, %v4789
        %v4806 = vadd.f32 %v4710, %v4790
        %v4807 = vadd.f32 %v4711, %v4791
        %v4808 = vadd.f32 %v4712, %v4792
        %v4809 = vadd.f32 %v4713, %v4793
        %v4810 = vadd.f32 %v4714, %v4794
        %v4811 = vadd.f32 %v4715, %v4795
        %v4812 = vadd.f32 %v4716, %v4796
        %v4813 = vadd.f32 %v4717, %v4797
        %v4814 = vadd.f32 %v4718, %v4798
        %v4815 = vadd.f32 %v4719, %v4799
        %v4816 = vadd.f32 %v4720, %v4800
        %v4817 = vadd.f32 %v4721, %v4801
        %v4818 = vadd.f32 %v4722, %v4802
        %4835 = vrot.lane.b32.xlu0 %v4803, 96
        %v4836 = vpop.permute.xlu0 %4835
        %4837 = vrot.lane.b32.xlu0 %v4804, 96
        %v4838 = vpop.permute.xlu0 %4837
        %4839 = vrot.lane.b32.xlu0 %v4805, 96
        %v4840 = vpop.permute.xlu0 %4839
        %4841 = vrot.lane.b32.xlu0 %v4806, 96
        %v4842 = vpop.permute.xlu0 %4841
        %4843 = vrot.lane.b32.xlu0 %v4807, 96
        %v4844 = vpop.permute.xlu0 %4843
        %4845 = vrot.lane.b32.xlu0 %v4808, 96
        %v4846 = vpop.permute.xlu0 %4845
        %4847 = vrot.lane.b32.xlu0 %v4809, 96
        %v4848 = vpop.permute.xlu0 %4847
        %4849 = vrot.lane.b32.xlu0 %v4810, 96
        %v4850 = vpop.permute.xlu0 %4849
        %4851 = vrot.lane.b32.xlu0 %v4811, 96
        %v4852 = vpop.permute.xlu0 %4851
        %4853 = vrot.lane.b32.xlu0 %v4812, 96
        %v4854 = vpop.permute.xlu0 %4853
        %4855 = vrot.lane.b32.xlu0 %v4813, 96
        %v4856 = vpop.permute.xlu0 %4855
        %4857 = vrot.lane.b32.xlu0 %v4814, 96
        %v4858 = vpop.permute.xlu0 %4857
        %4859 = vrot.lane.b32.xlu0 %v4815, 96
        %v4860 = vpop.permute.xlu0 %4859
        %4861 = vrot.lane.b32.xlu0 %v4816, 96
        %v4862 = vpop.permute.xlu0 %4861
        %4863 = vrot.lane.b32.xlu0 %v4817, 96
        %v4864 = vpop.permute.xlu0 %4863
        %4865 = vrot.lane.b32.xlu0 %v4818, 96
        %v4866 = vpop.permute.xlu0 %4865
        %v4883 = vsel %vm2012, %v4836, 0.0
        %v4884 = vsel %vm2012, %v4838, 0.0
        %v4885 = vsel %vm2012, %v4840, 0.0
        %v4886 = vsel %vm2012, %v4842, 0.0
        %v4887 = vsel %vm2012, %v4844, 0.0
        %v4888 = vsel %vm2012, %v4846, 0.0
        %v4889 = vsel %vm2012, %v4848, 0.0
        %v4890 = vsel %vm2012, %v4850, 0.0
        %v4891 = vsel %vm2012, %v4852, 0.0
        %v4892 = vsel %vm2012, %v4854, 0.0
        %v4893 = vsel %vm2012, %v4856, 0.0
        %v4894 = vsel %vm2012, %v4858, 0.0
        %v4895 = vsel %vm2012, %v4860, 0.0
        %v4896 = vsel %vm2012, %v4862, 0.0
        %v4897 = vsel %vm2012, %v4864, 0.0
        %v4898 = vsel %vm2012, %v4866, 0.0
        %4899 = vmatprep.subr.mxu0 0.0
        %4900 = vmatpush1.msra.mxu0 %v4883
        %4901 = vmatprep.subr.mxu0 0.0
        %4902 = vmatpush1.msra.mxu0 %v4884
        %4903 = vmatprep.subr.mxu0 0.0
        %4904 = vmatpush1.msra.mxu0 0.0
        %4905 = vmatprep.subr.mxu0 0.0
        %4906 = vmatpush1.msra.mxu0 0.0
        %4907 = vmatprep.subr.mxu0 0.0
        %4908 = vmatpush1.msra.mxu0 0.0
        %4909 = vmatprep.subr.mxu0 0.0
        %4910 = vmatpush1.msra.mxu0 0.0
        %4911 = vmatprep.subr.mxu0 0.0
        %4912 = vmatpush1.msra.mxu0 0.0
        %4913 = vmatprep.subr.mxu0 0.0
        %4914 = vmatpush1.msra.mxu0 0.0
        %4915 = vmatprep.subr.mxu0 0.0
        %4916 = vmatpush1.msra.mxu0 0.0
        %4917 = vmatprep.subr.mxu0 0.0
        %4918 = vmatpush1.msra.mxu0 0.0
        %4919 = vmatprep.subr.mxu0 0.0
        %4920 = vmatpush1.msra.mxu0 0.0
        %4921 = vmatprep.subr.mxu0 0.0
        %4922 = vmatpush1.msra.mxu0 0.0
        %4923 = vmatprep.subr.mxu0 0.0
        %4924 = vmatpush1.msra.mxu0 0.0
        %4925 = vmatprep.subr.mxu0 0.0
        %4926 = vmatpush1.msra.mxu0 0.0
        %4927 = vmatprep.subr.mxu0 0.0
        %4928 = vmatpush1.msra.mxu0 0.0
        %4929 = vmatprep.subr.mxu0 0.0
        %4930 = vmatpush1.msra.mxu0 0.0
        %4931 = vmatprep.subr.mxu0 0.0
        %4932 = vmatpush1.msra.mxu0 0.0
        %4933 = vmatprep.subr.mxu0 0.0
        %4934 = vmatpush1.msra.mxu0 0.0
        %4935 = vmatprep.subr.mxu0 0.0
        %4936 = vmatpush1.msra.mxu0 0.0
        %4937 = vmatprep.subr.mxu0 0.0
        %4938 = vmatpush1.msra.mxu0 0.0
        %4939 = vmatprep.subr.mxu0 0.0
        %4940 = vmatpush1.msra.mxu0 0.0
        %4941 = vmatprep.subr.mxu0 0.0
        %4942 = vmatpush1.msra.mxu0 0.0
        %4943 = vmatprep.subr.mxu0 0.0
        %4944 = vmatpush1.msra.mxu0 0.0
        %4945 = vmatprep.subr.mxu0 0.0
        %4946 = vmatpush1.msra.mxu0 0.0
        %4947 = vmatprep.subr.mxu0 0.0
        %4948 = vmatpush1.msra.mxu0 0.0
        %4949 = vmatprep.subr.mxu0 0.0
        %4950 = vmatpush1.msra.mxu0 0.0
        %4951 = vmatprep.subr.mxu0 0.0
        %4952 = vmatpush1.msra.mxu0 0.0
        %4953 = vmatprep.subr.mxu0 0.0
        %4954 = vmatpush1.msra.mxu0 0.0
        %4955 = vmatprep.subr.mxu0 0.0
        %4956 = vmatpush1.msra.mxu0 0.0
        %4957 = vmatprep.subr.mxu0 0.0
        %4958 = vmatpush1.msra.mxu0 0.0
        %4959 = vmatprep.subr.mxu0 0.0
        %4960 = vmatpush1.msra.mxu0 0.0
        %4961 = vmatprep.subr.mxu0 0.0
        %4962 = vmatpush1.msra.mxu0 0.0
        %4963 = vmatprep.mubr.f32.mxu0 0.0
        %4964 = vmatmul.mubr.f32.gmra.mrb[0].mxu0 %v487
        %v4965 = vpop.f32.mrb[0].mxu0
        %v4966 = vadd.f32 0.0, %v4965
        %v4967 = vpop.f32.mrb[0].mxu0
        %4968 = vmatprep.mubr.f32.mxu0 0.0
        %4969 = vmatmul.mubr.f32.gmra.mrb[0].mxu0 %v490
        %v4970 = vpop.f32.mrb[0].mxu0
        %v4971 = vadd.f32 0.0, %v4970
        %v4972 = vpop.f32.mrb[0].mxu0
        %4973 = vdwg.mxu0
        %4974 = vmatprep.subr.mxu0 0.0
        %4975 = vmatpush1.msra.mxu0 %v4885
        %4976 = vmatprep.subr.mxu0 0.0
        %4977 = vmatpush1.msra.mxu0 %v4886
        %4978 = vmatprep.subr.mxu0 0.0
        %4979 = vmatpush1.msra.mxu0 0.0
        %4980 = vmatprep.subr.mxu0 0.0
        %4981 = vmatpush1.msra.mxu0 0.0
        %4982 = vmatprep.subr.mxu0 0.0
        %4983 = vmatpush1.msra.mxu0 0.0
        %4984 = vmatprep.subr.mxu0 0.0
        %4985 = vmatpush1.msra.mxu0 0.0
        %4986 = vmatprep.subr.mxu0 0.0
        %4987 = vmatpush1.msra.mxu0 0.0
        %4988 = vmatprep.subr.mxu0 0.0
        %4989 = vmatpush1.msra.mxu0 0.0
        %4990 = vmatprep.subr.mxu0 0.0
        %4991 = vmatpush1.msra.mxu0 0.0
        %4992 = vmatprep.subr.mxu0 0.0
        %4993 = vmatpush1.msra.mxu0 0.0
        %4994 = vmatprep.subr.mxu0 0.0
        %4995 = vmatpush1.msra.mxu0 0.0
        %4996 = vmatprep.subr.mxu0 0.0
        %4997 = vmatpush1.msra.mxu0 0.0
        %4998 = vmatprep.subr.mxu0 0.0
        %4999 = vmatpush1.msra.mxu0 0.0
        %5000 = vmatprep.subr.mxu0 0.0
        %5001 = vmatpush1.msra.mxu0 0.0
        %5002 = vmatprep.subr.mxu0 0.0
        %5003 = vmatpush1.msra.mxu0 0.0
        %5004 = vmatprep.subr.mxu0 0.0
        %5005 = vmatpush1.msra.mxu0 0.0
        %5006 = vmatprep.subr.mxu0 0.0
        %5007 = vmatpush1.msra.mxu0 0.0
        %5008 = vmatprep.subr.mxu0 0.0
        %5009 = vmatpush1.msra.mxu0 0.0
        %5010 = vmatprep.subr.mxu0 0.0
        %5011 = vmatpush1.msra.mxu0 0.0
        %5012 = vmatprep.subr.mxu0 0.0
        %5013 = vmatpush1.msra.mxu0 0.0
        %5014 = vmatprep.subr.mxu0 0.0
        %5015 = vmatpush1.msra.mxu0 0.0
        %5016 = vmatprep.subr.mxu0 0.0
        %5017 = vmatpush1.msra.mxu0 0.0
        %5018 = vmatprep.subr.mxu0 0.0
        %5019 = vmatpush1.msra.mxu0 0.0
        %5020 = vmatprep.subr.mxu0 0.0
        %5021 = vmatpush1.msra.mxu0 0.0
        %5022 = vmatprep.subr.mxu0 0.0
        %5023 = vmatpush1.msra.mxu0 0.0
        %5024 = vmatprep.subr.mxu0 0.0
        %5025 = vmatpush1.msra.mxu0 0.0
        %5026 = vmatprep.subr.mxu0 0.0
        %5027 = vmatpush1.msra.mxu0 0.0
        %5028 = vmatprep.subr.mxu0 0.0
        %5029 = vmatpush1.msra.mxu0 0.0
        %5030 = vmatprep.subr.mxu0 0.0
        %5031 = vmatpush1.msra.mxu0 0.0
        %5032 = vmatprep.subr.mxu0 0.0
        %5033 = vmatpush1.msra.mxu0 0.0
        %5034 = vmatprep.subr.mxu0 0.0
        %5035 = vmatpush1.msra.mxu0 0.0
        %5036 = vmatprep.subr.mxu0 0.0
        %5037 = vmatpush1.msra.mxu0 0.0
        %5038 = vmatprep.mubr.f32.mxu0 0.0
        %5039 = vmatmul.mubr.f32.gmra.mrb[0].mxu0 %v568
        %v5040 = vpop.f32.mrb[0].mxu0
        %v5041 = vadd.f32 0.0, %v5040
        %v5042 = vpop.f32.mrb[0].mxu0
        %5043 = vmatprep.mubr.f32.mxu0 0.0
        %5044 = vmatmul.mubr.f32.gmra.mrb[0].mxu0 %v571
        %v5045 = vpop.f32.mrb[0].mxu0
        %v5046 = vadd.f32 0.0, %v5045
        %v5047 = vpop.f32.mrb[0].mxu0
        %5048 = vdwg.mxu0
        %5049 = vmatprep.subr.mxu0 0.0
        %5050 = vmatpush1.msra.mxu0 %v4887
        %5051 = vmatprep.subr.mxu0 0.0
        %5052 = vmatpush1.msra.mxu0 %v4888
        %5053 = vmatprep.subr.mxu0 0.0
        %5054 = vmatpush1.msra.mxu0 0.0
        %5055 = vmatprep.subr.mxu0 0.0
        %5056 = vmatpush1.msra.mxu0 0.0
        %5057 = vmatprep.subr.mxu0 0.0
        %5058 = vmatpush1.msra.mxu0 0.0
        %5059 = vmatprep.subr.mxu0 0.0
        %5060 = vmatpush1.msra.mxu0 0.0
        %5061 = vmatprep.subr.mxu0 0.0
        %5062 = vmatpush1.msra.mxu0 0.0
        %5063 = vmatprep.subr.mxu0 0.0
        %5064 = vmatpush1.msra.mxu0 0.0
        %5065 = vmatprep.subr.mxu0 0.0
        %5066 = vmatpush1.msra.mxu0 0.0
        %5067 = vmatprep.subr.mxu0 0.0
        %5068 = vmatpush1.msra.mxu0 0.0
        %5069 = vmatprep.subr.mxu0 0.0
        %5070 = vmatpush1.msra.mxu0 0.0
        %5071 = vmatprep.subr.mxu0 0.0
        %5072 = vmatpush1.msra.mxu0 0.0
        %5073 = vmatprep.subr.mxu0 0.0
        %5074 = vmatpush1.msra.mxu0 0.0
        %5075 = vmatprep.subr.mxu0 0.0
        %5076 = vmatpush1.msra.mxu0 0.0
        %5077 = vmatprep.subr.mxu0 0.0
        %5078 = vmatpush1.msra.mxu0 0.0
        %5079 = vmatprep.subr.mxu0 0.0
        %5080 = vmatpush1.msra.mxu0 0.0
        %5081 = vmatprep.subr.mxu0 0.0
        %5082 = vmatpush1.msra.mxu0 0.0
        %5083 = vmatprep.subr.mxu0 0.0
        %5084 = vmatpush1.msra.mxu0 0.0
        %5085 = vmatprep.subr.mxu0 0.0
        %5086 = vmatpush1.msra.mxu0 0.0
        %5087 = vmatprep.subr.mxu0 0.0
        %5088 = vmatpush1.msra.mxu0 0.0
        %5089 = vmatprep.subr.mxu0 0.0
        %5090 = vmatpush1.msra.mxu0 0.0
        %5091 = vmatprep.subr.mxu0 0.0
        %5092 = vmatpush1.msra.mxu0 0.0
        %5093 = vmatprep.subr.mxu0 0.0
        %5094 = vmatpush1.msra.mxu0 0.0
        %5095 = vmatprep.subr.mxu0 0.0
        %5096 = vmatpush1.msra.mxu0 0.0
        %5097 = vmatprep.subr.mxu0 0.0
        %5098 = vmatpush1.msra.mxu0 0.0
        %5099 = vmatprep.subr.mxu0 0.0
        %5100 = vmatpush1.msra.mxu0 0.0
        %5101 = vmatprep.subr.mxu0 0.0
        %5102 = vmatpush1.msra.mxu0 0.0
        %5103 = vmatprep.subr.mxu0 0.0
        %5104 = vmatpush1.msra.mxu0 0.0
        %5105 = vmatprep.subr.mxu0 0.0
        %5106 = vmatpush1.msra.mxu0 0.0
        %5107 = vmatprep.subr.mxu0 0.0
        %5108 = vmatpush1.msra.mxu0 0.0
        %5109 = vmatprep.subr.mxu0 0.0
        %5110 = vmatpush1.msra.mxu0 0.0
        %5111 = vmatprep.subr.mxu0 0.0
        %5112 = vmatpush1.msra.mxu0 0.0
        %5113 = vmatprep.mubr.f32.mxu0 0.0
        %5114 = vmatmul.mubr.f32.gmra.mrb[0].mxu0 %v649
        %v5115 = vpop.f32.mrb[0].mxu0
        %v5116 = vadd.f32 0.0, %v5115
        %v5117 = vpop.f32.mrb[0].mxu0
        %5118 = vmatprep.mubr.f32.mxu0 0.0
        %5119 = vmatmul.mubr.f32.gmra.mrb[0].mxu0 %v652
        %v5120 = vpop.f32.mrb[0].mxu0
        %v5121 = vadd.f32 0.0, %v5120
        %v5122 = vpop.f32.mrb[0].mxu0
        %5123 = vdwg.mxu0
        %5124 = vmatprep.subr.mxu0 0.0
        %5125 = vmatpush1.msra.mxu0 %v4889
        %5126 = vmatprep.subr.mxu0 0.0
        %5127 = vmatpush1.msra.mxu0 %v4890
        %5128 = vmatprep.subr.mxu0 0.0
        %5129 = vmatpush1.msra.mxu0 0.0
        %5130 = vmatprep.subr.mxu0 0.0
        %5131 = vmatpush1.msra.mxu0 0.0
        %5132 = vmatprep.subr.mxu0 0.0
        %5133 = vmatpush1.msra.mxu0 0.0
        %5134 = vmatprep.subr.mxu0 0.0
        %5135 = vmatpush1.msra.mxu0 0.0
        %5136 = vmatprep.subr.mxu0 0.0
        %5137 = vmatpush1.msra.mxu0 0.0
        %5138 = vmatprep.subr.mxu0 0.0
        %5139 = vmatpush1.msra.mxu0 0.0
        %5140 = vmatprep.subr.mxu0 0.0
        %5141 = vmatpush1.msra.mxu0 0.0
        %5142 = vmatprep.subr.mxu0 0.0
        %5143 = vmatpush1.msra.mxu0 0.0
        %5144 = vmatprep.subr.mxu0 0.0
        %5145 = vmatpush1.msra.mxu0 0.0
        %5146 = vmatprep.subr.mxu0 0.0
        %5147 = vmatpush1.msra.mxu0 0.0
        %5148 = vmatprep.subr.mxu0 0.0
        %5149 = vmatpush1.msra.mxu0 0.0
        %5150 = vmatprep.subr.mxu0 0.0
        %5151 = vmatpush1.msra.mxu0 0.0
        %5152 = vmatprep.subr.mxu0 0.0
        %5153 = vmatpush1.msra.mxu0 0.0
        %5154 = vmatprep.subr.mxu0 0.0
        %5155 = vmatpush1.msra.mxu0 0.0
        %5156 = vmatprep.subr.mxu0 0.0
        %5157 = vmatpush1.msra.mxu0 0.0
        %5158 = vmatprep.subr.mxu0 0.0
        %5159 = vmatpush1.msra.mxu0 0.0
        %5160 = vmatprep.subr.mxu0 0.0
        %5161 = vmatpush1.msra.mxu0 0.0
        %5162 = vmatprep.subr.mxu0 0.0
        %5163 = vmatpush1.msra.mxu0 0.0
        %5164 = vmatprep.subr.mxu0 0.0
        %5165 = vmatpush1.msra.mxu0 0.0
        %5166 = vmatprep.subr.mxu0 0.0
        %5167 = vmatpush1.msra.mxu0 0.0
        %5168 = vmatprep.subr.mxu0 0.0
        %5169 = vmatpush1.msra.mxu0 0.0
        %5170 = vmatprep.subr.mxu0 0.0
        %5171 = vmatpush1.msra.mxu0 0.0
        %5172 = vmatprep.subr.mxu0 0.0
        %5173 = vmatpush1.msra.mxu0 0.0
        %5174 = vmatprep.subr.mxu0 0.0
        %5175 = vmatpush1.msra.mxu0 0.0
        %5176 = vmatprep.subr.mxu0 0.0
        %5177 = vmatpush1.msra.mxu0 0.0
        %5178 = vmatprep.subr.mxu0 0.0
        %5179 = vmatpush1.msra.mxu0 0.0
        %5180 = vmatprep.subr.mxu0 0.0
        %5181 = vmatpush1.msra.mxu0 0.0
        %5182 = vmatprep.subr.mxu0 0.0
        %5183 = vmatpush1.msra.mxu0 0.0
        %5184 = vmatprep.subr.mxu0 0.0
        %5185 = vmatpush1.msra.mxu0 0.0
        %5186 = vmatprep.subr.mxu0 0.0
        %5187 = vmatpush1.msra.mxu0 0.0
        %5188 = vmatprep.mubr.f32.mxu0 0.0
        %5189 = vmatmul.mubr.f32.gmra.mrb[0].mxu0 %v730
        %v5190 = vpop.f32.mrb[0].mxu0
        %v5191 = vadd.f32 0.0, %v5190
        %v5192 = vpop.f32.mrb[0].mxu0
        %5193 = vmatprep.mubr.f32.mxu0 0.0
        %5194 = vmatmul.mubr.f32.gmra.mrb[0].mxu0 %v733
        %v5195 = vpop.f32.mrb[0].mxu0
        %v5196 = vadd.f32 0.0, %v5195
        %v5197 = vpop.f32.mrb[0].mxu0
        %5198 = vdwg.mxu0
        %5199 = vmatprep.subr.mxu0 0.0
        %5200 = vmatpush1.msra.mxu0 %v4891
        %5201 = vmatprep.subr.mxu0 0.0
        %5202 = vmatpush1.msra.mxu0 %v4892
        %5203 = vmatprep.subr.mxu0 0.0
        %5204 = vmatpush1.msra.mxu0 0.0
        %5205 = vmatprep.subr.mxu0 0.0
        %5206 = vmatpush1.msra.mxu0 0.0
        %5207 = vmatprep.subr.mxu0 0.0
        %5208 = vmatpush1.msra.mxu0 0.0
        %5209 = vmatprep.subr.mxu0 0.0
        %5210 = vmatpush1.msra.mxu0 0.0
        %5211 = vmatprep.subr.mxu0 0.0
        %5212 = vmatpush1.msra.mxu0 0.0
        %5213 = vmatprep.subr.mxu0 0.0
        %5214 = vmatpush1.msra.mxu0 0.0
        %5215 = vmatprep.subr.mxu0 0.0
        %5216 = vmatpush1.msra.mxu0 0.0
        %5217 = vmatprep.subr.mxu0 0.0
        %5218 = vmatpush1.msra.mxu0 0.0
        %5219 = vmatprep.subr.mxu0 0.0
        %5220 = vmatpush1.msra.mxu0 0.0
        %5221 = vmatprep.subr.mxu0 0.0
        %5222 = vmatpush1.msra.mxu0 0.0
        %5223 = vmatprep.subr.mxu0 0.0
        %5224 = vmatpush1.msra.mxu0 0.0
        %5225 = vmatprep.subr.mxu0 0.0
        %5226 = vmatpush1.msra.mxu0 0.0
        %5227 = vmatprep.subr.mxu0 0.0
        %5228 = vmatpush1.msra.mxu0 0.0
        %5229 = vmatprep.subr.mxu0 0.0
        %5230 = vmatpush1.msra.mxu0 0.0
        %5231 = vmatprep.subr.mxu0 0.0
        %5232 = vmatpush1.msra.mxu0 0.0
        %5233 = vmatprep.subr.mxu0 0.0
        %5234 = vmatpush1.msra.mxu0 0.0
        %5235 = vmatprep.subr.mxu0 0.0
        %5236 = vmatpush1.msra.mxu0 0.0
        %5237 = vmatprep.subr.mxu0 0.0
        %5238 = vmatpush1.msra.mxu0 0.0
        %5239 = vmatprep.subr.mxu0 0.0
        %5240 = vmatpush1.msra.mxu0 0.0
        %5241 = vmatprep.subr.mxu0 0.0
        %5242 = vmatpush1.msra.mxu0 0.0
        %5243 = vmatprep.subr.mxu0 0.0
        %5244 = vmatpush1.msra.mxu0 0.0
        %5245 = vmatprep.subr.mxu0 0.0
        %5246 = vmatpush1.msra.mxu0 0.0
        %5247 = vmatprep.subr.mxu0 0.0
        %5248 = vmatpush1.msra.mxu0 0.0
        %5249 = vmatprep.subr.mxu0 0.0
        %5250 = vmatpush1.msra.mxu0 0.0
        %5251 = vmatprep.subr.mxu0 0.0
        %5252 = vmatpush1.msra.mxu0 0.0
        %5253 = vmatprep.subr.mxu0 0.0
        %5254 = vmatpush1.msra.mxu0 0.0
        %5255 = vmatprep.subr.mxu0 0.0
        %5256 = vmatpush1.msra.mxu0 0.0
        %5257 = vmatprep.subr.mxu0 0.0
        %5258 = vmatpush1.msra.mxu0 0.0
        %5259 = vmatprep.subr.mxu0 0.0
        %5260 = vmatpush1.msra.mxu0 0.0
        %5261 = vmatprep.subr.mxu0 0.0
        %5262 = vmatpush1.msra.mxu0 0.0
        %5263 = vmatprep.mubr.f32.mxu0 0.0
        %5264 = vmatmul.mubr.f32.gmra.mrb[0].mxu0 %v811
        %v5265 = vpop.f32.mrb[0].mxu0
        %v5266 = vadd.f32 0.0, %v5265
        %v5267 = vpop.f32.mrb[0].mxu0
        %5268 = vmatprep.mubr.f32.mxu0 0.0
        %5269 = vmatmul.mubr.f32.gmra.mrb[0].mxu0 %v814
        %v5270 = vpop.f32.mrb[0].mxu0
        %v5271 = vadd.f32 0.0, %v5270
        %v5272 = vpop.f32.mrb[0].mxu0
        %5273 = vdwg.mxu0
        %5274 = vmatprep.subr.mxu0 0.0
        %5275 = vmatpush1.msra.mxu0 %v4893
        %5276 = vmatprep.subr.mxu0 0.0
        %5277 = vmatpush1.msra.mxu0 %v4894
        %5278 = vmatprep.subr.mxu0 0.0
        %5279 = vmatpush1.msra.mxu0 0.0
        %5280 = vmatprep.subr.mxu0 0.0
        %5281 = vmatpush1.msra.mxu0 0.0
        %5282 = vmatprep.subr.mxu0 0.0
        %5283 = vmatpush1.msra.mxu0 0.0
        %5284 = vmatprep.subr.mxu0 0.0
        %5285 = vmatpush1.msra.mxu0 0.0
        %5286 = vmatprep.subr.mxu0 0.0
        %5287 = vmatpush1.msra.mxu0 0.0
        %5288 = vmatprep.subr.mxu0 0.0
        %5289 = vmatpush1.msra.mxu0 0.0
        %5290 = vmatprep.subr.mxu0 0.0
        %5291 = vmatpush1.msra.mxu0 0.0
        %5292 = vmatprep.subr.mxu0 0.0
        %5293 = vmatpush1.msra.mxu0 0.0
        %5294 = vmatprep.subr.mxu0 0.0
        %5295 = vmatpush1.msra.mxu0 0.0
        %5296 = vmatprep.subr.mxu0 0.0
        %5297 = vmatpush1.msra.mxu0 0.0
        %5298 = vmatprep.subr.mxu0 0.0
        %5299 = vmatpush1.msra.mxu0 0.0
        %5300 = vmatprep.subr.mxu0 0.0
        %5301 = vmatpush1.msra.mxu0 0.0
        %5302 = vmatprep.subr.mxu0 0.0
        %5303 = vmatpush1.msra.mxu0 0.0
        %5304 = vmatprep.subr.mxu0 0.0
        %5305 = vmatpush1.msra.mxu0 0.0
        %5306 = vmatprep.subr.mxu0 0.0
        %5307 = vmatpush1.msra.mxu0 0.0
        %5308 = vmatprep.subr.mxu0 0.0
        %5309 = vmatpush1.msra.mxu0 0.0
        %5310 = vmatprep.subr.mxu0 0.0
        %5311 = vmatpush1.msra.mxu0 0.0
        %5312 = vmatprep.subr.mxu0 0.0
        %5313 = vmatpush1.msra.mxu0 0.0
        %5314 = vmatprep.subr.mxu0 0.0
        %5315 = vmatpush1.msra.mxu0 0.0
        %5316 = vmatprep.subr.mxu0 0.0
        %5317 = vmatpush1.msra.mxu0 0.0
        %5318 = vmatprep.subr.mxu0 0.0
        %5319 = vmatpush1.msra.mxu0 0.0
        %5320 = vmatprep.subr.mxu0 0.0
        %5321 = vmatpush1.msra.mxu0 0.0
        %5322 = vmatprep.subr.mxu0 0.0
        %5323 = vmatpush1.msra.mxu0 0.0
        %5324 = vmatprep.subr.mxu0 0.0
        %5325 = vmatpush1.msra.mxu0 0.0
        %5326 = vmatprep.subr.mxu0 0.0
        %5327 = vmatpush1.msra.mxu0 0.0
        %5328 = vmatprep.subr.mxu0 0.0
        %5329 = vmatpush1.msra.mxu0 0.0
        %5330 = vmatprep.subr.mxu0 0.0
        %5331 = vmatpush1.msra.mxu0 0.0
        %5332 = vmatprep.subr.mxu0 0.0
        %5333 = vmatpush1.msra.mxu0 0.0
        %5334 = vmatprep.subr.mxu0 0.0
        %5335 = vmatpush1.msra.mxu0 0.0
        %5336 = vmatprep.subr.mxu0 0.0
        %5337 = vmatpush1.msra.mxu0 0.0
        %5338 = vmatprep.mubr.f32.mxu0 0.0
        %5339 = vmatmul.mubr.f32.gmra.mrb[0].mxu0 %v892
        %v5340 = vpop.f32.mrb[0].mxu0
        %v5341 = vadd.f32 0.0, %v5340
        %v5342 = vpop.f32.mrb[0].mxu0
        %5343 = vmatprep.mubr.f32.mxu0 0.0
        %5344 = vmatmul.mubr.f32.gmra.mrb[0].mxu0 %v895
        %v5345 = vpop.f32.mrb[0].mxu0
        %v5346 = vadd.f32 0.0, %v5345
        %v5347 = vpop.f32.mrb[0].mxu0
        %5348 = vdwg.mxu0
        %5349 = vmatprep.subr.mxu0 0.0
        %5350 = vmatpush1.msra.mxu0 %v4895
        %5351 = vmatprep.subr.mxu0 0.0
        %5352 = vmatpush1.msra.mxu0 %v4896
        %5353 = vmatprep.subr.mxu0 0.0
        %5354 = vmatpush1.msra.mxu0 0.0
        %5355 = vmatprep.subr.mxu0 0.0
        %5356 = vmatpush1.msra.mxu0 0.0
        %5357 = vmatprep.subr.mxu0 0.0
        %5358 = vmatpush1.msra.mxu0 0.0
        %5359 = vmatprep.subr.mxu0 0.0
        %5360 = vmatpush1.msra.mxu0 0.0
        %5361 = vmatprep.subr.mxu0 0.0
        %5362 = vmatpush1.msra.mxu0 0.0
        %5363 = vmatprep.subr.mxu0 0.0
        %5364 = vmatpush1.msra.mxu0 0.0
        %5365 = vmatprep.subr.mxu0 0.0
        %5366 = vmatpush1.msra.mxu0 0.0
        %5367 = vmatprep.subr.mxu0 0.0
        %5368 = vmatpush1.msra.mxu0 0.0
        %5369 = vmatprep.subr.mxu0 0.0
        %5370 = vmatpush1.msra.mxu0 0.0
        %5371 = vmatprep.subr.mxu0 0.0
        %5372 = vmatpush1.msra.mxu0 0.0
        %5373 = vmatprep.subr.mxu0 0.0
        %5374 = vmatpush1.msra.mxu0 0.0
        %5375 = vmatprep.subr.mxu0 0.0
        %5376 = vmatpush1.msra.mxu0 0.0
        %5377 = vmatprep.subr.mxu0 0.0
        %5378 = vmatpush1.msra.mxu0 0.0
        %5379 = vmatprep.subr.mxu0 0.0
        %5380 = vmatpush1.msra.mxu0 0.0
        %5381 = vmatprep.subr.mxu0 0.0
        %5382 = vmatpush1.msra.mxu0 0.0
        %5383 = vmatprep.subr.mxu0 0.0
        %5384 = vmatpush1.msra.mxu0 0.0
        %5385 = vmatprep.subr.mxu0 0.0
        %5386 = vmatpush1.msra.mxu0 0.0
        %5387 = vmatprep.subr.mxu0 0.0
        %5388 = vmatpush1.msra.mxu0 0.0
        %5389 = vmatprep.subr.mxu0 0.0
        %5390 = vmatpush1.msra.mxu0 0.0
        %5391 = vmatprep.subr.mxu0 0.0
        %5392 = vmatpush1.msra.mxu0 0.0
        %5393 = vmatprep.subr.mxu0 0.0
        %5394 = vmatpush1.msra.mxu0 0.0
        %5395 = vmatprep.subr.mxu0 0.0
        %5396 = vmatpush1.msra.mxu0 0.0
        %5397 = vmatprep.subr.mxu0 0.0
        %5398 = vmatpush1.msra.mxu0 0.0
        %5399 = vmatprep.subr.mxu0 0.0
        %5400 = vmatpush1.msra.mxu0 0.0
        %5401 = vmatprep.subr.mxu0 0.0
        %5402 = vmatpush1.msra.mxu0 0.0
        %5403 = vmatprep.subr.mxu0 0.0
        %5404 = vmatpush1.msra.mxu0 0.0
        %5405 = vmatprep.subr.mxu0 0.0
        %5406 = vmatpush1.msra.mxu0 0.0
        %5407 = vmatprep.subr.mxu0 0.0
        %5408 = vmatpush1.msra.mxu0 0.0
        %5409 = vmatprep.subr.mxu0 0.0
        %5410 = vmatpush1.msra.mxu0 0.0
        %5411 = vmatprep.subr.mxu0 0.0
        %5412 = vmatpush1.msra.mxu0 0.0
        %5413 = vmatprep.mubr.f32.mxu0 0.0
        %5414 = vmatmul.mubr.f32.gmra.mrb[0].mxu0 %v973
        %v5415 = vpop.f32.mrb[0].mxu0
        %v5416 = vadd.f32 0.0, %v5415
        %v5417 = vpop.f32.mrb[0].mxu0
        %5418 = vmatprep.mubr.f32.mxu0 0.0
        %5419 = vmatmul.mubr.f32.gmra.mrb[0].mxu0 %v976
        %v5420 = vpop.f32.mrb[0].mxu0
        %v5421 = vadd.f32 0.0, %v5420
        %v5422 = vpop.f32.mrb[0].mxu0
        %5423 = vdwg.mxu0
        %5424 = vmatprep.subr.mxu0 0.0
        %5425 = vmatpush1.msra.mxu0 %v4897
        %5426 = vmatprep.subr.mxu0 0.0
        %5427 = vmatpush1.msra.mxu0 %v4898
        %5428 = vmatprep.subr.mxu0 0.0
        %5429 = vmatpush1.msra.mxu0 0.0
        %5430 = vmatprep.subr.mxu0 0.0
        %5431 = vmatpush1.msra.mxu0 0.0
        %5432 = vmatprep.subr.mxu0 0.0
        %5433 = vmatpush1.msra.mxu0 0.0
        %5434 = vmatprep.subr.mxu0 0.0
        %5435 = vmatpush1.msra.mxu0 0.0
        %5436 = vmatprep.subr.mxu0 0.0
        %5437 = vmatpush1.msra.mxu0 0.0
        %5438 = vmatprep.subr.mxu0 0.0
        %5439 = vmatpush1.msra.mxu0 0.0
        %5440 = vmatprep.subr.mxu0 0.0
        %5441 = vmatpush1.msra.mxu0 0.0
        %5442 = vmatprep.subr.mxu0 0.0
        %5443 = vmatpush1.msra.mxu0 0.0
        %5444 = vmatprep.subr.mxu0 0.0
        %5445 = vmatpush1.msra.mxu0 0.0
        %5446 = vmatprep.subr.mxu0 0.0
        %5447 = vmatpush1.msra.mxu0 0.0
        %5448 = vmatprep.subr.mxu0 0.0
        %5449 = vmatpush1.msra.mxu0 0.0
        %5450 = vmatprep.subr.mxu0 0.0
        %5451 = vmatpush1.msra.mxu0 0.0
        %5452 = vmatprep.subr.mxu0 0.0
        %5453 = vmatpush1.msra.mxu0 0.0
        %5454 = vmatprep.subr.mxu0 0.0
        %5455 = vmatpush1.msra.mxu0 0.0
        %5456 = vmatprep.subr.mxu0 0.0
        %5457 = vmatpush1.msra.mxu0 0.0
        %5458 = vmatprep.subr.mxu0 0.0
        %5459 = vmatpush1.msra.mxu0 0.0
        %5460 = vmatprep.subr.mxu0 0.0
        %5461 = vmatpush1.msra.mxu0 0.0
        %5462 = vmatprep.subr.mxu0 0.0
        %5463 = vmatpush1.msra.mxu0 0.0
        %5464 = vmatprep.subr.mxu0 0.0
        %5465 = vmatpush1.msra.mxu0 0.0
        %5466 = vmatprep.subr.mxu0 0.0
        %5467 = vmatpush1.msra.mxu0 0.0
        %5468 = vmatprep.subr.mxu0 0.0
        %5469 = vmatpush1.msra.mxu0 0.0
        %5470 = vmatprep.subr.mxu0 0.0
        %5471 = vmatpush1.msra.mxu0 0.0
        %5472 = vmatprep.subr.mxu0 0.0
        %5473 = vmatpush1.msra.mxu0 0.0
        %5474 = vmatprep.subr.mxu0 0.0
        %5475 = vmatpush1.msra.mxu0 0.0
        %5476 = vmatprep.subr.mxu0 0.0
        %5477 = vmatpush1.msra.mxu0 0.0
        %5478 = vmatprep.subr.mxu0 0.0
        %5479 = vmatpush1.msra.mxu0 0.0
        %5480 = vmatprep.subr.mxu0 0.0
        %5481 = vmatpush1.msra.mxu0 0.0
        %5482 = vmatprep.subr.mxu0 0.0
        %5483 = vmatpush1.msra.mxu0 0.0
        %5484 = vmatprep.subr.mxu0 0.0
        %5485 = vmatpush1.msra.mxu0 0.0
        %5486 = vmatprep.subr.mxu0 0.0
        %5487 = vmatpush1.msra.mxu0 0.0
        %5488 = vmatprep.mubr.f32.mxu0 0.0
        %5489 = vmatmul.mubr.f32.gmra.mrb[0].mxu0 %v1054
        %v5490 = vpop.f32.mrb[0].mxu0
        %v5491 = vadd.f32 0.0, %v5490
        %v5492 = vpop.f32.mrb[0].mxu0
        %5493 = vmatprep.mubr.f32.mxu0 0.0
        %5494 = vmatmul.mubr.f32.gmra.mrb[0].mxu0 %v1057
        %v5495 = vpop.f32.mrb[0].mxu0
        %v5496 = vadd.f32 0.0, %v5495
        %v5497 = vpop.f32.mrb[0].mxu0
        %5498 = vdwg.mxu0
        %v5499 = vpack.c.bf16 %v4884, %v4883
        %v5500 = vpack.c.bf16 %v4886, %v4885
        %v5501 = vpack.c.bf16 %v4888, %v4887
        %v5502 = vpack.c.bf16 %v4890, %v4889
        %v5503 = vpack.c.bf16 %v4892, %v4891
        %v5504 = vpack.c.bf16 %v4894, %v4893
        %v5505 = vpack.c.bf16 %v4896, %v4895
        %v5506 = vpack.c.bf16 %v4898, %v4897
        %v5507 = vpack.c.bf16 %v4971, %v4966
        %v5508 = vpack.c.bf16 %v5046, %v5041
        %v5509 = vpack.c.bf16 %v5121, %v5116
        %v5510 = vpack.c.bf16 %v5196, %v5191
        %v5511 = vpack.c.bf16 %v5271, %v5266
        %v5512 = vpack.c.bf16 %v5346, %v5341
        %v5513 = vpack.c.bf16 %v5421, %v5416
        %v5514 = vpack.c.bf16 %v5496, %v5491
        %s5515 = scalar_lea.vmem [#allocation6], 192
        %v5516 = vld [vmem:[%s5515] sm:$0xf]
        %v5517 = vld [vmem:[%s5515 + $0x4] sm:$0xf]
        %v5518 = vld [vmem:[%s5515 + $0x8] sm:$0xf]
        %v5519 = vld [vmem:[%s5515 + $0xc] sm:$0xf]
        %v5520 = vld [vmem:[%s5515 + $0x10] sm:$0xf]
        %v5521 = vld [vmem:[%s5515 + $0x14] sm:$0xf]
        %v5522 = vld [vmem:[%s5515 + $0x18] sm:$0xf]
        %v5523 = vld [vmem:[%s5515 + $0x1c] sm:$0xf]
        %v5524 = vld [vmem:[%s5515 + $0x20] sm:$0xf]
        %v5525 = vld [vmem:[%s5515 + $0x24] sm:$0xf]
        %v5526 = vld [vmem:[%s5515 + $0x28] sm:$0xf]
        %v5527 = vld [vmem:[%s5515 + $0x2c] sm:$0xf]
        %v5528 = vld [vmem:[%s5515 + $0x30] sm:$0xf]
        %v5529 = vld [vmem:[%s5515 + $0x34] sm:$0xf]
        %v5530 = vld [vmem:[%s5515 + $0x38] sm:$0xf]
        %v5531 = vld [vmem:[%s5515 + $0x3c] sm:$0xf]
        %v5548 = vunpack.c.l.b16 %v5516
        %v5549 = vunpack.c.l.b16 %v5517
        %v5550 = vunpack.c.l.b16 %v5518
        %v5551 = vunpack.c.l.b16 %v5519
        %v5552 = vunpack.c.l.b16 %v5520
        %v5553 = vunpack.c.l.b16 %v5521
        %v5554 = vunpack.c.l.b16 %v5522
        %v5555 = vunpack.c.l.b16 %v5523
        %v5556 = vunpack.c.l.b16 %v5524
        %v5557 = vunpack.c.l.b16 %v5525
        %v5558 = vunpack.c.l.b16 %v5526
        %v5559 = vunpack.c.l.b16 %v5527
        %v5560 = vunpack.c.l.b16 %v5528
        %v5561 = vunpack.c.l.b16 %v5529
        %v5562 = vunpack.c.l.b16 %v5530
        %v5563 = vunpack.c.l.b16 %v5531
        %v5564 = vpack.c.b16 %v5549, %v5548
        %v5565 = vpack.c.b16 %v5551, %v5550
        %v5566 = vpack.c.b16 %v5553, %v5552
        %v5567 = vpack.c.b16 %v5555, %v5554
        %v5568 = vpack.c.b16 %v5557, %v5556
        %v5569 = vpack.c.b16 %v5559, %v5558
        %v5570 = vpack.c.b16 %v5561, %v5560
        %v5571 = vpack.c.b16 %v5563, %v5562
        %5580 = vmatprep.subr.bf16.mxu0 0
        %5581 = vmatpush1.bf16.msra.mxu0 %v5564
        %5582 = vmatprep.subr.bf16.mxu0 0
        %5583 = vmatpush1.bf16.msra.mxu0 %v5565
        %5584 = vmatprep.subr.bf16.mxu0 0
        %5585 = vmatpush1.bf16.msra.mxu0 %v5566
        %5586 = vmatprep.subr.bf16.mxu0 0
        %5587 = vmatpush1.bf16.msra.mxu0 %v5567
        %5588 = vmatprep.subr.bf16.mxu0 0
        %5589 = vmatpush1.bf16.msra.mxu0 %v5568
        %5590 = vmatprep.subr.bf16.mxu0 0
        %5591 = vmatpush1.bf16.msra.mxu0 %v5569
        %5592 = vmatprep.subr.bf16.mxu0 0
        %5593 = vmatpush1.bf16.msra.mxu0 %v5570
        %5594 = vmatprep.subr.bf16.mxu0 0
        %5595 = vmatpush1.bf16.msra.mxu0 %v5571
        %5596 = vmatprep.subr.bf16.mxu0 0
        %5597 = vmatpush1.bf16.msra.mxu0 0
        %5598 = vmatprep.subr.bf16.mxu0 0
        %5599 = vmatpush1.bf16.msra.mxu0 0
        %5600 = vmatprep.subr.bf16.mxu0 0
        %5601 = vmatpush1.bf16.msra.mxu0 0
        %5602 = vmatprep.subr.bf16.mxu0 0
        %5603 = vmatpush1.bf16.msra.mxu0 0
        %5604 = vmatprep.subr.bf16.mxu0 0
        %5605 = vmatpush1.bf16.msra.mxu0 0
        %5606 = vmatprep.subr.bf16.mxu0 0
        %5607 = vmatpush1.bf16.msra.mxu0 0
        %5608 = vmatprep.subr.bf16.mxu0 0
        %5609 = vmatpush1.bf16.msra.mxu0 0
        %5610 = vmatprep.subr.bf16.mxu0 0
        %5611 = vmatpush1.bf16.msra.mxu0 0
        %5612 = vmatprep.mubr.bf16.mxu0 0
        %5613 = vmatmul.mubr.bf16.gmra.mrb[0].mxu0 %v5507
        %v5614 = vpop.f32.mrb[0].mxu0
        %v5615 = vadd.f32 %v1170, %v5614
        %v5616 = vpop.f32.mrb[0].mxu0
        %v5617 = vpop.f32.mrb[0].mxu0
        %v5618 = vadd.f32 %v1170, %v5617
        %v5619 = vpop.f32.mrb[0].mxu0
        %5620 = vmatprep.mubr.bf16.mxu0 0
        %5621 = vmatmul.mubr.bf16.gmra.mrb[0].mxu0 %v5508
        %v5622 = vpop.f32.mrb[0].mxu0
        %v5623 = vadd.f32 %v1170, %v5622
        %v5624 = vpop.f32.mrb[0].mxu0
        %v5625 = vpop.f32.mrb[0].mxu0
        %v5626 = vadd.f32 %v1170, %v5625
        %v5627 = vpop.f32.mrb[0].mxu0
        %5628 = vmatprep.mubr.bf16.mxu0 0
        %5629 = vmatmul.mubr.bf16.gmra.mrb[0].mxu0 %v5509
        %v5630 = vpop.f32.mrb[0].mxu0
        %v5631 = vadd.f32 %v1170, %v5630
        %v5632 = vpop.f32.mrb[0].mxu0
        %v5633 = vpop.f32.mrb[0].mxu0
        %v5634 = vadd.f32 %v1170, %v5633
        %v5635 = vpop.f32.mrb[0].mxu0
        %5636 = vmatprep.mubr.bf16.mxu0 0
        %5637 = vmatmul.mubr.bf16.gmra.mrb[0].mxu0 %v5510
        %v5638 = vpop.f32.mrb[0].mxu0
        %v5639 = vadd.f32 %v1170, %v5638
        %v5640 = vpop.f32.mrb[0].mxu0
        %v5641 = vpop.f32.mrb[0].mxu0
        %v5642 = vadd.f32 %v1170, %v5641
        %v5643 = vpop.f32.mrb[0].mxu0
        %5644 = vmatprep.mubr.bf16.mxu0 0
        %5645 = vmatmul.mubr.bf16.gmra.mrb[0].mxu0 %v5511
        %v5646 = vpop.f32.mrb[0].mxu0
        %v5647 = vadd.f32 %v1170, %v5646
        %v5648 = vpop.f32.mrb[0].mxu0
        %v5649 = vpop.f32.mrb[0].mxu0
        %v5650 = vadd.f32 %v1170, %v5649
        %v5651 = vpop.f32.mrb[0].mxu0
        %5652 = vmatprep.mubr.bf16.mxu0 0
        %5653 = vmatmul.mubr.bf16.gmra.mrb[0].mxu0 %v5512
        %v5654 = vpop.f32.mrb[0].mxu0
        %v5655 = vadd.f32 %v1170, %v5654
        %v5656 = vpop.f32.mrb[0].mxu0
        %v5657 = vpop.f32.mrb[0].mxu0
        %v5658 = vadd.f32 %v1170, %v5657
        %v5659 = vpop.f32.mrb[0].mxu0
        %5660 = vmatprep.mubr.bf16.mxu0 0
        %5661 = vmatmul.mubr.bf16.gmra.mrb[0].mxu0 %v5513
        %v5662 = vpop.f32.mrb[0].mxu0
        %v5663 = vadd.f32 %v1170, %v5662
        %v5664 = vpop.f32.mrb[0].mxu0
        %v5665 = vpop.f32.mrb[0].mxu0
        %v5666 = vadd.f32 %v1170, %v5665
        %v5667 = vpop.f32.mrb[0].mxu0
        %5668 = vmatprep.mubr.bf16.mxu0 0
        %5669 = vmatmul.mubr.bf16.gmra.mrb[0].mxu0 %v5514
        %v5670 = vpop.f32.mrb[0].mxu0
        %v5671 = vadd.f32 %v1170, %v5670
        %v5672 = vpop.f32.mrb[0].mxu0
        %v5673 = vpop.f32.mrb[0].mxu0
        %v5674 = vadd.f32 %v1170, %v5673
        %v5675 = vpop.f32.mrb[0].mxu0
        %5676 = vdwg.mxu0
        %5677 = vmatprep.subr.bf16.mxu0 0
        %5678 = vmatpush1.bf16.msra.mxu0 %v1355
        %5679 = vmatprep.subr.bf16.mxu0 0
        %5680 = vmatpush1.bf16.msra.mxu0 %v1356
        %5681 = vmatprep.subr.bf16.mxu0 0
        %5682 = vmatpush1.bf16.msra.mxu0 %v1357
        %5683 = vmatprep.subr.bf16.mxu0 0
        %5684 = vmatpush1.bf16.msra.mxu0 %v1358
        %5685 = vmatprep.subr.bf16.mxu0 0
        %5686 = vmatpush1.bf16.msra.mxu0 %v1359
        %5687 = vmatprep.subr.bf16.mxu0 0
        %5688 = vmatpush1.bf16.msra.mxu0 %v1360
        %5689 = vmatprep.subr.bf16.mxu0 0
        %5690 = vmatpush1.bf16.msra.mxu0 %v1361
        %5691 = vmatprep.subr.bf16.mxu0 0
        %5692 = vmatpush1.bf16.msra.mxu0 %v1362
        %5693 = vmatprep.subr.bf16.mxu0 0
        %5694 = vmatpush1.bf16.msra.mxu0 0
        %5695 = vmatprep.subr.bf16.mxu0 0
        %5696 = vmatpush1.bf16.msra.mxu0 0
        %5697 = vmatprep.subr.bf16.mxu0 0
        %5698 = vmatpush1.bf16.msra.mxu0 0
        %5699 = vmatprep.subr.bf16.mxu0 0
        %5700 = vmatpush1.bf16.msra.mxu0 0
        %5701 = vmatprep.subr.bf16.mxu0 0
        %5702 = vmatpush1.bf16.msra.mxu0 0
        %5703 = vmatprep.subr.bf16.mxu0 0
        %5704 = vmatpush1.bf16.msra.mxu0 0
        %5705 = vmatprep.subr.bf16.mxu0 0
        %5706 = vmatpush1.bf16.msra.mxu0 0
        %5707 = vmatprep.subr.bf16.mxu0 0
        %5708 = vmatpush1.bf16.msra.mxu0 0
        %5709 = vmatprep.mubr.bf16.mxu0 0
        %5710 = vmatmul.mubr.bf16.gmra.mrb[0].mxu0 %v5499
        %v5711 = vpop.f32.mrb[0].mxu0
        %v5712 = vadd.f32 %v1321, %v5711
        %v5713 = vpop.f32.mrb[0].mxu0
        %v5714 = vpop.f32.mrb[0].mxu0
        %v5715 = vadd.f32 %v1321, %v5714
        %v5716 = vpop.f32.mrb[0].mxu0
        %5717 = vmatprep.mubr.bf16.mxu0 0
        %5718 = vmatmul.mubr.bf16.gmra.mrb[0].mxu0 %v5500
        %v5719 = vpop.f32.mrb[0].mxu0
        %v5720 = vadd.f32 %v1321, %v5719
        %v5721 = vpop.f32.mrb[0].mxu0
        %v5722 = vpop.f32.mrb[0].mxu0
        %v5723 = vadd.f32 %v1321, %v5722
        %v5724 = vpop.f32.mrb[0].mxu0
        %5725 = vmatprep.mubr.bf16.mxu0 0
        %5726 = vmatmul.mubr.bf16.gmra.mrb[0].mxu0 %v5501
        %v5727 = vpop.f32.mrb[0].mxu0
        %v5728 = vadd.f32 %v1321, %v5727
        %v5729 = vpop.f32.mrb[0].mxu0
        %v5730 = vpop.f32.mrb[0].mxu0
        %v5731 = vadd.f32 %v1321, %v5730
        %v5732 = vpop.f32.mrb[0].mxu0
        %5733 = vmatprep.mubr.bf16.mxu0 0
        %5734 = vmatmul.mubr.bf16.gmra.mrb[0].mxu0 %v5502
        %v5735 = vpop.f32.mrb[0].mxu0
        %v5736 = vadd.f32 %v1321, %v5735
        %v5737 = vpop.f32.mrb[0].mxu0
        %v5738 = vpop.f32.mrb[0].mxu0
        %v5739 = vadd.f32 %v1321, %v5738
        %v5740 = vpop.f32.mrb[0].mxu0
        %5741 = vmatprep.mubr.bf16.mxu0 0
        %5742 = vmatmul.mubr.bf16.gmra.mrb[0].mxu0 %v5503
        %v5743 = vpop.f32.mrb[0].mxu0
        %v5744 = vadd.f32 %v1321, %v5743
        %v5745 = vpop.f32.mrb[0].mxu0
        %v5746 = vpop.f32.mrb[0].mxu0
        %v5747 = vadd.f32 %v1321, %v5746
        %v5748 = vpop.f32.mrb[0].mxu0
        %5749 = vmatprep.mubr.bf16.mxu0 0
        %5750 = vmatmul.mubr.bf16.gmra.mrb[0].mxu0 %v5504
        %v5751 = vpop.f32.mrb[0].mxu0
        %v5752 = vadd.f32 %v1321, %v5751
        %v5753 = vpop.f32.mrb[0].mxu0
        %v5754 = vpop.f32.mrb[0].mxu0
        %v5755 = vadd.f32 %v1321, %v5754
        %v5756 = vpop.f32.mrb[0].mxu0
        %5757 = vmatprep.mubr.bf16.mxu0 0
        %5758 = vmatmul.mubr.bf16.gmra.mrb[0].mxu0 %v5505
        %v5759 = vpop.f32.mrb[0].mxu0
        %v5760 = vadd.f32 %v1321, %v5759
        %v5761 = vpop.f32.mrb[0].mxu0
        %v5762 = vpop.f32.mrb[0].mxu0
        %v5763 = vadd.f32 %v1321, %v5762
        %v5764 = vpop.f32.mrb[0].mxu0
        %5765 = vmatprep.mubr.bf16.mxu0 0
        %5766 = vmatmul.mubr.bf16.gmra.mrb[0].mxu0 %v5506
        %v5767 = vpop.f32.mrb[0].mxu0
        %v5768 = vadd.f32 %v1321, %v5767
        %v5769 = vpop.f32.mrb[0].mxu0
        %v5770 = vpop.f32.mrb[0].mxu0
        %v5771 = vadd.f32 %v1321, %v5770
        %v5772 = vpop.f32.mrb[0].mxu0
        %5773 = vdwg.mxu0
        %v5774 = vadd.f32 %v5615, %v5712
        %v5775 = vadd.f32 %v5618, %v5715
        %v5776 = vadd.f32 %v5623, %v5720
        %v5777 = vadd.f32 %v5626, %v5723
        %v5778 = vadd.f32 %v5631, %v5728
        %v5779 = vadd.f32 %v5634, %v5731
        %v5780 = vadd.f32 %v5639, %v5736
        %v5781 = vadd.f32 %v5642, %v5739
        %v5782 = vadd.f32 %v5647, %v5744
        %v5783 = vadd.f32 %v5650, %v5747
        %v5784 = vadd.f32 %v5655, %v5752
        %v5785 = vadd.f32 %v5658, %v5755
        %v5786 = vadd.f32 %v5663, %v5760
        %v5787 = vadd.f32 %v5666, %v5763
        %v5788 = vadd.f32 %v5671, %v5768
        %v5789 = vadd.f32 %v5674, %v5771
        %v5790 = vxor.u32 %v5774, 2147483648
        %v5791 = vxor.u32 %v5775, 2147483648
        %v5792 = vxor.u32 %v5776, 2147483648
        %v5793 = vxor.u32 %v5777, 2147483648
        %v5794 = vxor.u32 %v5778, 2147483648
        %v5795 = vxor.u32 %v5779, 2147483648
        %v5796 = vxor.u32 %v5780, 2147483648
        %v5797 = vxor.u32 %v5781, 2147483648
        %v5798 = vxor.u32 %v5782, 2147483648
        %v5799 = vxor.u32 %v5783, 2147483648
        %v5800 = vxor.u32 %v5784, 2147483648
        %v5801 = vxor.u32 %v5785, 2147483648
        %v5802 = vxor.u32 %v5786, 2147483648
        %v5803 = vxor.u32 %v5787, 2147483648
        %v5804 = vxor.u32 %v5788, 2147483648
        %v5805 = vxor.u32 %v5789, 2147483648
        %v5806 = vmul.f32 %v5790, 1.442695
        %v5807 = vpow.pop %v5806
        %v5808 = vmul.f32 %v5791, 1.442695
        %v5809 = vpow.pop %v5808
        %v5810 = vmul.f32 %v5792, 1.442695
        %v5811 = vpow.pop %v5810
        %v5812 = vmul.f32 %v5793, 1.442695
        %v5813 = vpow.pop %v5812
        %v5814 = vmul.f32 %v5794, 1.442695
        %v5815 = vpow.pop %v5814
        %v5816 = vmul.f32 %v5795, 1.442695
        %v5817 = vpow.pop %v5816
        %v5818 = vmul.f32 %v5796, 1.442695
        %v5819 = vpow.pop %v5818
        %v5820 = vmul.f32 %v5797, 1.442695
        %v5821 = vpow.pop %v5820
        %v5822 = vmul.f32 %v5798, 1.442695
        %v5823 = vpow.pop %v5822
        %v5824 = vmul.f32 %v5799, 1.442695
        %v5825 = vpow.pop %v5824
        %v5826 = vmul.f32 %v5800, 1.442695
        %v5827 = vpow.pop %v5826
        %v5828 = vmul.f32 %v5801, 1.442695
        %v5829 = vpow.pop %v5828
        %v5830 = vmul.f32 %v5802, 1.442695
        %v5831 = vpow.pop %v5830
        %v5832 = vmul.f32 %v5803, 1.442695
        %v5833 = vpow.pop %v5832
        %v5834 = vmul.f32 %v5804, 1.442695
        %v5835 = vpow.pop %v5834
        %v5836 = vmul.f32 %v5805, 1.442695
        %v5837 = vpow.pop %v5836
        %v5838 = vadd.f32 %v5807, 1.0
        %v5839 = vadd.f32 %v5809, 1.0
        %v5840 = vadd.f32 %v5811, 1.0
        %v5841 = vadd.f32 %v5813, 1.0
        %v5842 = vadd.f32 %v5815, 1.0
        %v5843 = vadd.f32 %v5817, 1.0
        %v5844 = vadd.f32 %v5819, 1.0
        %v5845 = vadd.f32 %v5821, 1.0
        %v5846 = vadd.f32 %v5823, 1.0
        %v5847 = vadd.f32 %v5825, 1.0
        %v5848 = vadd.f32 %v5827, 1.0
        %v5849 = vadd.f32 %v5829, 1.0
        %v5850 = vadd.f32 %v5831, 1.0
        %v5851 = vadd.f32 %v5833, 1.0
        %v5852 = vadd.f32 %v5835, 1.0
        %v5853 = vadd.f32 %v5837, 1.0
        %v5854 = vrcp.pop %v5838
        %v5855 = vmul.f32 1.0, %v5854
        %v5856 = vrcp.pop %v5839
        %v5857 = vmul.f32 1.0, %v5856
        %v5858 = vrcp.pop %v5840
        %v5859 = vmul.f32 1.0, %v5858
        %v5860 = vrcp.pop %v5841
        %v5861 = vmul.f32 1.0, %v5860
        %v5862 = vrcp.pop %v5842
        %v5863 = vmul.f32 1.0, %v5862
        %v5864 = vrcp.pop %v5843
        %v5865 = vmul.f32 1.0, %v5864
        %v5866 = vrcp.pop %v5844
        %v5867 = vmul.f32 1.0, %v5866
        %v5868 = vrcp.pop %v5845
        %v5869 = vmul.f32 1.0, %v5868
        %v5870 = vrcp.pop %v5846
        %v5871 = vmul.f32 1.0, %v5870
        %v5872 = vrcp.pop %v5847
        %v5873 = vmul.f32 1.0, %v5872
        %v5874 = vrcp.pop %v5848
        %v5875 = vmul.f32 1.0, %v5874
        %v5876 = vrcp.pop %v5849
        %v5877 = vmul.f32 1.0, %v5876
        %v5878 = vrcp.pop %v5850
        %v5879 = vmul.f32 1.0, %v5878
        %v5880 = vrcp.pop %v5851
        %v5881 = vmul.f32 1.0, %v5880
        %v5882 = vrcp.pop %v5852
        %v5883 = vmul.f32 1.0, %v5882
        %v5884 = vrcp.pop %v5853
        %v5885 = vmul.f32 1.0, %v5884
        %5902 = vrot.lane.b32.xlu0 %v5712, 64
        %v5903 = vpop.permute.xlu0 %5902
        %5904 = vrot.lane.b32.xlu0 %v5715, 64
        %v5905 = vpop.permute.xlu0 %5904
        %5906 = vrot.lane.b32.xlu0 %v5720, 64
        %v5907 = vpop.permute.xlu0 %5906
        %5908 = vrot.lane.b32.xlu0 %v5723, 64
        %v5909 = vpop.permute.xlu0 %5908
        %5910 = vrot.lane.b32.xlu0 %v5728, 64
        %v5911 = vpop.permute.xlu0 %5910
        %5912 = vrot.lane.b32.xlu0 %v5731, 64
        %v5913 = vpop.permute.xlu0 %5912
        %5914 = vrot.lane.b32.xlu0 %v5736, 64
        %v5915 = vpop.permute.xlu0 %5914
        %5916 = vrot.lane.b32.xlu0 %v5739, 64
        %v5917 = vpop.permute.xlu0 %5916
        %5918 = vrot.lane.b32.xlu0 %v5744, 64
        %v5919 = vpop.permute.xlu0 %5918
        %5920 = vrot.lane.b32.xlu0 %v5747, 64
        %v5921 = vpop.permute.xlu0 %5920
        %5922 = vrot.lane.b32.xlu0 %v5752, 64
        %v5923 = vpop.permute.xlu0 %5922
        %5924 = vrot.lane.b32.xlu0 %v5755, 64
        %v5925 = vpop.permute.xlu0 %5924
        %5926 = vrot.lane.b32.xlu0 %v5760, 64
        %v5927 = vpop.permute.xlu0 %5926
        %5928 = vrot.lane.b32.xlu0 %v5763, 64
        %v5929 = vpop.permute.xlu0 %5928
        %5930 = vrot.lane.b32.xlu0 %v5768, 64
        %v5931 = vpop.permute.xlu0 %5930
        %5932 = vrot.lane.b32.xlu0 %v5771, 64
        %v5933 = vpop.permute.xlu0 %5932
        %v5950 = vmul.f32 %v5855, %v5903
        %v5951 = vmul.f32 %v5857, %v5905
        %v5952 = vmul.f32 %v5859, %v5907
        %v5953 = vmul.f32 %v5861, %v5909
        %v5954 = vmul.f32 %v5863, %v5911
        %v5955 = vmul.f32 %v5865, %v5913
        %v5956 = vmul.f32 %v5867, %v5915
        %v5957 = vmul.f32 %v5869, %v5917
        %v5958 = vmul.f32 %v5871, %v5919
        %v5959 = vmul.f32 %v5873, %v5921
        %v5960 = vmul.f32 %v5875, %v5923
        %v5961 = vmul.f32 %v5877, %v5925
        %v5962 = vmul.f32 %v5879, %v5927
        %v5963 = vmul.f32 %v5881, %v5929
        %v5964 = vmul.f32 %v5883, %v5931
        %v5965 = vmul.f32 %v5885, %v5933
        %5982 = vrot.lane.b32.xlu0 %v5950, 64
        %v5983 = vpop.permute.xlu0 %5982
        %5984 = vrot.lane.b32.xlu0 %v5951, 64
        %v5985 = vpop.permute.xlu0 %5984
        %5986 = vrot.lane.b32.xlu0 %v5952, 64
        %v5987 = vpop.permute.xlu0 %5986
        %5988 = vrot.lane.b32.xlu0 %v5953, 64
        %v5989 = vpop.permute.xlu0 %5988
        %5990 = vrot.lane.b32.xlu0 %v5954, 64
        %v5991 = vpop.permute.xlu0 %5990
        %5992 = vrot.lane.b32.xlu0 %v5955, 64
        %v5993 = vpop.permute.xlu0 %5992
        %5994 = vrot.lane.b32.xlu0 %v5956, 64
        %v5995 = vpop.permute.xlu0 %5994
        %5996 = vrot.lane.b32.xlu0 %v5957, 64
        %v5997 = vpop.permute.xlu0 %5996
        %5998 = vrot.lane.b32.xlu0 %v5958, 64
        %v5999 = vpop.permute.xlu0 %5998
        %6000 = vrot.lane.b32.xlu0 %v5959, 64
        %v6001 = vpop.permute.xlu0 %6000
        %6002 = vrot.lane.b32.xlu0 %v5960, 64
        %v6003 = vpop.permute.xlu0 %6002
        %6004 = vrot.lane.b32.xlu0 %v5961, 64
        %v6005 = vpop.permute.xlu0 %6004
        %6006 = vrot.lane.b32.xlu0 %v5962, 64
        %v6007 = vpop.permute.xlu0 %6006
        %6008 = vrot.lane.b32.xlu0 %v5963, 64
        %v6009 = vpop.permute.xlu0 %6008
        %6010 = vrot.lane.b32.xlu0 %v5964, 64
        %v6011 = vpop.permute.xlu0 %6010
        %6012 = vrot.lane.b32.xlu0 %v5965, 64
        %v6013 = vpop.permute.xlu0 %6012
        %v6030 = vadd.f32 %v5615, %v5983
        %v6031 = vadd.f32 %v5618, %v5985
        %v6032 = vadd.f32 %v5623, %v5987
        %v6033 = vadd.f32 %v5626, %v5989
        %v6034 = vadd.f32 %v5631, %v5991
        %v6035 = vadd.f32 %v5634, %v5993
        %v6036 = vadd.f32 %v5639, %v5995
        %v6037 = vadd.f32 %v5642, %v5997
        %v6038 = vadd.f32 %v5647, %v5999
        %v6039 = vadd.f32 %v5650, %v6001
        %v6040 = vadd.f32 %v5655, %v6003
        %v6041 = vadd.f32 %v5658, %v6005
        %v6042 = vadd.f32 %v5663, %v6007
        %v6043 = vadd.f32 %v5666, %v6009
        %v6044 = vadd.f32 %v5671, %v6011
        %v6045 = vadd.f32 %v5674, %v6013
        %v6046 = vtanh.pop %v6030
        %v6047 = vtanh.pop %v6031
        %v6048 = vtanh.pop %v6032
        %v6049 = vtanh.pop %v6033
        %v6050 = vtanh.pop %v6034
        %v6051 = vtanh.pop %v6035
        %v6052 = vtanh.pop %v6036
        %v6053 = vtanh.pop %v6037
        %v6054 = vtanh.pop %v6038
        %v6055 = vtanh.pop %v6039
        %v6056 = vtanh.pop %v6040
        %v6057 = vtanh.pop %v6041
        %v6058 = vtanh.pop %v6042
        %v6059 = vtanh.pop %v6043
        %v6060 = vtanh.pop %v6044
        %v6061 = vtanh.pop %v6045
        %v6062 = vsub.f32 1.0, %v5855
        %v6063 = vsub.f32 1.0, %v5857
        %v6064 = vsub.f32 1.0, %v5859
        %v6065 = vsub.f32 1.0, %v5861
        %v6066 = vsub.f32 1.0, %v5863
        %v6067 = vsub.f32 1.0, %v5865
        %v6068 = vsub.f32 1.0, %v5867
        %v6069 = vsub.f32 1.0, %v5869
        %v6070 = vsub.f32 1.0, %v5871
        %v6071 = vsub.f32 1.0, %v5873
        %v6072 = vsub.f32 1.0, %v5875
        %v6073 = vsub.f32 1.0, %v5877
        %v6074 = vsub.f32 1.0, %v5879
        %v6075 = vsub.f32 1.0, %v5881
        %v6076 = vsub.f32 1.0, %v5883
        %v6077 = vsub.f32 1.0, %v5885
        %6094 = vrot.lane.b32.xlu0 %v6046, 96
        %v6095 = vpop.permute.xlu0 %6094
        %6096 = vrot.lane.b32.xlu0 %v6047, 96
        %v6097 = vpop.permute.xlu0 %6096
        %6098 = vrot.lane.b32.xlu0 %v6048, 96
        %v6099 = vpop.permute.xlu0 %6098
        %6100 = vrot.lane.b32.xlu0 %v6049, 96
        %v6101 = vpop.permute.xlu0 %6100
        %6102 = vrot.lane.b32.xlu0 %v6050, 96
        %v6103 = vpop.permute.xlu0 %6102
        %6104 = vrot.lane.b32.xlu0 %v6051, 96
        %v6105 = vpop.permute.xlu0 %6104
        %6106 = vrot.lane.b32.xlu0 %v6052, 96
        %v6107 = vpop.permute.xlu0 %6106
        %6108 = vrot.lane.b32.xlu0 %v6053, 96
        %v6109 = vpop.permute.xlu0 %6108
        %6110 = vrot.lane.b32.xlu0 %v6054, 96
        %v6111 = vpop.permute.xlu0 %6110
        %6112 = vrot.lane.b32.xlu0 %v6055, 96
        %v6113 = vpop.permute.xlu0 %6112
        %6114 = vrot.lane.b32.xlu0 %v6056, 96
        %v6115 = vpop.permute.xlu0 %6114
        %6116 = vrot.lane.b32.xlu0 %v6057, 96
        %v6117 = vpop.permute.xlu0 %6116
        %6118 = vrot.lane.b32.xlu0 %v6058, 96
        %v6119 = vpop.permute.xlu0 %6118
        %6120 = vrot.lane.b32.xlu0 %v6059, 96
        %v6121 = vpop.permute.xlu0 %6120
        %6122 = vrot.lane.b32.xlu0 %v6060, 96
        %v6123 = vpop.permute.xlu0 %6122
        %6124 = vrot.lane.b32.xlu0 %v6061, 96
        %v6125 = vpop.permute.xlu0 %6124
        %v6142 = vmul.f32 %v6062, %v6095
        %v6143 = vmul.f32 %v6063, %v6097
        %v6144 = vmul.f32 %v6064, %v6099
        %v6145 = vmul.f32 %v6065, %v6101
        %v6146 = vmul.f32 %v6066, %v6103
        %v6147 = vmul.f32 %v6067, %v6105
        %v6148 = vmul.f32 %v6068, %v6107
        %v6149 = vmul.f32 %v6069, %v6109
        %v6150 = vmul.f32 %v6070, %v6111
        %v6151 = vmul.f32 %v6071, %v6113
        %v6152 = vmul.f32 %v6072, %v6115
        %v6153 = vmul.f32 %v6073, %v6117
        %v6154 = vmul.f32 %v6074, %v6119
        %v6155 = vmul.f32 %v6075, %v6121
        %v6156 = vmul.f32 %v6076, %v6123
        %v6157 = vmul.f32 %v6077, %v6125
        %6174 = vrot.lane.b32.xlu0 %v4883, 32
        %v6175 = vpop.permute.xlu0 %6174
        %6176 = vrot.lane.b32.xlu0 %v4884, 32
        %v6177 = vpop.permute.xlu0 %6176
        %6178 = vrot.lane.b32.xlu0 %v4885, 32
        %v6179 = vpop.permute.xlu0 %6178
        %6180 = vrot.lane.b32.xlu0 %v4886, 32
        %v6181 = vpop.permute.xlu0 %6180
        %6182 = vrot.lane.b32.xlu0 %v4887, 32
        %v6183 = vpop.permute.xlu0 %6182
        %6184 = vrot.lane.b32.xlu0 %v4888, 32
        %v6185 = vpop.permute.xlu0 %6184
        %6186 = vrot.lane.b32.xlu0 %v4889, 32
        %v6187 = vpop.permute.xlu0 %6186
        %6188 = vrot.lane.b32.xlu0 %v4890, 32
        %v6189 = vpop.permute.xlu0 %6188
        %6190 = vrot.lane.b32.xlu0 %v4891, 32
        %v6191 = vpop.permute.xlu0 %6190
        %6192 = vrot.lane.b32.xlu0 %v4892, 32
        %v6193 = vpop.permute.xlu0 %6192
        %6194 = vrot.lane.b32.xlu0 %v4893, 32
        %v6195 = vpop.permute.xlu0 %6194
        %6196 = vrot.lane.b32.xlu0 %v4894, 32
        %v6197 = vpop.permute.xlu0 %6196
        %6198 = vrot.lane.b32.xlu0 %v4895, 32
        %v6199 = vpop.permute.xlu0 %6198
        %6200 = vrot.lane.b32.xlu0 %v4896, 32
        %v6201 = vpop.permute.xlu0 %6200
        %6202 = vrot.lane.b32.xlu0 %v4897, 32
        %v6203 = vpop.permute.xlu0 %6202
        %6204 = vrot.lane.b32.xlu0 %v4898, 32
        %v6205 = vpop.permute.xlu0 %6204
        %v6222 = vmul.f32 %v5855, %v6175
        %v6223 = vmul.f32 %v5857, %v6177
        %v6224 = vmul.f32 %v5859, %v6179
        %v6225 = vmul.f32 %v5861, %v6181
        %v6226 = vmul.f32 %v5863, %v6183
        %v6227 = vmul.f32 %v5865, %v6185
        %v6228 = vmul.f32 %v5867, %v6187
        %v6229 = vmul.f32 %v5869, %v6189
        %v6230 = vmul.f32 %v5871, %v6191
        %v6231 = vmul.f32 %v5873, %v6193
        %v6232 = vmul.f32 %v5875, %v6195
        %v6233 = vmul.f32 %v5877, %v6197
        %v6234 = vmul.f32 %v5879, %v6199
        %v6235 = vmul.f32 %v5881, %v6201
        %v6236 = vmul.f32 %v5883, %v6203
        %v6237 = vmul.f32 %v5885, %v6205
        %v6238 = vadd.f32 %v6142, %v6222
        %v6239 = vadd.f32 %v6143, %v6223
        %v6240 = vadd.f32 %v6144, %v6224
        %v6241 = vadd.f32 %v6145, %v6225
        %v6242 = vadd.f32 %v6146, %v6226
        %v6243 = vadd.f32 %v6147, %v6227
        %v6244 = vadd.f32 %v6148, %v6228
        %v6245 = vadd.f32 %v6149, %v6229
        %v6246 = vadd.f32 %v6150, %v6230
        %v6247 = vadd.f32 %v6151, %v6231
        %v6248 = vadd.f32 %v6152, %v6232
        %v6249 = vadd.f32 %v6153, %v6233
        %v6250 = vadd.f32 %v6154, %v6234
        %v6251 = vadd.f32 %v6155, %v6235
        %v6252 = vadd.f32 %v6156, %v6236
        %v6253 = vadd.f32 %v6157, %v6237
        %6270 = vrot.lane.b32.xlu0 %v6238, 96
        %v6271 = vpop.permute.xlu0 %6270
        %6272 = vrot.lane.b32.xlu0 %v6239, 96
        %v6273 = vpop.permute.xlu0 %6272
        %6274 = vrot.lane.b32.xlu0 %v6240, 96
        %v6275 = vpop.permute.xlu0 %6274
        %6276 = vrot.lane.b32.xlu0 %v6241, 96
        %v6277 = vpop.permute.xlu0 %6276
        %6278 = vrot.lane.b32.xlu0 %v6242, 96
        %v6279 = vpop.permute.xlu0 %6278
        %6280 = vrot.lane.b32.xlu0 %v6243, 96
        %v6281 = vpop.permute.xlu0 %6280
        %6282 = vrot.lane.b32.xlu0 %v6244, 96
        %v6283 = vpop.permute.xlu0 %6282
        %6284 = vrot.lane.b32.xlu0 %v6245, 96
        %v6285 = vpop.permute.xlu0 %6284
        %6286 = vrot.lane.b32.xlu0 %v6246, 96
        %v6287 = vpop.permute.xlu0 %6286
        %6288 = vrot.lane.b32.xlu0 %v6247, 96
        %v6289 = vpop.permute.xlu0 %6288
        %6290 = vrot.lane.b32.xlu0 %v6248, 96
        %v6291 = vpop.permute.xlu0 %6290
        %6292 = vrot.lane.b32.xlu0 %v6249, 96
        %v6293 = vpop.permute.xlu0 %6292
        %6294 = vrot.lane.b32.xlu0 %v6250, 96
        %v6295 = vpop.permute.xlu0 %6294
        %6296 = vrot.lane.b32.xlu0 %v6251, 96
        %v6297 = vpop.permute.xlu0 %6296
        %6298 = vrot.lane.b32.xlu0 %v6252, 96
        %v6299 = vpop.permute.xlu0 %6298
        %6300 = vrot.lane.b32.xlu0 %v6253, 96
        %v6301 = vpop.permute.xlu0 %6300
        %v6318 = vsel %vm2012, %v6271, 0.0
        %v6319 = vsel %vm2012, %v6273, 0.0
        %v6320 = vsel %vm2012, %v6275, 0.0
        %v6321 = vsel %vm2012, %v6277, 0.0
        %v6322 = vsel %vm2012, %v6279, 0.0
        %v6323 = vsel %vm2012, %v6281, 0.0
        %v6324 = vsel %vm2012, %v6283, 0.0
        %v6325 = vsel %vm2012, %v6285, 0.0
        %v6326 = vsel %vm2012, %v6287, 0.0
        %v6327 = vsel %vm2012, %v6289, 0.0
        %v6328 = vsel %vm2012, %v6291, 0.0
        %v6329 = vsel %vm2012, %v6293, 0.0
        %v6330 = vsel %vm2012, %v6295, 0.0
        %v6331 = vsel %vm2012, %v6297, 0.0
        %v6332 = vsel %vm2012, %v6299, 0.0
        %v6333 = vsel %vm2012, %v6301, 0.0
        %v6334 = vld [vmem:[%s6] sm:$0x1]
        %v6336 = vlaneseq
        %v6337 = vshrl.u32 %v6336, 7
        %v6338 = vsub.s32 0, %v6337
        %v6339 = vrot.slane %v6334, %v6338
        %v6341 = vmul.f32 %v6318, %v6339
        %v6342 = vmul.f32 %v6319, %v6339
        %v6343 = vmul.f32 %v6320, %v6339
        %v6344 = vmul.f32 %v6321, %v6339
        %v6345 = vmul.f32 %v6322, %v6339
        %v6346 = vmul.f32 %v6323, %v6339
        %v6347 = vmul.f32 %v6324, %v6339
        %v6348 = vmul.f32 %v6325, %v6339
        %v6349 = vmul.f32 %v6326, %v6339
        %v6350 = vmul.f32 %v6327, %v6339
        %v6351 = vmul.f32 %v6328, %v6339
        %v6352 = vmul.f32 %v6329, %v6339
        %v6353 = vmul.f32 %v6330, %v6339
        %v6354 = vmul.f32 %v6331, %v6339
        %v6355 = vmul.f32 %v6332, %v6339
        %v6356 = vmul.f32 %v6333, %v6339
        %6357 = vadd.xlane.f32.xlu0 %v6341
        %v6358 = vpop.xlane.xlu0 %6357
        %6359 = vadd.xlane.f32.xlu0 %v6342
        %v6360 = vpop.xlane.xlu0 %6359
        %6361 = vadd.xlane.f32.xlu0 %v6343
        %v6362 = vpop.xlane.xlu0 %6361
        %6363 = vadd.xlane.f32.xlu0 %v6344
        %v6364 = vpop.xlane.xlu0 %6363
        %6365 = vadd.xlane.f32.xlu0 %v6345
        %v6366 = vpop.xlane.xlu0 %6365
        %6367 = vadd.xlane.f32.xlu0 %v6346
        %v6368 = vpop.xlane.xlu0 %6367
        %6369 = vadd.xlane.f32.xlu0 %v6347
        %v6370 = vpop.xlane.xlu0 %6369
        %6371 = vadd.xlane.f32.xlu0 %v6348
        %v6372 = vpop.xlane.xlu0 %6371
        %6373 = vadd.xlane.f32.xlu0 %v6349
        %v6374 = vpop.xlane.xlu0 %6373
        %6375 = vadd.xlane.f32.xlu0 %v6350
        %v6376 = vpop.xlane.xlu0 %6375
        %6377 = vadd.xlane.f32.xlu0 %v6351
        %v6378 = vpop.xlane.xlu0 %6377
        %6379 = vadd.xlane.f32.xlu0 %v6352
        %v6380 = vpop.xlane.xlu0 %6379
        %6381 = vadd.xlane.f32.xlu0 %v6353
        %v6382 = vpop.xlane.xlu0 %6381
        %6383 = vadd.xlane.f32.xlu0 %v6354
        %v6384 = vpop.xlane.xlu0 %6383
        %6385 = vadd.xlane.f32.xlu0 %v6355
        %v6386 = vpop.xlane.xlu0 %6385
        %6387 = vadd.xlane.f32.xlu0 %v6356
        %v6388 = vpop.xlane.xlu0 %6387
        %v6389 = vld [vmem:[#allocation2] sm:$0x1]
        %v6391 = vlaneseq
        %v6392 = vshrl.u32 %v6391, 7
        %v6393 = vsub.s32 0, %v6392
        %v6394 = vrot.slane %v6389, %v6393
        %v6396 = vadd.f32 %v6358, %v6394
        %v6397 = vadd.f32 %v6360, %v6394
        %v6398 = vadd.f32 %v6362, %v6394
        %v6399 = vadd.f32 %v6364, %v6394
        %v6400 = vadd.f32 %v6366, %v6394
        %v6401 = vadd.f32 %v6368, %v6394
        %v6402 = vadd.f32 %v6370, %v6394
        %v6403 = vadd.f32 %v6372, %v6394
        %v6404 = vadd.f32 %v6374, %v6394
        %v6405 = vadd.f32 %v6376, %v6394
        %v6406 = vadd.f32 %v6378, %v6394
        %v6407 = vadd.f32 %v6380, %v6394
        %v6408 = vadd.f32 %v6382, %v6394
        %v6409 = vadd.f32 %v6384, %v6394
        %v6410 = vadd.f32 %v6386, %v6394
        %v6411 = vadd.f32 %v6388, %v6394
        %v6412 = vxor.u32 %v6396, 2147483648
        %v6413 = vxor.u32 %v6397, 2147483648
        %v6414 = vxor.u32 %v6398, 2147483648
        %v6415 = vxor.u32 %v6399, 2147483648
        %v6416 = vxor.u32 %v6400, 2147483648
        %v6417 = vxor.u32 %v6401, 2147483648
        %v6418 = vxor.u32 %v6402, 2147483648
        %v6419 = vxor.u32 %v6403, 2147483648
        %v6420 = vxor.u32 %v6404, 2147483648
        %v6421 = vxor.u32 %v6405, 2147483648
        %v6422 = vxor.u32 %v6406, 2147483648
        %v6423 = vxor.u32 %v6407, 2147483648
        %v6424 = vxor.u32 %v6408, 2147483648
        %v6425 = vxor.u32 %v6409, 2147483648
        %v6426 = vxor.u32 %v6410, 2147483648
        %v6427 = vxor.u32 %v6411, 2147483648
        %v6428 = vmul.f32 %v6412, 1.442695
        %v6429 = vpow.pop %v6428
        %v6430 = vmul.f32 %v6413, 1.442695
        %v6431 = vpow.pop %v6430
        %v6432 = vmul.f32 %v6414, 1.442695
        %v6433 = vpow.pop %v6432
        %v6434 = vmul.f32 %v6415, 1.442695
        %v6435 = vpow.pop %v6434
        %v6436 = vmul.f32 %v6416, 1.442695
        %v6437 = vpow.pop %v6436
        %v6438 = vmul.f32 %v6417, 1.442695
        %v6439 = vpow.pop %v6438
        %v6440 = vmul.f32 %v6418, 1.442695
        %v6441 = vpow.pop %v6440
        %v6442 = vmul.f32 %v6419, 1.442695
        %v6443 = vpow.pop %v6442
        %v6444 = vmul.f32 %v6420, 1.442695
        %v6445 = vpow.pop %v6444
        %v6446 = vmul.f32 %v6421, 1.442695
        %v6447 = vpow.pop %v6446
        %v6448 = vmul.f32 %v6422, 1.442695
        %v6449 = vpow.pop %v6448
        %v6450 = vmul.f32 %v6423, 1.442695
        %v6451 = vpow.pop %v6450
        %v6452 = vmul.f32 %v6424, 1.442695
        %v6453 = vpow.pop %v6452
        %v6454 = vmul.f32 %v6425, 1.442695
        %v6455 = vpow.pop %v6454
        %v6456 = vmul.f32 %v6426, 1.442695
        %v6457 = vpow.pop %v6456
        %v6458 = vmul.f32 %v6427, 1.442695
        %v6459 = vpow.pop %v6458
        %v6460 = vadd.f32 %v6429, 1.0
        %v6461 = vadd.f32 %v6431, 1.0
        %v6462 = vadd.f32 %v6433, 1.0
        %v6463 = vadd.f32 %v6435, 1.0
        %v6464 = vadd.f32 %v6437, 1.0
        %v6465 = vadd.f32 %v6439, 1.0
        %v6466 = vadd.f32 %v6441, 1.0
        %v6467 = vadd.f32 %v6443, 1.0
        %v6468 = vadd.f32 %v6445, 1.0
        %v6469 = vadd.f32 %v6447, 1.0
        %v6470 = vadd.f32 %v6449, 1.0
        %v6471 = vadd.f32 %v6451, 1.0
        %v6472 = vadd.f32 %v6453, 1.0
        %v6473 = vadd.f32 %v6455, 1.0
        %v6474 = vadd.f32 %v6457, 1.0
        %v6475 = vadd.f32 %v6459, 1.0
        %v6476 = vrcp.pop %v6460
        %v6477 = vmul.f32 1.0, %v6476
        %v6478 = vrcp.pop %v6461
        %v6479 = vmul.f32 1.0, %v6478
        %v6480 = vrcp.pop %v6462
        %v6481 = vmul.f32 1.0, %v6480
        %v6482 = vrcp.pop %v6463
        %v6483 = vmul.f32 1.0, %v6482
        %v6484 = vrcp.pop %v6464
        %v6485 = vmul.f32 1.0, %v6484
        %v6486 = vrcp.pop %v6465
        %v6487 = vmul.f32 1.0, %v6486
        %v6488 = vrcp.pop %v6466
        %v6489 = vmul.f32 1.0, %v6488
        %v6490 = vrcp.pop %v6467
        %v6491 = vmul.f32 1.0, %v6490
        %v6492 = vrcp.pop %v6468
        %v6493 = vmul.f32 1.0, %v6492
        %v6494 = vrcp.pop %v6469
        %v6495 = vmul.f32 1.0, %v6494
        %v6496 = vrcp.pop %v6470
        %v6497 = vmul.f32 1.0, %v6496
        %v6498 = vrcp.pop %v6471
        %v6499 = vmul.f32 1.0, %v6498
        %v6500 = vrcp.pop %v6472
        %v6501 = vmul.f32 1.0, %v6500
        %v6502 = vrcp.pop %v6473
        %v6503 = vmul.f32 1.0, %v6502
        %v6504 = vrcp.pop %v6474
        %v6505 = vmul.f32 1.0, %v6504
        %v6506 = vrcp.pop %v6475
        %v6507 = vmul.f32 1.0, %v6506
        %v6508 = vmul.f32 %v6477, 1.442695
        %v6509 = vpow.pop %v6508
        %v6510 = vmul.f32 %v6479, 1.442695
        %v6511 = vpow.pop %v6510
        %v6512 = vmul.f32 %v6481, 1.442695
        %v6513 = vpow.pop %v6512
        %v6514 = vmul.f32 %v6483, 1.442695
        %v6515 = vpow.pop %v6514
        %v6516 = vmul.f32 %v6485, 1.442695
        %v6517 = vpow.pop %v6516
        %v6518 = vmul.f32 %v6487, 1.442695
        %v6519 = vpow.pop %v6518
        %v6520 = vmul.f32 %v6489, 1.442695
        %v6521 = vpow.pop %v6520
        %v6522 = vmul.f32 %v6491, 1.442695
        %v6523 = vpow.pop %v6522
        %v6524 = vmul.f32 %v6493, 1.442695
        %v6525 = vpow.pop %v6524
        %v6526 = vmul.f32 %v6495, 1.442695
        %v6527 = vpow.pop %v6526
        %v6528 = vmul.f32 %v6497, 1.442695
        %v6529 = vpow.pop %v6528
        %v6530 = vmul.f32 %v6499, 1.442695
        %v6531 = vpow.pop %v6530
        %v6532 = vmul.f32 %v6501, 1.442695
        %v6533 = vpow.pop %v6532
        %v6534 = vmul.f32 %v6503, 1.442695
        %v6535 = vpow.pop %v6534
        %v6536 = vmul.f32 %v6505, 1.442695
        %v6537 = vpow.pop %v6536
        %v6538 = vmul.f32 %v6507, 1.442695
        %v6539 = vpow.pop %v6538
        %v6540 = vld [vmem:[%s432] sm:$0xff]
        %v6541 = vld [vmem:[%s432 + $0x8] sm:$0xff]
        %v6542 = vld [vmem:[%s432 + $0x10] sm:$0xff]
        %v6543 = vld [vmem:[%s432 + $0x18] sm:$0xff]
        %v6544 = vld [vmem:[%s432 + $0x20] sm:$0xff]
        %v6545 = vld [vmem:[%s432 + $0x28] sm:$0xff]
        %v6546 = vld [vmem:[%s432 + $0x30] sm:$0xff]
        %v6547 = vld [vmem:[%s432 + $0x38] sm:$0xff]
        %v6548 = vld [vmem:[%s432 + $0x40] sm:$0xff]
        %v6549 = vld [vmem:[%s432 + $0x48] sm:$0xff]
        %v6550 = vld [vmem:[%s432 + $0x50] sm:$0xff]
        %v6551 = vld [vmem:[%s432 + $0x58] sm:$0xff]
        %v6552 = vld [vmem:[%s432 + $0x60] sm:$0xff]
        %v6553 = vld [vmem:[%s432 + $0x68] sm:$0xff]
        %v6554 = vld [vmem:[%s432 + $0x70] sm:$0xff]
        %v6555 = vld [vmem:[%s432 + $0x78] sm:$0xff]
        %v6556 = vmul.f32 %v6509, %v6540
        %v6557 = vmul.f32 %v6511, %v6541
        %v6558 = vmul.f32 %v6513, %v6542
        %v6559 = vmul.f32 %v6515, %v6543
        %v6560 = vmul.f32 %v6517, %v6544
        %v6561 = vmul.f32 %v6519, %v6545
        %v6562 = vmul.f32 %v6521, %v6546
        %v6563 = vmul.f32 %v6523, %v6547
        %v6564 = vmul.f32 %v6525, %v6548
        %v6565 = vmul.f32 %v6527, %v6549
        %v6566 = vmul.f32 %v6529, %v6550
        %v6567 = vmul.f32 %v6531, %v6551
        %v6568 = vmul.f32 %v6533, %v6552
        %v6569 = vmul.f32 %v6535, %v6553
        %v6570 = vmul.f32 %v6537, %v6554
        %v6571 = vmul.f32 %v6539, %v6555
        %vm6572 = vcmask 7168
        %v6573 = vsel %vm6572, %v6556, 0.0
        %v6574 = vsel %vm6572, %v6557, 0.0
        %v6575 = vadd.f32 %v6573, %v6574
        %v6576 = vrot.slane %v6575, 4
        %v6577 = vadd.f32 %v6575, %v6576
        %v6578 = vrot.slane %v6577, 2
        %v6579 = vadd.f32 %v6577, %v6578
        %v6580 = vrot.slane %v6579, 1
        %v6581 = vadd.f32 %v6579, %v6580
        %v6582 = vsel %vm6572, %v6558, 0.0
        %v6583 = vsel %vm6572, %v6559, 0.0
        %v6584 = vadd.f32 %v6582, %v6583
        %v6585 = vrot.slane %v6584, 4
        %v6586 = vadd.f32 %v6584, %v6585
        %v6587 = vrot.slane %v6586, 2
        %v6588 = vadd.f32 %v6586, %v6587
        %v6589 = vrot.slane %v6588, 1
        %v6590 = vadd.f32 %v6588, %v6589
        %v6591 = vsel %vm6572, %v6560, 0.0
        %v6592 = vsel %vm6572, %v6561, 0.0
        %v6593 = vadd.f32 %v6591, %v6592
        %v6594 = vrot.slane %v6593, 4
        %v6595 = vadd.f32 %v6593, %v6594
        %v6596 = vrot.slane %v6595, 2
        %v6597 = vadd.f32 %v6595, %v6596
        %v6598 = vrot.slane %v6597, 1
        %v6599 = vadd.f32 %v6597, %v6598
        %v6600 = vsel %vm6572, %v6562, 0.0
        %v6601 = vsel %vm6572, %v6563, 0.0
        %v6602 = vadd.f32 %v6600, %v6601
        %v6603 = vrot.slane %v6602, 4
        %v6604 = vadd.f32 %v6602, %v6603
        %v6605 = vrot.slane %v6604, 2
        %v6606 = vadd.f32 %v6604, %v6605
        %v6607 = vrot.slane %v6606, 1
        %v6608 = vadd.f32 %v6606, %v6607
        %v6609 = vsel %vm6572, %v6564, 0.0
        %v6610 = vsel %vm6572, %v6565, 0.0
        %v6611 = vadd.f32 %v6609, %v6610
        %v6612 = vrot.slane %v6611, 4
        %v6613 = vadd.f32 %v6611, %v6612
        %v6614 = vrot.slane %v6613, 2
        %v6615 = vadd.f32 %v6613, %v6614
        %v6616 = vrot.slane %v6615, 1
        %v6617 = vadd.f32 %v6615, %v6616
        %v6618 = vsel %vm6572, %v6566, 0.0
        %v6619 = vsel %vm6572, %v6567, 0.0
        %v6620 = vadd.f32 %v6618, %v6619
        %v6621 = vrot.slane %v6620, 4
        %v6622 = vadd.f32 %v6620, %v6621
        %v6623 = vrot.slane %v6622, 2
        %v6624 = vadd.f32 %v6622, %v6623
        %v6625 = vrot.slane %v6624, 1
        %v6626 = vadd.f32 %v6624, %v6625
        %v6627 = vsel %vm6572, %v6568, 0.0
        %v6628 = vsel %vm6572, %v6569, 0.0
        %v6629 = vadd.f32 %v6627, %v6628
        %v6630 = vrot.slane %v6629, 4
        %v6631 = vadd.f32 %v6629, %v6630
        %v6632 = vrot.slane %v6631, 2
        %v6633 = vadd.f32 %v6631, %v6632
        %v6634 = vrot.slane %v6633, 1
        %v6635 = vadd.f32 %v6633, %v6634
        %v6636 = vsel %vm6572, %v6570, 0.0
        %v6637 = vsel %vm6572, %v6571, 0.0
        %v6638 = vadd.f32 %v6636, %v6637
        %v6639 = vrot.slane %v6638, 4
        %v6640 = vadd.f32 %v6638, %v6639
        %v6641 = vrot.slane %v6640, 2
        %v6642 = vadd.f32 %v6640, %v6641
        %v6643 = vrot.slane %v6642, 1
        %v6644 = vadd.f32 %v6642, %v6643
        %v6645 = vmax.f32 %v6581, 1e-06
        %v6646 = vmax.f32 %v6590, 1e-06
        %v6647 = vmax.f32 %v6599, 1e-06
        %v6648 = vmax.f32 %v6608, 1e-06
        %v6649 = vmax.f32 %v6617, 1e-06
        %v6650 = vmax.f32 %v6626, 1e-06
        %v6651 = vmax.f32 %v6635, 1e-06
        %v6652 = vmax.f32 %v6644, 1e-06
        %v6653 = vrcp.pop %v6645
        %v6654 = vrcp.pop %v6646
        %v6655 = vrcp.pop %v6647
        %v6656 = vrcp.pop %v6648
        %v6657 = vrcp.pop %v6649
        %v6658 = vrcp.pop %v6650
        %v6659 = vrcp.pop %v6651
        %v6660 = vrcp.pop %v6652
        %v6661 = vmul.f32 %v6556, %v6653
        %v6662 = vmul.f32 %v6557, %v6653
        %v6663 = vmul.f32 %v6558, %v6654
        %v6664 = vmul.f32 %v6559, %v6654
        %v6665 = vmul.f32 %v6560, %v6655
        %v6666 = vmul.f32 %v6561, %v6655
        %v6667 = vmul.f32 %v6562, %v6656
        %v6668 = vmul.f32 %v6563, %v6656
        %v6669 = vmul.f32 %v6564, %v6657
        %v6670 = vmul.f32 %v6565, %v6657
        %v6671 = vmul.f32 %v6566, %v6658
        %v6672 = vmul.f32 %v6567, %v6658
        %v6673 = vmul.f32 %v6568, %v6659
        %v6674 = vmul.f32 %v6569, %v6659
        %v6675 = vmul.f32 %v6570, %v6660
        %v6676 = vmul.f32 %v6571, %v6660
        %6678 = vset.pattern.permute.xlu0 0
        %6679 = vperm.xlu0 %6678, %v6661
        %v6680 = vpop.permute.xlu0 %6679
        %6683 = vset.pattern.permute.xlu0 0
        %6684 = vperm.xlu0 %6683, %v6662
        %v6685 = vpop.permute.xlu0 %6684
        %6688 = vset.pattern.permute.xlu0 0
        %6689 = vperm.xlu0 %6688, %v6663
        %v6690 = vpop.permute.xlu0 %6689
        %6693 = vset.pattern.permute.xlu0 0
        %6694 = vperm.xlu0 %6693, %v6664
        %v6695 = vpop.permute.xlu0 %6694
        %6698 = vset.pattern.permute.xlu0 0
        %6699 = vperm.xlu0 %6698, %v6665
        %v6700 = vpop.permute.xlu0 %6699
        %6703 = vset.pattern.permute.xlu0 0
        %6704 = vperm.xlu0 %6703, %v6666
        %v6705 = vpop.permute.xlu0 %6704
        %6708 = vset.pattern.permute.xlu0 0
        %6709 = vperm.xlu0 %6708, %v6667
        %v6710 = vpop.permute.xlu0 %6709
        %6713 = vset.pattern.permute.xlu0 0
        %6714 = vperm.xlu0 %6713, %v6668
        %v6715 = vpop.permute.xlu0 %6714
        %6718 = vset.pattern.permute.xlu0 0
        %6719 = vperm.xlu0 %6718, %v6669
        %v6720 = vpop.permute.xlu0 %6719
        %6723 = vset.pattern.permute.xlu0 0
        %6724 = vperm.xlu0 %6723, %v6670
        %v6725 = vpop.permute.xlu0 %6724
        %6728 = vset.pattern.permute.xlu0 0
        %6729 = vperm.xlu0 %6728, %v6671
        %v6730 = vpop.permute.xlu0 %6729
        %6733 = vset.pattern.permute.xlu0 0
        %6734 = vperm.xlu0 %6733, %v6672
        %v6735 = vpop.permute.xlu0 %6734
        %6738 = vset.pattern.permute.xlu0 0
        %6739 = vperm.xlu0 %6738, %v6673
        %v6740 = vpop.permute.xlu0 %6739
        %6743 = vset.pattern.permute.xlu0 0
        %6744 = vperm.xlu0 %6743, %v6674
        %v6745 = vpop.permute.xlu0 %6744
        %6748 = vset.pattern.permute.xlu0 0
        %6749 = vperm.xlu0 %6748, %v6675
        %v6750 = vpop.permute.xlu0 %6749
        %6753 = vset.pattern.permute.xlu0 0
        %6754 = vperm.xlu0 %6753, %v6676
        %v6755 = vpop.permute.xlu0 %6754
        %v6757 = vmul.f32 %v6680, %v6318
        %v6758 = vmul.f32 %v6685, %v6319
        %v6759 = vmul.f32 %v6690, %v6320
        %v6760 = vmul.f32 %v6695, %v6321
        %v6761 = vmul.f32 %v6700, %v6322
        %v6762 = vmul.f32 %v6705, %v6323
        %v6763 = vmul.f32 %v6710, %v6324
        %v6764 = vmul.f32 %v6715, %v6325
        %v6765 = vmul.f32 %v6720, %v6326
        %v6766 = vmul.f32 %v6725, %v6327
        %v6767 = vmul.f32 %v6730, %v6328
        %v6768 = vmul.f32 %v6735, %v6329
        %v6769 = vmul.f32 %v6740, %v6330
        %v6770 = vmul.f32 %v6745, %v6331
        %v6771 = vmul.f32 %v6750, %v6332
        %v6772 = vmul.f32 %v6755, %v6333
        %v6773 = vadd.f32 %v6757, %v6758
        %v6774 = vrot.slane %v6773, 4
        %v6775 = vadd.f32 %v6773, %v6774
        %v6776 = vrot.slane %v6775, 2
        %v6777 = vadd.f32 %v6775, %v6776
        %v6778 = vrot.slane %v6777, 1
        %v6779 = vadd.f32 %v6777, %v6778
        %v6780 = vadd.f32 %v6759, %v6760
        %v6781 = vrot.slane %v6780, 4
        %v6782 = vadd.f32 %v6780, %v6781
        %v6783 = vrot.slane %v6782, 2
        %v6784 = vadd.f32 %v6782, %v6783
        %v6785 = vrot.slane %v6784, 1
        %v6786 = vadd.f32 %v6784, %v6785
        %v6787 = vadd.f32 %v6761, %v6762
        %v6788 = vrot.slane %v6787, 4
        %v6789 = vadd.f32 %v6787, %v6788
        %v6790 = vrot.slane %v6789, 2
        %v6791 = vadd.f32 %v6789, %v6790
        %v6792 = vrot.slane %v6791, 1
        %v6793 = vadd.f32 %v6791, %v6792
        %v6794 = vadd.f32 %v6763, %v6764
        %v6795 = vrot.slane %v6794, 4
        %v6796 = vadd.f32 %v6794, %v6795
        %v6797 = vrot.slane %v6796, 2
        %v6798 = vadd.f32 %v6796, %v6797
        %v6799 = vrot.slane %v6798, 1
        %v6800 = vadd.f32 %v6798, %v6799
        %v6801 = vadd.f32 %v6765, %v6766
        %v6802 = vrot.slane %v6801, 4
        %v6803 = vadd.f32 %v6801, %v6802
        %v6804 = vrot.slane %v6803, 2
        %v6805 = vadd.f32 %v6803, %v6804
        %v6806 = vrot.slane %v6805, 1
        %v6807 = vadd.f32 %v6805, %v6806
        %v6808 = vadd.f32 %v6767, %v6768
        %v6809 = vrot.slane %v6808, 4
        %v6810 = vadd.f32 %v6808, %v6809
        %v6811 = vrot.slane %v6810, 2
        %v6812 = vadd.f32 %v6810, %v6811
        %v6813 = vrot.slane %v6812, 1
        %v6814 = vadd.f32 %v6812, %v6813
        %v6815 = vadd.f32 %v6769, %v6770
        %v6816 = vrot.slane %v6815, 4
        %v6817 = vadd.f32 %v6815, %v6816
        %v6818 = vrot.slane %v6817, 2
        %v6819 = vadd.f32 %v6817, %v6818
        %v6820 = vrot.slane %v6819, 1
        %v6821 = vadd.f32 %v6819, %v6820
        %v6822 = vadd.f32 %v6771, %v6772
        %v6823 = vrot.slane %v6822, 4
        %v6824 = vadd.f32 %v6822, %v6823
        %v6825 = vrot.slane %v6824, 2
        %v6826 = vadd.f32 %v6824, %v6825
        %v6827 = vrot.slane %v6826, 1
        %v6828 = vadd.f32 %v6826, %v6827
        %vm6837 = vcmask 1041409
        %v6838 = vsel %vm6837, %v6786, %v6779
        %vm6839 = vcmask 1042434
        %v6840 = vsel %vm6839, %v6793, %v6838
        %vm6841 = vcmask 1043459
        %v6842 = vsel %vm6841, %v6800, %v6840
        %vm6843 = vcmask 1044484
        %v6844 = vsel %vm6843, %v6807, %v6842
        %vm6845 = vcmask 1045509
        %v6846 = vsel %vm6845, %v6814, %v6844
        %vm6847 = vcmask 1046534
        %v6848 = vsel %vm6847, %v6821, %v6846
        %vm6849 = vcmask 1047559
        %v6850 = vsel %vm6849, %v6828, %v6848
        %6852 = vst [vmem:[%s418] sm:$0xff] %v6850
        %s6853 = sand.u32 %s241, 1
        %s6854 = scalar_lea.sflag [#allocation5], %s6853
        %s6855 = sand.u32 %s241, 1
        %s6856 = smul.addr %s6855, 8
        %s6857 = scalar_lea.vmem [#allocation9], %s6856
        // Predicated region
        $region69: #{tpu_custom_call.1} parent=55 // pred_check
          %p6858 = pneg %p251
        $region70: #{tpu_custom_call.1} parent=55 // pred_check_branch
          %6860 = sbr.rel (%p6858) target = $region72
        $region71: #{tpu_custom_call.1} parent=55 // pred_region
          %s6862 = ssub.s32 128, 128
          %6863 = vsyncadd %s6854, %s6862
          %s6864 = smul.addr %s29, 128
          %s6865 = scalar_lea.hbm %s9, %s6864
          %s6867 = sshll.u32 %s6857, 4
          %s6868 = int_to_ptr.vmem [resolvable:$true] %s6867
          %6870 = dma.vmem_to_hbm [thread:$0]  %s6868, 128, %s6865, %s6854
        $region72: #{tpu_custom_call.1} parent=55 // pred_fallthru
          _
      $region56: #{tpu_custom_call.1} parent=5 // pred_fallthru
        _
      %p6871 = scmp.le.s32.totalorder 2, %s24
      // Predicated region
      $region73: #{tpu_custom_call.1} parent=5 // pred_check
        %p6872 = pneg %p6871
      $region74: #{tpu_custom_call.1} parent=5 // pred_check_branch
        %6874 = sbr.rel (%p6872) target = $region76
      $region75: #{tpu_custom_call.1} parent=5 // pred_region
        %s6875 = ssub.s32 %s24, 2
        // Predicated region
        $region77: #{tpu_custom_call.1} parent=75 // pred_check
          %p6876 = pneg %p257
        $region78: #{tpu_custom_call.1} parent=75 // pred_check_branch
          %6878 = sbr.rel (%p6876) target = $region80
        $region79: #{tpu_custom_call.1} parent=75 // pred_region
          %s6879 = sand.u32 %s242, 1
          %s6880 = scalar_lea.sflag [#allocation5], %s6879
          %s6881 = sand.u32 %s242, 1
          %s6882 = smul.addr %s6881, 8
          %s6883 = scalar_lea.vmem [#allocation9], %s6882
          %6884 = dma.done %s6880, 128
        $region80: #{tpu_custom_call.1} parent=75 // pred_fallthru
          _
      $region76: #{tpu_custom_call.1} parent=5 // pred_fallthru
        _
    $region6: #{tpu_custom_call.1} parent=1 // loop_footer
      %s28 = sadd.s32 1, %s24
    $region7: #{tpu_custom_call.1} parent=1 // loop_footer_branch
      %23 = sbr.rel target = $region3
    $region8: #{tpu_custom_call.1} parent=1 // loop_exit
      _
    %6885 = vsyncpa [#allocation4], 1
    %s6886 = scalar_lea.sflag [#allocation4], 1
    %6887 = vsyncpa %s6886, 1
    %6888 = vsyncpa [#allocation7], 1
    %6889 = vsyncpa [#allocation5], 1
    %s6890 = scalar_lea.sflag [#allocation5], 1
    %6891 = vsyncpa %s6890, 1

</llo_original>
